<compile_context>
chip_gen: v6e
topology: v6e:2x2x1
jax: 0.10.0
libtpu: 0.0.40
codegen_flags: <defaults>
</compile_context>

<pallas_src>
import functools

import jax
import jax.numpy as jnp
from jax import lax
from jax.experimental import pallas as pl
from jax.experimental.pallas import tpu as pltpu

ICA = 5           # ICA_CHANNELS
FILT = 101        # FILTERING_SIZE
ENV = 51          # ENVELOPE_SIZE
DECIM = 20        # fin_layer_decim
UNMIX_LEN = 256   # the detector runs on the last 256 input samples
EPS = 1e-5        # BatchNorm1d eps


# ----------------------------------------------------------------------------
# Wrapper-side (XLA) builders for the weight-derived MXU matrices
# ----------------------------------------------------------------------------
def _toeplitz_bank(w, l_in):
    """w: (n, K) -> (n, l_in, l_out) with M[c, t + k, t] = w[c, k] (valid cross-corr)."""
    _, k_size = w.shape
    l_out = l_in - k_size + 1
    r = jnp.arange(l_in)[:, None]
    t = jnp.arange(l_out)[None, :]
    diff = r - t
    valid = (diff >= 0) & (diff < k_size)
    idx = jnp.clip(diff, 0, k_size - 1)
    return jnp.where(valid[None, :, :], w[:, idx], 0.0).astype(jnp.float32)


def _tap_toeplitz_bank(w, l_in, start, stride, n_taps):
    """w: (n, K) -> (n, l_in, n_taps) with M[c, start + stride*j + k, j] = w[c, k]."""
    _, k_size = w.shape
    r = jnp.arange(l_in)[:, None]
    tap = start + stride * jnp.arange(n_taps)[None, :]
    diff = r - tap
    valid = (diff >= 0) & (diff < k_size)
    idx = jnp.clip(diff, 0, k_size - 1)
    return jnp.where(valid[None, :, :], w[:, idx], 0.0).astype(jnp.float32)


def _selection_matrix(n_in, n_out, start, stride):
    iv = jnp.arange(n_in)[:, None]
    ov = jnp.arange(n_out)[None, :]
    return (iv == start + stride * ov).astype(jnp.float32)


# ----------------------------------------------------------------------------
# In-kernel building blocks (pure jnp on VMEM/vreg-resident values)
# ----------------------------------------------------------------------------
def _tree_sum(terms):
    while len(terms) > 1:
        nxt = [terms[i] + terms[i + 1] for i in range(0, len(terms) - 1, 2)]
        if len(terms) % 2:
            nxt.append(terms[-1])
        terms = nxt
    return terms[0]


def _tree_max(terms):
    while len(terms) > 1:
        nxt = [jnp.maximum(terms[i], terms[i + 1]) for i in range(0, len(terms) - 1, 2)]
        if len(terms) % 2:
            nxt.append(terms[-1])
        terms = nxt
    return terms[0]


def _bn_channel_major(x, n_chan, rows_per_ch):
    """BatchNorm1d(affine=False), TRAIN mode (biased var, eps=1e-5) on a
    (n_chan*rows_per_ch, L) slab whose rows are ordered (channel, batch)."""
    n = rows_per_ch * x.shape[1]
    out = []
    for i in range(n_chan):
        blk = x[i * rows_per_ch:(i + 1) * rows_per_ch, :]
        s = jnp.sum(jnp.sum(blk, axis=1, keepdims=True), axis=0, keepdims=True)
        d = blk - s * (1.0 / n)
        v = jnp.sum(jnp.sum(d * d, axis=1, keepdims=True), axis=0, keepdims=True) * (1.0 / n)
        out.append(d * lax.rsqrt(v + EPS))
    return jnp.concatenate(out, axis=0)


def _inv_small(m):
    """Gauss-Jordan inverse of a small (n, n) tile with partial (row-max) pivoting.
    # TODO(synk): qualitatively matches torch.linalg.inv (pivoted LU) stability,
    # but not bit-exactly (different elimination rounding order)."""
    n = m.shape[0]
    rows = lax.broadcasted_iota(jnp.int32, (n, n), 0)
    cols = lax.broadcasted_iota(jnp.int32, (n, n), 1)
    riota = lax.broadcasted_iota(jnp.int32, (n, 1), 0)
    a = m.astype(jnp.float32)
    inv = jnp.where(rows == cols, 1.0, 0.0).astype(jnp.float32)
    for k in range(n):
        # pick the row >= k with the largest |a[:, k]| (ties -> lowest row index)
        colv = jnp.where(riota >= k, jnp.abs(a[:, k:k + 1]), -1.0)
        scored = colv * (1.0 - 1e-6 * riota.astype(jnp.float32))
        onehot = (scored >= jnp.max(scored, axis=0, keepdims=True)).astype(jnp.float32)
        piv_a = jnp.sum(onehot * a, axis=0, keepdims=True)          # (1, n)
        piv_i = jnp.sum(onehot * inv, axis=0, keepdims=True)
        is_k = riota == k
        is_p = onehot > 0.5
        a = jnp.where(is_k, piv_a, jnp.where(is_p, a[k:k + 1, :], a))
        inv = jnp.where(is_k, piv_i, jnp.where(is_p, inv[k:k + 1, :], inv))
        # eliminate column k (row k scaled so the pivot becomes 1)
        inv_p = 1.0 / a[k:k + 1, k:k + 1]
        factor = jnp.where(is_k, 1.0 - inv_p, a[:, k:k + 1] * inv_p)
        a = a - factor * a[k:k + 1, :]
        inv = inv - factor * inv[k:k + 1, :]
    return inv


# ----------------------------------------------------------------------------
# The fused forward kernel (single invocation, everything VMEM-resident)
# ----------------------------------------------------------------------------
def _simple_net_kernel(x_ref, t1_ref, b1_ref, t2f_ref, alin_ref, b1l_ref,
                       tf_ref, te_ref, be_ref, w2t_ref, b2_ref, o_ref,
                       *, batch, chans, length):
    B, C, T = batch, chans, length
    x = x_ref[...]                                              # (B*C, T)

    l1 = T - 64 + 1                                             # human_conv1 output length
    ls = l1 - 8 + 1                                             # stride-1 sliding-max length

    # ---------------- human branch: per-sample unmixing matrix ---------------
    # conv1 / maxpool-decimation / conv2 / avgpool / linear all become MXU
    # matmuls against the precomputed matrices; only abs/max/relu stay on the VPU.
    z = jnp.zeros((B, ICA * C), jnp.float32)
    for c in range(C):
        xc = jnp.concatenate([x[b * C + c:b * C + c + 1, :] for b in range(B)],
                             axis=0)                            # (B, T), rows = batches
        a1c = jnp.abs(jnp.dot(xc, t1_ref[c], preferred_element_type=jnp.float32)
                      + b1_ref[c:c + 1, :])                     # human_conv1 + abs, (B, l1)
        # MaxPool1d(8, stride=4): stride-1 sliding max (pairwise tree); the
        # stride-4 decimation is folded into the conv2 band matrix t2f.
        m = _tree_max([a1c[:, k:k + ls] for k in range(8)])     # (B, ls)
        # human_conv2 (grouped) + relu; AvgPool1d + human_linear1 folded in alin.
        r2c = jnp.maximum(jnp.dot(m, t2f_ref[c],
                                  preferred_element_type=jnp.float32), 0.0)    # (B, ICA*l2)
        z = z + jnp.dot(r2c, alin_ref[c], preferred_element_type=jnp.float32)  # (B, ICA*C)
    s = 1.0 / (1.0 + jnp.exp(-(z + b1l_ref[...])))              # sigmoid(human_linear1)

    # -------- per-sample 5x5 inverse (torch.linalg.inv) + unmixing ------------
    u_rows = [None] * (ICA * B)
    for b in range(B):
        sb = s[b:b + 1, :]
        mb = jnp.concatenate([sb[:, C * i:C * i + C] for i in range(ICA)],
                             axis=0)                            # (ICA, C)
        invb = _inv_small(mb)
        xb = x[b * C:(b + 1) * C, T - UNMIX_LEN:]               # (C, 256)
        ub = _tree_sum([invb[:, j:j + 1] * xb[j:j + 1, :] for j in range(C)])  # (ICA, 256)
        for i in range(ICA):
            u_rows[i * B + b] = ub[i:i + 1, :]
    u_cm = jnp.concatenate(u_rows, axis=0)                      # (ICA*B, 256), channel-major

    # ---------------- unmixed_batchnorm + EnvelopeDetector -------------------
    un = _bn_channel_major(u_cm, ICA, B)                        # unmixed_batchnorm

    hf = jnp.concatenate(
        [jnp.dot(un[i * B:(i + 1) * B, :], tf_ref[i],
                 preferred_element_type=jnp.float32) for i in range(ICA)],
        axis=0)                                                 # conv_filtering, (ICA*B, lf)
    hf = jnp.abs(_bn_channel_major(hf, ICA, B))                 # pre_envelope_batchnorm + abs

    # conv_envelope with the stride-DECIM tap selection folded into te (+ bias)
    feats = jnp.concatenate(
        [jnp.dot(hf[i * B:(i + 1) * B, :], te_ref[i],
                 preferred_element_type=jnp.float32) + be_ref[i:i + 1, :]
         for i in range(ICA)],
        axis=1)                                                 # (B, ICA*n_taps)

    # features_batchnorm (per-feature over the batch, train mode)
    fm = jnp.mean(feats, axis=0, keepdims=True)
    fd = feats - fm
    fv = jnp.mean(fd * fd, axis=0, keepdims=True)
    fn = fd * lax.rsqrt(fv + EPS)

    logits = jnp.dot(fn, w2t_ref[...],
                     preferred_element_type=jnp.float32) + b2_ref[...]
    o_ref[...] = 1.0 / (1.0 + jnp.exp(-logits))                 # exact sigmoid


# ----------------------------------------------------------------------------
# pallas_call wrapper (the ONLY launch in the forward pass)
# ----------------------------------------------------------------------------
def simple_net_forward(params, inputs, lag_backward):
    B, C, T = inputs.shape
    assert C == ICA, "torch.linalg.inv needs a square (ICA_CHANNELS, in_channels) matrix"
    assert T == lag_backward and T >= UNMIX_LEN
    l1 = T - 64 + 1
    ls = l1 - 8 + 1
    lp = (l1 - 8) // 4 + 1
    l2 = lp - 64 + 1
    k_avg = (lag_backward - 64 + 1) // 4 - 64                   # human_avg_pool2 window
    assert 1 <= k_avg <= l2 and (l2 - k_avg) // 10 + 1 == 1     # single avg-pool window
    lf = UNMIX_LEN - FILT + 1
    le = lf - ENV + 1
    start = (lag_backward - FILT - ENV + 2) % DECIM
    n_taps = (le - start + DECIM - 1) // DECIM
    assert ICA * n_taps == params["w2_wT"].shape[0]
    n_out = params["w2_b"].shape[1]

    x2d = inputs.reshape(B * C, T)                              # contiguous collapse (free)

    # ---- weight-derived MXU matrices, built once per call outside the kernel ----
    t1 = _toeplitz_bank(params["hc1_w"], T)                     # (C, T, l1)
    # human_conv2 band matrix with the stride-4 maxpool decimation folded in.
    selp = _selection_matrix(ls, lp, 0, 4)                      # (ls, lp), 0/1 selection
    t2 = _toeplitz_bank(params["hc2_w"], lp)                    # (C*ICA, lp, l2)
    t2 = t2.reshape(C, ICA, lp, l2).transpose(0, 2, 1, 3).reshape(C, lp, ICA * l2)
    t2f = jnp.matmul(selp[None], t2)                            # (C, ls, ICA*l2)
    # AvgPool1d(k_avg, stride=10) + human_linear1 folded into one matrix per group.
    wlin = params["hl1_wT"].reshape(C, ICA, ICA * C)            # [in=(c,i), out]
    avg_mask = (jnp.arange(l2) < k_avg).astype(jnp.float32) / k_avg
    alin = (wlin[:, :, None, :] * avg_mask[None, None, :, None]
            ).reshape(C, ICA * l2, ICA * C)                     # (C, ICA*l2, ICA*C)
    tf = _toeplitz_bank(params["filt_w"], UNMIX_LEN)            # (ICA, 256, lf)
    # conv_envelope Toeplitz evaluated only at the DECIM-strided tap positions.
    te = _tap_toeplitz_bank(params["env_w"], lf, start, DECIM, n_taps)  # (ICA, lf, n_taps)

    args = (x2d, t1, params["hc1_b"], t2f, alin, params["hl1_b"],
            tf, te, params["env_b"], params["w2_wT"], params["w2_b"])
    kernel = functools.partial(_simple_net_kernel, batch=B, chans=C, length=T)
    # No grid: total operand I/O is ~3 MB, everything is whole-array VMEM-resident,
    # so there is nothing to pipeline (no double-buffering / per-step overhead).
    # TODO(synk): a batch-parallel core_map split (v7x megacore) would need a
    # two-phase cross-core reduction to keep the train-mode BatchNorm stats exact.
    return pl.pallas_call(
        kernel,
        out_shape=jax.ShapeDtypeStruct((B, n_out), jnp.float32),
        in_specs=[pl.BlockSpec(memory_space=pltpu.MemorySpace.VMEM) for _ in args],
        out_specs=pl.BlockSpec(memory_space=pltpu.MemorySpace.VMEM),
    )(*args)


# ----------------------------------------------------------------------------
# Parameters (deterministic; shapes per SimpleNet.__init__, kernel-friendly layout)
# ----------------------------------------------------------------------------
def _uniform(key, shape, bound):
    return jax.random.uniform(key, shape, jnp.float32, -bound, bound)


def init_params(key, in_channels, output_channels):
    c = in_channels
    keys = jax.random.split(key, 9)
    # TODO(synk): nn.Linear(135, ...) hard-codes in_features=135, inconsistent with
    # in_channels=5 (forced by torch.linalg.inv); the actual flattened width is used.
    flat = ICA * c
    # Symmetric parametrization of conv_filtering applied once at init.
    raw = _uniform(keys[4], (ICA, FILT), 1.0 / (FILT ** 0.5))
    filt_w = jnp.concatenate(
        [raw[:, :FILT // 2 + 1], jnp.flip(raw[:, :FILT // 2], axis=-1)], axis=-1)
    n_feats = ICA * ((UNMIX_LEN - FILT - ENV + 2) // DECIM)     # 25
    return dict(
        hc1_w=_uniform(keys[0], (c, 64), 1.0 / 8.0),            # human_conv1
        hc1_b=_uniform(keys[1], (c, 1), 1.0 / 8.0),
        hc2_w=_uniform(keys[2], (ICA * c, 64), 1.0 / 8.0),      # human_conv2 (no bias)
        # human_linear1: stored pre-transposed [in, out]
        hl1_wT=_uniform(keys[3], (flat, ICA * c), 1.0 / (flat ** 0.5)),
        hl1_b=_uniform(keys[5], (1, ICA * c), 1.0 / (flat ** 0.5)),
        filt_w=filt_w,                                          # conv_filtering (symmetric)
        env_w=jnp.full((ICA, ENV), 1.0 / FILT, jnp.float32),    # conv_envelope per __init__
        env_b=_uniform(keys[6], (ICA, 1), 1.0 / (ENV ** 0.5)),
        # wights_second: stored pre-transposed [in, out]
        w2_wT=_uniform(keys[7], (n_feats, output_channels), 1.0 / (n_feats ** 0.5)),
        w2_b=_uniform(keys[8], (1, output_channels), 1.0 / (n_feats ** 0.5)),
    )


if __name__ == "__main__":
    in_channels = 5
    output_channels = 3
    lag_backward = 336                  # also the input length T

    key = jax.random.PRNGKey(0)
    k_in, k_p = jax.random.split(key)
    inputs = jax.random.normal(k_in, (2, in_channels, lag_backward), jnp.float32)
    params = init_params(k_p, in_channels, output_channels)

    fwd = jax.jit(functools.partial(simple_net_forward, lag_backward=lag_backward))
    out = fwd(params, inputs)
    jax.block_until_ready(out)
    assert out.shape == (2, output_channels)
    print("KERNEL_OK")
</pallas_src>

<mosaic_0001>
module attributes {stable_mosaic.version = 11 : i64} {
  func.func @_simple_net_kernel(%arg0: memref<10x336xf32, #tpu.memory_space<vmem>>, %arg1: memref<5x336x273xf32, #tpu.memory_space<vmem>>, %arg2: memref<5x1xf32, #tpu.memory_space<vmem>>, %arg3: memref<5x266x20xf32, #tpu.memory_space<vmem>>, %arg4: memref<5x20x25xf32, #tpu.memory_space<vmem>>, %arg5: memref<1x25xf32, #tpu.memory_space<vmem>>, %arg6: memref<5x256x156xf32, #tpu.memory_space<vmem>>, %arg7: memref<5x156x5xf32, #tpu.memory_space<vmem>>, %arg8: memref<5x1xf32, #tpu.memory_space<vmem>>, %arg9: memref<25x3xf32, #tpu.memory_space<vmem>>, %arg10: memref<1x3xf32, #tpu.memory_space<vmem>>, %arg11: memref<2x3xf32, #tpu.memory_space<vmem>>) attributes {dimension_semantics = [], scalar_prefetch = 0 : i64, scratch_operands = 0 : i64, tpu.core_type = #tpu.core_type<tc>} {
    %c0 = arith.constant 0 : index
    %c0_0 = arith.constant 0 : index
    %0 = vector.load %arg0[%c0, %c0_0] : memref<10x336xf32, #tpu.memory_space<vmem>>, vector<10x336xf32>
    %cst = arith.constant 0.000000e+00 : f32
    %1 = vector.broadcast %cst : f32 to vector<2x25xf32>
    %2 = vector.extract_strided_slice %0 {offsets = [0, 0], sizes = [1, 336], strides = [1, 1]} : vector<10x336xf32> to vector<1x336xf32>
    %3 = vector.extract_strided_slice %0 {offsets = [5, 0], sizes = [1, 336], strides = [1, 1]} : vector<10x336xf32> to vector<1x336xf32>
    %4 = tpu.concatenate %2, %3 in 0 : vector<1x336xf32>, vector<1x336xf32> -> vector<2x336xf32>
    %c0_1 = arith.constant 0 : index
    %c0_2 = arith.constant 0 : index
    %c0_3 = arith.constant 0 : index
    %5 = vector.load %arg1[%c0_1, %c0_2, %c0_3] : memref<5x336x273xf32, #tpu.memory_space<vmem>>, vector<1x336x273xf32>
    %6 = vector.shape_cast %5 : vector<1x336x273xf32> to vector<336x273xf32>
    %cst_4 = arith.constant dense<0.000000e+00> : vector<2x273xf32>
    %7 = tpu.matmul %4, %6, %cst_4 {dimension_numbers = #tpu.dot_dimension_numbers<[1], [0], [0], [1], [0, 0, 1, 1], [], []>} : vector<2x336xf32>, vector<336x273xf32>, vector<2x273xf32> -> vector<2x273xf32>
    %c0_5 = arith.constant 0 : index
    %c0_6 = arith.constant 0 : index
    %8 = vector.load %arg2[%c0_5, %c0_6] : memref<5x1xf32, #tpu.memory_space<vmem>>, vector<1x1xf32>
    %9 = vector.broadcast %8 : vector<1x1xf32> to vector<2x273xf32>
    %10 = arith.addf %7, %9 : vector<2x273xf32>
    %11 = math.absf %10 : vector<2x273xf32>
    %12 = vector.extract_strided_slice %11 {offsets = [0, 0], sizes = [2, 266], strides = [1, 1]} : vector<2x273xf32> to vector<2x266xf32>
    %13 = vector.extract_strided_slice %11 {offsets = [0, 1], sizes = [2, 266], strides = [1, 1]} : vector<2x273xf32> to vector<2x266xf32>
    %14 = vector.extract_strided_slice %11 {offsets = [0, 2], sizes = [2, 266], strides = [1, 1]} : vector<2x273xf32> to vector<2x266xf32>
    %15 = vector.extract_strided_slice %11 {offsets = [0, 3], sizes = [2, 266], strides = [1, 1]} : vector<2x273xf32> to vector<2x266xf32>
    %16 = vector.extract_strided_slice %11 {offsets = [0, 4], sizes = [2, 266], strides = [1, 1]} : vector<2x273xf32> to vector<2x266xf32>
    %17 = vector.extract_strided_slice %11 {offsets = [0, 5], sizes = [2, 266], strides = [1, 1]} : vector<2x273xf32> to vector<2x266xf32>
    %18 = vector.extract_strided_slice %11 {offsets = [0, 6], sizes = [2, 266], strides = [1, 1]} : vector<2x273xf32> to vector<2x266xf32>
    %19 = vector.extract_strided_slice %11 {offsets = [0, 7], sizes = [2, 266], strides = [1, 1]} : vector<2x273xf32> to vector<2x266xf32>
    %20 = arith.maximumf %12, %13 : vector<2x266xf32>
    %21 = arith.maximumf %14, %15 : vector<2x266xf32>
    %22 = arith.maximumf %16, %17 : vector<2x266xf32>
    %23 = arith.maximumf %18, %19 : vector<2x266xf32>
    %24 = arith.maximumf %20, %21 : vector<2x266xf32>
    %25 = arith.maximumf %22, %23 : vector<2x266xf32>
    %26 = arith.maximumf %24, %25 : vector<2x266xf32>
    %c0_7 = arith.constant 0 : index
    %c0_8 = arith.constant 0 : index
    %c0_9 = arith.constant 0 : index
    %27 = vector.load %arg3[%c0_7, %c0_8, %c0_9] : memref<5x266x20xf32, #tpu.memory_space<vmem>>, vector<1x266x20xf32>
    %28 = vector.shape_cast %27 : vector<1x266x20xf32> to vector<266x20xf32>
    %cst_10 = arith.constant dense<0.000000e+00> : vector<2x20xf32>
    %29 = tpu.matmul %26, %28, %cst_10 {dimension_numbers = #tpu.dot_dimension_numbers<[1], [0], [0], [1], [0, 0, 1, 1], [], []>} : vector<2x266xf32>, vector<266x20xf32>, vector<2x20xf32> -> vector<2x20xf32>
    %cst_11 = arith.constant 0.000000e+00 : f32
    %30 = vector.broadcast %cst_11 : f32 to vector<2x20xf32>
    %31 = arith.maximumf %29, %30 : vector<2x20xf32>
    %c0_12 = arith.constant 0 : index
    %c0_13 = arith.constant 0 : index
    %c0_14 = arith.constant 0 : index
    %32 = vector.load %arg4[%c0_12, %c0_13, %c0_14] : memref<5x20x25xf32, #tpu.memory_space<vmem>>, vector<1x20x25xf32>
    %33 = vector.shape_cast %32 : vector<1x20x25xf32> to vector<20x25xf32>
    %cst_15 = arith.constant dense<0.000000e+00> : vector<2x25xf32>
    %34 = tpu.matmul %31, %33, %cst_15 {dimension_numbers = #tpu.dot_dimension_numbers<[1], [0], [0], [1], [0, 0, 1, 1], [], []>} : vector<2x20xf32>, vector<20x25xf32>, vector<2x25xf32> -> vector<2x25xf32>
    %35 = arith.addf %1, %34 : vector<2x25xf32>
    %36 = vector.extract_strided_slice %0 {offsets = [1, 0], sizes = [1, 336], strides = [1, 1]} : vector<10x336xf32> to vector<1x336xf32>
    %37 = vector.extract_strided_slice %0 {offsets = [6, 0], sizes = [1, 336], strides = [1, 1]} : vector<10x336xf32> to vector<1x336xf32>
    %38 = tpu.concatenate %36, %37 in 0 : vector<1x336xf32>, vector<1x336xf32> -> vector<2x336xf32>
    %c1 = arith.constant 1 : index
    %c0_16 = arith.constant 0 : index
    %c0_17 = arith.constant 0 : index
    %39 = vector.load %arg1[%c1, %c0_16, %c0_17] : memref<5x336x273xf32, #tpu.memory_space<vmem>>, vector<1x336x273xf32>
    %40 = vector.shape_cast %39 : vector<1x336x273xf32> to vector<336x273xf32>
    %cst_18 = arith.constant dense<0.000000e+00> : vector<2x273xf32>
    %41 = tpu.matmul %38, %40, %cst_18 {dimension_numbers = #tpu.dot_dimension_numbers<[1], [0], [0], [1], [0, 0, 1, 1], [], []>} : vector<2x336xf32>, vector<336x273xf32>, vector<2x273xf32> -> vector<2x273xf32>
    %c1_19 = arith.constant 1 : index
    %c0_20 = arith.constant 0 : index
    %42 = vector.load %arg2[%c1_19, %c0_20] : memref<5x1xf32, #tpu.memory_space<vmem>>, vector<1x1xf32>
    %43 = vector.broadcast %42 : vector<1x1xf32> to vector<2x273xf32>
    %44 = arith.addf %41, %43 : vector<2x273xf32>
    %45 = math.absf %44 : vector<2x273xf32>
    %46 = vector.extract_strided_slice %45 {offsets = [0, 0], sizes = [2, 266], strides = [1, 1]} : vector<2x273xf32> to vector<2x266xf32>
    %47 = vector.extract_strided_slice %45 {offsets = [0, 1], sizes = [2, 266], strides = [1, 1]} : vector<2x273xf32> to vector<2x266xf32>
    %48 = vector.extract_strided_slice %45 {offsets = [0, 2], sizes = [2, 266], strides = [1, 1]} : vector<2x273xf32> to vector<2x266xf32>
    %49 = vector.extract_strided_slice %45 {offsets = [0, 3], sizes = [2, 266], strides = [1, 1]} : vector<2x273xf32> to vector<2x266xf32>
    %50 = vector.extract_strided_slice %45 {offsets = [0, 4], sizes = [2, 266], strides = [1, 1]} : vector<2x273xf32> to vector<2x266xf32>
    %51 = vector.extract_strided_slice %45 {offsets = [0, 5], sizes = [2, 266], strides = [1, 1]} : vector<2x273xf32> to vector<2x266xf32>
    %52 = vector.extract_strided_slice %45 {offsets = [0, 6], sizes = [2, 266], strides = [1, 1]} : vector<2x273xf32> to vector<2x266xf32>
    %53 = vector.extract_strided_slice %45 {offsets = [0, 7], sizes = [2, 266], strides = [1, 1]} : vector<2x273xf32> to vector<2x266xf32>
    %54 = arith.maximumf %46, %47 : vector<2x266xf32>
    %55 = arith.maximumf %48, %49 : vector<2x266xf32>
    %56 = arith.maximumf %50, %51 : vector<2x266xf32>
    %57 = arith.maximumf %52, %53 : vector<2x266xf32>
    %58 = arith.maximumf %54, %55 : vector<2x266xf32>
    %59 = arith.maximumf %56, %57 : vector<2x266xf32>
    %60 = arith.maximumf %58, %59 : vector<2x266xf32>
    %c1_21 = arith.constant 1 : index
    %c0_22 = arith.constant 0 : index
    %c0_23 = arith.constant 0 : index
    %61 = vector.load %arg3[%c1_21, %c0_22, %c0_23] : memref<5x266x20xf32, #tpu.memory_space<vmem>>, vector<1x266x20xf32>
    %62 = vector.shape_cast %61 : vector<1x266x20xf32> to vector<266x20xf32>
    %cst_24 = arith.constant dense<0.000000e+00> : vector<2x20xf32>
    %63 = tpu.matmul %60, %62, %cst_24 {dimension_numbers = #tpu.dot_dimension_numbers<[1], [0], [0], [1], [0, 0, 1, 1], [], []>} : vector<2x266xf32>, vector<266x20xf32>, vector<2x20xf32> -> vector<2x20xf32>
    %cst_25 = arith.constant 0.000000e+00 : f32
    %64 = vector.broadcast %cst_25 : f32 to vector<2x20xf32>
    %65 = arith.maximumf %63, %64 : vector<2x20xf32>
    %c1_26 = arith.constant 1 : index
    %c0_27 = arith.constant 0 : index
    %c0_28 = arith.constant 0 : index
    %66 = vector.load %arg4[%c1_26, %c0_27, %c0_28] : memref<5x20x25xf32, #tpu.memory_space<vmem>>, vector<1x20x25xf32>
    %67 = vector.shape_cast %66 : vector<1x20x25xf32> to vector<20x25xf32>
    %cst_29 = arith.constant dense<0.000000e+00> : vector<2x25xf32>
    %68 = tpu.matmul %65, %67, %cst_29 {dimension_numbers = #tpu.dot_dimension_numbers<[1], [0], [0], [1], [0, 0, 1, 1], [], []>} : vector<2x20xf32>, vector<20x25xf32>, vector<2x25xf32> -> vector<2x25xf32>
    %69 = arith.addf %35, %68 : vector<2x25xf32>
    %70 = vector.extract_strided_slice %0 {offsets = [2, 0], sizes = [1, 336], strides = [1, 1]} : vector<10x336xf32> to vector<1x336xf32>
    %71 = vector.extract_strided_slice %0 {offsets = [7, 0], sizes = [1, 336], strides = [1, 1]} : vector<10x336xf32> to vector<1x336xf32>
    %72 = tpu.concatenate %70, %71 in 0 : vector<1x336xf32>, vector<1x336xf32> -> vector<2x336xf32>
    %c2 = arith.constant 2 : index
    %c0_30 = arith.constant 0 : index
    %c0_31 = arith.constant 0 : index
    %73 = vector.load %arg1[%c2, %c0_30, %c0_31] : memref<5x336x273xf32, #tpu.memory_space<vmem>>, vector<1x336x273xf32>
    %74 = vector.shape_cast %73 : vector<1x336x273xf32> to vector<336x273xf32>
    %cst_32 = arith.constant dense<0.000000e+00> : vector<2x273xf32>
    %75 = tpu.matmul %72, %74, %cst_32 {dimension_numbers = #tpu.dot_dimension_numbers<[1], [0], [0], [1], [0, 0, 1, 1], [], []>} : vector<2x336xf32>, vector<336x273xf32>, vector<2x273xf32> -> vector<2x273xf32>
    %c2_33 = arith.constant 2 : index
    %c0_34 = arith.constant 0 : index
    %76 = vector.load %arg2[%c2_33, %c0_34] : memref<5x1xf32, #tpu.memory_space<vmem>>, vector<1x1xf32>
    %77 = vector.broadcast %76 : vector<1x1xf32> to vector<2x273xf32>
    %78 = arith.addf %75, %77 : vector<2x273xf32>
    %79 = math.absf %78 : vector<2x273xf32>
    %80 = vector.extract_strided_slice %79 {offsets = [0, 0], sizes = [2, 266], strides = [1, 1]} : vector<2x273xf32> to vector<2x266xf32>
    %81 = vector.extract_strided_slice %79 {offsets = [0, 1], sizes = [2, 266], strides = [1, 1]} : vector<2x273xf32> to vector<2x266xf32>
    %82 = vector.extract_strided_slice %79 {offsets = [0, 2], sizes = [2, 266], strides = [1, 1]} : vector<2x273xf32> to vector<2x266xf32>
    %83 = vector.extract_strided_slice %79 {offsets = [0, 3], sizes = [2, 266], strides = [1, 1]} : vector<2x273xf32> to vector<2x266xf32>
    %84 = vector.extract_strided_slice %79 {offsets = [0, 4], sizes = [2, 266], strides = [1, 1]} : vector<2x273xf32> to vector<2x266xf32>
    %85 = vector.extract_strided_slice %79 {offsets = [0, 5], sizes = [2, 266], strides = [1, 1]} : vector<2x273xf32> to vector<2x266xf32>
    %86 = vector.extract_strided_slice %79 {offsets = [0, 6], sizes = [2, 266], strides = [1, 1]} : vector<2x273xf32> to vector<2x266xf32>
    %87 = vector.extract_strided_slice %79 {offsets = [0, 7], sizes = [2, 266], strides = [1, 1]} : vector<2x273xf32> to vector<2x266xf32>
    %88 = arith.maximumf %80, %81 : vector<2x266xf32>
    %89 = arith.maximumf %82, %83 : vector<2x266xf32>
    %90 = arith.maximumf %84, %85 : vector<2x266xf32>
    %91 = arith.maximumf %86, %87 : vector<2x266xf32>
    %92 = arith.maximumf %88, %89 : vector<2x266xf32>
    %93 = arith.maximumf %90, %91 : vector<2x266xf32>
    %94 = arith.maximumf %92, %93 : vector<2x266xf32>
    %c2_35 = arith.constant 2 : index
    %c0_36 = arith.constant 0 : index
    %c0_37 = arith.constant 0 : index
    %95 = vector.load %arg3[%c2_35, %c0_36, %c0_37] : memref<5x266x20xf32, #tpu.memory_space<vmem>>, vector<1x266x20xf32>
    %96 = vector.shape_cast %95 : vector<1x266x20xf32> to vector<266x20xf32>
    %cst_38 = arith.constant dense<0.000000e+00> : vector<2x20xf32>
    %97 = tpu.matmul %94, %96, %cst_38 {dimension_numbers = #tpu.dot_dimension_numbers<[1], [0], [0], [1], [0, 0, 1, 1], [], []>} : vector<2x266xf32>, vector<266x20xf32>, vector<2x20xf32> -> vector<2x20xf32>
    %cst_39 = arith.constant 0.000000e+00 : f32
    %98 = vector.broadcast %cst_39 : f32 to vector<2x20xf32>
    %99 = arith.maximumf %97, %98 : vector<2x20xf32>
    %c2_40 = arith.constant 2 : index
    %c0_41 = arith.constant 0 : index
    %c0_42 = arith.constant 0 : index
    %100 = vector.load %arg4[%c2_40, %c0_41, %c0_42] : memref<5x20x25xf32, #tpu.memory_space<vmem>>, vector<1x20x25xf32>
    %101 = vector.shape_cast %100 : vector<1x20x25xf32> to vector<20x25xf32>
    %cst_43 = arith.constant dense<0.000000e+00> : vector<2x25xf32>
    %102 = tpu.matmul %99, %101, %cst_43 {dimension_numbers = #tpu.dot_dimension_numbers<[1], [0], [0], [1], [0, 0, 1, 1], [], []>} : vector<2x20xf32>, vector<20x25xf32>, vector<2x25xf32> -> vector<2x25xf32>
    %103 = arith.addf %69, %102 : vector<2x25xf32>
    %104 = vector.extract_strided_slice %0 {offsets = [3, 0], sizes = [1, 336], strides = [1, 1]} : vector<10x336xf32> to vector<1x336xf32>
    %105 = vector.extract_strided_slice %0 {offsets = [8, 0], sizes = [1, 336], strides = [1, 1]} : vector<10x336xf32> to vector<1x336xf32>
    %106 = tpu.concatenate %104, %105 in 0 : vector<1x336xf32>, vector<1x336xf32> -> vector<2x336xf32>
    %c3 = arith.constant 3 : index
    %c0_44 = arith.constant 0 : index
    %c0_45 = arith.constant 0 : index
    %107 = vector.load %arg1[%c3, %c0_44, %c0_45] : memref<5x336x273xf32, #tpu.memory_space<vmem>>, vector<1x336x273xf32>
    %108 = vector.shape_cast %107 : vector<1x336x273xf32> to vector<336x273xf32>
    %cst_46 = arith.constant dense<0.000000e+00> : vector<2x273xf32>
    %109 = tpu.matmul %106, %108, %cst_46 {dimension_numbers = #tpu.dot_dimension_numbers<[1], [0], [0], [1], [0, 0, 1, 1], [], []>} : vector<2x336xf32>, vector<336x273xf32>, vector<2x273xf32> -> vector<2x273xf32>
    %c3_47 = arith.constant 3 : index
    %c0_48 = arith.constant 0 : index
    %110 = vector.load %arg2[%c3_47, %c0_48] : memref<5x1xf32, #tpu.memory_space<vmem>>, vector<1x1xf32>
    %111 = vector.broadcast %110 : vector<1x1xf32> to vector<2x273xf32>
    %112 = arith.addf %109, %111 : vector<2x273xf32>
    %113 = math.absf %112 : vector<2x273xf32>
    %114 = vector.extract_strided_slice %113 {offsets = [0, 0], sizes = [2, 266], strides = [1, 1]} : vector<2x273xf32> to vector<2x266xf32>
    %115 = vector.extract_strided_slice %113 {offsets = [0, 1], sizes = [2, 266], strides = [1, 1]} : vector<2x273xf32> to vector<2x266xf32>
    %116 = vector.extract_strided_slice %113 {offsets = [0, 2], sizes = [2, 266], strides = [1, 1]} : vector<2x273xf32> to vector<2x266xf32>
    %117 = vector.extract_strided_slice %113 {offsets = [0, 3], sizes = [2, 266], strides = [1, 1]} : vector<2x273xf32> to vector<2x266xf32>
    %118 = vector.extract_strided_slice %113 {offsets = [0, 4], sizes = [2, 266], strides = [1, 1]} : vector<2x273xf32> to vector<2x266xf32>
    %119 = vector.extract_strided_slice %113 {offsets = [0, 5], sizes = [2, 266], strides = [1, 1]} : vector<2x273xf32> to vector<2x266xf32>
    %120 = vector.extract_strided_slice %113 {offsets = [0, 6], sizes = [2, 266], strides = [1, 1]} : vector<2x273xf32> to vector<2x266xf32>
    %121 = vector.extract_strided_slice %113 {offsets = [0, 7], sizes = [2, 266], strides = [1, 1]} : vector<2x273xf32> to vector<2x266xf32>
    %122 = arith.maximumf %114, %115 : vector<2x266xf32>
    %123 = arith.maximumf %116, %117 : vector<2x266xf32>
    %124 = arith.maximumf %118, %119 : vector<2x266xf32>
    %125 = arith.maximumf %120, %121 : vector<2x266xf32>
    %126 = arith.maximumf %122, %123 : vector<2x266xf32>
    %127 = arith.maximumf %124, %125 : vector<2x266xf32>
    %128 = arith.maximumf %126, %127 : vector<2x266xf32>
    %c3_49 = arith.constant 3 : index
    %c0_50 = arith.constant 0 : index
    %c0_51 = arith.constant 0 : index
    %129 = vector.load %arg3[%c3_49, %c0_50, %c0_51] : memref<5x266x20xf32, #tpu.memory_space<vmem>>, vector<1x266x20xf32>
    %130 = vector.shape_cast %129 : vector<1x266x20xf32> to vector<266x20xf32>
    %cst_52 = arith.constant dense<0.000000e+00> : vector<2x20xf32>
    %131 = tpu.matmul %128, %130, %cst_52 {dimension_numbers = #tpu.dot_dimension_numbers<[1], [0], [0], [1], [0, 0, 1, 1], [], []>} : vector<2x266xf32>, vector<266x20xf32>, vector<2x20xf32> -> vector<2x20xf32>
    %cst_53 = arith.constant 0.000000e+00 : f32
    %132 = vector.broadcast %cst_53 : f32 to vector<2x20xf32>
    %133 = arith.maximumf %131, %132 : vector<2x20xf32>
    %c3_54 = arith.constant 3 : index
    %c0_55 = arith.constant 0 : index
    %c0_56 = arith.constant 0 : index
    %134 = vector.load %arg4[%c3_54, %c0_55, %c0_56] : memref<5x20x25xf32, #tpu.memory_space<vmem>>, vector<1x20x25xf32>
    %135 = vector.shape_cast %134 : vector<1x20x25xf32> to vector<20x25xf32>
    %cst_57 = arith.constant dense<0.000000e+00> : vector<2x25xf32>
    %136 = tpu.matmul %133, %135, %cst_57 {dimension_numbers = #tpu.dot_dimension_numbers<[1], [0], [0], [1], [0, 0, 1, 1], [], []>} : vector<2x20xf32>, vector<20x25xf32>, vector<2x25xf32> -> vector<2x25xf32>
    %137 = arith.addf %103, %136 : vector<2x25xf32>
    %138 = vector.extract_strided_slice %0 {offsets = [4, 0], sizes = [1, 336], strides = [1, 1]} : vector<10x336xf32> to vector<1x336xf32>
    %139 = vector.extract_strided_slice %0 {offsets = [9, 0], sizes = [1, 336], strides = [1, 1]} : vector<10x336xf32> to vector<1x336xf32>
    %140 = tpu.concatenate %138, %139 in 0 : vector<1x336xf32>, vector<1x336xf32> -> vector<2x336xf32>
    %c4 = arith.constant 4 : index
    %c0_58 = arith.constant 0 : index
    %c0_59 = arith.constant 0 : index
    %141 = vector.load %arg1[%c4, %c0_58, %c0_59] : memref<5x336x273xf32, #tpu.memory_space<vmem>>, vector<1x336x273xf32>
    %142 = vector.shape_cast %141 : vector<1x336x273xf32> to vector<336x273xf32>
    %cst_60 = arith.constant dense<0.000000e+00> : vector<2x273xf32>
    %143 = tpu.matmul %140, %142, %cst_60 {dimension_numbers = #tpu.dot_dimension_numbers<[1], [0], [0], [1], [0, 0, 1, 1], [], []>} : vector<2x336xf32>, vector<336x273xf32>, vector<2x273xf32> -> vector<2x273xf32>
    %c4_61 = arith.constant 4 : index
    %c0_62 = arith.constant 0 : index
    %144 = vector.load %arg2[%c4_61, %c0_62] : memref<5x1xf32, #tpu.memory_space<vmem>>, vector<1x1xf32>
    %145 = vector.broadcast %144 : vector<1x1xf32> to vector<2x273xf32>
    %146 = arith.addf %143, %145 : vector<2x273xf32>
    %147 = math.absf %146 : vector<2x273xf32>
    %148 = vector.extract_strided_slice %147 {offsets = [0, 0], sizes = [2, 266], strides = [1, 1]} : vector<2x273xf32> to vector<2x266xf32>
    %149 = vector.extract_strided_slice %147 {offsets = [0, 1], sizes = [2, 266], strides = [1, 1]} : vector<2x273xf32> to vector<2x266xf32>
    %150 = vector.extract_strided_slice %147 {offsets = [0, 2], sizes = [2, 266], strides = [1, 1]} : vector<2x273xf32> to vector<2x266xf32>
    %151 = vector.extract_strided_slice %147 {offsets = [0, 3], sizes = [2, 266], strides = [1, 1]} : vector<2x273xf32> to vector<2x266xf32>
    %152 = vector.extract_strided_slice %147 {offsets = [0, 4], sizes = [2, 266], strides = [1, 1]} : vector<2x273xf32> to vector<2x266xf32>
    %153 = vector.extract_strided_slice %147 {offsets = [0, 5], sizes = [2, 266], strides = [1, 1]} : vector<2x273xf32> to vector<2x266xf32>
    %154 = vector.extract_strided_slice %147 {offsets = [0, 6], sizes = [2, 266], strides = [1, 1]} : vector<2x273xf32> to vector<2x266xf32>
    %155 = vector.extract_strided_slice %147 {offsets = [0, 7], sizes = [2, 266], strides = [1, 1]} : vector<2x273xf32> to vector<2x266xf32>
    %156 = arith.maximumf %148, %149 : vector<2x266xf32>
    %157 = arith.maximumf %150, %151 : vector<2x266xf32>
    %158 = arith.maximumf %152, %153 : vector<2x266xf32>
    %159 = arith.maximumf %154, %155 : vector<2x266xf32>
    %160 = arith.maximumf %156, %157 : vector<2x266xf32>
    %161 = arith.maximumf %158, %159 : vector<2x266xf32>
    %162 = arith.maximumf %160, %161 : vector<2x266xf32>
    %c4_63 = arith.constant 4 : index
    %c0_64 = arith.constant 0 : index
    %c0_65 = arith.constant 0 : index
    %163 = vector.load %arg3[%c4_63, %c0_64, %c0_65] : memref<5x266x20xf32, #tpu.memory_space<vmem>>, vector<1x266x20xf32>
    %164 = vector.shape_cast %163 : vector<1x266x20xf32> to vector<266x20xf32>
    %cst_66 = arith.constant dense<0.000000e+00> : vector<2x20xf32>
    %165 = tpu.matmul %162, %164, %cst_66 {dimension_numbers = #tpu.dot_dimension_numbers<[1], [0], [0], [1], [0, 0, 1, 1], [], []>} : vector<2x266xf32>, vector<266x20xf32>, vector<2x20xf32> -> vector<2x20xf32>
    %cst_67 = arith.constant 0.000000e+00 : f32
    %166 = vector.broadcast %cst_67 : f32 to vector<2x20xf32>
    %167 = arith.maximumf %165, %166 : vector<2x20xf32>
    %c4_68 = arith.constant 4 : index
    %c0_69 = arith.constant 0 : index
    %c0_70 = arith.constant 0 : index
    %168 = vector.load %arg4[%c4_68, %c0_69, %c0_70] : memref<5x20x25xf32, #tpu.memory_space<vmem>>, vector<1x20x25xf32>
    %169 = vector.shape_cast %168 : vector<1x20x25xf32> to vector<20x25xf32>
    %cst_71 = arith.constant dense<0.000000e+00> : vector<2x25xf32>
    %170 = tpu.matmul %167, %169, %cst_71 {dimension_numbers = #tpu.dot_dimension_numbers<[1], [0], [0], [1], [0, 0, 1, 1], [], []>} : vector<2x20xf32>, vector<20x25xf32>, vector<2x25xf32> -> vector<2x25xf32>
    %171 = arith.addf %137, %170 : vector<2x25xf32>
    %c0_72 = arith.constant 0 : index
    %c0_73 = arith.constant 0 : index
    %172 = vector.load %arg5[%c0_72, %c0_73] : memref<1x25xf32, #tpu.memory_space<vmem>>, vector<1x25xf32>
    %173 = vector.broadcast %172 : vector<1x25xf32> to vector<2x25xf32>
    %174 = arith.addf %171, %173 : vector<2x25xf32>
    %cst_74 = arith.constant 0.000000e+00 : f32
    %175 = vector.broadcast %cst_74 : f32 to vector<2x25xf32>
    %176 = arith.subf %175, %174 : vector<2x25xf32>
    %177 = math.exp %176 : vector<2x25xf32>
    %cst_75 = arith.constant 1.000000e+00 : f32
    %178 = vector.broadcast %cst_75 : f32 to vector<2x25xf32>
    %179 = arith.addf %178, %177 : vector<2x25xf32>
    %cst_76 = arith.constant 1.000000e+00 : f32
    %180 = vector.broadcast %cst_76 : f32 to vector<2x25xf32>
    %181 = arith.divf %180, %179 : vector<2x25xf32>
    %182 = vector.extract_strided_slice %181 {offsets = [0, 0], sizes = [1, 25], strides = [1, 1]} : vector<2x25xf32> to vector<1x25xf32>
    %183 = vector.extract_strided_slice %182 {offsets = [0, 0], sizes = [1, 5], strides = [1, 1]} : vector<1x25xf32> to vector<1x5xf32>
    %184 = vector.extract_strided_slice %182 {offsets = [0, 5], sizes = [1, 5], strides = [1, 1]} : vector<1x25xf32> to vector<1x5xf32>
    %185 = vector.extract_strided_slice %182 {offsets = [0, 10], sizes = [1, 5], strides = [1, 1]} : vector<1x25xf32> to vector<1x5xf32>
    %186 = vector.extract_strided_slice %182 {offsets = [0, 15], sizes = [1, 5], strides = [1, 1]} : vector<1x25xf32> to vector<1x5xf32>
    %187 = vector.extract_strided_slice %182 {offsets = [0, 20], sizes = [1, 5], strides = [1, 1]} : vector<1x25xf32> to vector<1x5xf32>
    %188 = tpu.concatenate %183, %184, %185, %186, %187 in 0 : vector<1x5xf32>, vector<1x5xf32>, vector<1x5xf32>, vector<1x5xf32>, vector<1x5xf32> -> vector<5x5xf32>
    %189 = tpu.iota {dimensions = array<i32: 0>} : vector<5x5xi32>
    %190 = tpu.iota {dimensions = array<i32: 1>} : vector<5x5xi32>
    %191 = tpu.iota {dimensions = array<i32: 0>} : vector<5x1xi32>
    %192 = arith.cmpi eq, %189, %190 : vector<5x5xi32>
    %cst_77 = arith.constant 1.000000e+00 : f32
    %cst_78 = arith.constant 0.000000e+00 : f32
    %193 = vector.broadcast %cst_77 : f32 to vector<5x5xf32>
    %194 = vector.broadcast %cst_78 : f32 to vector<5x5xf32>
    %195 = arith.select %192, %193, %194 : vector<5x5xi1>, vector<5x5xf32>
    %c0_i32 = arith.constant 0 : i32
    %196 = vector.broadcast %c0_i32 : i32 to vector<5x1xi32>
    %197 = arith.cmpi sge, %191, %196 : vector<5x1xi32>
    %198 = vector.extract_strided_slice %188 {offsets = [0, 0], sizes = [5, 1], strides = [1, 1]} : vector<5x5xf32> to vector<5x1xf32>
    %199 = math.absf %198 : vector<5x1xf32>
    %cst_79 = arith.constant -1.000000e+00 : f32
    %200 = vector.broadcast %cst_79 : f32 to vector<5x1xf32>
    %201 = arith.select %197, %199, %200 : vector<5x1xi1>, vector<5x1xf32>
    %202 = arith.sitofp %191 : vector<5x1xi32> to vector<5x1xf32>
    %cst_80 = arith.constant 9.99999997E-7 : f32
    %203 = vector.broadcast %cst_80 : f32 to vector<5x1xf32>
    %204 = arith.mulf %203, %202 : vector<5x1xf32>
    %cst_81 = arith.constant 1.000000e+00 : f32
    %205 = vector.broadcast %cst_81 : f32 to vector<5x1xf32>
    %206 = arith.subf %205, %204 : vector<5x1xf32>
    %207 = arith.mulf %201, %206 : vector<5x1xf32>
    %cst_82 = arith.constant dense<0xFF800000> : vector<1xf32>
    %208 = vector.multi_reduction <maximumf>, %207, %cst_82 [0] : vector<5x1xf32> to vector<1xf32>
    %209 = vector.shape_cast %208 : vector<1xf32> to vector<1x1xf32>
    %210 = vector.broadcast %209 : vector<1x1xf32> to vector<5x1xf32>
    %211 = arith.cmpf oge, %207, %210 : vector<5x1xf32>
    %212 = arith.extui %211 : vector<5x1xi1> to vector<5x1xi32>
    %213 = arith.sitofp %212 : vector<5x1xi32> to vector<5x1xf32>
    %214 = vector.broadcast %213 : vector<5x1xf32> to vector<5x5xf32>
    %215 = arith.mulf %214, %188 : vector<5x5xf32>
    %cst_83 = arith.constant dense<0.000000e+00> : vector<5xf32>
    %216 = vector.multi_reduction <add>, %215, %cst_83 [0] : vector<5x5xf32> to vector<5xf32>
    %217 = vector.shape_cast %216 : vector<5xf32> to vector<1x5xf32>
    %218 = vector.broadcast %213 : vector<5x1xf32> to vector<5x5xf32>
    %219 = arith.mulf %218, %195 : vector<5x5xf32>
    %cst_84 = arith.constant dense<0.000000e+00> : vector<5xf32>
    %220 = vector.multi_reduction <add>, %219, %cst_84 [0] : vector<5x5xf32> to vector<5xf32>
    %221 = vector.shape_cast %220 : vector<5xf32> to vector<1x5xf32>
    %c0_i32_85 = arith.constant 0 : i32
    %222 = vector.broadcast %c0_i32_85 : i32 to vector<5x1xi32>
    %223 = arith.cmpi eq, %191, %222 : vector<5x1xi32>
    %cst_86 = arith.constant 5.000000e-01 : f32
    %224 = vector.broadcast %cst_86 : f32 to vector<5x1xf32>
    %225 = arith.cmpf ogt, %213, %224 : vector<5x1xf32>
    %226 = vector.extract_strided_slice %188 {offsets = [0, 0], sizes = [1, 5], strides = [1, 1]} : vector<5x5xf32> to vector<1x5xf32>
    %227 = vector.shape_cast %225 : vector<5x1xi1> to vector<5x1xi1>
    %228 = vector.broadcast %227 : vector<5x1xi1> to vector<5x5xi1>
    %229 = vector.shape_cast %226 : vector<1x5xf32> to vector<1x5xf32>
    %230 = vector.broadcast %229 : vector<1x5xf32> to vector<5x5xf32>
    %231 = arith.select %228, %230, %188 : vector<5x5xi1>, vector<5x5xf32>
    %232 = vector.shape_cast %223 : vector<5x1xi1> to vector<5x1xi1>
    %233 = vector.broadcast %232 : vector<5x1xi1> to vector<5x5xi1>
    %234 = vector.shape_cast %217 : vector<1x5xf32> to vector<1x5xf32>
    %235 = vector.broadcast %234 : vector<1x5xf32> to vector<5x5xf32>
    %236 = arith.select %233, %235, %231 : vector<5x5xi1>, vector<5x5xf32>
    %237 = vector.extract_strided_slice %195 {offsets = [0, 0], sizes = [1, 5], strides = [1, 1]} : vector<5x5xf32> to vector<1x5xf32>
    %238 = vector.shape_cast %225 : vector<5x1xi1> to vector<5x1xi1>
    %239 = vector.broadcast %238 : vector<5x1xi1> to vector<5x5xi1>
    %240 = vector.shape_cast %237 : vector<1x5xf32> to vector<1x5xf32>
    %241 = vector.broadcast %240 : vector<1x5xf32> to vector<5x5xf32>
    %242 = arith.select %239, %241, %195 : vector<5x5xi1>, vector<5x5xf32>
    %243 = vector.shape_cast %223 : vector<5x1xi1> to vector<5x1xi1>
    %244 = vector.broadcast %243 : vector<5x1xi1> to vector<5x5xi1>
    %245 = vector.shape_cast %221 : vector<1x5xf32> to vector<1x5xf32>
    %246 = vector.broadcast %245 : vector<1x5xf32> to vector<5x5xf32>
    %247 = arith.select %244, %246, %242 : vector<5x5xi1>, vector<5x5xf32>
    %248 = vector.extract_strided_slice %236 {offsets = [0, 0], sizes = [1, 1], strides = [1, 1]} : vector<5x5xf32> to vector<1x1xf32>
    %cst_87 = arith.constant 1.000000e+00 : f32
    %249 = vector.broadcast %cst_87 : f32 to vector<1x1xf32>
    %250 = arith.divf %249, %248 : vector<1x1xf32>
    %cst_88 = arith.constant 1.000000e+00 : f32
    %251 = vector.broadcast %cst_88 : f32 to vector<1x1xf32>
    %252 = arith.subf %251, %250 : vector<1x1xf32>
    %253 = vector.extract_strided_slice %236 {offsets = [0, 0], sizes = [5, 1], strides = [1, 1]} : vector<5x5xf32> to vector<5x1xf32>
    %254 = vector.broadcast %250 : vector<1x1xf32> to vector<5x1xf32>
    %255 = arith.mulf %253, %254 : vector<5x1xf32>
    %256 = vector.shape_cast %252 : vector<1x1xf32> to vector<1x1xf32>
    %257 = vector.broadcast %256 : vector<1x1xf32> to vector<5x1xf32>
    %258 = arith.select %223, %257, %255 : vector<5x1xi1>, vector<5x1xf32>
    %259 = vector.extract_strided_slice %236 {offsets = [0, 0], sizes = [1, 5], strides = [1, 1]} : vector<5x5xf32> to vector<1x5xf32>
    %260 = vector.broadcast %258 : vector<5x1xf32> to vector<5x5xf32>
    %261 = vector.broadcast %259 : vector<1x5xf32> to vector<5x5xf32>
    %262 = arith.mulf %260, %261 : vector<5x5xf32>
    %263 = arith.subf %236, %262 : vector<5x5xf32>
    %264 = vector.extract_strided_slice %247 {offsets = [0, 0], sizes = [1, 5], strides = [1, 1]} : vector<5x5xf32> to vector<1x5xf32>
    %265 = vector.broadcast %258 : vector<5x1xf32> to vector<5x5xf32>
    %266 = vector.broadcast %264 : vector<1x5xf32> to vector<5x5xf32>
    %267 = arith.mulf %265, %266 : vector<5x5xf32>
    %268 = arith.subf %247, %267 : vector<5x5xf32>
    %c1_i32 = arith.constant 1 : i32
    %269 = vector.broadcast %c1_i32 : i32 to vector<5x1xi32>
    %270 = arith.cmpi sge, %191, %269 : vector<5x1xi32>
    %271 = vector.extract_strided_slice %263 {offsets = [0, 1], sizes = [5, 1], strides = [1, 1]} : vector<5x5xf32> to vector<5x1xf32>
    %272 = math.absf %271 : vector<5x1xf32>
    %cst_89 = arith.constant -1.000000e+00 : f32
    %273 = vector.broadcast %cst_89 : f32 to vector<5x1xf32>
    %274 = arith.select %270, %272, %273 : vector<5x1xi1>, vector<5x1xf32>
    %275 = arith.sitofp %191 : vector<5x1xi32> to vector<5x1xf32>
    %cst_90 = arith.constant 9.99999997E-7 : f32
    %276 = vector.broadcast %cst_90 : f32 to vector<5x1xf32>
    %277 = arith.mulf %276, %275 : vector<5x1xf32>
    %cst_91 = arith.constant 1.000000e+00 : f32
    %278 = vector.broadcast %cst_91 : f32 to vector<5x1xf32>
    %279 = arith.subf %278, %277 : vector<5x1xf32>
    %280 = arith.mulf %274, %279 : vector<5x1xf32>
    %cst_92 = arith.constant dense<0xFF800000> : vector<1xf32>
    %281 = vector.multi_reduction <maximumf>, %280, %cst_92 [0] : vector<5x1xf32> to vector<1xf32>
    %282 = vector.shape_cast %281 : vector<1xf32> to vector<1x1xf32>
    %283 = vector.broadcast %282 : vector<1x1xf32> to vector<5x1xf32>
    %284 = arith.cmpf oge, %280, %283 : vector<5x1xf32>
    %285 = arith.extui %284 : vector<5x1xi1> to vector<5x1xi32>
    %286 = arith.sitofp %285 : vector<5x1xi32> to vector<5x1xf32>
    %287 = vector.broadcast %286 : vector<5x1xf32> to vector<5x5xf32>
    %288 = arith.mulf %287, %263 : vector<5x5xf32>
    %cst_93 = arith.constant dense<0.000000e+00> : vector<5xf32>
    %289 = vector.multi_reduction <add>, %288, %cst_93 [0] : vector<5x5xf32> to vector<5xf32>
    %290 = vector.shape_cast %289 : vector<5xf32> to vector<1x5xf32>
    %291 = vector.broadcast %286 : vector<5x1xf32> to vector<5x5xf32>
    %292 = arith.mulf %291, %268 : vector<5x5xf32>
    %cst_94 = arith.constant dense<0.000000e+00> : vector<5xf32>
    %293 = vector.multi_reduction <add>, %292, %cst_94 [0] : vector<5x5xf32> to vector<5xf32>
    %294 = vector.shape_cast %293 : vector<5xf32> to vector<1x5xf32>
    %c1_i32_95 = arith.constant 1 : i32
    %295 = vector.broadcast %c1_i32_95 : i32 to vector<5x1xi32>
    %296 = arith.cmpi eq, %191, %295 : vector<5x1xi32>
    %cst_96 = arith.constant 5.000000e-01 : f32
    %297 = vector.broadcast %cst_96 : f32 to vector<5x1xf32>
    %298 = arith.cmpf ogt, %286, %297 : vector<5x1xf32>
    %299 = vector.extract_strided_slice %263 {offsets = [1, 0], sizes = [1, 5], strides = [1, 1]} : vector<5x5xf32> to vector<1x5xf32>
    %300 = vector.shape_cast %298 : vector<5x1xi1> to vector<5x1xi1>
    %301 = vector.broadcast %300 : vector<5x1xi1> to vector<5x5xi1>
    %302 = vector.shape_cast %299 : vector<1x5xf32> to vector<1x5xf32>
    %303 = vector.broadcast %302 : vector<1x5xf32> to vector<5x5xf32>
    %304 = arith.select %301, %303, %263 : vector<5x5xi1>, vector<5x5xf32>
    %305 = vector.shape_cast %296 : vector<5x1xi1> to vector<5x1xi1>
    %306 = vector.broadcast %305 : vector<5x1xi1> to vector<5x5xi1>
    %307 = vector.shape_cast %290 : vector<1x5xf32> to vector<1x5xf32>
    %308 = vector.broadcast %307 : vector<1x5xf32> to vector<5x5xf32>
    %309 = arith.select %306, %308, %304 : vector<5x5xi1>, vector<5x5xf32>
    %310 = vector.extract_strided_slice %268 {offsets = [1, 0], sizes = [1, 5], strides = [1, 1]} : vector<5x5xf32> to vector<1x5xf32>
    %311 = vector.shape_cast %298 : vector<5x1xi1> to vector<5x1xi1>
    %312 = vector.broadcast %311 : vector<5x1xi1> to vector<5x5xi1>
    %313 = vector.shape_cast %310 : vector<1x5xf32> to vector<1x5xf32>
    %314 = vector.broadcast %313 : vector<1x5xf32> to vector<5x5xf32>
    %315 = arith.select %312, %314, %268 : vector<5x5xi1>, vector<5x5xf32>
    %316 = vector.shape_cast %296 : vector<5x1xi1> to vector<5x1xi1>
    %317 = vector.broadcast %316 : vector<5x1xi1> to vector<5x5xi1>
    %318 = vector.shape_cast %294 : vector<1x5xf32> to vector<1x5xf32>
    %319 = vector.broadcast %318 : vector<1x5xf32> to vector<5x5xf32>
    %320 = arith.select %317, %319, %315 : vector<5x5xi1>, vector<5x5xf32>
    %321 = vector.extract_strided_slice %309 {offsets = [1, 1], sizes = [1, 1], strides = [1, 1]} : vector<5x5xf32> to vector<1x1xf32>
    %cst_97 = arith.constant 1.000000e+00 : f32
    %322 = vector.broadcast %cst_97 : f32 to vector<1x1xf32>
    %323 = arith.divf %322, %321 : vector<1x1xf32>
    %cst_98 = arith.constant 1.000000e+00 : f32
    %324 = vector.broadcast %cst_98 : f32 to vector<1x1xf32>
    %325 = arith.subf %324, %323 : vector<1x1xf32>
    %326 = vector.extract_strided_slice %309 {offsets = [0, 1], sizes = [5, 1], strides = [1, 1]} : vector<5x5xf32> to vector<5x1xf32>
    %327 = vector.broadcast %323 : vector<1x1xf32> to vector<5x1xf32>
    %328 = arith.mulf %326, %327 : vector<5x1xf32>
    %329 = vector.shape_cast %325 : vector<1x1xf32> to vector<1x1xf32>
    %330 = vector.broadcast %329 : vector<1x1xf32> to vector<5x1xf32>
    %331 = arith.select %296, %330, %328 : vector<5x1xi1>, vector<5x1xf32>
    %332 = vector.extract_strided_slice %309 {offsets = [1, 0], sizes = [1, 5], strides = [1, 1]} : vector<5x5xf32> to vector<1x5xf32>
    %333 = vector.broadcast %331 : vector<5x1xf32> to vector<5x5xf32>
    %334 = vector.broadcast %332 : vector<1x5xf32> to vector<5x5xf32>
    %335 = arith.mulf %333, %334 : vector<5x5xf32>
    %336 = arith.subf %309, %335 : vector<5x5xf32>
    %337 = vector.extract_strided_slice %320 {offsets = [1, 0], sizes = [1, 5], strides = [1, 1]} : vector<5x5xf32> to vector<1x5xf32>
    %338 = vector.broadcast %331 : vector<5x1xf32> to vector<5x5xf32>
    %339 = vector.broadcast %337 : vector<1x5xf32> to vector<5x5xf32>
    %340 = arith.mulf %338, %339 : vector<5x5xf32>
    %341 = arith.subf %320, %340 : vector<5x5xf32>
    %c2_i32 = arith.constant 2 : i32
    %342 = vector.broadcast %c2_i32 : i32 to vector<5x1xi32>
    %343 = arith.cmpi sge, %191, %342 : vector<5x1xi32>
    %344 = vector.extract_strided_slice %336 {offsets = [0, 2], sizes = [5, 1], strides = [1, 1]} : vector<5x5xf32> to vector<5x1xf32>
    %345 = math.absf %344 : vector<5x1xf32>
    %cst_99 = arith.constant -1.000000e+00 : f32
    %346 = vector.broadcast %cst_99 : f32 to vector<5x1xf32>
    %347 = arith.select %343, %345, %346 : vector<5x1xi1>, vector<5x1xf32>
    %348 = arith.sitofp %191 : vector<5x1xi32> to vector<5x1xf32>
    %cst_100 = arith.constant 9.99999997E-7 : f32
    %349 = vector.broadcast %cst_100 : f32 to vector<5x1xf32>
    %350 = arith.mulf %349, %348 : vector<5x1xf32>
    %cst_101 = arith.constant 1.000000e+00 : f32
    %351 = vector.broadcast %cst_101 : f32 to vector<5x1xf32>
    %352 = arith.subf %351, %350 : vector<5x1xf32>
    %353 = arith.mulf %347, %352 : vector<5x1xf32>
    %cst_102 = arith.constant dense<0xFF800000> : vector<1xf32>
    %354 = vector.multi_reduction <maximumf>, %353, %cst_102 [0] : vector<5x1xf32> to vector<1xf32>
    %355 = vector.shape_cast %354 : vector<1xf32> to vector<1x1xf32>
    %356 = vector.broadcast %355 : vector<1x1xf32> to vector<5x1xf32>
    %357 = arith.cmpf oge, %353, %356 : vector<5x1xf32>
    %358 = arith.extui %357 : vector<5x1xi1> to vector<5x1xi32>
    %359 = arith.sitofp %358 : vector<5x1xi32> to vector<5x1xf32>
    %360 = vector.broadcast %359 : vector<5x1xf32> to vector<5x5xf32>
    %361 = arith.mulf %360, %336 : vector<5x5xf32>
    %cst_103 = arith.constant dense<0.000000e+00> : vector<5xf32>
    %362 = vector.multi_reduction <add>, %361, %cst_103 [0] : vector<5x5xf32> to vector<5xf32>
    %363 = vector.shape_cast %362 : vector<5xf32> to vector<1x5xf32>
    %364 = vector.broadcast %359 : vector<5x1xf32> to vector<5x5xf32>
    %365 = arith.mulf %364, %341 : vector<5x5xf32>
    %cst_104 = arith.constant dense<0.000000e+00> : vector<5xf32>
    %366 = vector.multi_reduction <add>, %365, %cst_104 [0] : vector<5x5xf32> to vector<5xf32>
    %367 = vector.shape_cast %366 : vector<5xf32> to vector<1x5xf32>
    %c2_i32_105 = arith.constant 2 : i32
    %368 = vector.broadcast %c2_i32_105 : i32 to vector<5x1xi32>
    %369 = arith.cmpi eq, %191, %368 : vector<5x1xi32>
    %cst_106 = arith.constant 5.000000e-01 : f32
    %370 = vector.broadcast %cst_106 : f32 to vector<5x1xf32>
    %371 = arith.cmpf ogt, %359, %370 : vector<5x1xf32>
    %372 = vector.extract_strided_slice %336 {offsets = [2, 0], sizes = [1, 5], strides = [1, 1]} : vector<5x5xf32> to vector<1x5xf32>
    %373 = vector.shape_cast %371 : vector<5x1xi1> to vector<5x1xi1>
    %374 = vector.broadcast %373 : vector<5x1xi1> to vector<5x5xi1>
    %375 = vector.shape_cast %372 : vector<1x5xf32> to vector<1x5xf32>
    %376 = vector.broadcast %375 : vector<1x5xf32> to vector<5x5xf32>
    %377 = arith.select %374, %376, %336 : vector<5x5xi1>, vector<5x5xf32>
    %378 = vector.shape_cast %369 : vector<5x1xi1> to vector<5x1xi1>
    %379 = vector.broadcast %378 : vector<5x1xi1> to vector<5x5xi1>
    %380 = vector.shape_cast %363 : vector<1x5xf32> to vector<1x5xf32>
    %381 = vector.broadcast %380 : vector<1x5xf32> to vector<5x5xf32>
    %382 = arith.select %379, %381, %377 : vector<5x5xi1>, vector<5x5xf32>
    %383 = vector.extract_strided_slice %341 {offsets = [2, 0], sizes = [1, 5], strides = [1, 1]} : vector<5x5xf32> to vector<1x5xf32>
    %384 = vector.shape_cast %371 : vector<5x1xi1> to vector<5x1xi1>
    %385 = vector.broadcast %384 : vector<5x1xi1> to vector<5x5xi1>
    %386 = vector.shape_cast %383 : vector<1x5xf32> to vector<1x5xf32>
    %387 = vector.broadcast %386 : vector<1x5xf32> to vector<5x5xf32>
    %388 = arith.select %385, %387, %341 : vector<5x5xi1>, vector<5x5xf32>
    %389 = vector.shape_cast %369 : vector<5x1xi1> to vector<5x1xi1>
    %390 = vector.broadcast %389 : vector<5x1xi1> to vector<5x5xi1>
    %391 = vector.shape_cast %367 : vector<1x5xf32> to vector<1x5xf32>
    %392 = vector.broadcast %391 : vector<1x5xf32> to vector<5x5xf32>
    %393 = arith.select %390, %392, %388 : vector<5x5xi1>, vector<5x5xf32>
    %394 = vector.extract_strided_slice %382 {offsets = [2, 2], sizes = [1, 1], strides = [1, 1]} : vector<5x5xf32> to vector<1x1xf32>
    %cst_107 = arith.constant 1.000000e+00 : f32
    %395 = vector.broadcast %cst_107 : f32 to vector<1x1xf32>
    %396 = arith.divf %395, %394 : vector<1x1xf32>
    %cst_108 = arith.constant 1.000000e+00 : f32
    %397 = vector.broadcast %cst_108 : f32 to vector<1x1xf32>
    %398 = arith.subf %397, %396 : vector<1x1xf32>
    %399 = vector.extract_strided_slice %382 {offsets = [0, 2], sizes = [5, 1], strides = [1, 1]} : vector<5x5xf32> to vector<5x1xf32>
    %400 = vector.broadcast %396 : vector<1x1xf32> to vector<5x1xf32>
    %401 = arith.mulf %399, %400 : vector<5x1xf32>
    %402 = vector.shape_cast %398 : vector<1x1xf32> to vector<1x1xf32>
    %403 = vector.broadcast %402 : vector<1x1xf32> to vector<5x1xf32>
    %404 = arith.select %369, %403, %401 : vector<5x1xi1>, vector<5x1xf32>
    %405 = vector.extract_strided_slice %382 {offsets = [2, 0], sizes = [1, 5], strides = [1, 1]} : vector<5x5xf32> to vector<1x5xf32>
    %406 = vector.broadcast %404 : vector<5x1xf32> to vector<5x5xf32>
    %407 = vector.broadcast %405 : vector<1x5xf32> to vector<5x5xf32>
    %408 = arith.mulf %406, %407 : vector<5x5xf32>
    %409 = arith.subf %382, %408 : vector<5x5xf32>
    %410 = vector.extract_strided_slice %393 {offsets = [2, 0], sizes = [1, 5], strides = [1, 1]} : vector<5x5xf32> to vector<1x5xf32>
    %411 = vector.broadcast %404 : vector<5x1xf32> to vector<5x5xf32>
    %412 = vector.broadcast %410 : vector<1x5xf32> to vector<5x5xf32>
    %413 = arith.mulf %411, %412 : vector<5x5xf32>
    %414 = arith.subf %393, %413 : vector<5x5xf32>
    %c3_i32 = arith.constant 3 : i32
    %415 = vector.broadcast %c3_i32 : i32 to vector<5x1xi32>
    %416 = arith.cmpi sge, %191, %415 : vector<5x1xi32>
    %417 = vector.extract_strided_slice %409 {offsets = [0, 3], sizes = [5, 1], strides = [1, 1]} : vector<5x5xf32> to vector<5x1xf32>
    %418 = math.absf %417 : vector<5x1xf32>
    %cst_109 = arith.constant -1.000000e+00 : f32
    %419 = vector.broadcast %cst_109 : f32 to vector<5x1xf32>
    %420 = arith.select %416, %418, %419 : vector<5x1xi1>, vector<5x1xf32>
    %421 = arith.sitofp %191 : vector<5x1xi32> to vector<5x1xf32>
    %cst_110 = arith.constant 9.99999997E-7 : f32
    %422 = vector.broadcast %cst_110 : f32 to vector<5x1xf32>
    %423 = arith.mulf %422, %421 : vector<5x1xf32>
    %cst_111 = arith.constant 1.000000e+00 : f32
    %424 = vector.broadcast %cst_111 : f32 to vector<5x1xf32>
    %425 = arith.subf %424, %423 : vector<5x1xf32>
    %426 = arith.mulf %420, %425 : vector<5x1xf32>
    %cst_112 = arith.constant dense<0xFF800000> : vector<1xf32>
    %427 = vector.multi_reduction <maximumf>, %426, %cst_112 [0] : vector<5x1xf32> to vector<1xf32>
    %428 = vector.shape_cast %427 : vector<1xf32> to vector<1x1xf32>
    %429 = vector.broadcast %428 : vector<1x1xf32> to vector<5x1xf32>
    %430 = arith.cmpf oge, %426, %429 : vector<5x1xf32>
    %431 = arith.extui %430 : vector<5x1xi1> to vector<5x1xi32>
    %432 = arith.sitofp %431 : vector<5x1xi32> to vector<5x1xf32>
    %433 = vector.broadcast %432 : vector<5x1xf32> to vector<5x5xf32>
    %434 = arith.mulf %433, %409 : vector<5x5xf32>
    %cst_113 = arith.constant dense<0.000000e+00> : vector<5xf32>
    %435 = vector.multi_reduction <add>, %434, %cst_113 [0] : vector<5x5xf32> to vector<5xf32>
    %436 = vector.shape_cast %435 : vector<5xf32> to vector<1x5xf32>
    %437 = vector.broadcast %432 : vector<5x1xf32> to vector<5x5xf32>
    %438 = arith.mulf %437, %414 : vector<5x5xf32>
    %cst_114 = arith.constant dense<0.000000e+00> : vector<5xf32>
    %439 = vector.multi_reduction <add>, %438, %cst_114 [0] : vector<5x5xf32> to vector<5xf32>
    %440 = vector.shape_cast %439 : vector<5xf32> to vector<1x5xf32>
    %c3_i32_115 = arith.constant 3 : i32
    %441 = vector.broadcast %c3_i32_115 : i32 to vector<5x1xi32>
    %442 = arith.cmpi eq, %191, %441 : vector<5x1xi32>
    %cst_116 = arith.constant 5.000000e-01 : f32
    %443 = vector.broadcast %cst_116 : f32 to vector<5x1xf32>
    %444 = arith.cmpf ogt, %432, %443 : vector<5x1xf32>
    %445 = vector.extract_strided_slice %409 {offsets = [3, 0], sizes = [1, 5], strides = [1, 1]} : vector<5x5xf32> to vector<1x5xf32>
    %446 = vector.shape_cast %444 : vector<5x1xi1> to vector<5x1xi1>
    %447 = vector.broadcast %446 : vector<5x1xi1> to vector<5x5xi1>
    %448 = vector.shape_cast %445 : vector<1x5xf32> to vector<1x5xf32>
    %449 = vector.broadcast %448 : vector<1x5xf32> to vector<5x5xf32>
    %450 = arith.select %447, %449, %409 : vector<5x5xi1>, vector<5x5xf32>
    %451 = vector.shape_cast %442 : vector<5x1xi1> to vector<5x1xi1>
    %452 = vector.broadcast %451 : vector<5x1xi1> to vector<5x5xi1>
    %453 = vector.shape_cast %436 : vector<1x5xf32> to vector<1x5xf32>
    %454 = vector.broadcast %453 : vector<1x5xf32> to vector<5x5xf32>
    %455 = arith.select %452, %454, %450 : vector<5x5xi1>, vector<5x5xf32>
    %456 = vector.extract_strided_slice %414 {offsets = [3, 0], sizes = [1, 5], strides = [1, 1]} : vector<5x5xf32> to vector<1x5xf32>
    %457 = vector.shape_cast %444 : vector<5x1xi1> to vector<5x1xi1>
    %458 = vector.broadcast %457 : vector<5x1xi1> to vector<5x5xi1>
    %459 = vector.shape_cast %456 : vector<1x5xf32> to vector<1x5xf32>
    %460 = vector.broadcast %459 : vector<1x5xf32> to vector<5x5xf32>
    %461 = arith.select %458, %460, %414 : vector<5x5xi1>, vector<5x5xf32>
    %462 = vector.shape_cast %442 : vector<5x1xi1> to vector<5x1xi1>
    %463 = vector.broadcast %462 : vector<5x1xi1> to vector<5x5xi1>
    %464 = vector.shape_cast %440 : vector<1x5xf32> to vector<1x5xf32>
    %465 = vector.broadcast %464 : vector<1x5xf32> to vector<5x5xf32>
    %466 = arith.select %463, %465, %461 : vector<5x5xi1>, vector<5x5xf32>
    %467 = vector.extract_strided_slice %455 {offsets = [3, 3], sizes = [1, 1], strides = [1, 1]} : vector<5x5xf32> to vector<1x1xf32>
    %cst_117 = arith.constant 1.000000e+00 : f32
    %468 = vector.broadcast %cst_117 : f32 to vector<1x1xf32>
    %469 = arith.divf %468, %467 : vector<1x1xf32>
    %cst_118 = arith.constant 1.000000e+00 : f32
    %470 = vector.broadcast %cst_118 : f32 to vector<1x1xf32>
    %471 = arith.subf %470, %469 : vector<1x1xf32>
    %472 = vector.extract_strided_slice %455 {offsets = [0, 3], sizes = [5, 1], strides = [1, 1]} : vector<5x5xf32> to vector<5x1xf32>
    %473 = vector.broadcast %469 : vector<1x1xf32> to vector<5x1xf32>
    %474 = arith.mulf %472, %473 : vector<5x1xf32>
    %475 = vector.shape_cast %471 : vector<1x1xf32> to vector<1x1xf32>
    %476 = vector.broadcast %475 : vector<1x1xf32> to vector<5x1xf32>
    %477 = arith.select %442, %476, %474 : vector<5x1xi1>, vector<5x1xf32>
    %478 = vector.extract_strided_slice %455 {offsets = [3, 0], sizes = [1, 5], strides = [1, 1]} : vector<5x5xf32> to vector<1x5xf32>
    %479 = vector.broadcast %477 : vector<5x1xf32> to vector<5x5xf32>
    %480 = vector.broadcast %478 : vector<1x5xf32> to vector<5x5xf32>
    %481 = arith.mulf %479, %480 : vector<5x5xf32>
    %482 = arith.subf %455, %481 : vector<5x5xf32>
    %483 = vector.extract_strided_slice %466 {offsets = [3, 0], sizes = [1, 5], strides = [1, 1]} : vector<5x5xf32> to vector<1x5xf32>
    %484 = vector.broadcast %477 : vector<5x1xf32> to vector<5x5xf32>
    %485 = vector.broadcast %483 : vector<1x5xf32> to vector<5x5xf32>
    %486 = arith.mulf %484, %485 : vector<5x5xf32>
    %487 = arith.subf %466, %486 : vector<5x5xf32>
    %c4_i32 = arith.constant 4 : i32
    %488 = vector.broadcast %c4_i32 : i32 to vector<5x1xi32>
    %489 = arith.cmpi sge, %191, %488 : vector<5x1xi32>
    %490 = vector.extract_strided_slice %482 {offsets = [0, 4], sizes = [5, 1], strides = [1, 1]} : vector<5x5xf32> to vector<5x1xf32>
    %491 = math.absf %490 : vector<5x1xf32>
    %cst_119 = arith.constant -1.000000e+00 : f32
    %492 = vector.broadcast %cst_119 : f32 to vector<5x1xf32>
    %493 = arith.select %489, %491, %492 : vector<5x1xi1>, vector<5x1xf32>
    %494 = arith.sitofp %191 : vector<5x1xi32> to vector<5x1xf32>
    %cst_120 = arith.constant 9.99999997E-7 : f32
    %495 = vector.broadcast %cst_120 : f32 to vector<5x1xf32>
    %496 = arith.mulf %495, %494 : vector<5x1xf32>
    %cst_121 = arith.constant 1.000000e+00 : f32
    %497 = vector.broadcast %cst_121 : f32 to vector<5x1xf32>
    %498 = arith.subf %497, %496 : vector<5x1xf32>
    %499 = arith.mulf %493, %498 : vector<5x1xf32>
    %cst_122 = arith.constant dense<0xFF800000> : vector<1xf32>
    %500 = vector.multi_reduction <maximumf>, %499, %cst_122 [0] : vector<5x1xf32> to vector<1xf32>
    %501 = vector.shape_cast %500 : vector<1xf32> to vector<1x1xf32>
    %502 = vector.broadcast %501 : vector<1x1xf32> to vector<5x1xf32>
    %503 = arith.cmpf oge, %499, %502 : vector<5x1xf32>
    %504 = arith.extui %503 : vector<5x1xi1> to vector<5x1xi32>
    %505 = arith.sitofp %504 : vector<5x1xi32> to vector<5x1xf32>
    %506 = vector.broadcast %505 : vector<5x1xf32> to vector<5x5xf32>
    %507 = arith.mulf %506, %482 : vector<5x5xf32>
    %cst_123 = arith.constant dense<0.000000e+00> : vector<5xf32>
    %508 = vector.multi_reduction <add>, %507, %cst_123 [0] : vector<5x5xf32> to vector<5xf32>
    %509 = vector.shape_cast %508 : vector<5xf32> to vector<1x5xf32>
    %510 = vector.broadcast %505 : vector<5x1xf32> to vector<5x5xf32>
    %511 = arith.mulf %510, %487 : vector<5x5xf32>
    %cst_124 = arith.constant dense<0.000000e+00> : vector<5xf32>
    %512 = vector.multi_reduction <add>, %511, %cst_124 [0] : vector<5x5xf32> to vector<5xf32>
    %513 = vector.shape_cast %512 : vector<5xf32> to vector<1x5xf32>
    %c4_i32_125 = arith.constant 4 : i32
    %514 = vector.broadcast %c4_i32_125 : i32 to vector<5x1xi32>
    %515 = arith.cmpi eq, %191, %514 : vector<5x1xi32>
    %cst_126 = arith.constant 5.000000e-01 : f32
    %516 = vector.broadcast %cst_126 : f32 to vector<5x1xf32>
    %517 = arith.cmpf ogt, %505, %516 : vector<5x1xf32>
    %518 = vector.extract_strided_slice %482 {offsets = [4, 0], sizes = [1, 5], strides = [1, 1]} : vector<5x5xf32> to vector<1x5xf32>
    %519 = vector.shape_cast %517 : vector<5x1xi1> to vector<5x1xi1>
    %520 = vector.broadcast %519 : vector<5x1xi1> to vector<5x5xi1>
    %521 = vector.shape_cast %518 : vector<1x5xf32> to vector<1x5xf32>
    %522 = vector.broadcast %521 : vector<1x5xf32> to vector<5x5xf32>
    %523 = arith.select %520, %522, %482 : vector<5x5xi1>, vector<5x5xf32>
    %524 = vector.shape_cast %515 : vector<5x1xi1> to vector<5x1xi1>
    %525 = vector.broadcast %524 : vector<5x1xi1> to vector<5x5xi1>
    %526 = vector.shape_cast %509 : vector<1x5xf32> to vector<1x5xf32>
    %527 = vector.broadcast %526 : vector<1x5xf32> to vector<5x5xf32>
    %528 = arith.select %525, %527, %523 : vector<5x5xi1>, vector<5x5xf32>
    %529 = vector.extract_strided_slice %487 {offsets = [4, 0], sizes = [1, 5], strides = [1, 1]} : vector<5x5xf32> to vector<1x5xf32>
    %530 = vector.shape_cast %517 : vector<5x1xi1> to vector<5x1xi1>
    %531 = vector.broadcast %530 : vector<5x1xi1> to vector<5x5xi1>
    %532 = vector.shape_cast %529 : vector<1x5xf32> to vector<1x5xf32>
    %533 = vector.broadcast %532 : vector<1x5xf32> to vector<5x5xf32>
    %534 = arith.select %531, %533, %487 : vector<5x5xi1>, vector<5x5xf32>
    %535 = vector.shape_cast %515 : vector<5x1xi1> to vector<5x1xi1>
    %536 = vector.broadcast %535 : vector<5x1xi1> to vector<5x5xi1>
    %537 = vector.shape_cast %513 : vector<1x5xf32> to vector<1x5xf32>
    %538 = vector.broadcast %537 : vector<1x5xf32> to vector<5x5xf32>
    %539 = arith.select %536, %538, %534 : vector<5x5xi1>, vector<5x5xf32>
    %540 = vector.extract_strided_slice %528 {offsets = [4, 4], sizes = [1, 1], strides = [1, 1]} : vector<5x5xf32> to vector<1x1xf32>
    %cst_127 = arith.constant 1.000000e+00 : f32
    %541 = vector.broadcast %cst_127 : f32 to vector<1x1xf32>
    %542 = arith.divf %541, %540 : vector<1x1xf32>
    %cst_128 = arith.constant 1.000000e+00 : f32
    %543 = vector.broadcast %cst_128 : f32 to vector<1x1xf32>
    %544 = arith.subf %543, %542 : vector<1x1xf32>
    %545 = vector.extract_strided_slice %528 {offsets = [0, 4], sizes = [5, 1], strides = [1, 1]} : vector<5x5xf32> to vector<5x1xf32>
    %546 = vector.broadcast %542 : vector<1x1xf32> to vector<5x1xf32>
    %547 = arith.mulf %545, %546 : vector<5x1xf32>
    %548 = vector.shape_cast %544 : vector<1x1xf32> to vector<1x1xf32>
    %549 = vector.broadcast %548 : vector<1x1xf32> to vector<5x1xf32>
    %550 = arith.select %515, %549, %547 : vector<5x1xi1>, vector<5x1xf32>
    %551 = vector.extract_strided_slice %539 {offsets = [4, 0], sizes = [1, 5], strides = [1, 1]} : vector<5x5xf32> to vector<1x5xf32>
    %552 = vector.broadcast %550 : vector<5x1xf32> to vector<5x5xf32>
    %553 = vector.broadcast %551 : vector<1x5xf32> to vector<5x5xf32>
    %554 = arith.mulf %552, %553 : vector<5x5xf32>
    %555 = arith.subf %539, %554 : vector<5x5xf32>
    %556 = vector.extract_strided_slice %0 {offsets = [0, 80], sizes = [5, 256], strides = [1, 1]} : vector<10x336xf32> to vector<5x256xf32>
    %557 = vector.extract_strided_slice %555 {offsets = [0, 0], sizes = [5, 1], strides = [1, 1]} : vector<5x5xf32> to vector<5x1xf32>
    %558 = vector.extract_strided_slice %556 {offsets = [0, 0], sizes = [1, 256], strides = [1, 1]} : vector<5x256xf32> to vector<1x256xf32>
    %559 = vector.broadcast %557 : vector<5x1xf32> to vector<5x256xf32>
    %560 = vector.broadcast %558 : vector<1x256xf32> to vector<5x256xf32>
    %561 = arith.mulf %559, %560 : vector<5x256xf32>
    %562 = vector.extract_strided_slice %555 {offsets = [0, 1], sizes = [5, 1], strides = [1, 1]} : vector<5x5xf32> to vector<5x1xf32>
    %563 = vector.extract_strided_slice %556 {offsets = [1, 0], sizes = [1, 256], strides = [1, 1]} : vector<5x256xf32> to vector<1x256xf32>
    %564 = vector.broadcast %562 : vector<5x1xf32> to vector<5x256xf32>
    %565 = vector.broadcast %563 : vector<1x256xf32> to vector<5x256xf32>
    %566 = arith.mulf %564, %565 : vector<5x256xf32>
    %567 = vector.extract_strided_slice %555 {offsets = [0, 2], sizes = [5, 1], strides = [1, 1]} : vector<5x5xf32> to vector<5x1xf32>
    %568 = vector.extract_strided_slice %556 {offsets = [2, 0], sizes = [1, 256], strides = [1, 1]} : vector<5x256xf32> to vector<1x256xf32>
    %569 = vector.broadcast %567 : vector<5x1xf32> to vector<5x256xf32>
    %570 = vector.broadcast %568 : vector<1x256xf32> to vector<5x256xf32>
    %571 = arith.mulf %569, %570 : vector<5x256xf32>
    %572 = vector.extract_strided_slice %555 {offsets = [0, 3], sizes = [5, 1], strides = [1, 1]} : vector<5x5xf32> to vector<5x1xf32>
    %573 = vector.extract_strided_slice %556 {offsets = [3, 0], sizes = [1, 256], strides = [1, 1]} : vector<5x256xf32> to vector<1x256xf32>
    %574 = vector.broadcast %572 : vector<5x1xf32> to vector<5x256xf32>
    %575 = vector.broadcast %573 : vector<1x256xf32> to vector<5x256xf32>
    %576 = arith.mulf %574, %575 : vector<5x256xf32>
    %577 = vector.extract_strided_slice %555 {offsets = [0, 4], sizes = [5, 1], strides = [1, 1]} : vector<5x5xf32> to vector<5x1xf32>
    %578 = vector.extract_strided_slice %556 {offsets = [4, 0], sizes = [1, 256], strides = [1, 1]} : vector<5x256xf32> to vector<1x256xf32>
    %579 = vector.broadcast %577 : vector<5x1xf32> to vector<5x256xf32>
    %580 = vector.broadcast %578 : vector<1x256xf32> to vector<5x256xf32>
    %581 = arith.mulf %579, %580 : vector<5x256xf32>
    %582 = arith.addf %561, %566 : vector<5x256xf32>
    %583 = arith.addf %571, %576 : vector<5x256xf32>
    %584 = arith.addf %582, %583 : vector<5x256xf32>
    %585 = arith.addf %584, %581 : vector<5x256xf32>
    %586 = vector.extract_strided_slice %585 {offsets = [0, 0], sizes = [1, 256], strides = [1, 1]} : vector<5x256xf32> to vector<1x256xf32>
    %587 = vector.extract_strided_slice %585 {offsets = [1, 0], sizes = [1, 256], strides = [1, 1]} : vector<5x256xf32> to vector<1x256xf32>
    %588 = vector.extract_strided_slice %585 {offsets = [2, 0], sizes = [1, 256], strides = [1, 1]} : vector<5x256xf32> to vector<1x256xf32>
    %589 = vector.extract_strided_slice %585 {offsets = [3, 0], sizes = [1, 256], strides = [1, 1]} : vector<5x256xf32> to vector<1x256xf32>
    %590 = vector.extract_strided_slice %585 {offsets = [4, 0], sizes = [1, 256], strides = [1, 1]} : vector<5x256xf32> to vector<1x256xf32>
    %591 = vector.extract_strided_slice %181 {offsets = [1, 0], sizes = [1, 25], strides = [1, 1]} : vector<2x25xf32> to vector<1x25xf32>
    %592 = vector.extract_strided_slice %591 {offsets = [0, 0], sizes = [1, 5], strides = [1, 1]} : vector<1x25xf32> to vector<1x5xf32>
    %593 = vector.extract_strided_slice %591 {offsets = [0, 5], sizes = [1, 5], strides = [1, 1]} : vector<1x25xf32> to vector<1x5xf32>
    %594 = vector.extract_strided_slice %591 {offsets = [0, 10], sizes = [1, 5], strides = [1, 1]} : vector<1x25xf32> to vector<1x5xf32>
    %595 = vector.extract_strided_slice %591 {offsets = [0, 15], sizes = [1, 5], strides = [1, 1]} : vector<1x25xf32> to vector<1x5xf32>
    %596 = vector.extract_strided_slice %591 {offsets = [0, 20], sizes = [1, 5], strides = [1, 1]} : vector<1x25xf32> to vector<1x5xf32>
    %597 = tpu.concatenate %592, %593, %594, %595, %596 in 0 : vector<1x5xf32>, vector<1x5xf32>, vector<1x5xf32>, vector<1x5xf32>, vector<1x5xf32> -> vector<5x5xf32>
    %598 = tpu.iota {dimensions = array<i32: 0>} : vector<5x5xi32>
    %599 = tpu.iota {dimensions = array<i32: 1>} : vector<5x5xi32>
    %600 = tpu.iota {dimensions = array<i32: 0>} : vector<5x1xi32>
    %601 = arith.cmpi eq, %598, %599 : vector<5x5xi32>
    %cst_129 = arith.constant 1.000000e+00 : f32
    %cst_130 = arith.constant 0.000000e+00 : f32
    %602 = vector.broadcast %cst_129 : f32 to vector<5x5xf32>
    %603 = vector.broadcast %cst_130 : f32 to vector<5x5xf32>
    %604 = arith.select %601, %602, %603 : vector<5x5xi1>, vector<5x5xf32>
    %c0_i32_131 = arith.constant 0 : i32
    %605 = vector.broadcast %c0_i32_131 : i32 to vector<5x1xi32>
    %606 = arith.cmpi sge, %600, %605 : vector<5x1xi32>
    %607 = vector.extract_strided_slice %597 {offsets = [0, 0], sizes = [5, 1], strides = [1, 1]} : vector<5x5xf32> to vector<5x1xf32>
    %608 = math.absf %607 : vector<5x1xf32>
    %cst_132 = arith.constant -1.000000e+00 : f32
    %609 = vector.broadcast %cst_132 : f32 to vector<5x1xf32>
    %610 = arith.select %606, %608, %609 : vector<5x1xi1>, vector<5x1xf32>
    %611 = arith.sitofp %600 : vector<5x1xi32> to vector<5x1xf32>
    %cst_133 = arith.constant 9.99999997E-7 : f32
    %612 = vector.broadcast %cst_133 : f32 to vector<5x1xf32>
    %613 = arith.mulf %612, %611 : vector<5x1xf32>
    %cst_134 = arith.constant 1.000000e+00 : f32
    %614 = vector.broadcast %cst_134 : f32 to vector<5x1xf32>
    %615 = arith.subf %614, %613 : vector<5x1xf32>
    %616 = arith.mulf %610, %615 : vector<5x1xf32>
    %cst_135 = arith.constant dense<0xFF800000> : vector<1xf32>
    %617 = vector.multi_reduction <maximumf>, %616, %cst_135 [0] : vector<5x1xf32> to vector<1xf32>
    %618 = vector.shape_cast %617 : vector<1xf32> to vector<1x1xf32>
    %619 = vector.broadcast %618 : vector<1x1xf32> to vector<5x1xf32>
    %620 = arith.cmpf oge, %616, %619 : vector<5x1xf32>
    %621 = arith.extui %620 : vector<5x1xi1> to vector<5x1xi32>
    %622 = arith.sitofp %621 : vector<5x1xi32> to vector<5x1xf32>
    %623 = vector.broadcast %622 : vector<5x1xf32> to vector<5x5xf32>
    %624 = arith.mulf %623, %597 : vector<5x5xf32>
    %cst_136 = arith.constant dense<0.000000e+00> : vector<5xf32>
    %625 = vector.multi_reduction <add>, %624, %cst_136 [0] : vector<5x5xf32> to vector<5xf32>
    %626 = vector.shape_cast %625 : vector<5xf32> to vector<1x5xf32>
    %627 = vector.broadcast %622 : vector<5x1xf32> to vector<5x5xf32>
    %628 = arith.mulf %627, %604 : vector<5x5xf32>
    %cst_137 = arith.constant dense<0.000000e+00> : vector<5xf32>
    %629 = vector.multi_reduction <add>, %628, %cst_137 [0] : vector<5x5xf32> to vector<5xf32>
    %630 = vector.shape_cast %629 : vector<5xf32> to vector<1x5xf32>
    %c0_i32_138 = arith.constant 0 : i32
    %631 = vector.broadcast %c0_i32_138 : i32 to vector<5x1xi32>
    %632 = arith.cmpi eq, %600, %631 : vector<5x1xi32>
    %cst_139 = arith.constant 5.000000e-01 : f32
    %633 = vector.broadcast %cst_139 : f32 to vector<5x1xf32>
    %634 = arith.cmpf ogt, %622, %633 : vector<5x1xf32>
    %635 = vector.extract_strided_slice %597 {offsets = [0, 0], sizes = [1, 5], strides = [1, 1]} : vector<5x5xf32> to vector<1x5xf32>
    %636 = vector.shape_cast %634 : vector<5x1xi1> to vector<5x1xi1>
    %637 = vector.broadcast %636 : vector<5x1xi1> to vector<5x5xi1>
    %638 = vector.shape_cast %635 : vector<1x5xf32> to vector<1x5xf32>
    %639 = vector.broadcast %638 : vector<1x5xf32> to vector<5x5xf32>
    %640 = arith.select %637, %639, %597 : vector<5x5xi1>, vector<5x5xf32>
    %641 = vector.shape_cast %632 : vector<5x1xi1> to vector<5x1xi1>
    %642 = vector.broadcast %641 : vector<5x1xi1> to vector<5x5xi1>
    %643 = vector.shape_cast %626 : vector<1x5xf32> to vector<1x5xf32>
    %644 = vector.broadcast %643 : vector<1x5xf32> to vector<5x5xf32>
    %645 = arith.select %642, %644, %640 : vector<5x5xi1>, vector<5x5xf32>
    %646 = vector.extract_strided_slice %604 {offsets = [0, 0], sizes = [1, 5], strides = [1, 1]} : vector<5x5xf32> to vector<1x5xf32>
    %647 = vector.shape_cast %634 : vector<5x1xi1> to vector<5x1xi1>
    %648 = vector.broadcast %647 : vector<5x1xi1> to vector<5x5xi1>
    %649 = vector.shape_cast %646 : vector<1x5xf32> to vector<1x5xf32>
    %650 = vector.broadcast %649 : vector<1x5xf32> to vector<5x5xf32>
    %651 = arith.select %648, %650, %604 : vector<5x5xi1>, vector<5x5xf32>
    %652 = vector.shape_cast %632 : vector<5x1xi1> to vector<5x1xi1>
    %653 = vector.broadcast %652 : vector<5x1xi1> to vector<5x5xi1>
    %654 = vector.shape_cast %630 : vector<1x5xf32> to vector<1x5xf32>
    %655 = vector.broadcast %654 : vector<1x5xf32> to vector<5x5xf32>
    %656 = arith.select %653, %655, %651 : vector<5x5xi1>, vector<5x5xf32>
    %657 = vector.extract_strided_slice %645 {offsets = [0, 0], sizes = [1, 1], strides = [1, 1]} : vector<5x5xf32> to vector<1x1xf32>
    %cst_140 = arith.constant 1.000000e+00 : f32
    %658 = vector.broadcast %cst_140 : f32 to vector<1x1xf32>
    %659 = arith.divf %658, %657 : vector<1x1xf32>
    %cst_141 = arith.constant 1.000000e+00 : f32
    %660 = vector.broadcast %cst_141 : f32 to vector<1x1xf32>
    %661 = arith.subf %660, %659 : vector<1x1xf32>
    %662 = vector.extract_strided_slice %645 {offsets = [0, 0], sizes = [5, 1], strides = [1, 1]} : vector<5x5xf32> to vector<5x1xf32>
    %663 = vector.broadcast %659 : vector<1x1xf32> to vector<5x1xf32>
    %664 = arith.mulf %662, %663 : vector<5x1xf32>
    %665 = vector.shape_cast %661 : vector<1x1xf32> to vector<1x1xf32>
    %666 = vector.broadcast %665 : vector<1x1xf32> to vector<5x1xf32>
    %667 = arith.select %632, %666, %664 : vector<5x1xi1>, vector<5x1xf32>
    %668 = vector.extract_strided_slice %645 {offsets = [0, 0], sizes = [1, 5], strides = [1, 1]} : vector<5x5xf32> to vector<1x5xf32>
    %669 = vector.broadcast %667 : vector<5x1xf32> to vector<5x5xf32>
    %670 = vector.broadcast %668 : vector<1x5xf32> to vector<5x5xf32>
    %671 = arith.mulf %669, %670 : vector<5x5xf32>
    %672 = arith.subf %645, %671 : vector<5x5xf32>
    %673 = vector.extract_strided_slice %656 {offsets = [0, 0], sizes = [1, 5], strides = [1, 1]} : vector<5x5xf32> to vector<1x5xf32>
    %674 = vector.broadcast %667 : vector<5x1xf32> to vector<5x5xf32>
    %675 = vector.broadcast %673 : vector<1x5xf32> to vector<5x5xf32>
    %676 = arith.mulf %674, %675 : vector<5x5xf32>
    %677 = arith.subf %656, %676 : vector<5x5xf32>
    %c1_i32_142 = arith.constant 1 : i32
    %678 = vector.broadcast %c1_i32_142 : i32 to vector<5x1xi32>
    %679 = arith.cmpi sge, %600, %678 : vector<5x1xi32>
    %680 = vector.extract_strided_slice %672 {offsets = [0, 1], sizes = [5, 1], strides = [1, 1]} : vector<5x5xf32> to vector<5x1xf32>
    %681 = math.absf %680 : vector<5x1xf32>
    %cst_143 = arith.constant -1.000000e+00 : f32
    %682 = vector.broadcast %cst_143 : f32 to vector<5x1xf32>
    %683 = arith.select %679, %681, %682 : vector<5x1xi1>, vector<5x1xf32>
    %684 = arith.sitofp %600 : vector<5x1xi32> to vector<5x1xf32>
    %cst_144 = arith.constant 9.99999997E-7 : f32
    %685 = vector.broadcast %cst_144 : f32 to vector<5x1xf32>
    %686 = arith.mulf %685, %684 : vector<5x1xf32>
    %cst_145 = arith.constant 1.000000e+00 : f32
    %687 = vector.broadcast %cst_145 : f32 to vector<5x1xf32>
    %688 = arith.subf %687, %686 : vector<5x1xf32>
    %689 = arith.mulf %683, %688 : vector<5x1xf32>
    %cst_146 = arith.constant dense<0xFF800000> : vector<1xf32>
    %690 = vector.multi_reduction <maximumf>, %689, %cst_146 [0] : vector<5x1xf32> to vector<1xf32>
    %691 = vector.shape_cast %690 : vector<1xf32> to vector<1x1xf32>
    %692 = vector.broadcast %691 : vector<1x1xf32> to vector<5x1xf32>
    %693 = arith.cmpf oge, %689, %692 : vector<5x1xf32>
    %694 = arith.extui %693 : vector<5x1xi1> to vector<5x1xi32>
    %695 = arith.sitofp %694 : vector<5x1xi32> to vector<5x1xf32>
    %696 = vector.broadcast %695 : vector<5x1xf32> to vector<5x5xf32>
    %697 = arith.mulf %696, %672 : vector<5x5xf32>
    %cst_147 = arith.constant dense<0.000000e+00> : vector<5xf32>
    %698 = vector.multi_reduction <add>, %697, %cst_147 [0] : vector<5x5xf32> to vector<5xf32>
    %699 = vector.shape_cast %698 : vector<5xf32> to vector<1x5xf32>
    %700 = vector.broadcast %695 : vector<5x1xf32> to vector<5x5xf32>
    %701 = arith.mulf %700, %677 : vector<5x5xf32>
    %cst_148 = arith.constant dense<0.000000e+00> : vector<5xf32>
    %702 = vector.multi_reduction <add>, %701, %cst_148 [0] : vector<5x5xf32> to vector<5xf32>
    %703 = vector.shape_cast %702 : vector<5xf32> to vector<1x5xf32>
    %c1_i32_149 = arith.constant 1 : i32
    %704 = vector.broadcast %c1_i32_149 : i32 to vector<5x1xi32>
    %705 = arith.cmpi eq, %600, %704 : vector<5x1xi32>
    %cst_150 = arith.constant 5.000000e-01 : f32
    %706 = vector.broadcast %cst_150 : f32 to vector<5x1xf32>
    %707 = arith.cmpf ogt, %695, %706 : vector<5x1xf32>
    %708 = vector.extract_strided_slice %672 {offsets = [1, 0], sizes = [1, 5], strides = [1, 1]} : vector<5x5xf32> to vector<1x5xf32>
    %709 = vector.shape_cast %707 : vector<5x1xi1> to vector<5x1xi1>
    %710 = vector.broadcast %709 : vector<5x1xi1> to vector<5x5xi1>
    %711 = vector.shape_cast %708 : vector<1x5xf32> to vector<1x5xf32>
    %712 = vector.broadcast %711 : vector<1x5xf32> to vector<5x5xf32>
    %713 = arith.select %710, %712, %672 : vector<5x5xi1>, vector<5x5xf32>
    %714 = vector.shape_cast %705 : vector<5x1xi1> to vector<5x1xi1>
    %715 = vector.broadcast %714 : vector<5x1xi1> to vector<5x5xi1>
    %716 = vector.shape_cast %699 : vector<1x5xf32> to vector<1x5xf32>
    %717 = vector.broadcast %716 : vector<1x5xf32> to vector<5x5xf32>
    %718 = arith.select %715, %717, %713 : vector<5x5xi1>, vector<5x5xf32>
    %719 = vector.extract_strided_slice %677 {offsets = [1, 0], sizes = [1, 5], strides = [1, 1]} : vector<5x5xf32> to vector<1x5xf32>
    %720 = vector.shape_cast %707 : vector<5x1xi1> to vector<5x1xi1>
    %721 = vector.broadcast %720 : vector<5x1xi1> to vector<5x5xi1>
    %722 = vector.shape_cast %719 : vector<1x5xf32> to vector<1x5xf32>
    %723 = vector.broadcast %722 : vector<1x5xf32> to vector<5x5xf32>
    %724 = arith.select %721, %723, %677 : vector<5x5xi1>, vector<5x5xf32>
    %725 = vector.shape_cast %705 : vector<5x1xi1> to vector<5x1xi1>
    %726 = vector.broadcast %725 : vector<5x1xi1> to vector<5x5xi1>
    %727 = vector.shape_cast %703 : vector<1x5xf32> to vector<1x5xf32>
    %728 = vector.broadcast %727 : vector<1x5xf32> to vector<5x5xf32>
    %729 = arith.select %726, %728, %724 : vector<5x5xi1>, vector<5x5xf32>
    %730 = vector.extract_strided_slice %718 {offsets = [1, 1], sizes = [1, 1], strides = [1, 1]} : vector<5x5xf32> to vector<1x1xf32>
    %cst_151 = arith.constant 1.000000e+00 : f32
    %731 = vector.broadcast %cst_151 : f32 to vector<1x1xf32>
    %732 = arith.divf %731, %730 : vector<1x1xf32>
    %cst_152 = arith.constant 1.000000e+00 : f32
    %733 = vector.broadcast %cst_152 : f32 to vector<1x1xf32>
    %734 = arith.subf %733, %732 : vector<1x1xf32>
    %735 = vector.extract_strided_slice %718 {offsets = [0, 1], sizes = [5, 1], strides = [1, 1]} : vector<5x5xf32> to vector<5x1xf32>
    %736 = vector.broadcast %732 : vector<1x1xf32> to vector<5x1xf32>
    %737 = arith.mulf %735, %736 : vector<5x1xf32>
    %738 = vector.shape_cast %734 : vector<1x1xf32> to vector<1x1xf32>
    %739 = vector.broadcast %738 : vector<1x1xf32> to vector<5x1xf32>
    %740 = arith.select %705, %739, %737 : vector<5x1xi1>, vector<5x1xf32>
    %741 = vector.extract_strided_slice %718 {offsets = [1, 0], sizes = [1, 5], strides = [1, 1]} : vector<5x5xf32> to vector<1x5xf32>
    %742 = vector.broadcast %740 : vector<5x1xf32> to vector<5x5xf32>
    %743 = vector.broadcast %741 : vector<1x5xf32> to vector<5x5xf32>
    %744 = arith.mulf %742, %743 : vector<5x5xf32>
    %745 = arith.subf %718, %744 : vector<5x5xf32>
    %746 = vector.extract_strided_slice %729 {offsets = [1, 0], sizes = [1, 5], strides = [1, 1]} : vector<5x5xf32> to vector<1x5xf32>
    %747 = vector.broadcast %740 : vector<5x1xf32> to vector<5x5xf32>
    %748 = vector.broadcast %746 : vector<1x5xf32> to vector<5x5xf32>
    %749 = arith.mulf %747, %748 : vector<5x5xf32>
    %750 = arith.subf %729, %749 : vector<5x5xf32>
    %c2_i32_153 = arith.constant 2 : i32
    %751 = vector.broadcast %c2_i32_153 : i32 to vector<5x1xi32>
    %752 = arith.cmpi sge, %600, %751 : vector<5x1xi32>
    %753 = vector.extract_strided_slice %745 {offsets = [0, 2], sizes = [5, 1], strides = [1, 1]} : vector<5x5xf32> to vector<5x1xf32>
    %754 = math.absf %753 : vector<5x1xf32>
    %cst_154 = arith.constant -1.000000e+00 : f32
    %755 = vector.broadcast %cst_154 : f32 to vector<5x1xf32>
    %756 = arith.select %752, %754, %755 : vector<5x1xi1>, vector<5x1xf32>
    %757 = arith.sitofp %600 : vector<5x1xi32> to vector<5x1xf32>
    %cst_155 = arith.constant 9.99999997E-7 : f32
    %758 = vector.broadcast %cst_155 : f32 to vector<5x1xf32>
    %759 = arith.mulf %758, %757 : vector<5x1xf32>
    %cst_156 = arith.constant 1.000000e+00 : f32
    %760 = vector.broadcast %cst_156 : f32 to vector<5x1xf32>
    %761 = arith.subf %760, %759 : vector<5x1xf32>
    %762 = arith.mulf %756, %761 : vector<5x1xf32>
    %cst_157 = arith.constant dense<0xFF800000> : vector<1xf32>
    %763 = vector.multi_reduction <maximumf>, %762, %cst_157 [0] : vector<5x1xf32> to vector<1xf32>
    %764 = vector.shape_cast %763 : vector<1xf32> to vector<1x1xf32>
    %765 = vector.broadcast %764 : vector<1x1xf32> to vector<5x1xf32>
    %766 = arith.cmpf oge, %762, %765 : vector<5x1xf32>
    %767 = arith.extui %766 : vector<5x1xi1> to vector<5x1xi32>
    %768 = arith.sitofp %767 : vector<5x1xi32> to vector<5x1xf32>
    %769 = vector.broadcast %768 : vector<5x1xf32> to vector<5x5xf32>
    %770 = arith.mulf %769, %745 : vector<5x5xf32>
    %cst_158 = arith.constant dense<0.000000e+00> : vector<5xf32>
    %771 = vector.multi_reduction <add>, %770, %cst_158 [0] : vector<5x5xf32> to vector<5xf32>
    %772 = vector.shape_cast %771 : vector<5xf32> to vector<1x5xf32>
    %773 = vector.broadcast %768 : vector<5x1xf32> to vector<5x5xf32>
    %774 = arith.mulf %773, %750 : vector<5x5xf32>
    %cst_159 = arith.constant dense<0.000000e+00> : vector<5xf32>
    %775 = vector.multi_reduction <add>, %774, %cst_159 [0] : vector<5x5xf32> to vector<5xf32>
    %776 = vector.shape_cast %775 : vector<5xf32> to vector<1x5xf32>
    %c2_i32_160 = arith.constant 2 : i32
    %777 = vector.broadcast %c2_i32_160 : i32 to vector<5x1xi32>
    %778 = arith.cmpi eq, %600, %777 : vector<5x1xi32>
    %cst_161 = arith.constant 5.000000e-01 : f32
    %779 = vector.broadcast %cst_161 : f32 to vector<5x1xf32>
    %780 = arith.cmpf ogt, %768, %779 : vector<5x1xf32>
    %781 = vector.extract_strided_slice %745 {offsets = [2, 0], sizes = [1, 5], strides = [1, 1]} : vector<5x5xf32> to vector<1x5xf32>
    %782 = vector.shape_cast %780 : vector<5x1xi1> to vector<5x1xi1>
    %783 = vector.broadcast %782 : vector<5x1xi1> to vector<5x5xi1>
    %784 = vector.shape_cast %781 : vector<1x5xf32> to vector<1x5xf32>
    %785 = vector.broadcast %784 : vector<1x5xf32> to vector<5x5xf32>
    %786 = arith.select %783, %785, %745 : vector<5x5xi1>, vector<5x5xf32>
    %787 = vector.shape_cast %778 : vector<5x1xi1> to vector<5x1xi1>
    %788 = vector.broadcast %787 : vector<5x1xi1> to vector<5x5xi1>
    %789 = vector.shape_cast %772 : vector<1x5xf32> to vector<1x5xf32>
    %790 = vector.broadcast %789 : vector<1x5xf32> to vector<5x5xf32>
    %791 = arith.select %788, %790, %786 : vector<5x5xi1>, vector<5x5xf32>
    %792 = vector.extract_strided_slice %750 {offsets = [2, 0], sizes = [1, 5], strides = [1, 1]} : vector<5x5xf32> to vector<1x5xf32>
    %793 = vector.shape_cast %780 : vector<5x1xi1> to vector<5x1xi1>
    %794 = vector.broadcast %793 : vector<5x1xi1> to vector<5x5xi1>
    %795 = vector.shape_cast %792 : vector<1x5xf32> to vector<1x5xf32>
    %796 = vector.broadcast %795 : vector<1x5xf32> to vector<5x5xf32>
    %797 = arith.select %794, %796, %750 : vector<5x5xi1>, vector<5x5xf32>
    %798 = vector.shape_cast %778 : vector<5x1xi1> to vector<5x1xi1>
    %799 = vector.broadcast %798 : vector<5x1xi1> to vector<5x5xi1>
    %800 = vector.shape_cast %776 : vector<1x5xf32> to vector<1x5xf32>
    %801 = vector.broadcast %800 : vector<1x5xf32> to vector<5x5xf32>
    %802 = arith.select %799, %801, %797 : vector<5x5xi1>, vector<5x5xf32>
    %803 = vector.extract_strided_slice %791 {offsets = [2, 2], sizes = [1, 1], strides = [1, 1]} : vector<5x5xf32> to vector<1x1xf32>
    %cst_162 = arith.constant 1.000000e+00 : f32
    %804 = vector.broadcast %cst_162 : f32 to vector<1x1xf32>
    %805 = arith.divf %804, %803 : vector<1x1xf32>
    %cst_163 = arith.constant 1.000000e+00 : f32
    %806 = vector.broadcast %cst_163 : f32 to vector<1x1xf32>
    %807 = arith.subf %806, %805 : vector<1x1xf32>
    %808 = vector.extract_strided_slice %791 {offsets = [0, 2], sizes = [5, 1], strides = [1, 1]} : vector<5x5xf32> to vector<5x1xf32>
    %809 = vector.broadcast %805 : vector<1x1xf32> to vector<5x1xf32>
    %810 = arith.mulf %808, %809 : vector<5x1xf32>
    %811 = vector.shape_cast %807 : vector<1x1xf32> to vector<1x1xf32>
    %812 = vector.broadcast %811 : vector<1x1xf32> to vector<5x1xf32>
    %813 = arith.select %778, %812, %810 : vector<5x1xi1>, vector<5x1xf32>
    %814 = vector.extract_strided_slice %791 {offsets = [2, 0], sizes = [1, 5], strides = [1, 1]} : vector<5x5xf32> to vector<1x5xf32>
    %815 = vector.broadcast %813 : vector<5x1xf32> to vector<5x5xf32>
    %816 = vector.broadcast %814 : vector<1x5xf32> to vector<5x5xf32>
    %817 = arith.mulf %815, %816 : vector<5x5xf32>
    %818 = arith.subf %791, %817 : vector<5x5xf32>
    %819 = vector.extract_strided_slice %802 {offsets = [2, 0], sizes = [1, 5], strides = [1, 1]} : vector<5x5xf32> to vector<1x5xf32>
    %820 = vector.broadcast %813 : vector<5x1xf32> to vector<5x5xf32>
    %821 = vector.broadcast %819 : vector<1x5xf32> to vector<5x5xf32>
    %822 = arith.mulf %820, %821 : vector<5x5xf32>
    %823 = arith.subf %802, %822 : vector<5x5xf32>
    %c3_i32_164 = arith.constant 3 : i32
    %824 = vector.broadcast %c3_i32_164 : i32 to vector<5x1xi32>
    %825 = arith.cmpi sge, %600, %824 : vector<5x1xi32>
    %826 = vector.extract_strided_slice %818 {offsets = [0, 3], sizes = [5, 1], strides = [1, 1]} : vector<5x5xf32> to vector<5x1xf32>
    %827 = math.absf %826 : vector<5x1xf32>
    %cst_165 = arith.constant -1.000000e+00 : f32
    %828 = vector.broadcast %cst_165 : f32 to vector<5x1xf32>
    %829 = arith.select %825, %827, %828 : vector<5x1xi1>, vector<5x1xf32>
    %830 = arith.sitofp %600 : vector<5x1xi32> to vector<5x1xf32>
    %cst_166 = arith.constant 9.99999997E-7 : f32
    %831 = vector.broadcast %cst_166 : f32 to vector<5x1xf32>
    %832 = arith.mulf %831, %830 : vector<5x1xf32>
    %cst_167 = arith.constant 1.000000e+00 : f32
    %833 = vector.broadcast %cst_167 : f32 to vector<5x1xf32>
    %834 = arith.subf %833, %832 : vector<5x1xf32>
    %835 = arith.mulf %829, %834 : vector<5x1xf32>
    %cst_168 = arith.constant dense<0xFF800000> : vector<1xf32>
    %836 = vector.multi_reduction <maximumf>, %835, %cst_168 [0] : vector<5x1xf32> to vector<1xf32>
    %837 = vector.shape_cast %836 : vector<1xf32> to vector<1x1xf32>
    %838 = vector.broadcast %837 : vector<1x1xf32> to vector<5x1xf32>
    %839 = arith.cmpf oge, %835, %838 : vector<5x1xf32>
    %840 = arith.extui %839 : vector<5x1xi1> to vector<5x1xi32>
    %841 = arith.sitofp %840 : vector<5x1xi32> to vector<5x1xf32>
    %842 = vector.broadcast %841 : vector<5x1xf32> to vector<5x5xf32>
    %843 = arith.mulf %842, %818 : vector<5x5xf32>
    %cst_169 = arith.constant dense<0.000000e+00> : vector<5xf32>
    %844 = vector.multi_reduction <add>, %843, %cst_169 [0] : vector<5x5xf32> to vector<5xf32>
    %845 = vector.shape_cast %844 : vector<5xf32> to vector<1x5xf32>
    %846 = vector.broadcast %841 : vector<5x1xf32> to vector<5x5xf32>
    %847 = arith.mulf %846, %823 : vector<5x5xf32>
    %cst_170 = arith.constant dense<0.000000e+00> : vector<5xf32>
    %848 = vector.multi_reduction <add>, %847, %cst_170 [0] : vector<5x5xf32> to vector<5xf32>
    %849 = vector.shape_cast %848 : vector<5xf32> to vector<1x5xf32>
    %c3_i32_171 = arith.constant 3 : i32
    %850 = vector.broadcast %c3_i32_171 : i32 to vector<5x1xi32>
    %851 = arith.cmpi eq, %600, %850 : vector<5x1xi32>
    %cst_172 = arith.constant 5.000000e-01 : f32
    %852 = vector.broadcast %cst_172 : f32 to vector<5x1xf32>
    %853 = arith.cmpf ogt, %841, %852 : vector<5x1xf32>
    %854 = vector.extract_strided_slice %818 {offsets = [3, 0], sizes = [1, 5], strides = [1, 1]} : vector<5x5xf32> to vector<1x5xf32>
    %855 = vector.shape_cast %853 : vector<5x1xi1> to vector<5x1xi1>
    %856 = vector.broadcast %855 : vector<5x1xi1> to vector<5x5xi1>
    %857 = vector.shape_cast %854 : vector<1x5xf32> to vector<1x5xf32>
    %858 = vector.broadcast %857 : vector<1x5xf32> to vector<5x5xf32>
    %859 = arith.select %856, %858, %818 : vector<5x5xi1>, vector<5x5xf32>
    %860 = vector.shape_cast %851 : vector<5x1xi1> to vector<5x1xi1>
    %861 = vector.broadcast %860 : vector<5x1xi1> to vector<5x5xi1>
    %862 = vector.shape_cast %845 : vector<1x5xf32> to vector<1x5xf32>
    %863 = vector.broadcast %862 : vector<1x5xf32> to vector<5x5xf32>
    %864 = arith.select %861, %863, %859 : vector<5x5xi1>, vector<5x5xf32>
    %865 = vector.extract_strided_slice %823 {offsets = [3, 0], sizes = [1, 5], strides = [1, 1]} : vector<5x5xf32> to vector<1x5xf32>
    %866 = vector.shape_cast %853 : vector<5x1xi1> to vector<5x1xi1>
    %867 = vector.broadcast %866 : vector<5x1xi1> to vector<5x5xi1>
    %868 = vector.shape_cast %865 : vector<1x5xf32> to vector<1x5xf32>
    %869 = vector.broadcast %868 : vector<1x5xf32> to vector<5x5xf32>
    %870 = arith.select %867, %869, %823 : vector<5x5xi1>, vector<5x5xf32>
    %871 = vector.shape_cast %851 : vector<5x1xi1> to vector<5x1xi1>
    %872 = vector.broadcast %871 : vector<5x1xi1> to vector<5x5xi1>
    %873 = vector.shape_cast %849 : vector<1x5xf32> to vector<1x5xf32>
    %874 = vector.broadcast %873 : vector<1x5xf32> to vector<5x5xf32>
    %875 = arith.select %872, %874, %870 : vector<5x5xi1>, vector<5x5xf32>
    %876 = vector.extract_strided_slice %864 {offsets = [3, 3], sizes = [1, 1], strides = [1, 1]} : vector<5x5xf32> to vector<1x1xf32>
    %cst_173 = arith.constant 1.000000e+00 : f32
    %877 = vector.broadcast %cst_173 : f32 to vector<1x1xf32>
    %878 = arith.divf %877, %876 : vector<1x1xf32>
    %cst_174 = arith.constant 1.000000e+00 : f32
    %879 = vector.broadcast %cst_174 : f32 to vector<1x1xf32>
    %880 = arith.subf %879, %878 : vector<1x1xf32>
    %881 = vector.extract_strided_slice %864 {offsets = [0, 3], sizes = [5, 1], strides = [1, 1]} : vector<5x5xf32> to vector<5x1xf32>
    %882 = vector.broadcast %878 : vector<1x1xf32> to vector<5x1xf32>
    %883 = arith.mulf %881, %882 : vector<5x1xf32>
    %884 = vector.shape_cast %880 : vector<1x1xf32> to vector<1x1xf32>
    %885 = vector.broadcast %884 : vector<1x1xf32> to vector<5x1xf32>
    %886 = arith.select %851, %885, %883 : vector<5x1xi1>, vector<5x1xf32>
    %887 = vector.extract_strided_slice %864 {offsets = [3, 0], sizes = [1, 5], strides = [1, 1]} : vector<5x5xf32> to vector<1x5xf32>
    %888 = vector.broadcast %886 : vector<5x1xf32> to vector<5x5xf32>
    %889 = vector.broadcast %887 : vector<1x5xf32> to vector<5x5xf32>
    %890 = arith.mulf %888, %889 : vector<5x5xf32>
    %891 = arith.subf %864, %890 : vector<5x5xf32>
    %892 = vector.extract_strided_slice %875 {offsets = [3, 0], sizes = [1, 5], strides = [1, 1]} : vector<5x5xf32> to vector<1x5xf32>
    %893 = vector.broadcast %886 : vector<5x1xf32> to vector<5x5xf32>
    %894 = vector.broadcast %892 : vector<1x5xf32> to vector<5x5xf32>
    %895 = arith.mulf %893, %894 : vector<5x5xf32>
    %896 = arith.subf %875, %895 : vector<5x5xf32>
    %c4_i32_175 = arith.constant 4 : i32
    %897 = vector.broadcast %c4_i32_175 : i32 to vector<5x1xi32>
    %898 = arith.cmpi sge, %600, %897 : vector<5x1xi32>
    %899 = vector.extract_strided_slice %891 {offsets = [0, 4], sizes = [5, 1], strides = [1, 1]} : vector<5x5xf32> to vector<5x1xf32>
    %900 = math.absf %899 : vector<5x1xf32>
    %cst_176 = arith.constant -1.000000e+00 : f32
    %901 = vector.broadcast %cst_176 : f32 to vector<5x1xf32>
    %902 = arith.select %898, %900, %901 : vector<5x1xi1>, vector<5x1xf32>
    %903 = arith.sitofp %600 : vector<5x1xi32> to vector<5x1xf32>
    %cst_177 = arith.constant 9.99999997E-7 : f32
    %904 = vector.broadcast %cst_177 : f32 to vector<5x1xf32>
    %905 = arith.mulf %904, %903 : vector<5x1xf32>
    %cst_178 = arith.constant 1.000000e+00 : f32
    %906 = vector.broadcast %cst_178 : f32 to vector<5x1xf32>
    %907 = arith.subf %906, %905 : vector<5x1xf32>
    %908 = arith.mulf %902, %907 : vector<5x1xf32>
    %cst_179 = arith.constant dense<0xFF800000> : vector<1xf32>
    %909 = vector.multi_reduction <maximumf>, %908, %cst_179 [0] : vector<5x1xf32> to vector<1xf32>
    %910 = vector.shape_cast %909 : vector<1xf32> to vector<1x1xf32>
    %911 = vector.broadcast %910 : vector<1x1xf32> to vector<5x1xf32>
    %912 = arith.cmpf oge, %908, %911 : vector<5x1xf32>
    %913 = arith.extui %912 : vector<5x1xi1> to vector<5x1xi32>
    %914 = arith.sitofp %913 : vector<5x1xi32> to vector<5x1xf32>
    %915 = vector.broadcast %914 : vector<5x1xf32> to vector<5x5xf32>
    %916 = arith.mulf %915, %891 : vector<5x5xf32>
    %cst_180 = arith.constant dense<0.000000e+00> : vector<5xf32>
    %917 = vector.multi_reduction <add>, %916, %cst_180 [0] : vector<5x5xf32> to vector<5xf32>
    %918 = vector.shape_cast %917 : vector<5xf32> to vector<1x5xf32>
    %919 = vector.broadcast %914 : vector<5x1xf32> to vector<5x5xf32>
    %920 = arith.mulf %919, %896 : vector<5x5xf32>
    %cst_181 = arith.constant dense<0.000000e+00> : vector<5xf32>
    %921 = vector.multi_reduction <add>, %920, %cst_181 [0] : vector<5x5xf32> to vector<5xf32>
    %922 = vector.shape_cast %921 : vector<5xf32> to vector<1x5xf32>
    %c4_i32_182 = arith.constant 4 : i32
    %923 = vector.broadcast %c4_i32_182 : i32 to vector<5x1xi32>
    %924 = arith.cmpi eq, %600, %923 : vector<5x1xi32>
    %cst_183 = arith.constant 5.000000e-01 : f32
    %925 = vector.broadcast %cst_183 : f32 to vector<5x1xf32>
    %926 = arith.cmpf ogt, %914, %925 : vector<5x1xf32>
    %927 = vector.extract_strided_slice %891 {offsets = [4, 0], sizes = [1, 5], strides = [1, 1]} : vector<5x5xf32> to vector<1x5xf32>
    %928 = vector.shape_cast %926 : vector<5x1xi1> to vector<5x1xi1>
    %929 = vector.broadcast %928 : vector<5x1xi1> to vector<5x5xi1>
    %930 = vector.shape_cast %927 : vector<1x5xf32> to vector<1x5xf32>
    %931 = vector.broadcast %930 : vector<1x5xf32> to vector<5x5xf32>
    %932 = arith.select %929, %931, %891 : vector<5x5xi1>, vector<5x5xf32>
    %933 = vector.shape_cast %924 : vector<5x1xi1> to vector<5x1xi1>
    %934 = vector.broadcast %933 : vector<5x1xi1> to vector<5x5xi1>
    %935 = vector.shape_cast %918 : vector<1x5xf32> to vector<1x5xf32>
    %936 = vector.broadcast %935 : vector<1x5xf32> to vector<5x5xf32>
    %937 = arith.select %934, %936, %932 : vector<5x5xi1>, vector<5x5xf32>
    %938 = vector.extract_strided_slice %896 {offsets = [4, 0], sizes = [1, 5], strides = [1, 1]} : vector<5x5xf32> to vector<1x5xf32>
    %939 = vector.shape_cast %926 : vector<5x1xi1> to vector<5x1xi1>
    %940 = vector.broadcast %939 : vector<5x1xi1> to vector<5x5xi1>
    %941 = vector.shape_cast %938 : vector<1x5xf32> to vector<1x5xf32>
    %942 = vector.broadcast %941 : vector<1x5xf32> to vector<5x5xf32>
    %943 = arith.select %940, %942, %896 : vector<5x5xi1>, vector<5x5xf32>
    %944 = vector.shape_cast %924 : vector<5x1xi1> to vector<5x1xi1>
    %945 = vector.broadcast %944 : vector<5x1xi1> to vector<5x5xi1>
    %946 = vector.shape_cast %922 : vector<1x5xf32> to vector<1x5xf32>
    %947 = vector.broadcast %946 : vector<1x5xf32> to vector<5x5xf32>
    %948 = arith.select %945, %947, %943 : vector<5x5xi1>, vector<5x5xf32>
    %949 = vector.extract_strided_slice %937 {offsets = [4, 4], sizes = [1, 1], strides = [1, 1]} : vector<5x5xf32> to vector<1x1xf32>
    %cst_184 = arith.constant 1.000000e+00 : f32
    %950 = vector.broadcast %cst_184 : f32 to vector<1x1xf32>
    %951 = arith.divf %950, %949 : vector<1x1xf32>
    %cst_185 = arith.constant 1.000000e+00 : f32
    %952 = vector.broadcast %cst_185 : f32 to vector<1x1xf32>
    %953 = arith.subf %952, %951 : vector<1x1xf32>
    %954 = vector.extract_strided_slice %937 {offsets = [0, 4], sizes = [5, 1], strides = [1, 1]} : vector<5x5xf32> to vector<5x1xf32>
    %955 = vector.broadcast %951 : vector<1x1xf32> to vector<5x1xf32>
    %956 = arith.mulf %954, %955 : vector<5x1xf32>
    %957 = vector.shape_cast %953 : vector<1x1xf32> to vector<1x1xf32>
    %958 = vector.broadcast %957 : vector<1x1xf32> to vector<5x1xf32>
    %959 = arith.select %924, %958, %956 : vector<5x1xi1>, vector<5x1xf32>
    %960 = vector.extract_strided_slice %948 {offsets = [4, 0], sizes = [1, 5], strides = [1, 1]} : vector<5x5xf32> to vector<1x5xf32>
    %961 = vector.broadcast %959 : vector<5x1xf32> to vector<5x5xf32>
    %962 = vector.broadcast %960 : vector<1x5xf32> to vector<5x5xf32>
    %963 = arith.mulf %961, %962 : vector<5x5xf32>
    %964 = arith.subf %948, %963 : vector<5x5xf32>
    %965 = vector.extract_strided_slice %0 {offsets = [5, 80], sizes = [5, 256], strides = [1, 1]} : vector<10x336xf32> to vector<5x256xf32>
    %966 = vector.extract_strided_slice %964 {offsets = [0, 0], sizes = [5, 1], strides = [1, 1]} : vector<5x5xf32> to vector<5x1xf32>
    %967 = vector.extract_strided_slice %965 {offsets = [0, 0], sizes = [1, 256], strides = [1, 1]} : vector<5x256xf32> to vector<1x256xf32>
    %968 = vector.broadcast %966 : vector<5x1xf32> to vector<5x256xf32>
    %969 = vector.broadcast %967 : vector<1x256xf32> to vector<5x256xf32>
    %970 = arith.mulf %968, %969 : vector<5x256xf32>
    %971 = vector.extract_strided_slice %964 {offsets = [0, 1], sizes = [5, 1], strides = [1, 1]} : vector<5x5xf32> to vector<5x1xf32>
    %972 = vector.extract_strided_slice %965 {offsets = [1, 0], sizes = [1, 256], strides = [1, 1]} : vector<5x256xf32> to vector<1x256xf32>
    %973 = vector.broadcast %971 : vector<5x1xf32> to vector<5x256xf32>
    %974 = vector.broadcast %972 : vector<1x256xf32> to vector<5x256xf32>
    %975 = arith.mulf %973, %974 : vector<5x256xf32>
    %976 = vector.extract_strided_slice %964 {offsets = [0, 2], sizes = [5, 1], strides = [1, 1]} : vector<5x5xf32> to vector<5x1xf32>
    %977 = vector.extract_strided_slice %965 {offsets = [2, 0], sizes = [1, 256], strides = [1, 1]} : vector<5x256xf32> to vector<1x256xf32>
    %978 = vector.broadcast %976 : vector<5x1xf32> to vector<5x256xf32>
    %979 = vector.broadcast %977 : vector<1x256xf32> to vector<5x256xf32>
    %980 = arith.mulf %978, %979 : vector<5x256xf32>
    %981 = vector.extract_strided_slice %964 {offsets = [0, 3], sizes = [5, 1], strides = [1, 1]} : vector<5x5xf32> to vector<5x1xf32>
    %982 = vector.extract_strided_slice %965 {offsets = [3, 0], sizes = [1, 256], strides = [1, 1]} : vector<5x256xf32> to vector<1x256xf32>
    %983 = vector.broadcast %981 : vector<5x1xf32> to vector<5x256xf32>
    %984 = vector.broadcast %982 : vector<1x256xf32> to vector<5x256xf32>
    %985 = arith.mulf %983, %984 : vector<5x256xf32>
    %986 = vector.extract_strided_slice %964 {offsets = [0, 4], sizes = [5, 1], strides = [1, 1]} : vector<5x5xf32> to vector<5x1xf32>
    %987 = vector.extract_strided_slice %965 {offsets = [4, 0], sizes = [1, 256], strides = [1, 1]} : vector<5x256xf32> to vector<1x256xf32>
    %988 = vector.broadcast %986 : vector<5x1xf32> to vector<5x256xf32>
    %989 = vector.broadcast %987 : vector<1x256xf32> to vector<5x256xf32>
    %990 = arith.mulf %988, %989 : vector<5x256xf32>
    %991 = arith.addf %970, %975 : vector<5x256xf32>
    %992 = arith.addf %980, %985 : vector<5x256xf32>
    %993 = arith.addf %991, %992 : vector<5x256xf32>
    %994 = arith.addf %993, %990 : vector<5x256xf32>
    %995 = vector.extract_strided_slice %994 {offsets = [0, 0], sizes = [1, 256], strides = [1, 1]} : vector<5x256xf32> to vector<1x256xf32>
    %996 = vector.extract_strided_slice %994 {offsets = [1, 0], sizes = [1, 256], strides = [1, 1]} : vector<5x256xf32> to vector<1x256xf32>
    %997 = vector.extract_strided_slice %994 {offsets = [2, 0], sizes = [1, 256], strides = [1, 1]} : vector<5x256xf32> to vector<1x256xf32>
    %998 = vector.extract_strided_slice %994 {offsets = [3, 0], sizes = [1, 256], strides = [1, 1]} : vector<5x256xf32> to vector<1x256xf32>
    %999 = vector.extract_strided_slice %994 {offsets = [4, 0], sizes = [1, 256], strides = [1, 1]} : vector<5x256xf32> to vector<1x256xf32>
    %1000 = tpu.concatenate %586, %995, %587, %996, %588, %997, %589, %998, %590, %999 in 0 : vector<1x256xf32>, vector<1x256xf32>, vector<1x256xf32>, vector<1x256xf32>, vector<1x256xf32>, vector<1x256xf32>, vector<1x256xf32>, vector<1x256xf32>, vector<1x256xf32>, vector<1x256xf32> -> vector<10x256xf32>
    %1001 = vector.extract_strided_slice %1000 {offsets = [0, 0], sizes = [2, 256], strides = [1, 1]} : vector<10x256xf32> to vector<2x256xf32>
    %cst_186 = arith.constant dense<0.000000e+00> : vector<2xf32>
    %1002 = vector.multi_reduction <add>, %1001, %cst_186 [1] : vector<2x256xf32> to vector<2xf32>
    %1003 = vector.shape_cast %1002 : vector<2xf32> to vector<2x1xf32>
    %cst_187 = arith.constant dense<0.000000e+00> : vector<1xf32>
    %1004 = vector.multi_reduction <add>, %1003, %cst_187 [0] : vector<2x1xf32> to vector<1xf32>
    %1005 = vector.shape_cast %1004 : vector<1xf32> to vector<1x1xf32>
    %cst_188 = arith.constant 0.001953125 : f32
    %1006 = vector.broadcast %cst_188 : f32 to vector<1x1xf32>
    %1007 = arith.mulf %1005, %1006 : vector<1x1xf32>
    %1008 = vector.broadcast %1007 : vector<1x1xf32> to vector<2x256xf32>
    %1009 = arith.subf %1001, %1008 : vector<2x256xf32>
    %1010 = arith.mulf %1009, %1009 : vector<2x256xf32>
    %cst_189 = arith.constant dense<0.000000e+00> : vector<2xf32>
    %1011 = vector.multi_reduction <add>, %1010, %cst_189 [1] : vector<2x256xf32> to vector<2xf32>
    %1012 = vector.shape_cast %1011 : vector<2xf32> to vector<2x1xf32>
    %cst_190 = arith.constant dense<0.000000e+00> : vector<1xf32>
    %1013 = vector.multi_reduction <add>, %1012, %cst_190 [0] : vector<2x1xf32> to vector<1xf32>
    %1014 = vector.shape_cast %1013 : vector<1xf32> to vector<1x1xf32>
    %cst_191 = arith.constant 0.001953125 : f32
    %1015 = vector.broadcast %cst_191 : f32 to vector<1x1xf32>
    %1016 = arith.mulf %1014, %1015 : vector<1x1xf32>
    %cst_192 = arith.constant 9.99999974E-6 : f32
    %1017 = vector.broadcast %cst_192 : f32 to vector<1x1xf32>
    %1018 = arith.addf %1016, %1017 : vector<1x1xf32>
    %1019 = math.rsqrt %1018 : vector<1x1xf32>
    %1020 = vector.broadcast %1019 : vector<1x1xf32> to vector<2x256xf32>
    %1021 = arith.mulf %1009, %1020 : vector<2x256xf32>
    %1022 = vector.extract_strided_slice %1000 {offsets = [2, 0], sizes = [2, 256], strides = [1, 1]} : vector<10x256xf32> to vector<2x256xf32>
    %cst_193 = arith.constant dense<0.000000e+00> : vector<2xf32>
    %1023 = vector.multi_reduction <add>, %1022, %cst_193 [1] : vector<2x256xf32> to vector<2xf32>
    %1024 = vector.shape_cast %1023 : vector<2xf32> to vector<2x1xf32>
    %cst_194 = arith.constant dense<0.000000e+00> : vector<1xf32>
    %1025 = vector.multi_reduction <add>, %1024, %cst_194 [0] : vector<2x1xf32> to vector<1xf32>
    %1026 = vector.shape_cast %1025 : vector<1xf32> to vector<1x1xf32>
    %cst_195 = arith.constant 0.001953125 : f32
    %1027 = vector.broadcast %cst_195 : f32 to vector<1x1xf32>
    %1028 = arith.mulf %1026, %1027 : vector<1x1xf32>
    %1029 = vector.broadcast %1028 : vector<1x1xf32> to vector<2x256xf32>
    %1030 = arith.subf %1022, %1029 : vector<2x256xf32>
    %1031 = arith.mulf %1030, %1030 : vector<2x256xf32>
    %cst_196 = arith.constant dense<0.000000e+00> : vector<2xf32>
    %1032 = vector.multi_reduction <add>, %1031, %cst_196 [1] : vector<2x256xf32> to vector<2xf32>
    %1033 = vector.shape_cast %1032 : vector<2xf32> to vector<2x1xf32>
    %cst_197 = arith.constant dense<0.000000e+00> : vector<1xf32>
    %1034 = vector.multi_reduction <add>, %1033, %cst_197 [0] : vector<2x1xf32> to vector<1xf32>
    %1035 = vector.shape_cast %1034 : vector<1xf32> to vector<1x1xf32>
    %cst_198 = arith.constant 0.001953125 : f32
    %1036 = vector.broadcast %cst_198 : f32 to vector<1x1xf32>
    %1037 = arith.mulf %1035, %1036 : vector<1x1xf32>
    %cst_199 = arith.constant 9.99999974E-6 : f32
    %1038 = vector.broadcast %cst_199 : f32 to vector<1x1xf32>
    %1039 = arith.addf %1037, %1038 : vector<1x1xf32>
    %1040 = math.rsqrt %1039 : vector<1x1xf32>
    %1041 = vector.broadcast %1040 : vector<1x1xf32> to vector<2x256xf32>
    %1042 = arith.mulf %1030, %1041 : vector<2x256xf32>
    %1043 = vector.extract_strided_slice %1000 {offsets = [4, 0], sizes = [2, 256], strides = [1, 1]} : vector<10x256xf32> to vector<2x256xf32>
    %cst_200 = arith.constant dense<0.000000e+00> : vector<2xf32>
    %1044 = vector.multi_reduction <add>, %1043, %cst_200 [1] : vector<2x256xf32> to vector<2xf32>
    %1045 = vector.shape_cast %1044 : vector<2xf32> to vector<2x1xf32>
    %cst_201 = arith.constant dense<0.000000e+00> : vector<1xf32>
    %1046 = vector.multi_reduction <add>, %1045, %cst_201 [0] : vector<2x1xf32> to vector<1xf32>
    %1047 = vector.shape_cast %1046 : vector<1xf32> to vector<1x1xf32>
    %cst_202 = arith.constant 0.001953125 : f32
    %1048 = vector.broadcast %cst_202 : f32 to vector<1x1xf32>
    %1049 = arith.mulf %1047, %1048 : vector<1x1xf32>
    %1050 = vector.broadcast %1049 : vector<1x1xf32> to vector<2x256xf32>
    %1051 = arith.subf %1043, %1050 : vector<2x256xf32>
    %1052 = arith.mulf %1051, %1051 : vector<2x256xf32>
    %cst_203 = arith.constant dense<0.000000e+00> : vector<2xf32>
    %1053 = vector.multi_reduction <add>, %1052, %cst_203 [1] : vector<2x256xf32> to vector<2xf32>
    %1054 = vector.shape_cast %1053 : vector<2xf32> to vector<2x1xf32>
    %cst_204 = arith.constant dense<0.000000e+00> : vector<1xf32>
    %1055 = vector.multi_reduction <add>, %1054, %cst_204 [0] : vector<2x1xf32> to vector<1xf32>
    %1056 = vector.shape_cast %1055 : vector<1xf32> to vector<1x1xf32>
    %cst_205 = arith.constant 0.001953125 : f32
    %1057 = vector.broadcast %cst_205 : f32 to vector<1x1xf32>
    %1058 = arith.mulf %1056, %1057 : vector<1x1xf32>
    %cst_206 = arith.constant 9.99999974E-6 : f32
    %1059 = vector.broadcast %cst_206 : f32 to vector<1x1xf32>
    %1060 = arith.addf %1058, %1059 : vector<1x1xf32>
    %1061 = math.rsqrt %1060 : vector<1x1xf32>
    %1062 = vector.broadcast %1061 : vector<1x1xf32> to vector<2x256xf32>
    %1063 = arith.mulf %1051, %1062 : vector<2x256xf32>
    %1064 = vector.extract_strided_slice %1000 {offsets = [6, 0], sizes = [2, 256], strides = [1, 1]} : vector<10x256xf32> to vector<2x256xf32>
    %cst_207 = arith.constant dense<0.000000e+00> : vector<2xf32>
    %1065 = vector.multi_reduction <add>, %1064, %cst_207 [1] : vector<2x256xf32> to vector<2xf32>
    %1066 = vector.shape_cast %1065 : vector<2xf32> to vector<2x1xf32>
    %cst_208 = arith.constant dense<0.000000e+00> : vector<1xf32>
    %1067 = vector.multi_reduction <add>, %1066, %cst_208 [0] : vector<2x1xf32> to vector<1xf32>
    %1068 = vector.shape_cast %1067 : vector<1xf32> to vector<1x1xf32>
    %cst_209 = arith.constant 0.001953125 : f32
    %1069 = vector.broadcast %cst_209 : f32 to vector<1x1xf32>
    %1070 = arith.mulf %1068, %1069 : vector<1x1xf32>
    %1071 = vector.broadcast %1070 : vector<1x1xf32> to vector<2x256xf32>
    %1072 = arith.subf %1064, %1071 : vector<2x256xf32>
    %1073 = arith.mulf %1072, %1072 : vector<2x256xf32>
    %cst_210 = arith.constant dense<0.000000e+00> : vector<2xf32>
    %1074 = vector.multi_reduction <add>, %1073, %cst_210 [1] : vector<2x256xf32> to vector<2xf32>
    %1075 = vector.shape_cast %1074 : vector<2xf32> to vector<2x1xf32>
    %cst_211 = arith.constant dense<0.000000e+00> : vector<1xf32>
    %1076 = vector.multi_reduction <add>, %1075, %cst_211 [0] : vector<2x1xf32> to vector<1xf32>
    %1077 = vector.shape_cast %1076 : vector<1xf32> to vector<1x1xf32>
    %cst_212 = arith.constant 0.001953125 : f32
    %1078 = vector.broadcast %cst_212 : f32 to vector<1x1xf32>
    %1079 = arith.mulf %1077, %1078 : vector<1x1xf32>
    %cst_213 = arith.constant 9.99999974E-6 : f32
    %1080 = vector.broadcast %cst_213 : f32 to vector<1x1xf32>
    %1081 = arith.addf %1079, %1080 : vector<1x1xf32>
    %1082 = math.rsqrt %1081 : vector<1x1xf32>
    %1083 = vector.broadcast %1082 : vector<1x1xf32> to vector<2x256xf32>
    %1084 = arith.mulf %1072, %1083 : vector<2x256xf32>
    %1085 = vector.extract_strided_slice %1000 {offsets = [8, 0], sizes = [2, 256], strides = [1, 1]} : vector<10x256xf32> to vector<2x256xf32>
    %cst_214 = arith.constant dense<0.000000e+00> : vector<2xf32>
    %1086 = vector.multi_reduction <add>, %1085, %cst_214 [1] : vector<2x256xf32> to vector<2xf32>
    %1087 = vector.shape_cast %1086 : vector<2xf32> to vector<2x1xf32>
    %cst_215 = arith.constant dense<0.000000e+00> : vector<1xf32>
    %1088 = vector.multi_reduction <add>, %1087, %cst_215 [0] : vector<2x1xf32> to vector<1xf32>
    %1089 = vector.shape_cast %1088 : vector<1xf32> to vector<1x1xf32>
    %cst_216 = arith.constant 0.001953125 : f32
    %1090 = vector.broadcast %cst_216 : f32 to vector<1x1xf32>
    %1091 = arith.mulf %1089, %1090 : vector<1x1xf32>
    %1092 = vector.broadcast %1091 : vector<1x1xf32> to vector<2x256xf32>
    %1093 = arith.subf %1085, %1092 : vector<2x256xf32>
    %1094 = arith.mulf %1093, %1093 : vector<2x256xf32>
    %cst_217 = arith.constant dense<0.000000e+00> : vector<2xf32>
    %1095 = vector.multi_reduction <add>, %1094, %cst_217 [1] : vector<2x256xf32> to vector<2xf32>
    %1096 = vector.shape_cast %1095 : vector<2xf32> to vector<2x1xf32>
    %cst_218 = arith.constant dense<0.000000e+00> : vector<1xf32>
    %1097 = vector.multi_reduction <add>, %1096, %cst_218 [0] : vector<2x1xf32> to vector<1xf32>
    %1098 = vector.shape_cast %1097 : vector<1xf32> to vector<1x1xf32>
    %cst_219 = arith.constant 0.001953125 : f32
    %1099 = vector.broadcast %cst_219 : f32 to vector<1x1xf32>
    %1100 = arith.mulf %1098, %1099 : vector<1x1xf32>
    %cst_220 = arith.constant 9.99999974E-6 : f32
    %1101 = vector.broadcast %cst_220 : f32 to vector<1x1xf32>
    %1102 = arith.addf %1100, %1101 : vector<1x1xf32>
    %1103 = math.rsqrt %1102 : vector<1x1xf32>
    %1104 = vector.broadcast %1103 : vector<1x1xf32> to vector<2x256xf32>
    %1105 = arith.mulf %1093, %1104 : vector<2x256xf32>
    %1106 = tpu.concatenate %1021, %1042, %1063, %1084, %1105 in 0 : vector<2x256xf32>, vector<2x256xf32>, vector<2x256xf32>, vector<2x256xf32>, vector<2x256xf32> -> vector<10x256xf32>
    %1107 = vector.extract_strided_slice %1106 {offsets = [0, 0], sizes = [2, 256], strides = [1, 1]} : vector<10x256xf32> to vector<2x256xf32>
    %c0_221 = arith.constant 0 : index
    %c0_222 = arith.constant 0 : index
    %c0_223 = arith.constant 0 : index
    %1108 = vector.load %arg6[%c0_221, %c0_222, %c0_223] : memref<5x256x156xf32, #tpu.memory_space<vmem>>, vector<1x256x156xf32>
    %1109 = vector.shape_cast %1108 : vector<1x256x156xf32> to vector<256x156xf32>
    %cst_224 = arith.constant dense<0.000000e+00> : vector<2x156xf32>
    %1110 = tpu.matmul %1107, %1109, %cst_224 {dimension_numbers = #tpu.dot_dimension_numbers<[1], [0], [0], [1], [0, 0, 1, 1], [], []>} : vector<2x256xf32>, vector<256x156xf32>, vector<2x156xf32> -> vector<2x156xf32>
    %1111 = vector.extract_strided_slice %1106 {offsets = [2, 0], sizes = [2, 256], strides = [1, 1]} : vector<10x256xf32> to vector<2x256xf32>
    %c1_225 = arith.constant 1 : index
    %c0_226 = arith.constant 0 : index
    %c0_227 = arith.constant 0 : index
    %1112 = vector.load %arg6[%c1_225, %c0_226, %c0_227] : memref<5x256x156xf32, #tpu.memory_space<vmem>>, vector<1x256x156xf32>
    %1113 = vector.shape_cast %1112 : vector<1x256x156xf32> to vector<256x156xf32>
    %cst_228 = arith.constant dense<0.000000e+00> : vector<2x156xf32>
    %1114 = tpu.matmul %1111, %1113, %cst_228 {dimension_numbers = #tpu.dot_dimension_numbers<[1], [0], [0], [1], [0, 0, 1, 1], [], []>} : vector<2x256xf32>, vector<256x156xf32>, vector<2x156xf32> -> vector<2x156xf32>
    %1115 = vector.extract_strided_slice %1106 {offsets = [4, 0], sizes = [2, 256], strides = [1, 1]} : vector<10x256xf32> to vector<2x256xf32>
    %c2_229 = arith.constant 2 : index
    %c0_230 = arith.constant 0 : index
    %c0_231 = arith.constant 0 : index
    %1116 = vector.load %arg6[%c2_229, %c0_230, %c0_231] : memref<5x256x156xf32, #tpu.memory_space<vmem>>, vector<1x256x156xf32>
    %1117 = vector.shape_cast %1116 : vector<1x256x156xf32> to vector<256x156xf32>
    %cst_232 = arith.constant dense<0.000000e+00> : vector<2x156xf32>
    %1118 = tpu.matmul %1115, %1117, %cst_232 {dimension_numbers = #tpu.dot_dimension_numbers<[1], [0], [0], [1], [0, 0, 1, 1], [], []>} : vector<2x256xf32>, vector<256x156xf32>, vector<2x156xf32> -> vector<2x156xf32>
    %1119 = vector.extract_strided_slice %1106 {offsets = [6, 0], sizes = [2, 256], strides = [1, 1]} : vector<10x256xf32> to vector<2x256xf32>
    %c3_233 = arith.constant 3 : index
    %c0_234 = arith.constant 0 : index
    %c0_235 = arith.constant 0 : index
    %1120 = vector.load %arg6[%c3_233, %c0_234, %c0_235] : memref<5x256x156xf32, #tpu.memory_space<vmem>>, vector<1x256x156xf32>
    %1121 = vector.shape_cast %1120 : vector<1x256x156xf32> to vector<256x156xf32>
    %cst_236 = arith.constant dense<0.000000e+00> : vector<2x156xf32>
    %1122 = tpu.matmul %1119, %1121, %cst_236 {dimension_numbers = #tpu.dot_dimension_numbers<[1], [0], [0], [1], [0, 0, 1, 1], [], []>} : vector<2x256xf32>, vector<256x156xf32>, vector<2x156xf32> -> vector<2x156xf32>
    %1123 = vector.extract_strided_slice %1106 {offsets = [8, 0], sizes = [2, 256], strides = [1, 1]} : vector<10x256xf32> to vector<2x256xf32>
    %c4_237 = arith.constant 4 : index
    %c0_238 = arith.constant 0 : index
    %c0_239 = arith.constant 0 : index
    %1124 = vector.load %arg6[%c4_237, %c0_238, %c0_239] : memref<5x256x156xf32, #tpu.memory_space<vmem>>, vector<1x256x156xf32>
    %1125 = vector.shape_cast %1124 : vector<1x256x156xf32> to vector<256x156xf32>
    %cst_240 = arith.constant dense<0.000000e+00> : vector<2x156xf32>
    %1126 = tpu.matmul %1123, %1125, %cst_240 {dimension_numbers = #tpu.dot_dimension_numbers<[1], [0], [0], [1], [0, 0, 1, 1], [], []>} : vector<2x256xf32>, vector<256x156xf32>, vector<2x156xf32> -> vector<2x156xf32>
    %1127 = tpu.concatenate %1110, %1114, %1118, %1122, %1126 in 0 : vector<2x156xf32>, vector<2x156xf32>, vector<2x156xf32>, vector<2x156xf32>, vector<2x156xf32> -> vector<10x156xf32>
    %1128 = vector.extract_strided_slice %1127 {offsets = [0, 0], sizes = [2, 156], strides = [1, 1]} : vector<10x156xf32> to vector<2x156xf32>
    %cst_241 = arith.constant dense<0.000000e+00> : vector<2xf32>
    %1129 = vector.multi_reduction <add>, %1128, %cst_241 [1] : vector<2x156xf32> to vector<2xf32>
    %1130 = vector.shape_cast %1129 : vector<2xf32> to vector<2x1xf32>
    %cst_242 = arith.constant dense<0.000000e+00> : vector<1xf32>
    %1131 = vector.multi_reduction <add>, %1130, %cst_242 [0] : vector<2x1xf32> to vector<1xf32>
    %1132 = vector.shape_cast %1131 : vector<1xf32> to vector<1x1xf32>
    %cst_243 = arith.constant 0.00320512825 : f32
    %1133 = vector.broadcast %cst_243 : f32 to vector<1x1xf32>
    %1134 = arith.mulf %1132, %1133 : vector<1x1xf32>
    %1135 = vector.broadcast %1134 : vector<1x1xf32> to vector<2x156xf32>
    %1136 = arith.subf %1128, %1135 : vector<2x156xf32>
    %1137 = arith.mulf %1136, %1136 : vector<2x156xf32>
    %cst_244 = arith.constant dense<0.000000e+00> : vector<2xf32>
    %1138 = vector.multi_reduction <add>, %1137, %cst_244 [1] : vector<2x156xf32> to vector<2xf32>
    %1139 = vector.shape_cast %1138 : vector<2xf32> to vector<2x1xf32>
    %cst_245 = arith.constant dense<0.000000e+00> : vector<1xf32>
    %1140 = vector.multi_reduction <add>, %1139, %cst_245 [0] : vector<2x1xf32> to vector<1xf32>
    %1141 = vector.shape_cast %1140 : vector<1xf32> to vector<1x1xf32>
    %cst_246 = arith.constant 0.00320512825 : f32
    %1142 = vector.broadcast %cst_246 : f32 to vector<1x1xf32>
    %1143 = arith.mulf %1141, %1142 : vector<1x1xf32>
    %cst_247 = arith.constant 9.99999974E-6 : f32
    %1144 = vector.broadcast %cst_247 : f32 to vector<1x1xf32>
    %1145 = arith.addf %1143, %1144 : vector<1x1xf32>
    %1146 = math.rsqrt %1145 : vector<1x1xf32>
    %1147 = vector.broadcast %1146 : vector<1x1xf32> to vector<2x156xf32>
    %1148 = arith.mulf %1136, %1147 : vector<2x156xf32>
    %1149 = vector.extract_strided_slice %1127 {offsets = [2, 0], sizes = [2, 156], strides = [1, 1]} : vector<10x156xf32> to vector<2x156xf32>
    %cst_248 = arith.constant dense<0.000000e+00> : vector<2xf32>
    %1150 = vector.multi_reduction <add>, %1149, %cst_248 [1] : vector<2x156xf32> to vector<2xf32>
    %1151 = vector.shape_cast %1150 : vector<2xf32> to vector<2x1xf32>
    %cst_249 = arith.constant dense<0.000000e+00> : vector<1xf32>
    %1152 = vector.multi_reduction <add>, %1151, %cst_249 [0] : vector<2x1xf32> to vector<1xf32>
    %1153 = vector.shape_cast %1152 : vector<1xf32> to vector<1x1xf32>
    %cst_250 = arith.constant 0.00320512825 : f32
    %1154 = vector.broadcast %cst_250 : f32 to vector<1x1xf32>
    %1155 = arith.mulf %1153, %1154 : vector<1x1xf32>
    %1156 = vector.broadcast %1155 : vector<1x1xf32> to vector<2x156xf32>
    %1157 = arith.subf %1149, %1156 : vector<2x156xf32>
    %1158 = arith.mulf %1157, %1157 : vector<2x156xf32>
    %cst_251 = arith.constant dense<0.000000e+00> : vector<2xf32>
    %1159 = vector.multi_reduction <add>, %1158, %cst_251 [1] : vector<2x156xf32> to vector<2xf32>
    %1160 = vector.shape_cast %1159 : vector<2xf32> to vector<2x1xf32>
    %cst_252 = arith.constant dense<0.000000e+00> : vector<1xf32>
    %1161 = vector.multi_reduction <add>, %1160, %cst_252 [0] : vector<2x1xf32> to vector<1xf32>
    %1162 = vector.shape_cast %1161 : vector<1xf32> to vector<1x1xf32>
    %cst_253 = arith.constant 0.00320512825 : f32
    %1163 = vector.broadcast %cst_253 : f32 to vector<1x1xf32>
    %1164 = arith.mulf %1162, %1163 : vector<1x1xf32>
    %cst_254 = arith.constant 9.99999974E-6 : f32
    %1165 = vector.broadcast %cst_254 : f32 to vector<1x1xf32>
    %1166 = arith.addf %1164, %1165 : vector<1x1xf32>
    %1167 = math.rsqrt %1166 : vector<1x1xf32>
    %1168 = vector.broadcast %1167 : vector<1x1xf32> to vector<2x156xf32>
    %1169 = arith.mulf %1157, %1168 : vector<2x156xf32>
    %1170 = vector.extract_strided_slice %1127 {offsets = [4, 0], sizes = [2, 156], strides = [1, 1]} : vector<10x156xf32> to vector<2x156xf32>
    %cst_255 = arith.constant dense<0.000000e+00> : vector<2xf32>
    %1171 = vector.multi_reduction <add>, %1170, %cst_255 [1] : vector<2x156xf32> to vector<2xf32>
    %1172 = vector.shape_cast %1171 : vector<2xf32> to vector<2x1xf32>
    %cst_256 = arith.constant dense<0.000000e+00> : vector<1xf32>
    %1173 = vector.multi_reduction <add>, %1172, %cst_256 [0] : vector<2x1xf32> to vector<1xf32>
    %1174 = vector.shape_cast %1173 : vector<1xf32> to vector<1x1xf32>
    %cst_257 = arith.constant 0.00320512825 : f32
    %1175 = vector.broadcast %cst_257 : f32 to vector<1x1xf32>
    %1176 = arith.mulf %1174, %1175 : vector<1x1xf32>
    %1177 = vector.broadcast %1176 : vector<1x1xf32> to vector<2x156xf32>
    %1178 = arith.subf %1170, %1177 : vector<2x156xf32>
    %1179 = arith.mulf %1178, %1178 : vector<2x156xf32>
    %cst_258 = arith.constant dense<0.000000e+00> : vector<2xf32>
    %1180 = vector.multi_reduction <add>, %1179, %cst_258 [1] : vector<2x156xf32> to vector<2xf32>
    %1181 = vector.shape_cast %1180 : vector<2xf32> to vector<2x1xf32>
    %cst_259 = arith.constant dense<0.000000e+00> : vector<1xf32>
    %1182 = vector.multi_reduction <add>, %1181, %cst_259 [0] : vector<2x1xf32> to vector<1xf32>
    %1183 = vector.shape_cast %1182 : vector<1xf32> to vector<1x1xf32>
    %cst_260 = arith.constant 0.00320512825 : f32
    %1184 = vector.broadcast %cst_260 : f32 to vector<1x1xf32>
    %1185 = arith.mulf %1183, %1184 : vector<1x1xf32>
    %cst_261 = arith.constant 9.99999974E-6 : f32
    %1186 = vector.broadcast %cst_261 : f32 to vector<1x1xf32>
    %1187 = arith.addf %1185, %1186 : vector<1x1xf32>
    %1188 = math.rsqrt %1187 : vector<1x1xf32>
    %1189 = vector.broadcast %1188 : vector<1x1xf32> to vector<2x156xf32>
    %1190 = arith.mulf %1178, %1189 : vector<2x156xf32>
    %1191 = vector.extract_strided_slice %1127 {offsets = [6, 0], sizes = [2, 156], strides = [1, 1]} : vector<10x156xf32> to vector<2x156xf32>
    %cst_262 = arith.constant dense<0.000000e+00> : vector<2xf32>
    %1192 = vector.multi_reduction <add>, %1191, %cst_262 [1] : vector<2x156xf32> to vector<2xf32>
    %1193 = vector.shape_cast %1192 : vector<2xf32> to vector<2x1xf32>
    %cst_263 = arith.constant dense<0.000000e+00> : vector<1xf32>
    %1194 = vector.multi_reduction <add>, %1193, %cst_263 [0] : vector<2x1xf32> to vector<1xf32>
    %1195 = vector.shape_cast %1194 : vector<1xf32> to vector<1x1xf32>
    %cst_264 = arith.constant 0.00320512825 : f32
    %1196 = vector.broadcast %cst_264 : f32 to vector<1x1xf32>
    %1197 = arith.mulf %1195, %1196 : vector<1x1xf32>
    %1198 = vector.broadcast %1197 : vector<1x1xf32> to vector<2x156xf32>
    %1199 = arith.subf %1191, %1198 : vector<2x156xf32>
    %1200 = arith.mulf %1199, %1199 : vector<2x156xf32>
    %cst_265 = arith.constant dense<0.000000e+00> : vector<2xf32>
    %1201 = vector.multi_reduction <add>, %1200, %cst_265 [1] : vector<2x156xf32> to vector<2xf32>
    %1202 = vector.shape_cast %1201 : vector<2xf32> to vector<2x1xf32>
    %cst_266 = arith.constant dense<0.000000e+00> : vector<1xf32>
    %1203 = vector.multi_reduction <add>, %1202, %cst_266 [0] : vector<2x1xf32> to vector<1xf32>
    %1204 = vector.shape_cast %1203 : vector<1xf32> to vector<1x1xf32>
    %cst_267 = arith.constant 0.00320512825 : f32
    %1205 = vector.broadcast %cst_267 : f32 to vector<1x1xf32>
    %1206 = arith.mulf %1204, %1205 : vector<1x1xf32>
    %cst_268 = arith.constant 9.99999974E-6 : f32
    %1207 = vector.broadcast %cst_268 : f32 to vector<1x1xf32>
    %1208 = arith.addf %1206, %1207 : vector<1x1xf32>
    %1209 = math.rsqrt %1208 : vector<1x1xf32>
    %1210 = vector.broadcast %1209 : vector<1x1xf32> to vector<2x156xf32>
    %1211 = arith.mulf %1199, %1210 : vector<2x156xf32>
    %1212 = vector.extract_strided_slice %1127 {offsets = [8, 0], sizes = [2, 156], strides = [1, 1]} : vector<10x156xf32> to vector<2x156xf32>
    %cst_269 = arith.constant dense<0.000000e+00> : vector<2xf32>
    %1213 = vector.multi_reduction <add>, %1212, %cst_269 [1] : vector<2x156xf32> to vector<2xf32>
    %1214 = vector.shape_cast %1213 : vector<2xf32> to vector<2x1xf32>
    %cst_270 = arith.constant dense<0.000000e+00> : vector<1xf32>
    %1215 = vector.multi_reduction <add>, %1214, %cst_270 [0] : vector<2x1xf32> to vector<1xf32>
    %1216 = vector.shape_cast %1215 : vector<1xf32> to vector<1x1xf32>
    %cst_271 = arith.constant 0.00320512825 : f32
    %1217 = vector.broadcast %cst_271 : f32 to vector<1x1xf32>
    %1218 = arith.mulf %1216, %1217 : vector<1x1xf32>
    %1219 = vector.broadcast %1218 : vector<1x1xf32> to vector<2x156xf32>
    %1220 = arith.subf %1212, %1219 : vector<2x156xf32>
    %1221 = arith.mulf %1220, %1220 : vector<2x156xf32>
    %cst_272 = arith.constant dense<0.000000e+00> : vector<2xf32>
    %1222 = vector.multi_reduction <add>, %1221, %cst_272 [1] : vector<2x156xf32> to vector<2xf32>
    %1223 = vector.shape_cast %1222 : vector<2xf32> to vector<2x1xf32>
    %cst_273 = arith.constant dense<0.000000e+00> : vector<1xf32>
    %1224 = vector.multi_reduction <add>, %1223, %cst_273 [0] : vector<2x1xf32> to vector<1xf32>
    %1225 = vector.shape_cast %1224 : vector<1xf32> to vector<1x1xf32>
    %cst_274 = arith.constant 0.00320512825 : f32
    %1226 = vector.broadcast %cst_274 : f32 to vector<1x1xf32>
    %1227 = arith.mulf %1225, %1226 : vector<1x1xf32>
    %cst_275 = arith.constant 9.99999974E-6 : f32
    %1228 = vector.broadcast %cst_275 : f32 to vector<1x1xf32>
    %1229 = arith.addf %1227, %1228 : vector<1x1xf32>
    %1230 = math.rsqrt %1229 : vector<1x1xf32>
    %1231 = vector.broadcast %1230 : vector<1x1xf32> to vector<2x156xf32>
    %1232 = arith.mulf %1220, %1231 : vector<2x156xf32>
    %1233 = tpu.concatenate %1148, %1169, %1190, %1211, %1232 in 0 : vector<2x156xf32>, vector<2x156xf32>, vector<2x156xf32>, vector<2x156xf32>, vector<2x156xf32> -> vector<10x156xf32>
    %1234 = math.absf %1233 : vector<10x156xf32>
    %1235 = vector.extract_strided_slice %1234 {offsets = [0, 0], sizes = [2, 156], strides = [1, 1]} : vector<10x156xf32> to vector<2x156xf32>
    %c0_276 = arith.constant 0 : index
    %c0_277 = arith.constant 0 : index
    %c0_278 = arith.constant 0 : index
    %1236 = vector.load %arg7[%c0_276, %c0_277, %c0_278] : memref<5x156x5xf32, #tpu.memory_space<vmem>>, vector<1x156x5xf32>
    %1237 = vector.shape_cast %1236 : vector<1x156x5xf32> to vector<156x5xf32>
    %cst_279 = arith.constant dense<0.000000e+00> : vector<2x5xf32>
    %1238 = tpu.matmul %1235, %1237, %cst_279 {dimension_numbers = #tpu.dot_dimension_numbers<[1], [0], [0], [1], [0, 0, 1, 1], [], []>} : vector<2x156xf32>, vector<156x5xf32>, vector<2x5xf32> -> vector<2x5xf32>
    %c0_280 = arith.constant 0 : index
    %c0_281 = arith.constant 0 : index
    %1239 = vector.load %arg8[%c0_280, %c0_281] : memref<5x1xf32, #tpu.memory_space<vmem>>, vector<1x1xf32>
    %1240 = vector.broadcast %1239 : vector<1x1xf32> to vector<2x5xf32>
    %1241 = arith.addf %1238, %1240 : vector<2x5xf32>
    %1242 = vector.extract_strided_slice %1234 {offsets = [2, 0], sizes = [2, 156], strides = [1, 1]} : vector<10x156xf32> to vector<2x156xf32>
    %c1_282 = arith.constant 1 : index
    %c0_283 = arith.constant 0 : index
    %c0_284 = arith.constant 0 : index
    %1243 = vector.load %arg7[%c1_282, %c0_283, %c0_284] : memref<5x156x5xf32, #tpu.memory_space<vmem>>, vector<1x156x5xf32>
    %1244 = vector.shape_cast %1243 : vector<1x156x5xf32> to vector<156x5xf32>
    %cst_285 = arith.constant dense<0.000000e+00> : vector<2x5xf32>
    %1245 = tpu.matmul %1242, %1244, %cst_285 {dimension_numbers = #tpu.dot_dimension_numbers<[1], [0], [0], [1], [0, 0, 1, 1], [], []>} : vector<2x156xf32>, vector<156x5xf32>, vector<2x5xf32> -> vector<2x5xf32>
    %c1_286 = arith.constant 1 : index
    %c0_287 = arith.constant 0 : index
    %1246 = vector.load %arg8[%c1_286, %c0_287] : memref<5x1xf32, #tpu.memory_space<vmem>>, vector<1x1xf32>
    %1247 = vector.broadcast %1246 : vector<1x1xf32> to vector<2x5xf32>
    %1248 = arith.addf %1245, %1247 : vector<2x5xf32>
    %1249 = vector.extract_strided_slice %1234 {offsets = [4, 0], sizes = [2, 156], strides = [1, 1]} : vector<10x156xf32> to vector<2x156xf32>
    %c2_288 = arith.constant 2 : index
    %c0_289 = arith.constant 0 : index
    %c0_290 = arith.constant 0 : index
    %1250 = vector.load %arg7[%c2_288, %c0_289, %c0_290] : memref<5x156x5xf32, #tpu.memory_space<vmem>>, vector<1x156x5xf32>
    %1251 = vector.shape_cast %1250 : vector<1x156x5xf32> to vector<156x5xf32>
    %cst_291 = arith.constant dense<0.000000e+00> : vector<2x5xf32>
    %1252 = tpu.matmul %1249, %1251, %cst_291 {dimension_numbers = #tpu.dot_dimension_numbers<[1], [0], [0], [1], [0, 0, 1, 1], [], []>} : vector<2x156xf32>, vector<156x5xf32>, vector<2x5xf32> -> vector<2x5xf32>
    %c2_292 = arith.constant 2 : index
    %c0_293 = arith.constant 0 : index
    %1253 = vector.load %arg8[%c2_292, %c0_293] : memref<5x1xf32, #tpu.memory_space<vmem>>, vector<1x1xf32>
    %1254 = vector.broadcast %1253 : vector<1x1xf32> to vector<2x5xf32>
    %1255 = arith.addf %1252, %1254 : vector<2x5xf32>
    %1256 = vector.extract_strided_slice %1234 {offsets = [6, 0], sizes = [2, 156], strides = [1, 1]} : vector<10x156xf32> to vector<2x156xf32>
    %c3_294 = arith.constant 3 : index
    %c0_295 = arith.constant 0 : index
    %c0_296 = arith.constant 0 : index
    %1257 = vector.load %arg7[%c3_294, %c0_295, %c0_296] : memref<5x156x5xf32, #tpu.memory_space<vmem>>, vector<1x156x5xf32>
    %1258 = vector.shape_cast %1257 : vector<1x156x5xf32> to vector<156x5xf32>
    %cst_297 = arith.constant dense<0.000000e+00> : vector<2x5xf32>
    %1259 = tpu.matmul %1256, %1258, %cst_297 {dimension_numbers = #tpu.dot_dimension_numbers<[1], [0], [0], [1], [0, 0, 1, 1], [], []>} : vector<2x156xf32>, vector<156x5xf32>, vector<2x5xf32> -> vector<2x5xf32>
    %c3_298 = arith.constant 3 : index
    %c0_299 = arith.constant 0 : index
    %1260 = vector.load %arg8[%c3_298, %c0_299] : memref<5x1xf32, #tpu.memory_space<vmem>>, vector<1x1xf32>
    %1261 = vector.broadcast %1260 : vector<1x1xf32> to vector<2x5xf32>
    %1262 = arith.addf %1259, %1261 : vector<2x5xf32>
    %1263 = vector.extract_strided_slice %1234 {offsets = [8, 0], sizes = [2, 156], strides = [1, 1]} : vector<10x156xf32> to vector<2x156xf32>
    %c4_300 = arith.constant 4 : index
    %c0_301 = arith.constant 0 : index
    %c0_302 = arith.constant 0 : index
    %1264 = vector.load %arg7[%c4_300, %c0_301, %c0_302] : memref<5x156x5xf32, #tpu.memory_space<vmem>>, vector<1x156x5xf32>
    %1265 = vector.shape_cast %1264 : vector<1x156x5xf32> to vector<156x5xf32>
    %cst_303 = arith.constant dense<0.000000e+00> : vector<2x5xf32>
    %1266 = tpu.matmul %1263, %1265, %cst_303 {dimension_numbers = #tpu.dot_dimension_numbers<[1], [0], [0], [1], [0, 0, 1, 1], [], []>} : vector<2x156xf32>, vector<156x5xf32>, vector<2x5xf32> -> vector<2x5xf32>
    %c4_304 = arith.constant 4 : index
    %c0_305 = arith.constant 0 : index
    %1267 = vector.load %arg8[%c4_304, %c0_305] : memref<5x1xf32, #tpu.memory_space<vmem>>, vector<1x1xf32>
    %1268 = vector.broadcast %1267 : vector<1x1xf32> to vector<2x5xf32>
    %1269 = arith.addf %1266, %1268 : vector<2x5xf32>
    %1270 = tpu.concatenate %1241, %1248, %1255, %1262, %1269 in 1 : vector<2x5xf32>, vector<2x5xf32>, vector<2x5xf32>, vector<2x5xf32>, vector<2x5xf32> -> vector<2x25xf32>
    %cst_306 = arith.constant dense<0.000000e+00> : vector<25xf32>
    %1271 = vector.multi_reduction <add>, %1270, %cst_306 [0] : vector<2x25xf32> to vector<25xf32>
    %1272 = vector.shape_cast %1271 : vector<25xf32> to vector<1x25xf32>
    %cst_307 = arith.constant 2.000000e+00 : f32
    %1273 = vector.broadcast %cst_307 : f32 to vector<1x25xf32>
    %1274 = arith.divf %1272, %1273 : vector<1x25xf32>
    %1275 = vector.broadcast %1274 : vector<1x25xf32> to vector<2x25xf32>
    %1276 = arith.subf %1270, %1275 : vector<2x25xf32>
    %1277 = arith.mulf %1276, %1276 : vector<2x25xf32>
    %cst_308 = arith.constant dense<0.000000e+00> : vector<25xf32>
    %1278 = vector.multi_reduction <add>, %1277, %cst_308 [0] : vector<2x25xf32> to vector<25xf32>
    %1279 = vector.shape_cast %1278 : vector<25xf32> to vector<1x25xf32>
    %cst_309 = arith.constant 2.000000e+00 : f32
    %1280 = vector.broadcast %cst_309 : f32 to vector<1x25xf32>
    %1281 = arith.divf %1279, %1280 : vector<1x25xf32>
    %cst_310 = arith.constant 9.99999974E-6 : f32
    %1282 = vector.broadcast %cst_310 : f32 to vector<1x25xf32>
    %1283 = arith.addf %1281, %1282 : vector<1x25xf32>
    %1284 = math.rsqrt %1283 : vector<1x25xf32>
    %1285 = vector.broadcast %1284 : vector<1x25xf32> to vector<2x25xf32>
    %1286 = arith.mulf %1276, %1285 : vector<2x25xf32>
    %c0_311 = arith.constant 0 : index
    %c0_312 = arith.constant 0 : index
    %1287 = vector.load %arg9[%c0_311, %c0_312] : memref<25x3xf32, #tpu.memory_space<vmem>>, vector<25x3xf32>
    %cst_313 = arith.constant dense<0.000000e+00> : vector<2x3xf32>
    %1288 = tpu.matmul %1286, %1287, %cst_313 {dimension_numbers = #tpu.dot_dimension_numbers<[1], [0], [0], [1], [0, 0, 1, 1], [], []>} : vector<2x25xf32>, vector<25x3xf32>, vector<2x3xf32> -> vector<2x3xf32>
    %c0_314 = arith.constant 0 : index
    %c0_315 = arith.constant 0 : index
    %1289 = vector.load %arg10[%c0_314, %c0_315] : memref<1x3xf32, #tpu.memory_space<vmem>>, vector<1x3xf32>
    %1290 = vector.broadcast %1289 : vector<1x3xf32> to vector<2x3xf32>
    %1291 = arith.addf %1288, %1290 : vector<2x3xf32>
    %cst_316 = arith.constant 0.000000e+00 : f32
    %1292 = vector.broadcast %cst_316 : f32 to vector<2x3xf32>
    %1293 = arith.subf %1292, %1291 : vector<2x3xf32>
    %1294 = math.exp %1293 : vector<2x3xf32>
    %cst_317 = arith.constant 1.000000e+00 : f32
    %1295 = vector.broadcast %cst_317 : f32 to vector<2x3xf32>
    %1296 = arith.addf %1295, %1294 : vector<2x3xf32>
    %cst_318 = arith.constant 1.000000e+00 : f32
    %1297 = vector.broadcast %cst_318 : f32 to vector<2x3xf32>
    %1298 = arith.divf %1297, %1296 : vector<2x3xf32>
    %c0_319 = arith.constant 0 : index
    %c0_320 = arith.constant 0 : index
    %1299 = vector.load %arg11[%c0_319, %c0_320] : memref<2x3xf32, #tpu.memory_space<vmem>>, vector<2x3xf32>
    tpu.vector_store %arg11[%c0_319, %c0_320], %1298 {strides = array<i32>} : memref<2x3xf32, #tpu.memory_space<vmem>>, vector<2x3xf32>,
    return
  }
}

</mosaic_0001>

<llo_original>
// kernel: mul.13
$region0: #{mul.13}
  %s0 = inlined_call_operand.vmem [shape: f32[25,25], index: 0, kind: input, shape index: {}]
  %s1 = inlined_call_operand.vmem [shape: f32[5,5,25], index: 1, kind: output, shape index: {}]
  %v2 = vld [vmem:[%s0] sm:$0xff]
  %vm3 = vcmask 203776
  %4 = vst.msk [vmem:[%s1] sm:$0x1f] %vm3, %v2
  %s5 = scalar_lea.vmem %s1, 3
  %6 = vst.msk [vmem:[%s5] sm:$0xe0] %vm3, %v2
  %s7 = scalar_lea.vmem %s0, 8
  %v8 = vld [vmem:[%s7] sm:$0xff]
  %vm9 = vcmask 203776
  %s10 = scalar_lea.vmem %s1, 11
  %11 = vst.msk [vmem:[%s10] sm:$0x3] %vm9, %v8
  %s12 = scalar_lea.vmem %s1, 14
  %13 = vst.msk [vmem:[%s12] sm:$0x7c] %vm9, %v8
  %s14 = scalar_lea.vmem %s1, 17
  %15 = vst.msk [vmem:[%s14] sm:$0x80] %vm9, %v8
  %s16 = scalar_lea.vmem %s0, 16
  %v17 = vld [vmem:[%s16] sm:$0xff]
  %vm18 = vcmask 203776
  %s19 = scalar_lea.vmem %s1, 25
  %20 = vst.msk [vmem:[%s19] sm:$0xf] %vm18, %v17
  %s21 = scalar_lea.vmem %s1, 28
  %22 = vst.msk [vmem:[%s21] sm:$0xf0] %vm18, %v17
  %s23 = scalar_lea.vmem %s0, 24
  %v24 = vld [vmem:[%s23] sm:$0x1]
  %vm25 = vcmask 203776
  %s26 = scalar_lea.vmem %s1, 36
  %27 = vst.msk [vmem:[%s26] sm:$0x1] %vm25, %v24

// kernel: simple_net_forward.1
$region0: #{simple_net_forward.1}
  #allocation0 [shape = 'u32[]', space=smem, size = 0x4, offset = 0x4, fixed_abs, tag = 'smem constant byte address 0x4 - core index']
  #allocation1 [shape = 'u32[144,128]{1,0:T(1,128)}', space=vmem, size = 0x12000, scoped, tag = 'internal scratch']
  %s0 = inlined_call_operand.vmem [shape: f32[10,336], index: 0, kind: input, shape index: {}]
  %s1 = inlined_call_operand.vmem [shape: f32[5,336,273], index: 1, kind: input, shape index: {}]
  %s2 = inlined_call_operand.vmem [shape: f32[5,1], index: 2, kind: input, shape index: {}]
  %s3 = inlined_call_operand.vmem [shape: f32[5,266,20], index: 3, kind: input, shape index: {}]
  %s4 = inlined_call_operand.vmem [shape: f32[5,20,25], index: 4, kind: input, shape index: {}]
  %s5 = inlined_call_operand.vmem [shape: f32[1,25], index: 5, kind: input, shape index: {}]
  %s6 = inlined_call_operand.vmem [shape: f32[5,256,156], index: 6, kind: input, shape index: {}]
  %s7 = inlined_call_operand.vmem [shape: f32[5,156,5], index: 7, kind: input, shape index: {}]
  %s8 = inlined_call_operand.vmem [shape: f32[5,1], index: 8, kind: input, shape index: {}]
  %s9 = inlined_call_operand.vmem [shape: f32[25,3], index: 9, kind: input, shape index: {}]
  %s10 = inlined_call_operand.vmem [shape: f32[1,3], index: 10, kind: input, shape index: {}]
  %s11 = inlined_call_operand.hbm [shape: f32[2,3], index: 11, kind: output, shape index: {}]
  %s12 = sld [smem:[#allocation0]]
  $region54: #{simple_net_forward.1} parent=0
    _
  %s14 = ssub.s32 1, %s12
  %s15 = scalar_select 0, %s14, %s12
  $region1: #{simple_net_forward.1} parent=0
    #allocation2 [shape = 'u8[1024]{0}', space=vmem, size = 0x400, scoped, tag = 'output window, operand 0, single buffered']
    #allocation3 [shape = 's32[1]{0}', space=sflag, size = 0x4, scoped, tag = 'scoped memory for simple_net_forward.1']
    %16 = vsyncpa [#allocation3], 0
    // Predicated region
    $region2: #{simple_net_forward.1} parent=1 // pred_check
      _
    $region3: #{simple_net_forward.1} parent=1 // pred_check_branch
      %18 = sbr.rel (0) target = $region5
    $region4: #{simple_net_forward.1} parent=1 // pred_region
      _
    $region5: #{simple_net_forward.1} parent=1 // pred_fallthru
      _
    // Predicated region
    $region6: #{simple_net_forward.1} parent=1 // pred_check
      _
    $region7: #{simple_net_forward.1} parent=1 // pred_check_branch
      %20 = sbr.rel (0) target = $region9
    $region8: #{simple_net_forward.1} parent=1 // pred_region
      _
    $region9: #{simple_net_forward.1} parent=1 // pred_fallthru
      _
    // Predicated region
    $region10: #{simple_net_forward.1} parent=1 // pred_check
      _
    $region11: #{simple_net_forward.1} parent=1 // pred_check_branch
      %22 = sbr.rel (0) target = $region13
    $region12: #{simple_net_forward.1} parent=1 // pred_region
      _
    $region13: #{simple_net_forward.1} parent=1 // pred_fallthru
      _
    // Predicated region
    $region14: #{simple_net_forward.1} parent=1 // pred_check
      _
    $region15: #{simple_net_forward.1} parent=1 // pred_check_branch
      %24 = sbr.rel (0) target = $region17
    $region16: #{simple_net_forward.1} parent=1 // pred_region
      _
    $region17: #{simple_net_forward.1} parent=1 // pred_fallthru
      _
    // Predicated region
    $region18: #{simple_net_forward.1} parent=1 // pred_check
      _
    $region19: #{simple_net_forward.1} parent=1 // pred_check_branch
      %26 = sbr.rel (0) target = $region21
    $region20: #{simple_net_forward.1} parent=1 // pred_region
      _
    $region21: #{simple_net_forward.1} parent=1 // pred_fallthru
      _
    // Predicated region
    $region22: #{simple_net_forward.1} parent=1 // pred_check
      _
    $region23: #{simple_net_forward.1} parent=1 // pred_check_branch
      %28 = sbr.rel (0) target = $region25
    $region24: #{simple_net_forward.1} parent=1 // pred_region
      _
    $region25: #{simple_net_forward.1} parent=1 // pred_fallthru
      _
    // Predicated region
    $region26: #{simple_net_forward.1} parent=1 // pred_check
      _
    $region27: #{simple_net_forward.1} parent=1 // pred_check_branch
      %30 = sbr.rel (0) target = $region29
    $region28: #{simple_net_forward.1} parent=1 // pred_region
      _
    $region29: #{simple_net_forward.1} parent=1 // pred_fallthru
      _
    // Predicated region
    $region30: #{simple_net_forward.1} parent=1 // pred_check
      _
    $region31: #{simple_net_forward.1} parent=1 // pred_check_branch
      %32 = sbr.rel (0) target = $region33
    $region32: #{simple_net_forward.1} parent=1 // pred_region
      _
    $region33: #{simple_net_forward.1} parent=1 // pred_fallthru
      _
    // Predicated region
    $region34: #{simple_net_forward.1} parent=1 // pred_check
      _
    $region35: #{simple_net_forward.1} parent=1 // pred_check_branch
      %34 = sbr.rel (0) target = $region37
    $region36: #{simple_net_forward.1} parent=1 // pred_region
      _
    $region37: #{simple_net_forward.1} parent=1 // pred_fallthru
      _
    // Predicated region
    $region38: #{simple_net_forward.1} parent=1 // pred_check
      _
    $region39: #{simple_net_forward.1} parent=1 // pred_check_branch
      %36 = sbr.rel (0) target = $region41
    $region40: #{simple_net_forward.1} parent=1 // pred_region
      _
    $region41: #{simple_net_forward.1} parent=1 // pred_fallthru
      _
    // Predicated region
    $region42: #{simple_net_forward.1} parent=1 // pred_check
      _
    $region43: #{simple_net_forward.1} parent=1 // pred_check_branch
      %38 = sbr.rel (0) target = $region45
    $region44: #{simple_net_forward.1} parent=1 // pred_region
      _
    $region45: #{simple_net_forward.1} parent=1 // pred_fallthru
      _
    %v39 = vld [vmem:[%s0] sm:$0xff]
    %v40 = vld [vmem:[%s0 + $0x8] sm:$0xff]
    %v41 = vld [vmem:[%s0 + $0x10] sm:$0xff]
    %v42 = vld [vmem:[%s0 + $0x18] sm:$0x3]
    %v43 = vld [vmem:[%s0 + $0x20] sm:$0x3]
    %v44 = vld [vmem:[%s0 + $0x28] sm:$0x3]
    %v48 = vrot.slane %v39, 4
    %v49 = vrot.slane %v40, 4
    %v50 = vrot.slane %v41, 4
    %vm54 = vcmask 1040384
    %v55 = vsel %vm54, %v39, %v48
    %v56 = vsel %vm54, %v40, %v49
    %v57 = vsel %vm54, %v41, %v50
    %v58 = vld [vmem:[%s1] sm:$0xff]
    %v59 = vld [vmem:[%s1 + $0x8] sm:$0xff]
    %v60 = vld [vmem:[%s1 + $0x10] sm:$0xff]
    %v61 = vld [vmem:[%s1 + $0x18] sm:$0xff]
    %v62 = vld [vmem:[%s1 + $0x20] sm:$0xff]
    %v63 = vld [vmem:[%s1 + $0x28] sm:$0xff]
    %v64 = vld [vmem:[%s1 + $0x30] sm:$0xff]
    %v65 = vld [vmem:[%s1 + $0x38] sm:$0xff]
    %v66 = vld [vmem:[%s1 + $0x40] sm:$0xff]
    %v67 = vld [vmem:[%s1 + $0x48] sm:$0xff]
    %v68 = vld [vmem:[%s1 + $0x50] sm:$0xff]
    %v69 = vld [vmem:[%s1 + $0x58] sm:$0xff]
    %v70 = vld [vmem:[%s1 + $0x60] sm:$0xff]
    %v71 = vld [vmem:[%s1 + $0x68] sm:$0xff]
    %v72 = vld [vmem:[%s1 + $0x70] sm:$0xff]
    %v73 = vld [vmem:[%s1 + $0x78] sm:$0xff]
    %v74 = vld [vmem:[%s1 + $0x80] sm:$0xff]
    %v75 = vld [vmem:[%s1 + $0x88] sm:$0xff]
    %v76 = vld [vmem:[%s1 + $0x90] sm:$0xff]
    %v77 = vld [vmem:[%s1 + $0x98] sm:$0xff]
    %v78 = vld [vmem:[%s1 + $0xa0] sm:$0xff]
    %v79 = vld [vmem:[%s1 + $0xa8] sm:$0xff]
    %v80 = vld [vmem:[%s1 + $0xb0] sm:$0xff]
    %v81 = vld [vmem:[%s1 + $0xb8] sm:$0xff]
    %v82 = vld [vmem:[%s1 + $0xc0] sm:$0xff]
    %v83 = vld [vmem:[%s1 + $0xc8] sm:$0xff]
    %v84 = vld [vmem:[%s1 + $0xd0] sm:$0xff]
    %v85 = vld [vmem:[%s1 + $0xd8] sm:$0xff]
    %v86 = vld [vmem:[%s1 + $0xe0] sm:$0xff]
    %v87 = vld [vmem:[%s1 + $0xe8] sm:$0xff]
    %v88 = vld [vmem:[%s1 + $0xf0] sm:$0xff]
    %v89 = vld [vmem:[%s1 + $0xf8] sm:$0xff]
    %v90 = vld [vmem:[%s1 + $0x100] sm:$0xff]
    %v91 = vld [vmem:[%s1 + $0x108] sm:$0xff]
    %v92 = vld [vmem:[%s1 + $0x110] sm:$0xff]
    %v93 = vld [vmem:[%s1 + $0x118] sm:$0xff]
    %v94 = vld [vmem:[%s1 + $0x120] sm:$0xff]
    %v95 = vld [vmem:[%s1 + $0x128] sm:$0xff]
    %v96 = vld [vmem:[%s1 + $0x130] sm:$0xff]
    %v97 = vld [vmem:[%s1 + $0x138] sm:$0xff]
    %v98 = vld [vmem:[%s1 + $0x140] sm:$0xff]
    %v99 = vld [vmem:[%s1 + $0x148] sm:$0xff]
    %v100 = vld [vmem:[%s1 + $0x150] sm:$0xff]
    %v101 = vld [vmem:[%s1 + $0x158] sm:$0xff]
    %v102 = vld [vmem:[%s1 + $0x160] sm:$0xff]
    %v103 = vld [vmem:[%s1 + $0x168] sm:$0xff]
    %v104 = vld [vmem:[%s1 + $0x170] sm:$0xff]
    %v105 = vld [vmem:[%s1 + $0x178] sm:$0xff]
    %v106 = vld [vmem:[%s1 + $0x180] sm:$0xff]
    %v107 = vld [vmem:[%s1 + $0x188] sm:$0xff]
    %v108 = vld [vmem:[%s1 + $0x190] sm:$0xff]
    %v109 = vld [vmem:[%s1 + $0x198] sm:$0xff]
    %v110 = vld [vmem:[%s1 + $0x1a0] sm:$0xff]
    %v111 = vld [vmem:[%s1 + $0x1a8] sm:$0xff]
    %v112 = vld [vmem:[%s1 + $0x1b0] sm:$0xff]
    %v113 = vld [vmem:[%s1 + $0x1b8] sm:$0xff]
    %v114 = vld [vmem:[%s1 + $0x1c0] sm:$0xff]
    %v115 = vld [vmem:[%s1 + $0x1c8] sm:$0xff]
    %v116 = vld [vmem:[%s1 + $0x1d0] sm:$0xff]
    %v117 = vld [vmem:[%s1 + $0x1d8] sm:$0xff]
    %v118 = vld [vmem:[%s1 + $0x1e0] sm:$0xff]
    %v119 = vld [vmem:[%s1 + $0x1e8] sm:$0xff]
    %v120 = vld [vmem:[%s1 + $0x1f0] sm:$0xff]
    %v121 = vld [vmem:[%s1 + $0x1f8] sm:$0xff]
    %v122 = vld [vmem:[%s1 + $0x200] sm:$0xff]
    %v123 = vld [vmem:[%s1 + $0x208] sm:$0xff]
    %v124 = vld [vmem:[%s1 + $0x210] sm:$0xff]
    %v125 = vld [vmem:[%s1 + $0x218] sm:$0xff]
    %v126 = vld [vmem:[%s1 + $0x220] sm:$0xff]
    %v127 = vld [vmem:[%s1 + $0x228] sm:$0xff]
    %v128 = vld [vmem:[%s1 + $0x230] sm:$0xff]
    %v129 = vld [vmem:[%s1 + $0x238] sm:$0xff]
    %v130 = vld [vmem:[%s1 + $0x240] sm:$0xff]
    %v131 = vld [vmem:[%s1 + $0x248] sm:$0xff]
    %v132 = vld [vmem:[%s1 + $0x250] sm:$0xff]
    %v133 = vld [vmem:[%s1 + $0x258] sm:$0xff]
    %v134 = vld [vmem:[%s1 + $0x260] sm:$0xff]
    %v135 = vld [vmem:[%s1 + $0x268] sm:$0xff]
    %v136 = vld [vmem:[%s1 + $0x270] sm:$0xff]
    %v137 = vld [vmem:[%s1 + $0x278] sm:$0xff]
    %v138 = vld [vmem:[%s1 + $0x280] sm:$0xff]
    %v139 = vld [vmem:[%s1 + $0x288] sm:$0xff]
    %v140 = vld [vmem:[%s1 + $0x290] sm:$0xff]
    %v141 = vld [vmem:[%s1 + $0x298] sm:$0xff]
    %v142 = vld [vmem:[%s1 + $0x2a0] sm:$0xff]
    %v143 = vld [vmem:[%s1 + $0x2a8] sm:$0xff]
    %v144 = vld [vmem:[%s1 + $0x2b0] sm:$0xff]
    %v145 = vld [vmem:[%s1 + $0x2b8] sm:$0xff]
    %v146 = vld [vmem:[%s1 + $0x2c0] sm:$0xff]
    %v147 = vld [vmem:[%s1 + $0x2c8] sm:$0xff]
    %v148 = vld [vmem:[%s1 + $0x2d0] sm:$0xff]
    %v149 = vld [vmem:[%s1 + $0x2d8] sm:$0xff]
    %v150 = vld [vmem:[%s1 + $0x2e0] sm:$0xff]
    %v151 = vld [vmem:[%s1 + $0x2e8] sm:$0xff]
    %v152 = vld [vmem:[%s1 + $0x2f0] sm:$0xff]
    %v153 = vld [vmem:[%s1 + $0x2f8] sm:$0xff]
    %v154 = vld [vmem:[%s1 + $0x300] sm:$0xff]
    %v155 = vld [vmem:[%s1 + $0x308] sm:$0xff]
    %v156 = vld [vmem:[%s1 + $0x310] sm:$0xff]
    %v157 = vld [vmem:[%s1 + $0x318] sm:$0xff]
    %v158 = vld [vmem:[%s1 + $0x320] sm:$0xff]
    %v159 = vld [vmem:[%s1 + $0x328] sm:$0xff]
    %v160 = vld [vmem:[%s1 + $0x330] sm:$0xff]
    %v161 = vld [vmem:[%s1 + $0x338] sm:$0xff]
    %v162 = vld [vmem:[%s1 + $0x340] sm:$0xff]
    %v163 = vld [vmem:[%s1 + $0x348] sm:$0xff]
    %v164 = vld [vmem:[%s1 + $0x350] sm:$0xff]
    %v165 = vld [vmem:[%s1 + $0x358] sm:$0xff]
    %v166 = vld [vmem:[%s1 + $0x360] sm:$0xff]
    %v167 = vld [vmem:[%s1 + $0x368] sm:$0xff]
    %v168 = vld [vmem:[%s1 + $0x370] sm:$0xff]
    %v169 = vld [vmem:[%s1 + $0x378] sm:$0xff]
    %v170 = vld [vmem:[%s1 + $0x380] sm:$0xff]
    %v171 = vld [vmem:[%s1 + $0x388] sm:$0xff]
    %v172 = vld [vmem:[%s1 + $0x390] sm:$0xff]
    %v173 = vld [vmem:[%s1 + $0x398] sm:$0xff]
    %v174 = vld [vmem:[%s1 + $0x3a0] sm:$0xff]
    %v175 = vld [vmem:[%s1 + $0x3a8] sm:$0xff]
    %v176 = vld [vmem:[%s1 + $0x3b0] sm:$0xff]
    %v177 = vld [vmem:[%s1 + $0x3b8] sm:$0xff]
    %v178 = vld [vmem:[%s1 + $0x3c0] sm:$0xff]
    %v179 = vld [vmem:[%s1 + $0x3c8] sm:$0xff]
    %v180 = vld [vmem:[%s1 + $0x3d0] sm:$0xff]
    %v181 = vld [vmem:[%s1 + $0x3d8] sm:$0xff]
    %v182 = vld [vmem:[%s1 + $0x3e0] sm:$0xff]
    %v183 = vld [vmem:[%s1 + $0x3e8] sm:$0xff]
    %v184 = vld [vmem:[%s2] sm:$0x1]
    %s186 = vtos %v184
    %v187 = vstv %s186
    %vm189 = vcmask 654336
    %v191 = vsel %vm189, %v57, 0
    %193 = vmatprep.subr.mxu0 %v104
    %194 = vmatpush1.msra.mxu0 %v103
    %195 = vmatprep.subr.mxu0 %v101
    %196 = vmatpush1.msra.mxu0 %v100
    %197 = vmatprep.subr.mxu0 %v98
    %198 = vmatpush1.msra.mxu0 %v97
    %199 = vmatprep.subr.mxu0 %v95
    %200 = vmatpush1.msra.mxu0 %v94
    %201 = vmatprep.subr.mxu0 %v92
    %202 = vmatpush1.msra.mxu0 %v91
    %203 = vmatprep.subr.mxu0 %v89
    %204 = vmatpush1.msra.mxu0 %v88
    %205 = vmatprep.subr.mxu0 %v86
    %206 = vmatpush1.msra.mxu0 %v85
    %207 = vmatprep.subr.mxu0 %v83
    %208 = vmatpush1.msra.mxu0 %v82
    %209 = vmatprep.subr.mxu0 %v80
    %210 = vmatpush1.msra.mxu0 %v79
    %211 = vmatprep.subr.mxu0 %v77
    %212 = vmatpush1.msra.mxu0 %v76
    %213 = vmatprep.subr.mxu0 %v74
    %214 = vmatpush1.msra.mxu0 %v73
    %215 = vmatprep.subr.mxu0 %v71
    %216 = vmatpush1.msra.mxu0 %v70
    %217 = vmatprep.subr.mxu0 %v68
    %218 = vmatpush1.msra.mxu0 %v67
    %219 = vmatprep.subr.mxu0 %v65
    %220 = vmatpush1.msra.mxu0 %v64
    %221 = vmatprep.subr.mxu0 %v62
    %222 = vmatpush1.msra.mxu0 %v61
    %223 = vmatprep.subr.mxu0 %v59
    %224 = vmatpush1.msra.mxu0 %v58
    %225 = vmatprep.subr.mxu0 %v152
    %226 = vmatpush2.msra.mxu0 %v151
    %227 = vmatprep.subr.mxu0 %v149
    %228 = vmatpush2.msra.mxu0 %v148
    %229 = vmatprep.subr.mxu0 %v146
    %230 = vmatpush2.msra.mxu0 %v145
    %231 = vmatprep.subr.mxu0 %v143
    %232 = vmatpush2.msra.mxu0 %v142
    %233 = vmatprep.subr.mxu0 %v140
    %234 = vmatpush2.msra.mxu0 %v139
    %235 = vmatprep.subr.mxu0 %v137
    %236 = vmatpush2.msra.mxu0 %v136
    %237 = vmatprep.subr.mxu0 %v134
    %238 = vmatpush2.msra.mxu0 %v133
    %239 = vmatprep.subr.mxu0 %v131
    %240 = vmatpush2.msra.mxu0 %v130
    %241 = vmatprep.subr.mxu0 %v128
    %242 = vmatpush2.msra.mxu0 %v127
    %243 = vmatprep.subr.mxu0 %v125
    %244 = vmatpush2.msra.mxu0 %v124
    %245 = vmatprep.subr.mxu0 %v122
    %246 = vmatpush2.msra.mxu0 %v121
    %247 = vmatprep.subr.mxu0 %v119
    %248 = vmatpush2.msra.mxu0 %v118
    %249 = vmatprep.subr.mxu0 %v116
    %250 = vmatpush2.msra.mxu0 %v115
    %251 = vmatprep.subr.mxu0 %v113
    %252 = vmatpush2.msra.mxu0 %v112
    %253 = vmatprep.subr.mxu0 %v110
    %254 = vmatpush2.msra.mxu0 %v109
    %255 = vmatprep.subr.mxu0 %v107
    %256 = vmatpush2.msra.mxu0 %v106
    %257 = vmatprep.mubr.f32.mxu0 %v56
    %258 = vmatmul.mubr.f32.gmra.mxu0 %v55
    %v259 = vpop.f32.mrf.mxu0
    %v260 = vadd.f32 %v187, %v259
    %v261 = vpop.f32.mrf.mxu0
    %v262 = vadd.f32 %v187, %v261
    %263 = vdwg.mxu0
    %264 = vmatprep.subr.mxu0 0.0
    %265 = vmatpush1.msra.mxu0 0.0
    %266 = vmatprep.subr.mxu0 0.0
    %267 = vmatpush1.msra.mxu0 0.0
    %268 = vmatprep.subr.mxu0 0.0
    %269 = vmatpush1.msra.mxu0 0.0
    %270 = vmatprep.subr.mxu0 0.0
    %271 = vmatpush1.msra.mxu0 0.0
    %272 = vmatprep.subr.mxu0 0.0
    %273 = vmatpush1.msra.mxu0 0.0
    %274 = vmatprep.subr.mxu0 0.0
    %275 = vmatpush1.msra.mxu0 0.0
    %276 = vmatprep.subr.mxu0 %v182
    %277 = vmatpush1.msra.mxu0 %v181
    %278 = vmatprep.subr.mxu0 %v179
    %279 = vmatpush1.msra.mxu0 %v178
    %280 = vmatprep.subr.mxu0 %v176
    %281 = vmatpush1.msra.mxu0 %v175
    %282 = vmatprep.subr.mxu0 %v173
    %283 = vmatpush1.msra.mxu0 %v172
    %284 = vmatprep.subr.mxu0 %v170
    %285 = vmatpush1.msra.mxu0 %v169
    %286 = vmatprep.subr.mxu0 %v167
    %287 = vmatpush1.msra.mxu0 %v166
    %288 = vmatprep.subr.mxu0 %v164
    %289 = vmatpush1.msra.mxu0 %v163
    %290 = vmatprep.subr.mxu0 %v161
    %291 = vmatpush1.msra.mxu0 %v160
    %292 = vmatprep.subr.mxu0 %v158
    %293 = vmatpush1.msra.mxu0 %v157
    %294 = vmatprep.subr.mxu0 %v155
    %295 = vmatpush1.msra.mxu0 %v154
    %296 = vmatprep.subr.mxu0 0.0
    %297 = vmatpush2.msra.mxu0 0.0
    %298 = vmatprep.subr.mxu0 0.0
    %299 = vmatpush2.msra.mxu0 0.0
    %300 = vmatprep.subr.mxu0 0.0
    %301 = vmatpush2.msra.mxu0 0.0
    %302 = vmatprep.subr.mxu0 0.0
    %303 = vmatpush2.msra.mxu0 0.0
    %304 = vmatprep.subr.mxu0 0.0
    %305 = vmatpush2.msra.mxu0 0.0
    %306 = vmatprep.subr.mxu0 0.0
    %307 = vmatpush2.msra.mxu0 0.0
    %308 = vmatprep.subr.mxu0 0.0
    %309 = vmatpush2.msra.mxu0 0.0
    %310 = vmatprep.subr.mxu0 0.0
    %311 = vmatpush2.msra.mxu0 0.0
    %312 = vmatprep.subr.mxu0 0.0
    %313 = vmatpush2.msra.mxu0 0.0
    %314 = vmatprep.subr.mxu0 0.0
    %315 = vmatpush2.msra.mxu0 0.0
    %316 = vmatprep.subr.mxu0 0.0
    %317 = vmatpush2.msra.mxu0 0.0
    %318 = vmatprep.subr.mxu0 0.0
    %319 = vmatpush2.msra.mxu0 0.0
    %320 = vmatprep.subr.mxu0 0.0
    %321 = vmatpush2.msra.mxu0 0.0
    %322 = vmatprep.subr.mxu0 0.0
    %323 = vmatpush2.msra.mxu0 0.0
    %324 = vmatprep.subr.mxu0 0.0
    %325 = vmatpush2.msra.mxu0 0.0
    %326 = vmatprep.subr.mxu0 0.0
    %327 = vmatpush2.msra.mxu0 0.0
    %328 = vmatprep.mubr.f32.mxu0 0.0
    %329 = vmatmul.mubr.f32.gmra.mxu0 %v191
    %v330 = vpop.f32.mrf.mxu0
    %v331 = vadd.f32 %v260, %v330
    %v332 = vpop.f32.mrf.mxu0
    %v333 = vadd.f32 %v262, %v332
    %334 = vdwg.mxu0
    %335 = vmatprep.subr.mxu0 0.0
    %336 = vmatpush1.msra.mxu0 %v105
    %337 = vmatprep.subr.mxu0 0.0
    %338 = vmatpush1.msra.mxu0 %v102
    %339 = vmatprep.subr.mxu0 0.0
    %340 = vmatpush1.msra.mxu0 %v99
    %341 = vmatprep.subr.mxu0 0.0
    %342 = vmatpush1.msra.mxu0 %v96
    %343 = vmatprep.subr.mxu0 0.0
    %344 = vmatpush1.msra.mxu0 %v93
    %345 = vmatprep.subr.mxu0 0.0
    %346 = vmatpush1.msra.mxu0 %v90
    %347 = vmatprep.subr.mxu0 0.0
    %348 = vmatpush1.msra.mxu0 %v87
    %349 = vmatprep.subr.mxu0 0.0
    %350 = vmatpush1.msra.mxu0 %v84
    %351 = vmatprep.subr.mxu0 0.0
    %352 = vmatpush1.msra.mxu0 %v81
    %353 = vmatprep.subr.mxu0 0.0
    %354 = vmatpush1.msra.mxu0 %v78
    %355 = vmatprep.subr.mxu0 0.0
    %356 = vmatpush1.msra.mxu0 %v75
    %357 = vmatprep.subr.mxu0 0.0
    %358 = vmatpush1.msra.mxu0 %v72
    %359 = vmatprep.subr.mxu0 0.0
    %360 = vmatpush1.msra.mxu0 %v69
    %361 = vmatprep.subr.mxu0 0.0
    %362 = vmatpush1.msra.mxu0 %v66
    %363 = vmatprep.subr.mxu0 0.0
    %364 = vmatpush1.msra.mxu0 %v63
    %365 = vmatprep.subr.mxu0 0.0
    %366 = vmatpush1.msra.mxu0 %v60
    %367 = vmatprep.subr.mxu0 0.0
    %368 = vmatpush2.msra.mxu0 %v153
    %369 = vmatprep.subr.mxu0 0.0
    %370 = vmatpush2.msra.mxu0 %v150
    %371 = vmatprep.subr.mxu0 0.0
    %372 = vmatpush2.msra.mxu0 %v147
    %373 = vmatprep.subr.mxu0 0.0
    %374 = vmatpush2.msra.mxu0 %v144
    %375 = vmatprep.subr.mxu0 0.0
    %376 = vmatpush2.msra.mxu0 %v141
    %377 = vmatprep.subr.mxu0 0.0
    %378 = vmatpush2.msra.mxu0 %v138
    %379 = vmatprep.subr.mxu0 0.0
    %380 = vmatpush2.msra.mxu0 %v135
    %381 = vmatprep.subr.mxu0 0.0
    %382 = vmatpush2.msra.mxu0 %v132
    %383 = vmatprep.subr.mxu0 0.0
    %384 = vmatpush2.msra.mxu0 %v129
    %385 = vmatprep.subr.mxu0 0.0
    %386 = vmatpush2.msra.mxu0 %v126
    %387 = vmatprep.subr.mxu0 0.0
    %388 = vmatpush2.msra.mxu0 %v123
    %389 = vmatprep.subr.mxu0 0.0
    %390 = vmatpush2.msra.mxu0 %v120
    %391 = vmatprep.subr.mxu0 0.0
    %392 = vmatpush2.msra.mxu0 %v117
    %393 = vmatprep.subr.mxu0 0.0
    %394 = vmatpush2.msra.mxu0 %v114
    %395 = vmatprep.subr.mxu0 0.0
    %396 = vmatpush2.msra.mxu0 %v111
    %397 = vmatprep.subr.mxu0 0.0
    %398 = vmatpush2.msra.mxu0 %v108
    %399 = vmatprep.mubr.f32.mxu0 %v56
    %400 = vmatmul.mubr.f32.gmra.mxu0 %v55
    %v401 = vpop.f32.mrf.mxu0
    %v402 = vadd.f32 %v187, %v401
    %v403 = vpop.f32.mrf.mxu0
    %404 = vdwg.mxu0
    %405 = vmatprep.subr.mxu0 0.0
    %406 = vmatpush1.msra.mxu0 0.0
    %407 = vmatprep.subr.mxu0 0.0
    %408 = vmatpush1.msra.mxu0 0.0
    %409 = vmatprep.subr.mxu0 0.0
    %410 = vmatpush1.msra.mxu0 0.0
    %411 = vmatprep.subr.mxu0 0.0
    %412 = vmatpush1.msra.mxu0 0.0
    %413 = vmatprep.subr.mxu0 0.0
    %414 = vmatpush1.msra.mxu0 0.0
    %415 = vmatprep.subr.mxu0 0.0
    %416 = vmatpush1.msra.mxu0 0.0
    %417 = vmatprep.subr.mxu0 0.0
    %418 = vmatpush1.msra.mxu0 %v183
    %419 = vmatprep.subr.mxu0 0.0
    %420 = vmatpush1.msra.mxu0 %v180
    %421 = vmatprep.subr.mxu0 0.0
    %422 = vmatpush1.msra.mxu0 %v177
    %423 = vmatprep.subr.mxu0 0.0
    %424 = vmatpush1.msra.mxu0 %v174
    %425 = vmatprep.subr.mxu0 0.0
    %426 = vmatpush1.msra.mxu0 %v171
    %427 = vmatprep.subr.mxu0 0.0
    %428 = vmatpush1.msra.mxu0 %v168
    %429 = vmatprep.subr.mxu0 0.0
    %430 = vmatpush1.msra.mxu0 %v165
    %431 = vmatprep.subr.mxu0 0.0
    %432 = vmatpush1.msra.mxu0 %v162
    %433 = vmatprep.subr.mxu0 0.0
    %434 = vmatpush1.msra.mxu0 %v159
    %435 = vmatprep.subr.mxu0 0.0
    %436 = vmatpush1.msra.mxu0 %v156
    %437 = vmatprep.subr.mxu0 0.0
    %438 = vmatpush2.msra.mxu0 0.0
    %439 = vmatprep.subr.mxu0 0.0
    %440 = vmatpush2.msra.mxu0 0.0
    %441 = vmatprep.subr.mxu0 0.0
    %442 = vmatpush2.msra.mxu0 0.0
    %443 = vmatprep.subr.mxu0 0.0
    %444 = vmatpush2.msra.mxu0 0.0
    %445 = vmatprep.subr.mxu0 0.0
    %446 = vmatpush2.msra.mxu0 0.0
    %447 = vmatprep.subr.mxu0 0.0
    %448 = vmatpush2.msra.mxu0 0.0
    %449 = vmatprep.subr.mxu0 0.0
    %450 = vmatpush2.msra.mxu0 0.0
    %451 = vmatprep.subr.mxu0 0.0
    %452 = vmatpush2.msra.mxu0 0.0
    %453 = vmatprep.subr.mxu0 0.0
    %454 = vmatpush2.msra.mxu0 0.0
    %455 = vmatprep.subr.mxu0 0.0
    %456 = vmatpush2.msra.mxu0 0.0
    %457 = vmatprep.subr.mxu0 0.0
    %458 = vmatpush2.msra.mxu0 0.0
    %459 = vmatprep.subr.mxu0 0.0
    %460 = vmatpush2.msra.mxu0 0.0
    %461 = vmatprep.subr.mxu0 0.0
    %462 = vmatpush2.msra.mxu0 0.0
    %463 = vmatprep.subr.mxu0 0.0
    %464 = vmatpush2.msra.mxu0 0.0
    %465 = vmatprep.subr.mxu0 0.0
    %466 = vmatpush2.msra.mxu0 0.0
    %467 = vmatprep.subr.mxu0 0.0
    %468 = vmatpush2.msra.mxu0 0.0
    %469 = vmatprep.mubr.f32.mxu0 0.0
    %470 = vmatmul.mubr.f32.gmra.mxu0 %v191
    %v471 = vpop.f32.mrf.mxu0
    %v472 = vadd.f32 %v402, %v471
    %v473 = vpop.f32.mrf.mxu0
    %474 = vdwg.mxu0
    %v475 = vand.u32 2147483647, %v331
    %v476 = vand.u32 2147483647, %v333
    %v477 = vand.u32 2147483647, %v472
    %481 = vrot.lane.b32.xlu0 %v475, 127
    %v482 = vpop.permute.xlu0 %481
    %483 = vrot.lane.b32.xlu0 %v476, 127
    %v484 = vpop.permute.xlu0 %483
    %485 = vrot.lane.b32.xlu0 %v477, 127
    %v486 = vpop.permute.xlu0 %485
    %vm487 = vcmask 1039360
    %v488 = vsel %vm487, %v482, %v484
    %v489 = vsel %vm487, %v484, %v486
    %v493 = vmax.f32 %v475, %v488
    %v494 = vmax.f32 %v476, %v489
    %v495 = vmax.f32 %v477, %v486
    %499 = vrot.lane.b32.xlu0 %v493, 126
    %v500 = vpop.permute.xlu0 %499
    %501 = vrot.lane.b32.xlu0 %v494, 126
    %v502 = vpop.permute.xlu0 %501
    %503 = vrot.lane.b32.xlu0 %v495, 126
    %v504 = vpop.permute.xlu0 %503
    %vm505 = vcmask 1031168
    %v506 = vsel %vm505, %v500, %v502
    %v507 = vsel %vm505, %v502, %v504
    %v511 = vmax.f32 %v493, %v506
    %v512 = vmax.f32 %v494, %v507
    %v513 = vmax.f32 %v495, %v504
    %517 = vrot.lane.b32.xlu0 %v511, 124
    %v518 = vpop.permute.xlu0 %517
    %519 = vrot.lane.b32.xlu0 %v512, 124
    %v520 = vpop.permute.xlu0 %519
    %521 = vrot.lane.b32.xlu0 %v513, 124
    %v522 = vpop.permute.xlu0 %521
    %vm523 = vcmask 1014784
    %v524 = vsel %vm523, %v518, %v520
    %v525 = vsel %vm523, %v520, %v522
    %v529 = vmax.f32 %v511, %v524
    %v530 = vmax.f32 %v512, %v525
    %v531 = vmax.f32 %v513, %v522
    %v532 = vld [vmem:[%s3] sm:$0xff]
    %v533 = vld [vmem:[%s3 + $0x8] sm:$0xff]
    %v534 = vld [vmem:[%s3 + $0x10] sm:$0xff]
    %v535 = vld [vmem:[%s3 + $0x18] sm:$0xff]
    %v536 = vld [vmem:[%s3 + $0x20] sm:$0xff]
    %v537 = vld [vmem:[%s3 + $0x28] sm:$0xff]
    %v538 = vld [vmem:[%s3 + $0x30] sm:$0xff]
    %v539 = vld [vmem:[%s3 + $0x38] sm:$0xff]
    %v540 = vld [vmem:[%s3 + $0x40] sm:$0xff]
    %v541 = vld [vmem:[%s3 + $0x48] sm:$0xff]
    %v542 = vld [vmem:[%s3 + $0x50] sm:$0xff]
    %v543 = vld [vmem:[%s3 + $0x58] sm:$0xff]
    %v544 = vld [vmem:[%s3 + $0x60] sm:$0xff]
    %v545 = vld [vmem:[%s3 + $0x68] sm:$0xff]
    %v546 = vld [vmem:[%s3 + $0x70] sm:$0xff]
    %v547 = vld [vmem:[%s3 + $0x78] sm:$0xff]
    %v548 = vld [vmem:[%s3 + $0x80] sm:$0xff]
    %v549 = vld [vmem:[%s3 + $0x88] sm:$0xff]
    %v550 = vld [vmem:[%s3 + $0x90] sm:$0xff]
    %v551 = vld [vmem:[%s3 + $0x98] sm:$0xff]
    %v552 = vld [vmem:[%s3 + $0xa0] sm:$0xff]
    %v553 = vld [vmem:[%s3 + $0xa8] sm:$0xff]
    %v554 = vld [vmem:[%s3 + $0xb0] sm:$0xff]
    %v555 = vld [vmem:[%s3 + $0xb8] sm:$0xff]
    %v556 = vld [vmem:[%s3 + $0xc0] sm:$0xff]
    %v557 = vld [vmem:[%s3 + $0xc8] sm:$0xff]
    %v558 = vld [vmem:[%s3 + $0xd0] sm:$0xff]
    %v559 = vld [vmem:[%s3 + $0xd8] sm:$0xff]
    %v560 = vld [vmem:[%s3 + $0xe0] sm:$0xff]
    %v561 = vld [vmem:[%s3 + $0xe8] sm:$0xff]
    %v562 = vld [vmem:[%s3 + $0xf0] sm:$0xff]
    %v563 = vld [vmem:[%s3 + $0xf8] sm:$0xff]
    %v564 = vld [vmem:[%s3 + $0x100] sm:$0xff]
    %v565 = vld [vmem:[%s3 + $0x108] sm:$0x3]
    %vm566 = vcmask 80896
    %v568 = vsel %vm566, %v531, 0
    %vm570 = vcmask 1041408
    %v572 = vsel %vm570, %v565, 0
    %574 = vmatprep.subr.mxu0 0.0
    %575 = vmatpush1.msra.mxu0 %v547
    %576 = vmatprep.subr.mxu0 0.0
    %577 = vmatpush1.msra.mxu0 %v546
    %578 = vmatprep.subr.mxu0 0.0
    %579 = vmatpush1.msra.mxu0 %v545
    %580 = vmatprep.subr.mxu0 0.0
    %581 = vmatpush1.msra.mxu0 %v544
    %582 = vmatprep.subr.mxu0 0.0
    %583 = vmatpush1.msra.mxu0 %v543
    %584 = vmatprep.subr.mxu0 0.0
    %585 = vmatpush1.msra.mxu0 %v542
    %586 = vmatprep.subr.mxu0 0.0
    %587 = vmatpush1.msra.mxu0 %v541
    %588 = vmatprep.subr.mxu0 0.0
    %589 = vmatpush1.msra.mxu0 %v540
    %590 = vmatprep.subr.mxu0 0.0
    %591 = vmatpush1.msra.mxu0 %v539
    %592 = vmatprep.subr.mxu0 0.0
    %593 = vmatpush1.msra.mxu0 %v538
    %594 = vmatprep.subr.mxu0 0.0
    %595 = vmatpush1.msra.mxu0 %v537
    %596 = vmatprep.subr.mxu0 0.0
    %597 = vmatpush1.msra.mxu0 %v536
    %598 = vmatprep.subr.mxu0 0.0
    %599 = vmatpush1.msra.mxu0 %v535
    %600 = vmatprep.subr.mxu0 0.0
    %601 = vmatpush1.msra.mxu0 %v534
    %602 = vmatprep.subr.mxu0 0.0
    %603 = vmatpush1.msra.mxu0 %v533
    %604 = vmatprep.subr.mxu0 0.0
    %605 = vmatpush1.msra.mxu0 %v532
    %606 = vmatprep.subr.mxu0 0.0
    %607 = vmatpush2.msra.mxu0 %v563
    %608 = vmatprep.subr.mxu0 0.0
    %609 = vmatpush2.msra.mxu0 %v562
    %610 = vmatprep.subr.mxu0 0.0
    %611 = vmatpush2.msra.mxu0 %v561
    %612 = vmatprep.subr.mxu0 0.0
    %613 = vmatpush2.msra.mxu0 %v560
    %614 = vmatprep.subr.mxu0 0.0
    %615 = vmatpush2.msra.mxu0 %v559
    %616 = vmatprep.subr.mxu0 0.0
    %617 = vmatpush2.msra.mxu0 %v558
    %618 = vmatprep.subr.mxu0 0.0
    %619 = vmatpush2.msra.mxu0 %v557
    %620 = vmatprep.subr.mxu0 0.0
    %621 = vmatpush2.msra.mxu0 %v556
    %622 = vmatprep.subr.mxu0 0.0
    %623 = vmatpush2.msra.mxu0 %v555
    %624 = vmatprep.subr.mxu0 0.0
    %625 = vmatpush2.msra.mxu0 %v554
    %626 = vmatprep.subr.mxu0 0.0
    %627 = vmatpush2.msra.mxu0 %v553
    %628 = vmatprep.subr.mxu0 0.0
    %629 = vmatpush2.msra.mxu0 %v552
    %630 = vmatprep.subr.mxu0 0.0
    %631 = vmatpush2.msra.mxu0 %v551
    %632 = vmatprep.subr.mxu0 0.0
    %633 = vmatpush2.msra.mxu0 %v550
    %634 = vmatprep.subr.mxu0 0.0
    %635 = vmatpush2.msra.mxu0 %v549
    %636 = vmatprep.subr.mxu0 0.0
    %637 = vmatpush2.msra.mxu0 %v548
    %638 = vmatprep.mubr.f32.mxu0 %v530
    %639 = vmatmul.mubr.f32.gmra.mxu0 %v529
    %v640 = vpop.f32.mrf.mxu0
    %v641 = vadd.f32 0.0, %v640
    %v642 = vpop.f32.mrf.mxu0
    %643 = vdwg.mxu0
    %644 = vmatprep.subr.mxu0 0.0
    %645 = vmatpush1.msra.mxu0 0.0
    %646 = vmatprep.subr.mxu0 0.0
    %647 = vmatpush1.msra.mxu0 0.0
    %648 = vmatprep.subr.mxu0 0.0
    %649 = vmatpush1.msra.mxu0 0.0
    %650 = vmatprep.subr.mxu0 0.0
    %651 = vmatpush1.msra.mxu0 0.0
    %652 = vmatprep.subr.mxu0 0.0
    %653 = vmatpush1.msra.mxu0 0.0
    %654 = vmatprep.subr.mxu0 0.0
    %655 = vmatpush1.msra.mxu0 0.0
    %656 = vmatprep.subr.mxu0 0.0
    %657 = vmatpush1.msra.mxu0 0.0
    %658 = vmatprep.subr.mxu0 0.0
    %659 = vmatpush1.msra.mxu0 0.0
    %660 = vmatprep.subr.mxu0 0.0
    %661 = vmatpush1.msra.mxu0 0.0
    %662 = vmatprep.subr.mxu0 0.0
    %663 = vmatpush1.msra.mxu0 0.0
    %664 = vmatprep.subr.mxu0 0.0
    %665 = vmatpush1.msra.mxu0 0.0
    %666 = vmatprep.subr.mxu0 0.0
    %667 = vmatpush1.msra.mxu0 0.0
    %668 = vmatprep.subr.mxu0 0.0
    %669 = vmatpush1.msra.mxu0 0.0
    %670 = vmatprep.subr.mxu0 0.0
    %671 = vmatpush1.msra.mxu0 0.0
    %672 = vmatprep.subr.mxu0 0.0
    %673 = vmatpush1.msra.mxu0 %v572
    %674 = vmatprep.subr.mxu0 0.0
    %675 = vmatpush1.msra.mxu0 %v564
    %676 = vmatprep.subr.mxu0 0.0
    %677 = vmatpush2.msra.mxu0 0.0
    %678 = vmatprep.subr.mxu0 0.0
    %679 = vmatpush2.msra.mxu0 0.0
    %680 = vmatprep.subr.mxu0 0.0
    %681 = vmatpush2.msra.mxu0 0.0
    %682 = vmatprep.subr.mxu0 0.0
    %683 = vmatpush2.msra.mxu0 0.0
    %684 = vmatprep.subr.mxu0 0.0
    %685 = vmatpush2.msra.mxu0 0.0
    %686 = vmatprep.subr.mxu0 0.0
    %687 = vmatpush2.msra.mxu0 0.0
    %688 = vmatprep.subr.mxu0 0.0
    %689 = vmatpush2.msra.mxu0 0.0
    %690 = vmatprep.subr.mxu0 0.0
    %691 = vmatpush2.msra.mxu0 0.0
    %692 = vmatprep.subr.mxu0 0.0
    %693 = vmatpush2.msra.mxu0 0.0
    %694 = vmatprep.subr.mxu0 0.0
    %695 = vmatpush2.msra.mxu0 0.0
    %696 = vmatprep.subr.mxu0 0.0
    %697 = vmatpush2.msra.mxu0 0.0
    %698 = vmatprep.subr.mxu0 0.0
    %699 = vmatpush2.msra.mxu0 0.0
    %700 = vmatprep.subr.mxu0 0.0
    %701 = vmatpush2.msra.mxu0 0.0
    %702 = vmatprep.subr.mxu0 0.0
    %703 = vmatpush2.msra.mxu0 0.0
    %704 = vmatprep.subr.mxu0 0.0
    %705 = vmatpush2.msra.mxu0 0.0
    %706 = vmatprep.subr.mxu0 0.0
    %707 = vmatpush2.msra.mxu0 0.0
    %708 = vmatprep.mubr.f32.mxu0 0.0
    %709 = vmatmul.mubr.f32.gmra.mxu0 %v568
    %v710 = vpop.f32.mrf.mxu0
    %v711 = vadd.f32 %v641, %v710
    %v712 = vpop.f32.mrf.mxu0
    %713 = vdwg.mxu0
    %v714 = vmax.f32 %v711, 0.0
    %v715 = vld [vmem:[%s4] sm:$0xff]
    %v716 = vld [vmem:[%s4 + $0x8] sm:$0xff]
    %v717 = vld [vmem:[%s4 + $0x10] sm:$0xf]
    %v718 = vrot.slane %v39, 1
    %v719 = vrot.slane %v40, 1
    %v720 = vrot.slane %v41, 1
    %v724 = vrot.slane %v39, 5
    %v725 = vrot.slane %v40, 5
    %v726 = vrot.slane %v41, 5
    %v730 = vsel %vm54, %v718, %v724
    %v731 = vsel %vm54, %v719, %v725
    %v732 = vsel %vm54, %v720, %v726
    %s733 = scalar_lea.vmem %s1, 1008
    %v734 = vld [vmem:[%s733] sm:$0xff]
    %v735 = vld [vmem:[%s733 + $0x8] sm:$0xff]
    %v736 = vld [vmem:[%s733 + $0x10] sm:$0xff]
    %v737 = vld [vmem:[%s733 + $0x18] sm:$0xff]
    %v738 = vld [vmem:[%s733 + $0x20] sm:$0xff]
    %v739 = vld [vmem:[%s733 + $0x28] sm:$0xff]
    %v740 = vld [vmem:[%s733 + $0x30] sm:$0xff]
    %v741 = vld [vmem:[%s733 + $0x38] sm:$0xff]
    %v742 = vld [vmem:[%s733 + $0x40] sm:$0xff]
    %v743 = vld [vmem:[%s733 + $0x48] sm:$0xff]
    %v744 = vld [vmem:[%s733 + $0x50] sm:$0xff]
    %v745 = vld [vmem:[%s733 + $0x58] sm:$0xff]
    %v746 = vld [vmem:[%s733 + $0x60] sm:$0xff]
    %v747 = vld [vmem:[%s733 + $0x68] sm:$0xff]
    %v748 = vld [vmem:[%s733 + $0x70] sm:$0xff]
    %v749 = vld [vmem:[%s733 + $0x78] sm:$0xff]
    %v750 = vld [vmem:[%s733 + $0x80] sm:$0xff]
    %v751 = vld [vmem:[%s733 + $0x88] sm:$0xff]
    %v752 = vld [vmem:[%s733 + $0x90] sm:$0xff]
    %v753 = vld [vmem:[%s733 + $0x98] sm:$0xff]
    %v754 = vld [vmem:[%s733 + $0xa0] sm:$0xff]
    %v755 = vld [vmem:[%s733 + $0xa8] sm:$0xff]
    %v756 = vld [vmem:[%s733 + $0xb0] sm:$0xff]
    %v757 = vld [vmem:[%s733 + $0xb8] sm:$0xff]
    %v758 = vld [vmem:[%s733 + $0xc0] sm:$0xff]
    %v759 = vld [vmem:[%s733 + $0xc8] sm:$0xff]
    %v760 = vld [vmem:[%s733 + $0xd0] sm:$0xff]
    %v761 = vld [vmem:[%s733 + $0xd8] sm:$0xff]
    %v762 = vld [vmem:[%s733 + $0xe0] sm:$0xff]
    %v763 = vld [vmem:[%s733 + $0xe8] sm:$0xff]
    %v764 = vld [vmem:[%s733 + $0xf0] sm:$0xff]
    %v765 = vld [vmem:[%s733 + $0xf8] sm:$0xff]
    %v766 = vld [vmem:[%s733 + $0x100] sm:$0xff]
    %v767 = vld [vmem:[%s733 + $0x108] sm:$0xff]
    %v768 = vld [vmem:[%s733 + $0x110] sm:$0xff]
    %v769 = vld [vmem:[%s733 + $0x118] sm:$0xff]
    %v770 = vld [vmem:[%s733 + $0x120] sm:$0xff]
    %v771 = vld [vmem:[%s733 + $0x128] sm:$0xff]
    %v772 = vld [vmem:[%s733 + $0x130] sm:$0xff]
    %v773 = vld [vmem:[%s733 + $0x138] sm:$0xff]
    %v774 = vld [vmem:[%s733 + $0x140] sm:$0xff]
    %v775 = vld [vmem:[%s733 + $0x148] sm:$0xff]
    %v776 = vld [vmem:[%s733 + $0x150] sm:$0xff]
    %v777 = vld [vmem:[%s733 + $0x158] sm:$0xff]
    %v778 = vld [vmem:[%s733 + $0x160] sm:$0xff]
    %v779 = vld [vmem:[%s733 + $0x168] sm:$0xff]
    %v780 = vld [vmem:[%s733 + $0x170] sm:$0xff]
    %v781 = vld [vmem:[%s733 + $0x178] sm:$0xff]
    %v782 = vld [vmem:[%s733 + $0x180] sm:$0xff]
    %v783 = vld [vmem:[%s733 + $0x188] sm:$0xff]
    %v784 = vld [vmem:[%s733 + $0x190] sm:$0xff]
    %v785 = vld [vmem:[%s733 + $0x198] sm:$0xff]
    %v786 = vld [vmem:[%s733 + $0x1a0] sm:$0xff]
    %v787 = vld [vmem:[%s733 + $0x1a8] sm:$0xff]
    %v788 = vld [vmem:[%s733 + $0x1b0] sm:$0xff]
    %v789 = vld [vmem:[%s733 + $0x1b8] sm:$0xff]
    %v790 = vld [vmem:[%s733 + $0x1c0] sm:$0xff]
    %v791 = vld [vmem:[%s733 + $0x1c8] sm:$0xff]
    %v792 = vld [vmem:[%s733 + $0x1d0] sm:$0xff]
    %v793 = vld [vmem:[%s733 + $0x1d8] sm:$0xff]
    %v794 = vld [vmem:[%s733 + $0x1e0] sm:$0xff]
    %v795 = vld [vmem:[%s733 + $0x1e8] sm:$0xff]
    %v796 = vld [vmem:[%s733 + $0x1f0] sm:$0xff]
    %v797 = vld [vmem:[%s733 + $0x1f8] sm:$0xff]
    %v798 = vld [vmem:[%s733 + $0x200] sm:$0xff]
    %v799 = vld [vmem:[%s733 + $0x208] sm:$0xff]
    %v800 = vld [vmem:[%s733 + $0x210] sm:$0xff]
    %v801 = vld [vmem:[%s733 + $0x218] sm:$0xff]
    %v802 = vld [vmem:[%s733 + $0x220] sm:$0xff]
    %v803 = vld [vmem:[%s733 + $0x228] sm:$0xff]
    %v804 = vld [vmem:[%s733 + $0x230] sm:$0xff]
    %v805 = vld [vmem:[%s733 + $0x238] sm:$0xff]
    %v806 = vld [vmem:[%s733 + $0x240] sm:$0xff]
    %v807 = vld [vmem:[%s733 + $0x248] sm:$0xff]
    %v808 = vld [vmem:[%s733 + $0x250] sm:$0xff]
    %v809 = vld [vmem:[%s733 + $0x258] sm:$0xff]
    %v810 = vld [vmem:[%s733 + $0x260] sm:$0xff]
    %v811 = vld [vmem:[%s733 + $0x268] sm:$0xff]
    %v812 = vld [vmem:[%s733 + $0x270] sm:$0xff]
    %v813 = vld [vmem:[%s733 + $0x278] sm:$0xff]
    %v814 = vld [vmem:[%s733 + $0x280] sm:$0xff]
    %v815 = vld [vmem:[%s733 + $0x288] sm:$0xff]
    %v816 = vld [vmem:[%s733 + $0x290] sm:$0xff]
    %v817 = vld [vmem:[%s733 + $0x298] sm:$0xff]
    %v818 = vld [vmem:[%s733 + $0x2a0] sm:$0xff]
    %v819 = vld [vmem:[%s733 + $0x2a8] sm:$0xff]
    %v820 = vld [vmem:[%s733 + $0x2b0] sm:$0xff]
    %v821 = vld [vmem:[%s733 + $0x2b8] sm:$0xff]
    %v822 = vld [vmem:[%s733 + $0x2c0] sm:$0xff]
    %v823 = vld [vmem:[%s733 + $0x2c8] sm:$0xff]
    %v824 = vld [vmem:[%s733 + $0x2d0] sm:$0xff]
    %v825 = vld [vmem:[%s733 + $0x2d8] sm:$0xff]
    %v826 = vld [vmem:[%s733 + $0x2e0] sm:$0xff]
    %v827 = vld [vmem:[%s733 + $0x2e8] sm:$0xff]
    %v828 = vld [vmem:[%s733 + $0x2f0] sm:$0xff]
    %v829 = vld [vmem:[%s733 + $0x2f8] sm:$0xff]
    %v830 = vld [vmem:[%s733 + $0x300] sm:$0xff]
    %v831 = vld [vmem:[%s733 + $0x308] sm:$0xff]
    %v832 = vld [vmem:[%s733 + $0x310] sm:$0xff]
    %v833 = vld [vmem:[%s733 + $0x318] sm:$0xff]
    %v834 = vld [vmem:[%s733 + $0x320] sm:$0xff]
    %v835 = vld [vmem:[%s733 + $0x328] sm:$0xff]
    %v836 = vld [vmem:[%s733 + $0x330] sm:$0xff]
    %v837 = vld [vmem:[%s733 + $0x338] sm:$0xff]
    %v838 = vld [vmem:[%s733 + $0x340] sm:$0xff]
    %v839 = vld [vmem:[%s733 + $0x348] sm:$0xff]
    %v840 = vld [vmem:[%s733 + $0x350] sm:$0xff]
    %v841 = vld [vmem:[%s733 + $0x358] sm:$0xff]
    %v842 = vld [vmem:[%s733 + $0x360] sm:$0xff]
    %v843 = vld [vmem:[%s733 + $0x368] sm:$0xff]
    %v844 = vld [vmem:[%s733 + $0x370] sm:$0xff]
    %v845 = vld [vmem:[%s733 + $0x378] sm:$0xff]
    %v846 = vld [vmem:[%s733 + $0x380] sm:$0xff]
    %v847 = vld [vmem:[%s733 + $0x388] sm:$0xff]
    %v848 = vld [vmem:[%s733 + $0x390] sm:$0xff]
    %v849 = vld [vmem:[%s733 + $0x398] sm:$0xff]
    %v850 = vld [vmem:[%s733 + $0x3a0] sm:$0xff]
    %v851 = vld [vmem:[%s733 + $0x3a8] sm:$0xff]
    %v852 = vld [vmem:[%s733 + $0x3b0] sm:$0xff]
    %v853 = vld [vmem:[%s733 + $0x3b8] sm:$0xff]
    %v854 = vld [vmem:[%s733 + $0x3c0] sm:$0xff]
    %v855 = vld [vmem:[%s733 + $0x3c8] sm:$0xff]
    %v856 = vld [vmem:[%s733 + $0x3d0] sm:$0xff]
    %v857 = vld [vmem:[%s733 + $0x3d8] sm:$0xff]
    %v858 = vld [vmem:[%s733 + $0x3e0] sm:$0xff]
    %v859 = vld [vmem:[%s733 + $0x3e8] sm:$0xff]
    %v860 = vld [vmem:[%s2 + $0x1] sm:$0x1]
    %s862 = vtos %v860
    %v863 = vstv %s862
    %v866 = vsel %vm189, %v732, 0
    %868 = vmatprep.subr.mxu0 %v780
    %869 = vmatpush1.msra.mxu0 %v779
    %870 = vmatprep.subr.mxu0 %v777
    %871 = vmatpush1.msra.mxu0 %v776
    %872 = vmatprep.subr.mxu0 %v774
    %873 = vmatpush1.msra.mxu0 %v773
    %874 = vmatprep.subr.mxu0 %v771
    %875 = vmatpush1.msra.mxu0 %v770
    %876 = vmatprep.subr.mxu0 %v768
    %877 = vmatpush1.msra.mxu0 %v767
    %878 = vmatprep.subr.mxu0 %v765
    %879 = vmatpush1.msra.mxu0 %v764
    %880 = vmatprep.subr.mxu0 %v762
    %881 = vmatpush1.msra.mxu0 %v761
    %882 = vmatprep.subr.mxu0 %v759
    %883 = vmatpush1.msra.mxu0 %v758
    %884 = vmatprep.subr.mxu0 %v756
    %885 = vmatpush1.msra.mxu0 %v755
    %886 = vmatprep.subr.mxu0 %v753
    %887 = vmatpush1.msra.mxu0 %v752
    %888 = vmatprep.subr.mxu0 %v750
    %889 = vmatpush1.msra.mxu0 %v749
    %890 = vmatprep.subr.mxu0 %v747
    %891 = vmatpush1.msra.mxu0 %v746
    %892 = vmatprep.subr.mxu0 %v744
    %893 = vmatpush1.msra.mxu0 %v743
    %894 = vmatprep.subr.mxu0 %v741
    %895 = vmatpush1.msra.mxu0 %v740
    %896 = vmatprep.subr.mxu0 %v738
    %897 = vmatpush1.msra.mxu0 %v737
    %898 = vmatprep.subr.mxu0 %v735
    %899 = vmatpush1.msra.mxu0 %v734
    %900 = vmatprep.subr.mxu0 %v828
    %901 = vmatpush2.msra.mxu0 %v827
    %902 = vmatprep.subr.mxu0 %v825
    %903 = vmatpush2.msra.mxu0 %v824
    %904 = vmatprep.subr.mxu0 %v822
    %905 = vmatpush2.msra.mxu0 %v821
    %906 = vmatprep.subr.mxu0 %v819
    %907 = vmatpush2.msra.mxu0 %v818
    %908 = vmatprep.subr.mxu0 %v816
    %909 = vmatpush2.msra.mxu0 %v815
    %910 = vmatprep.subr.mxu0 %v813
    %911 = vmatpush2.msra.mxu0 %v812
    %912 = vmatprep.subr.mxu0 %v810
    %913 = vmatpush2.msra.mxu0 %v809
    %914 = vmatprep.subr.mxu0 %v807
    %915 = vmatpush2.msra.mxu0 %v806
    %916 = vmatprep.subr.mxu0 %v804
    %917 = vmatpush2.msra.mxu0 %v803
    %918 = vmatprep.subr.mxu0 %v801
    %919 = vmatpush2.msra.mxu0 %v800
    %920 = vmatprep.subr.mxu0 %v798
    %921 = vmatpush2.msra.mxu0 %v797
    %922 = vmatprep.subr.mxu0 %v795
    %923 = vmatpush2.msra.mxu0 %v794
    %924 = vmatprep.subr.mxu0 %v792
    %925 = vmatpush2.msra.mxu0 %v791
    %926 = vmatprep.subr.mxu0 %v789
    %927 = vmatpush2.msra.mxu0 %v788
    %928 = vmatprep.subr.mxu0 %v786
    %929 = vmatpush2.msra.mxu0 %v785
    %930 = vmatprep.subr.mxu0 %v783
    %931 = vmatpush2.msra.mxu0 %v782
    %932 = vmatprep.mubr.f32.mxu0 %v731
    %933 = vmatmul.mubr.f32.gmra.mxu0 %v730
    %v934 = vpop.f32.mrf.mxu0
    %v935 = vadd.f32 %v863, %v934
    %v936 = vpop.f32.mrf.mxu0
    %v937 = vadd.f32 %v863, %v936
    %938 = vdwg.mxu0
    %939 = vmatprep.subr.mxu0 0.0
    %940 = vmatpush1.msra.mxu0 0.0
    %941 = vmatprep.subr.mxu0 0.0
    %942 = vmatpush1.msra.mxu0 0.0
    %943 = vmatprep.subr.mxu0 0.0
    %944 = vmatpush1.msra.mxu0 0.0
    %945 = vmatprep.subr.mxu0 0.0
    %946 = vmatpush1.msra.mxu0 0.0
    %947 = vmatprep.subr.mxu0 0.0
    %948 = vmatpush1.msra.mxu0 0.0
    %949 = vmatprep.subr.mxu0 0.0
    %950 = vmatpush1.msra.mxu0 0.0
    %951 = vmatprep.subr.mxu0 %v858
    %952 = vmatpush1.msra.mxu0 %v857
    %953 = vmatprep.subr.mxu0 %v855
    %954 = vmatpush1.msra.mxu0 %v854
    %955 = vmatprep.subr.mxu0 %v852
    %956 = vmatpush1.msra.mxu0 %v851
    %957 = vmatprep.subr.mxu0 %v849
    %958 = vmatpush1.msra.mxu0 %v848
    %959 = vmatprep.subr.mxu0 %v846
    %960 = vmatpush1.msra.mxu0 %v845
    %961 = vmatprep.subr.mxu0 %v843
    %962 = vmatpush1.msra.mxu0 %v842
    %963 = vmatprep.subr.mxu0 %v840
    %964 = vmatpush1.msra.mxu0 %v839
    %965 = vmatprep.subr.mxu0 %v837
    %966 = vmatpush1.msra.mxu0 %v836
    %967 = vmatprep.subr.mxu0 %v834
    %968 = vmatpush1.msra.mxu0 %v833
    %969 = vmatprep.subr.mxu0 %v831
    %970 = vmatpush1.msra.mxu0 %v830
    %971 = vmatprep.subr.mxu0 0.0
    %972 = vmatpush2.msra.mxu0 0.0
    %973 = vmatprep.subr.mxu0 0.0
    %974 = vmatpush2.msra.mxu0 0.0
    %975 = vmatprep.subr.mxu0 0.0
    %976 = vmatpush2.msra.mxu0 0.0
    %977 = vmatprep.subr.mxu0 0.0
    %978 = vmatpush2.msra.mxu0 0.0
    %979 = vmatprep.subr.mxu0 0.0
    %980 = vmatpush2.msra.mxu0 0.0
    %981 = vmatprep.subr.mxu0 0.0
    %982 = vmatpush2.msra.mxu0 0.0
    %983 = vmatprep.subr.mxu0 0.0
    %984 = vmatpush2.msra.mxu0 0.0
    %985 = vmatprep.subr.mxu0 0.0
    %986 = vmatpush2.msra.mxu0 0.0
    %987 = vmatprep.subr.mxu0 0.0
    %988 = vmatpush2.msra.mxu0 0.0
    %989 = vmatprep.subr.mxu0 0.0
    %990 = vmatpush2.msra.mxu0 0.0
    %991 = vmatprep.subr.mxu0 0.0
    %992 = vmatpush2.msra.mxu0 0.0
    %993 = vmatprep.subr.mxu0 0.0
    %994 = vmatpush2.msra.mxu0 0.0
    %995 = vmatprep.subr.mxu0 0.0
    %996 = vmatpush2.msra.mxu0 0.0
    %997 = vmatprep.subr.mxu0 0.0
    %998 = vmatpush2.msra.mxu0 0.0
    %999 = vmatprep.subr.mxu0 0.0
    %1000 = vmatpush2.msra.mxu0 0.0
    %1001 = vmatprep.subr.mxu0 0.0
    %1002 = vmatpush2.msra.mxu0 0.0
    %1003 = vmatprep.mubr.f32.mxu0 0.0
    %1004 = vmatmul.mubr.f32.gmra.mxu0 %v866
    %v1005 = vpop.f32.mrf.mxu0
    %v1006 = vadd.f32 %v935, %v1005
    %v1007 = vpop.f32.mrf.mxu0
    %v1008 = vadd.f32 %v937, %v1007
    %1009 = vdwg.mxu0
    %1010 = vmatprep.subr.mxu0 0.0
    %1011 = vmatpush1.msra.mxu0 %v781
    %1012 = vmatprep.subr.mxu0 0.0
    %1013 = vmatpush1.msra.mxu0 %v778
    %1014 = vmatprep.subr.mxu0 0.0
    %1015 = vmatpush1.msra.mxu0 %v775
    %1016 = vmatprep.subr.mxu0 0.0
    %1017 = vmatpush1.msra.mxu0 %v772
    %1018 = vmatprep.subr.mxu0 0.0
    %1019 = vmatpush1.msra.mxu0 %v769
    %1020 = vmatprep.subr.mxu0 0.0
    %1021 = vmatpush1.msra.mxu0 %v766
    %1022 = vmatprep.subr.mxu0 0.0
    %1023 = vmatpush1.msra.mxu0 %v763
    %1024 = vmatprep.subr.mxu0 0.0
    %1025 = vmatpush1.msra.mxu0 %v760
    %1026 = vmatprep.subr.mxu0 0.0
    %1027 = vmatpush1.msra.mxu0 %v757
    %1028 = vmatprep.subr.mxu0 0.0
    %1029 = vmatpush1.msra.mxu0 %v754
    %1030 = vmatprep.subr.mxu0 0.0
    %1031 = vmatpush1.msra.mxu0 %v751
    %1032 = vmatprep.subr.mxu0 0.0
    %1033 = vmatpush1.msra.mxu0 %v748
    %1034 = vmatprep.subr.mxu0 0.0
    %1035 = vmatpush1.msra.mxu0 %v745
    %1036 = vmatprep.subr.mxu0 0.0
    %1037 = vmatpush1.msra.mxu0 %v742
    %1038 = vmatprep.subr.mxu0 0.0
    %1039 = vmatpush1.msra.mxu0 %v739
    %1040 = vmatprep.subr.mxu0 0.0
    %1041 = vmatpush1.msra.mxu0 %v736
    %1042 = vmatprep.subr.mxu0 0.0
    %1043 = vmatpush2.msra.mxu0 %v829
    %1044 = vmatprep.subr.mxu0 0.0
    %1045 = vmatpush2.msra.mxu0 %v826
    %1046 = vmatprep.subr.mxu0 0.0
    %1047 = vmatpush2.msra.mxu0 %v823
    %1048 = vmatprep.subr.mxu0 0.0
    %1049 = vmatpush2.msra.mxu0 %v820
    %1050 = vmatprep.subr.mxu0 0.0
    %1051 = vmatpush2.msra.mxu0 %v817
    %1052 = vmatprep.subr.mxu0 0.0
    %1053 = vmatpush2.msra.mxu0 %v814
    %1054 = vmatprep.subr.mxu0 0.0
    %1055 = vmatpush2.msra.mxu0 %v811
    %1056 = vmatprep.subr.mxu0 0.0
    %1057 = vmatpush2.msra.mxu0 %v808
    %1058 = vmatprep.subr.mxu0 0.0
    %1059 = vmatpush2.msra.mxu0 %v805
    %1060 = vmatprep.subr.mxu0 0.0
    %1061 = vmatpush2.msra.mxu0 %v802
    %1062 = vmatprep.subr.mxu0 0.0
    %1063 = vmatpush2.msra.mxu0 %v799
    %1064 = vmatprep.subr.mxu0 0.0
    %1065 = vmatpush2.msra.mxu0 %v796
    %1066 = vmatprep.subr.mxu0 0.0
    %1067 = vmatpush2.msra.mxu0 %v793
    %1068 = vmatprep.subr.mxu0 0.0
    %1069 = vmatpush2.msra.mxu0 %v790
    %1070 = vmatprep.subr.mxu0 0.0
    %1071 = vmatpush2.msra.mxu0 %v787
    %1072 = vmatprep.subr.mxu0 0.0
    %1073 = vmatpush2.msra.mxu0 %v784
    %1074 = vmatprep.mubr.f32.mxu0 %v731
    %1075 = vmatmul.mubr.f32.gmra.mxu0 %v730
    %v1076 = vpop.f32.mrf.mxu0
    %v1077 = vadd.f32 %v863, %v1076
    %v1078 = vpop.f32.mrf.mxu0
    %1079 = vdwg.mxu0
    %1080 = vmatprep.subr.mxu0 0.0
    %1081 = vmatpush1.msra.mxu0 0.0
    %1082 = vmatprep.subr.mxu0 0.0
    %1083 = vmatpush1.msra.mxu0 0.0
    %1084 = vmatprep.subr.mxu0 0.0
    %1085 = vmatpush1.msra.mxu0 0.0
    %1086 = vmatprep.subr.mxu0 0.0
    %1087 = vmatpush1.msra.mxu0 0.0
    %1088 = vmatprep.subr.mxu0 0.0
    %1089 = vmatpush1.msra.mxu0 0.0
    %1090 = vmatprep.subr.mxu0 0.0
    %1091 = vmatpush1.msra.mxu0 0.0
    %1092 = vmatprep.subr.mxu0 0.0
    %1093 = vmatpush1.msra.mxu0 %v859
    %1094 = vmatprep.subr.mxu0 0.0
    %1095 = vmatpush1.msra.mxu0 %v856
    %1096 = vmatprep.subr.mxu0 0.0
    %1097 = vmatpush1.msra.mxu0 %v853
    %1098 = vmatprep.subr.mxu0 0.0
    %1099 = vmatpush1.msra.mxu0 %v850
    %1100 = vmatprep.subr.mxu0 0.0
    %1101 = vmatpush1.msra.mxu0 %v847
    %1102 = vmatprep.subr.mxu0 0.0
    %1103 = vmatpush1.msra.mxu0 %v844
    %1104 = vmatprep.subr.mxu0 0.0
    %1105 = vmatpush1.msra.mxu0 %v841
    %1106 = vmatprep.subr.mxu0 0.0
    %1107 = vmatpush1.msra.mxu0 %v838
    %1108 = vmatprep.subr.mxu0 0.0
    %1109 = vmatpush1.msra.mxu0 %v835
    %1110 = vmatprep.subr.mxu0 0.0
    %1111 = vmatpush1.msra.mxu0 %v832
    %1112 = vmatprep.subr.mxu0 0.0
    %1113 = vmatpush2.msra.mxu0 0.0
    %1114 = vmatprep.subr.mxu0 0.0
    %1115 = vmatpush2.msra.mxu0 0.0
    %1116 = vmatprep.subr.mxu0 0.0
    %1117 = vmatpush2.msra.mxu0 0.0
    %1118 = vmatprep.subr.mxu0 0.0
    %1119 = vmatpush2.msra.mxu0 0.0
    %1120 = vmatprep.subr.mxu0 0.0
    %1121 = vmatpush2.msra.mxu0 0.0
    %1122 = vmatprep.subr.mxu0 0.0
    %1123 = vmatpush2.msra.mxu0 0.0
    %1124 = vmatprep.subr.mxu0 0.0
    %1125 = vmatpush2.msra.mxu0 0.0
    %1126 = vmatprep.subr.mxu0 0.0
    %1127 = vmatpush2.msra.mxu0 0.0
    %1128 = vmatprep.subr.mxu0 0.0
    %1129 = vmatpush2.msra.mxu0 0.0
    %1130 = vmatprep.subr.mxu0 0.0
    %1131 = vmatpush2.msra.mxu0 0.0
    %1132 = vmatprep.subr.mxu0 0.0
    %1133 = vmatpush2.msra.mxu0 0.0
    %1134 = vmatprep.subr.mxu0 0.0
    %1135 = vmatpush2.msra.mxu0 0.0
    %1136 = vmatprep.subr.mxu0 0.0
    %1137 = vmatpush2.msra.mxu0 0.0
    %1138 = vmatprep.subr.mxu0 0.0
    %1139 = vmatpush2.msra.mxu0 0.0
    %1140 = vmatprep.subr.mxu0 0.0
    %1141 = vmatpush2.msra.mxu0 0.0
    %1142 = vmatprep.subr.mxu0 0.0
    %1143 = vmatpush2.msra.mxu0 0.0
    %1144 = vmatprep.mubr.f32.mxu0 0.0
    %1145 = vmatmul.mubr.f32.gmra.mxu0 %v866
    %v1146 = vpop.f32.mrf.mxu0
    %v1147 = vadd.f32 %v1077, %v1146
    %v1148 = vpop.f32.mrf.mxu0
    %1149 = vdwg.mxu0
    %v1150 = vand.u32 2147483647, %v1006
    %v1151 = vand.u32 2147483647, %v1008
    %v1152 = vand.u32 2147483647, %v1147
    %1156 = vrot.lane.b32.xlu0 %v1150, 127
    %v1157 = vpop.permute.xlu0 %1156
    %1158 = vrot.lane.b32.xlu0 %v1151, 127
    %v1159 = vpop.permute.xlu0 %1158
    %1160 = vrot.lane.b32.xlu0 %v1152, 127
    %v1161 = vpop.permute.xlu0 %1160
    %v1162 = vsel %vm487, %v1157, %v1159
    %v1163 = vsel %vm487, %v1159, %v1161
    %v1167 = vmax.f32 %v1150, %v1162
    %v1168 = vmax.f32 %v1151, %v1163
    %v1169 = vmax.f32 %v1152, %v1161
    %1173 = vrot.lane.b32.xlu0 %v1167, 126
    %v1174 = vpop.permute.xlu0 %1173
    %1175 = vrot.lane.b32.xlu0 %v1168, 126
    %v1176 = vpop.permute.xlu0 %1175
    %1177 = vrot.lane.b32.xlu0 %v1169, 126
    %v1178 = vpop.permute.xlu0 %1177
    %v1179 = vsel %vm505, %v1174, %v1176
    %v1180 = vsel %vm505, %v1176, %v1178
    %v1184 = vmax.f32 %v1167, %v1179
    %v1185 = vmax.f32 %v1168, %v1180
    %v1186 = vmax.f32 %v1169, %v1178
    %1190 = vrot.lane.b32.xlu0 %v1184, 124
    %v1191 = vpop.permute.xlu0 %1190
    %1192 = vrot.lane.b32.xlu0 %v1185, 124
    %v1193 = vpop.permute.xlu0 %1192
    %1194 = vrot.lane.b32.xlu0 %v1186, 124
    %v1195 = vpop.permute.xlu0 %1194
    %v1196 = vsel %vm523, %v1191, %v1193
    %v1197 = vsel %vm523, %v1193, %v1195
    %v1201 = vmax.f32 %v1184, %v1196
    %v1202 = vmax.f32 %v1185, %v1197
    %v1203 = vmax.f32 %v1186, %v1195
    %s1204 = scalar_lea.vmem %s3, 272
    %v1205 = vld [vmem:[%s1204] sm:$0xff]
    %v1206 = vld [vmem:[%s1204 + $0x8] sm:$0xff]
    %v1207 = vld [vmem:[%s1204 + $0x10] sm:$0xff]
    %v1208 = vld [vmem:[%s1204 + $0x18] sm:$0xff]
    %v1209 = vld [vmem:[%s1204 + $0x20] sm:$0xff]
    %v1210 = vld [vmem:[%s1204 + $0x28] sm:$0xff]
    %v1211 = vld [vmem:[%s1204 + $0x30] sm:$0xff]
    %v1212 = vld [vmem:[%s1204 + $0x38] sm:$0xff]
    %v1213 = vld [vmem:[%s1204 + $0x40] sm:$0xff]
    %v1214 = vld [vmem:[%s1204 + $0x48] sm:$0xff]
    %v1215 = vld [vmem:[%s1204 + $0x50] sm:$0xff]
    %v1216 = vld [vmem:[%s1204 + $0x58] sm:$0xff]
    %v1217 = vld [vmem:[%s1204 + $0x60] sm:$0xff]
    %v1218 = vld [vmem:[%s1204 + $0x68] sm:$0xff]
    %v1219 = vld [vmem:[%s1204 + $0x70] sm:$0xff]
    %v1220 = vld [vmem:[%s1204 + $0x78] sm:$0xff]
    %v1221 = vld [vmem:[%s1204 + $0x80] sm:$0xff]
    %v1222 = vld [vmem:[%s1204 + $0x88] sm:$0xff]
    %v1223 = vld [vmem:[%s1204 + $0x90] sm:$0xff]
    %v1224 = vld [vmem:[%s1204 + $0x98] sm:$0xff]
    %v1225 = vld [vmem:[%s1204 + $0xa0] sm:$0xff]
    %v1226 = vld [vmem:[%s1204 + $0xa8] sm:$0xff]
    %v1227 = vld [vmem:[%s1204 + $0xb0] sm:$0xff]
    %v1228 = vld [vmem:[%s1204 + $0xb8] sm:$0xff]
    %v1229 = vld [vmem:[%s1204 + $0xc0] sm:$0xff]
    %v1230 = vld [vmem:[%s1204 + $0xc8] sm:$0xff]
    %v1231 = vld [vmem:[%s1204 + $0xd0] sm:$0xff]
    %v1232 = vld [vmem:[%s1204 + $0xd8] sm:$0xff]
    %v1233 = vld [vmem:[%s1204 + $0xe0] sm:$0xff]
    %v1234 = vld [vmem:[%s1204 + $0xe8] sm:$0xff]
    %v1235 = vld [vmem:[%s1204 + $0xf0] sm:$0xff]
    %v1236 = vld [vmem:[%s1204 + $0xf8] sm:$0xff]
    %v1237 = vld [vmem:[%s1204 + $0x100] sm:$0xff]
    %v1238 = vld [vmem:[%s1204 + $0x108] sm:$0x3]
    %v1240 = vsel %vm566, %v1203, 0
    %v1243 = vsel %vm570, %v1238, 0
    %1245 = vmatprep.subr.mxu0 0.0
    %1246 = vmatpush1.msra.mxu0 %v1220
    %1247 = vmatprep.subr.mxu0 0.0
    %1248 = vmatpush1.msra.mxu0 %v1219
    %1249 = vmatprep.subr.mxu0 0.0
    %1250 = vmatpush1.msra.mxu0 %v1218
    %1251 = vmatprep.subr.mxu0 0.0
    %1252 = vmatpush1.msra.mxu0 %v1217
    %1253 = vmatprep.subr.mxu0 0.0
    %1254 = vmatpush1.msra.mxu0 %v1216
    %1255 = vmatprep.subr.mxu0 0.0
    %1256 = vmatpush1.msra.mxu0 %v1215
    %1257 = vmatprep.subr.mxu0 0.0
    %1258 = vmatpush1.msra.mxu0 %v1214
    %1259 = vmatprep.subr.mxu0 0.0
    %1260 = vmatpush1.msra.mxu0 %v1213
    %1261 = vmatprep.subr.mxu0 0.0
    %1262 = vmatpush1.msra.mxu0 %v1212
    %1263 = vmatprep.subr.mxu0 0.0
    %1264 = vmatpush1.msra.mxu0 %v1211
    %1265 = vmatprep.subr.mxu0 0.0
    %1266 = vmatpush1.msra.mxu0 %v1210
    %1267 = vmatprep.subr.mxu0 0.0
    %1268 = vmatpush1.msra.mxu0 %v1209
    %1269 = vmatprep.subr.mxu0 0.0
    %1270 = vmatpush1.msra.mxu0 %v1208
    %1271 = vmatprep.subr.mxu0 0.0
    %1272 = vmatpush1.msra.mxu0 %v1207
    %1273 = vmatprep.subr.mxu0 0.0
    %1274 = vmatpush1.msra.mxu0 %v1206
    %1275 = vmatprep.subr.mxu0 0.0
    %1276 = vmatpush1.msra.mxu0 %v1205
    %1277 = vmatprep.subr.mxu0 0.0
    %1278 = vmatpush2.msra.mxu0 %v1236
    %1279 = vmatprep.subr.mxu0 0.0
    %1280 = vmatpush2.msra.mxu0 %v1235
    %1281 = vmatprep.subr.mxu0 0.0
    %1282 = vmatpush2.msra.mxu0 %v1234
    %1283 = vmatprep.subr.mxu0 0.0
    %1284 = vmatpush2.msra.mxu0 %v1233
    %1285 = vmatprep.subr.mxu0 0.0
    %1286 = vmatpush2.msra.mxu0 %v1232
    %1287 = vmatprep.subr.mxu0 0.0
    %1288 = vmatpush2.msra.mxu0 %v1231
    %1289 = vmatprep.subr.mxu0 0.0
    %1290 = vmatpush2.msra.mxu0 %v1230
    %1291 = vmatprep.subr.mxu0 0.0
    %1292 = vmatpush2.msra.mxu0 %v1229
    %1293 = vmatprep.subr.mxu0 0.0
    %1294 = vmatpush2.msra.mxu0 %v1228
    %1295 = vmatprep.subr.mxu0 0.0
    %1296 = vmatpush2.msra.mxu0 %v1227
    %1297 = vmatprep.subr.mxu0 0.0
    %1298 = vmatpush2.msra.mxu0 %v1226
    %1299 = vmatprep.subr.mxu0 0.0
    %1300 = vmatpush2.msra.mxu0 %v1225
    %1301 = vmatprep.subr.mxu0 0.0
    %1302 = vmatpush2.msra.mxu0 %v1224
    %1303 = vmatprep.subr.mxu0 0.0
    %1304 = vmatpush2.msra.mxu0 %v1223
    %1305 = vmatprep.subr.mxu0 0.0
    %1306 = vmatpush2.msra.mxu0 %v1222
    %1307 = vmatprep.subr.mxu0 0.0
    %1308 = vmatpush2.msra.mxu0 %v1221
    %1309 = vmatprep.mubr.f32.mxu0 %v1202
    %1310 = vmatmul.mubr.f32.gmra.mxu0 %v1201
    %v1311 = vpop.f32.mrf.mxu0
    %v1312 = vadd.f32 0.0, %v1311
    %v1313 = vpop.f32.mrf.mxu0
    %1314 = vdwg.mxu0
    %1315 = vmatprep.subr.mxu0 0.0
    %1316 = vmatpush1.msra.mxu0 0.0
    %1317 = vmatprep.subr.mxu0 0.0
    %1318 = vmatpush1.msra.mxu0 0.0
    %1319 = vmatprep.subr.mxu0 0.0
    %1320 = vmatpush1.msra.mxu0 0.0
    %1321 = vmatprep.subr.mxu0 0.0
    %1322 = vmatpush1.msra.mxu0 0.0
    %1323 = vmatprep.subr.mxu0 0.0
    %1324 = vmatpush1.msra.mxu0 0.0
    %1325 = vmatprep.subr.mxu0 0.0
    %1326 = vmatpush1.msra.mxu0 0.0
    %1327 = vmatprep.subr.mxu0 0.0
    %1328 = vmatpush1.msra.mxu0 0.0
    %1329 = vmatprep.subr.mxu0 0.0
    %1330 = vmatpush1.msra.mxu0 0.0
    %1331 = vmatprep.subr.mxu0 0.0
    %1332 = vmatpush1.msra.mxu0 0.0
    %1333 = vmatprep.subr.mxu0 0.0
    %1334 = vmatpush1.msra.mxu0 0.0
    %1335 = vmatprep.subr.mxu0 0.0
    %1336 = vmatpush1.msra.mxu0 0.0
    %1337 = vmatprep.subr.mxu0 0.0
    %1338 = vmatpush1.msra.mxu0 0.0
    %1339 = vmatprep.subr.mxu0 0.0
    %1340 = vmatpush1.msra.mxu0 0.0
    %1341 = vmatprep.subr.mxu0 0.0
    %1342 = vmatpush1.msra.mxu0 0.0
    %1343 = vmatprep.subr.mxu0 0.0
    %1344 = vmatpush1.msra.mxu0 %v1243
    %1345 = vmatprep.subr.mxu0 0.0
    %1346 = vmatpush1.msra.mxu0 %v1237
    %1347 = vmatprep.subr.mxu0 0.0
    %1348 = vmatpush2.msra.mxu0 0.0
    %1349 = vmatprep.subr.mxu0 0.0
    %1350 = vmatpush2.msra.mxu0 0.0
    %1351 = vmatprep.subr.mxu0 0.0
    %1352 = vmatpush2.msra.mxu0 0.0
    %1353 = vmatprep.subr.mxu0 0.0
    %1354 = vmatpush2.msra.mxu0 0.0
    %1355 = vmatprep.subr.mxu0 0.0
    %1356 = vmatpush2.msra.mxu0 0.0
    %1357 = vmatprep.subr.mxu0 0.0
    %1358 = vmatpush2.msra.mxu0 0.0
    %1359 = vmatprep.subr.mxu0 0.0
    %1360 = vmatpush2.msra.mxu0 0.0
    %1361 = vmatprep.subr.mxu0 0.0
    %1362 = vmatpush2.msra.mxu0 0.0
    %1363 = vmatprep.subr.mxu0 0.0
    %1364 = vmatpush2.msra.mxu0 0.0
    %1365 = vmatprep.subr.mxu0 0.0
    %1366 = vmatpush2.msra.mxu0 0.0
    %1367 = vmatprep.subr.mxu0 0.0
    %1368 = vmatpush2.msra.mxu0 0.0
    %1369 = vmatprep.subr.mxu0 0.0
    %1370 = vmatpush2.msra.mxu0 0.0
    %1371 = vmatprep.subr.mxu0 0.0
    %1372 = vmatpush2.msra.mxu0 0.0
    %1373 = vmatprep.subr.mxu0 0.0
    %1374 = vmatpush2.msra.mxu0 0.0
    %1375 = vmatprep.subr.mxu0 0.0
    %1376 = vmatpush2.msra.mxu0 0.0
    %1377 = vmatprep.subr.mxu0 0.0
    %1378 = vmatpush2.msra.mxu0 0.0
    %1379 = vmatprep.mubr.f32.mxu0 0.0
    %1380 = vmatmul.mubr.f32.gmra.mxu0 %v1240
    %v1381 = vpop.f32.mrf.mxu0
    %v1382 = vadd.f32 %v1312, %v1381
    %v1383 = vpop.f32.mrf.mxu0
    %1384 = vdwg.mxu0
    %v1385 = vmax.f32 %v1382, 0.0
    %s1386 = scalar_lea.vmem %s4, 24
    %v1387 = vld [vmem:[%s1386] sm:$0xff]
    %v1388 = vld [vmem:[%s1386 + $0x8] sm:$0xff]
    %v1389 = vld [vmem:[%s1386 + $0x10] sm:$0xf]
    %vm1390 = vcmask 162816
    %v1392 = vsel %vm1390, %v1385, 0
    %vm1394 = vcmask 1043456
    %v1396 = vsel %vm1394, %v1389, 0
    %1398 = vmatprep.subr.mxu0 0.0
    %1399 = vmatpush1.msra.mxu0 0.0
    %1400 = vmatprep.subr.mxu0 0.0
    %1401 = vmatpush1.msra.mxu0 0.0
    %1402 = vmatprep.subr.mxu0 0.0
    %1403 = vmatpush1.msra.mxu0 0.0
    %1404 = vmatprep.subr.mxu0 0.0
    %1405 = vmatpush1.msra.mxu0 0.0
    %1406 = vmatprep.subr.mxu0 0.0
    %1407 = vmatpush1.msra.mxu0 0.0
    %1408 = vmatprep.subr.mxu0 0.0
    %1409 = vmatpush1.msra.mxu0 0.0
    %1410 = vmatprep.subr.mxu0 0.0
    %1411 = vmatpush1.msra.mxu0 0.0
    %1412 = vmatprep.subr.mxu0 0.0
    %1413 = vmatpush1.msra.mxu0 0.0
    %1414 = vmatprep.subr.mxu0 0.0
    %1415 = vmatpush1.msra.mxu0 0.0
    %1416 = vmatprep.subr.mxu0 0.0
    %1417 = vmatpush1.msra.mxu0 0.0
    %1418 = vmatprep.subr.mxu0 0.0
    %1419 = vmatpush1.msra.mxu0 0.0
    %1420 = vmatprep.subr.mxu0 0.0
    %1421 = vmatpush1.msra.mxu0 0.0
    %1422 = vmatprep.subr.mxu0 0.0
    %1423 = vmatpush1.msra.mxu0 0.0
    %1424 = vmatprep.subr.mxu0 0.0
    %1425 = vmatpush1.msra.mxu0 %v1396
    %1426 = vmatprep.subr.mxu0 0.0
    %1427 = vmatpush1.msra.mxu0 %v1388
    %1428 = vmatprep.subr.mxu0 0.0
    %1429 = vmatpush1.msra.mxu0 %v1387
    %1430 = vmatprep.subr.mxu0 0.0
    %1431 = vmatpush2.msra.mxu0 0.0
    %1432 = vmatprep.subr.mxu0 0.0
    %1433 = vmatpush2.msra.mxu0 0.0
    %1434 = vmatprep.subr.mxu0 0.0
    %1435 = vmatpush2.msra.mxu0 0.0
    %1436 = vmatprep.subr.mxu0 0.0
    %1437 = vmatpush2.msra.mxu0 0.0
    %1438 = vmatprep.subr.mxu0 0.0
    %1439 = vmatpush2.msra.mxu0 0.0
    %1440 = vmatprep.subr.mxu0 0.0
    %1441 = vmatpush2.msra.mxu0 0.0
    %1442 = vmatprep.subr.mxu0 0.0
    %1443 = vmatpush2.msra.mxu0 0.0
    %1444 = vmatprep.subr.mxu0 0.0
    %1445 = vmatpush2.msra.mxu0 0.0
    %1446 = vmatprep.subr.mxu0 0.0
    %1447 = vmatpush2.msra.mxu0 0.0
    %1448 = vmatprep.subr.mxu0 0.0
    %1449 = vmatpush2.msra.mxu0 0.0
    %1450 = vmatprep.subr.mxu0 0.0
    %1451 = vmatpush2.msra.mxu0 0.0
    %1452 = vmatprep.subr.mxu0 0.0
    %1453 = vmatpush2.msra.mxu0 0.0
    %1454 = vmatprep.subr.mxu0 0.0
    %1455 = vmatpush2.msra.mxu0 0.0
    %1456 = vmatprep.subr.mxu0 0.0
    %1457 = vmatpush2.msra.mxu0 0.0
    %1458 = vmatprep.subr.mxu0 0.0
    %1459 = vmatpush2.msra.mxu0 0.0
    %1460 = vmatprep.subr.mxu0 0.0
    %1461 = vmatpush2.msra.mxu0 0.0
    %1462 = vmatprep.mubr.f32.mxu0 0.0
    %1463 = vmatmul.mubr.f32.gmra.mxu0 %v1392
    %v1464 = vpop.f32.mrf.mxu0
    %v1465 = vadd.f32 0.0, %v1464
    %v1466 = vpop.f32.mrf.mxu0
    %1467 = vdwg.mxu0
    %v1469 = vsel %vm1390, %v714, 0
    %v1472 = vsel %vm1394, %v717, 0
    %1474 = vmatprep.subr.mxu0 0.0
    %1475 = vmatpush1.msra.mxu0 0.0
    %1476 = vmatprep.subr.mxu0 0.0
    %1477 = vmatpush1.msra.mxu0 0.0
    %1478 = vmatprep.subr.mxu0 0.0
    %1479 = vmatpush1.msra.mxu0 0.0
    %1480 = vmatprep.subr.mxu0 0.0
    %1481 = vmatpush1.msra.mxu0 0.0
    %1482 = vmatprep.subr.mxu0 0.0
    %1483 = vmatpush1.msra.mxu0 0.0
    %1484 = vmatprep.subr.mxu0 0.0
    %1485 = vmatpush1.msra.mxu0 0.0
    %1486 = vmatprep.subr.mxu0 0.0
    %1487 = vmatpush1.msra.mxu0 0.0
    %1488 = vmatprep.subr.mxu0 0.0
    %1489 = vmatpush1.msra.mxu0 0.0
    %1490 = vmatprep.subr.mxu0 0.0
    %1491 = vmatpush1.msra.mxu0 0.0
    %1492 = vmatprep.subr.mxu0 0.0
    %1493 = vmatpush1.msra.mxu0 0.0
    %1494 = vmatprep.subr.mxu0 0.0
    %1495 = vmatpush1.msra.mxu0 0.0
    %1496 = vmatprep.subr.mxu0 0.0
    %1497 = vmatpush1.msra.mxu0 0.0
    %1498 = vmatprep.subr.mxu0 0.0
    %1499 = vmatpush1.msra.mxu0 0.0
    %1500 = vmatprep.subr.mxu0 0.0
    %1501 = vmatpush1.msra.mxu0 %v1472
    %1502 = vmatprep.subr.mxu0 0.0
    %1503 = vmatpush1.msra.mxu0 %v716
    %1504 = vmatprep.subr.mxu0 0.0
    %1505 = vmatpush1.msra.mxu0 %v715
    %1506 = vmatprep.subr.mxu0 0.0
    %1507 = vmatpush2.msra.mxu0 0.0
    %1508 = vmatprep.subr.mxu0 0.0
    %1509 = vmatpush2.msra.mxu0 0.0
    %1510 = vmatprep.subr.mxu0 0.0
    %1511 = vmatpush2.msra.mxu0 0.0
    %1512 = vmatprep.subr.mxu0 0.0
    %1513 = vmatpush2.msra.mxu0 0.0
    %1514 = vmatprep.subr.mxu0 0.0
    %1515 = vmatpush2.msra.mxu0 0.0
    %1516 = vmatprep.subr.mxu0 0.0
    %1517 = vmatpush2.msra.mxu0 0.0
    %1518 = vmatprep.subr.mxu0 0.0
    %1519 = vmatpush2.msra.mxu0 0.0
    %1520 = vmatprep.subr.mxu0 0.0
    %1521 = vmatpush2.msra.mxu0 0.0
    %1522 = vmatprep.subr.mxu0 0.0
    %1523 = vmatpush2.msra.mxu0 0.0
    %1524 = vmatprep.subr.mxu0 0.0
    %1525 = vmatpush2.msra.mxu0 0.0
    %1526 = vmatprep.subr.mxu0 0.0
    %1527 = vmatpush2.msra.mxu0 0.0
    %1528 = vmatprep.subr.mxu0 0.0
    %1529 = vmatpush2.msra.mxu0 0.0
    %1530 = vmatprep.subr.mxu0 0.0
    %1531 = vmatpush2.msra.mxu0 0.0
    %1532 = vmatprep.subr.mxu0 0.0
    %1533 = vmatpush2.msra.mxu0 0.0
    %1534 = vmatprep.subr.mxu0 0.0
    %1535 = vmatpush2.msra.mxu0 0.0
    %1536 = vmatprep.subr.mxu0 0.0
    %1537 = vmatpush2.msra.mxu0 0.0
    %1538 = vmatprep.mubr.f32.mxu0 0.0
    %1539 = vmatmul.mubr.f32.gmra.mxu0 %v1469
    %v1540 = vpop.f32.mrf.mxu0
    %v1541 = vadd.f32 %v1465, %v1540
    %v1542 = vpop.f32.mrf.mxu0
    %1543 = vdwg.mxu0
    %v1544 = vrot.slane %v39, 2
    %v1545 = vrot.slane %v40, 2
    %v1546 = vrot.slane %v41, 2
    %v1550 = vrot.slane %v39, 6
    %v1551 = vrot.slane %v40, 6
    %v1552 = vrot.slane %v41, 6
    %v1556 = vsel %vm54, %v1544, %v1550
    %v1557 = vsel %vm54, %v1545, %v1551
    %v1558 = vsel %vm54, %v1546, %v1552
    %s1559 = scalar_lea.vmem %s1, 2016
    %v1560 = vld [vmem:[%s1559] sm:$0xff]
    %v1561 = vld [vmem:[%s1559 + $0x8] sm:$0xff]
    %v1562 = vld [vmem:[%s1559 + $0x10] sm:$0xff]
    %v1563 = vld [vmem:[%s1559 + $0x18] sm:$0xff]
    %v1564 = vld [vmem:[%s1559 + $0x20] sm:$0xff]
    %v1565 = vld [vmem:[%s1559 + $0x28] sm:$0xff]
    %v1566 = vld [vmem:[%s1559 + $0x30] sm:$0xff]
    %v1567 = vld [vmem:[%s1559 + $0x38] sm:$0xff]
    %v1568 = vld [vmem:[%s1559 + $0x40] sm:$0xff]
    %v1569 = vld [vmem:[%s1559 + $0x48] sm:$0xff]
    %v1570 = vld [vmem:[%s1559 + $0x50] sm:$0xff]
    %v1571 = vld [vmem:[%s1559 + $0x58] sm:$0xff]
    %v1572 = vld [vmem:[%s1559 + $0x60] sm:$0xff]
    %v1573 = vld [vmem:[%s1559 + $0x68] sm:$0xff]
    %v1574 = vld [vmem:[%s1559 + $0x70] sm:$0xff]
    %v1575 = vld [vmem:[%s1559 + $0x78] sm:$0xff]
    %v1576 = vld [vmem:[%s1559 + $0x80] sm:$0xff]
    %v1577 = vld [vmem:[%s1559 + $0x88] sm:$0xff]
    %v1578 = vld [vmem:[%s1559 + $0x90] sm:$0xff]
    %v1579 = vld [vmem:[%s1559 + $0x98] sm:$0xff]
    %v1580 = vld [vmem:[%s1559 + $0xa0] sm:$0xff]
    %v1581 = vld [vmem:[%s1559 + $0xa8] sm:$0xff]
    %v1582 = vld [vmem:[%s1559 + $0xb0] sm:$0xff]
    %v1583 = vld [vmem:[%s1559 + $0xb8] sm:$0xff]
    %v1584 = vld [vmem:[%s1559 + $0xc0] sm:$0xff]
    %v1585 = vld [vmem:[%s1559 + $0xc8] sm:$0xff]
    %v1586 = vld [vmem:[%s1559 + $0xd0] sm:$0xff]
    %v1587 = vld [vmem:[%s1559 + $0xd8] sm:$0xff]
    %v1588 = vld [vmem:[%s1559 + $0xe0] sm:$0xff]
    %v1589 = vld [vmem:[%s1559 + $0xe8] sm:$0xff]
    %v1590 = vld [vmem:[%s1559 + $0xf0] sm:$0xff]
    %v1591 = vld [vmem:[%s1559 + $0xf8] sm:$0xff]
    %v1592 = vld [vmem:[%s1559 + $0x100] sm:$0xff]
    %v1593 = vld [vmem:[%s1559 + $0x108] sm:$0xff]
    %v1594 = vld [vmem:[%s1559 + $0x110] sm:$0xff]
    %v1595 = vld [vmem:[%s1559 + $0x118] sm:$0xff]
    %v1596 = vld [vmem:[%s1559 + $0x120] sm:$0xff]
    %v1597 = vld [vmem:[%s1559 + $0x128] sm:$0xff]
    %v1598 = vld [vmem:[%s1559 + $0x130] sm:$0xff]
    %v1599 = vld [vmem:[%s1559 + $0x138] sm:$0xff]
    %v1600 = vld [vmem:[%s1559 + $0x140] sm:$0xff]
    %v1601 = vld [vmem:[%s1559 + $0x148] sm:$0xff]
    %v1602 = vld [vmem:[%s1559 + $0x150] sm:$0xff]
    %v1603 = vld [vmem:[%s1559 + $0x158] sm:$0xff]
    %v1604 = vld [vmem:[%s1559 + $0x160] sm:$0xff]
    %v1605 = vld [vmem:[%s1559 + $0x168] sm:$0xff]
    %v1606 = vld [vmem:[%s1559 + $0x170] sm:$0xff]
    %v1607 = vld [vmem:[%s1559 + $0x178] sm:$0xff]
    %v1608 = vld [vmem:[%s1559 + $0x180] sm:$0xff]
    %v1609 = vld [vmem:[%s1559 + $0x188] sm:$0xff]
    %v1610 = vld [vmem:[%s1559 + $0x190] sm:$0xff]
    %v1611 = vld [vmem:[%s1559 + $0x198] sm:$0xff]
    %v1612 = vld [vmem:[%s1559 + $0x1a0] sm:$0xff]
    %v1613 = vld [vmem:[%s1559 + $0x1a8] sm:$0xff]
    %v1614 = vld [vmem:[%s1559 + $0x1b0] sm:$0xff]
    %v1615 = vld [vmem:[%s1559 + $0x1b8] sm:$0xff]
    %v1616 = vld [vmem:[%s1559 + $0x1c0] sm:$0xff]
    %v1617 = vld [vmem:[%s1559 + $0x1c8] sm:$0xff]
    %v1618 = vld [vmem:[%s1559 + $0x1d0] sm:$0xff]
    %v1619 = vld [vmem:[%s1559 + $0x1d8] sm:$0xff]
    %v1620 = vld [vmem:[%s1559 + $0x1e0] sm:$0xff]
    %v1621 = vld [vmem:[%s1559 + $0x1e8] sm:$0xff]
    %v1622 = vld [vmem:[%s1559 + $0x1f0] sm:$0xff]
    %v1623 = vld [vmem:[%s1559 + $0x1f8] sm:$0xff]
    %v1624 = vld [vmem:[%s1559 + $0x200] sm:$0xff]
    %v1625 = vld [vmem:[%s1559 + $0x208] sm:$0xff]
    %v1626 = vld [vmem:[%s1559 + $0x210] sm:$0xff]
    %v1627 = vld [vmem:[%s1559 + $0x218] sm:$0xff]
    %v1628 = vld [vmem:[%s1559 + $0x220] sm:$0xff]
    %v1629 = vld [vmem:[%s1559 + $0x228] sm:$0xff]
    %v1630 = vld [vmem:[%s1559 + $0x230] sm:$0xff]
    %v1631 = vld [vmem:[%s1559 + $0x238] sm:$0xff]
    %v1632 = vld [vmem:[%s1559 + $0x240] sm:$0xff]
    %v1633 = vld [vmem:[%s1559 + $0x248] sm:$0xff]
    %v1634 = vld [vmem:[%s1559 + $0x250] sm:$0xff]
    %v1635 = vld [vmem:[%s1559 + $0x258] sm:$0xff]
    %v1636 = vld [vmem:[%s1559 + $0x260] sm:$0xff]
    %v1637 = vld [vmem:[%s1559 + $0x268] sm:$0xff]
    %v1638 = vld [vmem:[%s1559 + $0x270] sm:$0xff]
    %v1639 = vld [vmem:[%s1559 + $0x278] sm:$0xff]
    %v1640 = vld [vmem:[%s1559 + $0x280] sm:$0xff]
    %v1641 = vld [vmem:[%s1559 + $0x288] sm:$0xff]
    %v1642 = vld [vmem:[%s1559 + $0x290] sm:$0xff]
    %v1643 = vld [vmem:[%s1559 + $0x298] sm:$0xff]
    %v1644 = vld [vmem:[%s1559 + $0x2a0] sm:$0xff]
    %v1645 = vld [vmem:[%s1559 + $0x2a8] sm:$0xff]
    %v1646 = vld [vmem:[%s1559 + $0x2b0] sm:$0xff]
    %v1647 = vld [vmem:[%s1559 + $0x2b8] sm:$0xff]
    %v1648 = vld [vmem:[%s1559 + $0x2c0] sm:$0xff]
    %v1649 = vld [vmem:[%s1559 + $0x2c8] sm:$0xff]
    %v1650 = vld [vmem:[%s1559 + $0x2d0] sm:$0xff]
    %v1651 = vld [vmem:[%s1559 + $0x2d8] sm:$0xff]
    %v1652 = vld [vmem:[%s1559 + $0x2e0] sm:$0xff]
    %v1653 = vld [vmem:[%s1559 + $0x2e8] sm:$0xff]
    %v1654 = vld [vmem:[%s1559 + $0x2f0] sm:$0xff]
    %v1655 = vld [vmem:[%s1559 + $0x2f8] sm:$0xff]
    %v1656 = vld [vmem:[%s1559 + $0x300] sm:$0xff]
    %v1657 = vld [vmem:[%s1559 + $0x308] sm:$0xff]
    %v1658 = vld [vmem:[%s1559 + $0x310] sm:$0xff]
    %v1659 = vld [vmem:[%s1559 + $0x318] sm:$0xff]
    %v1660 = vld [vmem:[%s1559 + $0x320] sm:$0xff]
    %v1661 = vld [vmem:[%s1559 + $0x328] sm:$0xff]
    %v1662 = vld [vmem:[%s1559 + $0x330] sm:$0xff]
    %v1663 = vld [vmem:[%s1559 + $0x338] sm:$0xff]
    %v1664 = vld [vmem:[%s1559 + $0x340] sm:$0xff]
    %v1665 = vld [vmem:[%s1559 + $0x348] sm:$0xff]
    %v1666 = vld [vmem:[%s1559 + $0x350] sm:$0xff]
    %v1667 = vld [vmem:[%s1559 + $0x358] sm:$0xff]
    %v1668 = vld [vmem:[%s1559 + $0x360] sm:$0xff]
    %v1669 = vld [vmem:[%s1559 + $0x368] sm:$0xff]
    %v1670 = vld [vmem:[%s1559 + $0x370] sm:$0xff]
    %v1671 = vld [vmem:[%s1559 + $0x378] sm:$0xff]
    %v1672 = vld [vmem:[%s1559 + $0x380] sm:$0xff]
    %v1673 = vld [vmem:[%s1559 + $0x388] sm:$0xff]
    %v1674 = vld [vmem:[%s1559 + $0x390] sm:$0xff]
    %v1675 = vld [vmem:[%s1559 + $0x398] sm:$0xff]
    %v1676 = vld [vmem:[%s1559 + $0x3a0] sm:$0xff]
    %v1677 = vld [vmem:[%s1559 + $0x3a8] sm:$0xff]
    %v1678 = vld [vmem:[%s1559 + $0x3b0] sm:$0xff]
    %v1679 = vld [vmem:[%s1559 + $0x3b8] sm:$0xff]
    %v1680 = vld [vmem:[%s1559 + $0x3c0] sm:$0xff]
    %v1681 = vld [vmem:[%s1559 + $0x3c8] sm:$0xff]
    %v1682 = vld [vmem:[%s1559 + $0x3d0] sm:$0xff]
    %v1683 = vld [vmem:[%s1559 + $0x3d8] sm:$0xff]
    %v1684 = vld [vmem:[%s1559 + $0x3e0] sm:$0xff]
    %v1685 = vld [vmem:[%s1559 + $0x3e8] sm:$0xff]
    %v1686 = vld [vmem:[%s2 + $0x2] sm:$0x1]
    %s1688 = vtos %v1686
    %v1689 = vstv %s1688
    %v1692 = vsel %vm189, %v1558, 0
    %1694 = vmatprep.subr.mxu0 %v1606
    %1695 = vmatpush1.msra.mxu0 %v1605
    %1696 = vmatprep.subr.mxu0 %v1603
    %1697 = vmatpush1.msra.mxu0 %v1602
    %1698 = vmatprep.subr.mxu0 %v1600
    %1699 = vmatpush1.msra.mxu0 %v1599
    %1700 = vmatprep.subr.mxu0 %v1597
    %1701 = vmatpush1.msra.mxu0 %v1596
    %1702 = vmatprep.subr.mxu0 %v1594
    %1703 = vmatpush1.msra.mxu0 %v1593
    %1704 = vmatprep.subr.mxu0 %v1591
    %1705 = vmatpush1.msra.mxu0 %v1590
    %1706 = vmatprep.subr.mxu0 %v1588
    %1707 = vmatpush1.msra.mxu0 %v1587
    %1708 = vmatprep.subr.mxu0 %v1585
    %1709 = vmatpush1.msra.mxu0 %v1584
    %1710 = vmatprep.subr.mxu0 %v1582
    %1711 = vmatpush1.msra.mxu0 %v1581
    %1712 = vmatprep.subr.mxu0 %v1579
    %1713 = vmatpush1.msra.mxu0 %v1578
    %1714 = vmatprep.subr.mxu0 %v1576
    %1715 = vmatpush1.msra.mxu0 %v1575
    %1716 = vmatprep.subr.mxu0 %v1573
    %1717 = vmatpush1.msra.mxu0 %v1572
    %1718 = vmatprep.subr.mxu0 %v1570
    %1719 = vmatpush1.msra.mxu0 %v1569
    %1720 = vmatprep.subr.mxu0 %v1567
    %1721 = vmatpush1.msra.mxu0 %v1566
    %1722 = vmatprep.subr.mxu0 %v1564
    %1723 = vmatpush1.msra.mxu0 %v1563
    %1724 = vmatprep.subr.mxu0 %v1561
    %1725 = vmatpush1.msra.mxu0 %v1560
    %1726 = vmatprep.subr.mxu0 %v1654
    %1727 = vmatpush2.msra.mxu0 %v1653
    %1728 = vmatprep.subr.mxu0 %v1651
    %1729 = vmatpush2.msra.mxu0 %v1650
    %1730 = vmatprep.subr.mxu0 %v1648
    %1731 = vmatpush2.msra.mxu0 %v1647
    %1732 = vmatprep.subr.mxu0 %v1645
    %1733 = vmatpush2.msra.mxu0 %v1644
    %1734 = vmatprep.subr.mxu0 %v1642
    %1735 = vmatpush2.msra.mxu0 %v1641
    %1736 = vmatprep.subr.mxu0 %v1639
    %1737 = vmatpush2.msra.mxu0 %v1638
    %1738 = vmatprep.subr.mxu0 %v1636
    %1739 = vmatpush2.msra.mxu0 %v1635
    %1740 = vmatprep.subr.mxu0 %v1633
    %1741 = vmatpush2.msra.mxu0 %v1632
    %1742 = vmatprep.subr.mxu0 %v1630
    %1743 = vmatpush2.msra.mxu0 %v1629
    %1744 = vmatprep.subr.mxu0 %v1627
    %1745 = vmatpush2.msra.mxu0 %v1626
    %1746 = vmatprep.subr.mxu0 %v1624
    %1747 = vmatpush2.msra.mxu0 %v1623
    %1748 = vmatprep.subr.mxu0 %v1621
    %1749 = vmatpush2.msra.mxu0 %v1620
    %1750 = vmatprep.subr.mxu0 %v1618
    %1751 = vmatpush2.msra.mxu0 %v1617
    %1752 = vmatprep.subr.mxu0 %v1615
    %1753 = vmatpush2.msra.mxu0 %v1614
    %1754 = vmatprep.subr.mxu0 %v1612
    %1755 = vmatpush2.msra.mxu0 %v1611
    %1756 = vmatprep.subr.mxu0 %v1609
    %1757 = vmatpush2.msra.mxu0 %v1608
    %1758 = vmatprep.mubr.f32.mxu0 %v1557
    %1759 = vmatmul.mubr.f32.gmra.mxu0 %v1556
    %v1760 = vpop.f32.mrf.mxu0
    %v1761 = vadd.f32 %v1689, %v1760
    %v1762 = vpop.f32.mrf.mxu0
    %v1763 = vadd.f32 %v1689, %v1762
    %1764 = vdwg.mxu0
    %1765 = vmatprep.subr.mxu0 0.0
    %1766 = vmatpush1.msra.mxu0 0.0
    %1767 = vmatprep.subr.mxu0 0.0
    %1768 = vmatpush1.msra.mxu0 0.0
    %1769 = vmatprep.subr.mxu0 0.0
    %1770 = vmatpush1.msra.mxu0 0.0
    %1771 = vmatprep.subr.mxu0 0.0
    %1772 = vmatpush1.msra.mxu0 0.0
    %1773 = vmatprep.subr.mxu0 0.0
    %1774 = vmatpush1.msra.mxu0 0.0
    %1775 = vmatprep.subr.mxu0 0.0
    %1776 = vmatpush1.msra.mxu0 0.0
    %1777 = vmatprep.subr.mxu0 %v1684
    %1778 = vmatpush1.msra.mxu0 %v1683
    %1779 = vmatprep.subr.mxu0 %v1681
    %1780 = vmatpush1.msra.mxu0 %v1680
    %1781 = vmatprep.subr.mxu0 %v1678
    %1782 = vmatpush1.msra.mxu0 %v1677
    %1783 = vmatprep.subr.mxu0 %v1675
    %1784 = vmatpush1.msra.mxu0 %v1674
    %1785 = vmatprep.subr.mxu0 %v1672
    %1786 = vmatpush1.msra.mxu0 %v1671
    %1787 = vmatprep.subr.mxu0 %v1669
    %1788 = vmatpush1.msra.mxu0 %v1668
    %1789 = vmatprep.subr.mxu0 %v1666
    %1790 = vmatpush1.msra.mxu0 %v1665
    %1791 = vmatprep.subr.mxu0 %v1663
    %1792 = vmatpush1.msra.mxu0 %v1662
    %1793 = vmatprep.subr.mxu0 %v1660
    %1794 = vmatpush1.msra.mxu0 %v1659
    %1795 = vmatprep.subr.mxu0 %v1657
    %1796 = vmatpush1.msra.mxu0 %v1656
    %1797 = vmatprep.subr.mxu0 0.0
    %1798 = vmatpush2.msra.mxu0 0.0
    %1799 = vmatprep.subr.mxu0 0.0
    %1800 = vmatpush2.msra.mxu0 0.0
    %1801 = vmatprep.subr.mxu0 0.0
    %1802 = vmatpush2.msra.mxu0 0.0
    %1803 = vmatprep.subr.mxu0 0.0
    %1804 = vmatpush2.msra.mxu0 0.0
    %1805 = vmatprep.subr.mxu0 0.0
    %1806 = vmatpush2.msra.mxu0 0.0
    %1807 = vmatprep.subr.mxu0 0.0
    %1808 = vmatpush2.msra.mxu0 0.0
    %1809 = vmatprep.subr.mxu0 0.0
    %1810 = vmatpush2.msra.mxu0 0.0
    %1811 = vmatprep.subr.mxu0 0.0
    %1812 = vmatpush2.msra.mxu0 0.0
    %1813 = vmatprep.subr.mxu0 0.0
    %1814 = vmatpush2.msra.mxu0 0.0
    %1815 = vmatprep.subr.mxu0 0.0
    %1816 = vmatpush2.msra.mxu0 0.0
    %1817 = vmatprep.subr.mxu0 0.0
    %1818 = vmatpush2.msra.mxu0 0.0
    %1819 = vmatprep.subr.mxu0 0.0
    %1820 = vmatpush2.msra.mxu0 0.0
    %1821 = vmatprep.subr.mxu0 0.0
    %1822 = vmatpush2.msra.mxu0 0.0
    %1823 = vmatprep.subr.mxu0 0.0
    %1824 = vmatpush2.msra.mxu0 0.0
    %1825 = vmatprep.subr.mxu0 0.0
    %1826 = vmatpush2.msra.mxu0 0.0
    %1827 = vmatprep.subr.mxu0 0.0
    %1828 = vmatpush2.msra.mxu0 0.0
    %1829 = vmatprep.mubr.f32.mxu0 0.0
    %1830 = vmatmul.mubr.f32.gmra.mxu0 %v1692
    %v1831 = vpop.f32.mrf.mxu0
    %v1832 = vadd.f32 %v1761, %v1831
    %v1833 = vpop.f32.mrf.mxu0
    %v1834 = vadd.f32 %v1763, %v1833
    %1835 = vdwg.mxu0
    %1836 = vmatprep.subr.mxu0 0.0
    %1837 = vmatpush1.msra.mxu0 %v1607
    %1838 = vmatprep.subr.mxu0 0.0
    %1839 = vmatpush1.msra.mxu0 %v1604
    %1840 = vmatprep.subr.mxu0 0.0
    %1841 = vmatpush1.msra.mxu0 %v1601
    %1842 = vmatprep.subr.mxu0 0.0
    %1843 = vmatpush1.msra.mxu0 %v1598
    %1844 = vmatprep.subr.mxu0 0.0
    %1845 = vmatpush1.msra.mxu0 %v1595
    %1846 = vmatprep.subr.mxu0 0.0
    %1847 = vmatpush1.msra.mxu0 %v1592
    %1848 = vmatprep.subr.mxu0 0.0
    %1849 = vmatpush1.msra.mxu0 %v1589
    %1850 = vmatprep.subr.mxu0 0.0
    %1851 = vmatpush1.msra.mxu0 %v1586
    %1852 = vmatprep.subr.mxu0 0.0
    %1853 = vmatpush1.msra.mxu0 %v1583
    %1854 = vmatprep.subr.mxu0 0.0
    %1855 = vmatpush1.msra.mxu0 %v1580
    %1856 = vmatprep.subr.mxu0 0.0
    %1857 = vmatpush1.msra.mxu0 %v1577
    %1858 = vmatprep.subr.mxu0 0.0
    %1859 = vmatpush1.msra.mxu0 %v1574
    %1860 = vmatprep.subr.mxu0 0.0
    %1861 = vmatpush1.msra.mxu0 %v1571
    %1862 = vmatprep.subr.mxu0 0.0
    %1863 = vmatpush1.msra.mxu0 %v1568
    %1864 = vmatprep.subr.mxu0 0.0
    %1865 = vmatpush1.msra.mxu0 %v1565
    %1866 = vmatprep.subr.mxu0 0.0
    %1867 = vmatpush1.msra.mxu0 %v1562
    %1868 = vmatprep.subr.mxu0 0.0
    %1869 = vmatpush2.msra.mxu0 %v1655
    %1870 = vmatprep.subr.mxu0 0.0
    %1871 = vmatpush2.msra.mxu0 %v1652
    %1872 = vmatprep.subr.mxu0 0.0
    %1873 = vmatpush2.msra.mxu0 %v1649
    %1874 = vmatprep.subr.mxu0 0.0
    %1875 = vmatpush2.msra.mxu0 %v1646
    %1876 = vmatprep.subr.mxu0 0.0
    %1877 = vmatpush2.msra.mxu0 %v1643
    %1878 = vmatprep.subr.mxu0 0.0
    %1879 = vmatpush2.msra.mxu0 %v1640
    %1880 = vmatprep.subr.mxu0 0.0
    %1881 = vmatpush2.msra.mxu0 %v1637
    %1882 = vmatprep.subr.mxu0 0.0
    %1883 = vmatpush2.msra.mxu0 %v1634
    %1884 = vmatprep.subr.mxu0 0.0
    %1885 = vmatpush2.msra.mxu0 %v1631
    %1886 = vmatprep.subr.mxu0 0.0
    %1887 = vmatpush2.msra.mxu0 %v1628
    %1888 = vmatprep.subr.mxu0 0.0
    %1889 = vmatpush2.msra.mxu0 %v1625
    %1890 = vmatprep.subr.mxu0 0.0
    %1891 = vmatpush2.msra.mxu0 %v1622
    %1892 = vmatprep.subr.mxu0 0.0
    %1893 = vmatpush2.msra.mxu0 %v1619
    %1894 = vmatprep.subr.mxu0 0.0
    %1895 = vmatpush2.msra.mxu0 %v1616
    %1896 = vmatprep.subr.mxu0 0.0
    %1897 = vmatpush2.msra.mxu0 %v1613
    %1898 = vmatprep.subr.mxu0 0.0
    %1899 = vmatpush2.msra.mxu0 %v1610
    %1900 = vmatprep.mubr.f32.mxu0 %v1557
    %1901 = vmatmul.mubr.f32.gmra.mxu0 %v1556
    %v1902 = vpop.f32.mrf.mxu0
    %v1903 = vadd.f32 %v1689, %v1902
    %v1904 = vpop.f32.mrf.mxu0
    %1905 = vdwg.mxu0
    %1906 = vmatprep.subr.mxu0 0.0
    %1907 = vmatpush1.msra.mxu0 0.0
    %1908 = vmatprep.subr.mxu0 0.0
    %1909 = vmatpush1.msra.mxu0 0.0
    %1910 = vmatprep.subr.mxu0 0.0
    %1911 = vmatpush1.msra.mxu0 0.0
    %1912 = vmatprep.subr.mxu0 0.0
    %1913 = vmatpush1.msra.mxu0 0.0
    %1914 = vmatprep.subr.mxu0 0.0
    %1915 = vmatpush1.msra.mxu0 0.0
    %1916 = vmatprep.subr.mxu0 0.0
    %1917 = vmatpush1.msra.mxu0 0.0
    %1918 = vmatprep.subr.mxu0 0.0
    %1919 = vmatpush1.msra.mxu0 %v1685
    %1920 = vmatprep.subr.mxu0 0.0
    %1921 = vmatpush1.msra.mxu0 %v1682
    %1922 = vmatprep.subr.mxu0 0.0
    %1923 = vmatpush1.msra.mxu0 %v1679
    %1924 = vmatprep.subr.mxu0 0.0
    %1925 = vmatpush1.msra.mxu0 %v1676
    %1926 = vmatprep.subr.mxu0 0.0
    %1927 = vmatpush1.msra.mxu0 %v1673
    %1928 = vmatprep.subr.mxu0 0.0
    %1929 = vmatpush1.msra.mxu0 %v1670
    %1930 = vmatprep.subr.mxu0 0.0
    %1931 = vmatpush1.msra.mxu0 %v1667
    %1932 = vmatprep.subr.mxu0 0.0
    %1933 = vmatpush1.msra.mxu0 %v1664
    %1934 = vmatprep.subr.mxu0 0.0
    %1935 = vmatpush1.msra.mxu0 %v1661
    %1936 = vmatprep.subr.mxu0 0.0
    %1937 = vmatpush1.msra.mxu0 %v1658
    %1938 = vmatprep.subr.mxu0 0.0
    %1939 = vmatpush2.msra.mxu0 0.0
    %1940 = vmatprep.subr.mxu0 0.0
    %1941 = vmatpush2.msra.mxu0 0.0
    %1942 = vmatprep.subr.mxu0 0.0
    %1943 = vmatpush2.msra.mxu0 0.0
    %1944 = vmatprep.subr.mxu0 0.0
    %1945 = vmatpush2.msra.mxu0 0.0
    %1946 = vmatprep.subr.mxu0 0.0
    %1947 = vmatpush2.msra.mxu0 0.0
    %1948 = vmatprep.subr.mxu0 0.0
    %1949 = vmatpush2.msra.mxu0 0.0
    %1950 = vmatprep.subr.mxu0 0.0
    %1951 = vmatpush2.msra.mxu0 0.0
    %1952 = vmatprep.subr.mxu0 0.0
    %1953 = vmatpush2.msra.mxu0 0.0
    %1954 = vmatprep.subr.mxu0 0.0
    %1955 = vmatpush2.msra.mxu0 0.0
    %1956 = vmatprep.subr.mxu0 0.0
    %1957 = vmatpush2.msra.mxu0 0.0
    %1958 = vmatprep.subr.mxu0 0.0
    %1959 = vmatpush2.msra.mxu0 0.0
    %1960 = vmatprep.subr.mxu0 0.0
    %1961 = vmatpush2.msra.mxu0 0.0
    %1962 = vmatprep.subr.mxu0 0.0
    %1963 = vmatpush2.msra.mxu0 0.0
    %1964 = vmatprep.subr.mxu0 0.0
    %1965 = vmatpush2.msra.mxu0 0.0
    %1966 = vmatprep.subr.mxu0 0.0
    %1967 = vmatpush2.msra.mxu0 0.0
    %1968 = vmatprep.subr.mxu0 0.0
    %1969 = vmatpush2.msra.mxu0 0.0
    %1970 = vmatprep.mubr.f32.mxu0 0.0
    %1971 = vmatmul.mubr.f32.gmra.mxu0 %v1692
    %v1972 = vpop.f32.mrf.mxu0
    %v1973 = vadd.f32 %v1903, %v1972
    %v1974 = vpop.f32.mrf.mxu0
    %1975 = vdwg.mxu0
    %v1976 = vand.u32 2147483647, %v1832
    %v1977 = vand.u32 2147483647, %v1834
    %v1978 = vand.u32 2147483647, %v1973
    %1982 = vrot.lane.b32.xlu0 %v1976, 127
    %v1983 = vpop.permute.xlu0 %1982
    %1984 = vrot.lane.b32.xlu0 %v1977, 127
    %v1985 = vpop.permute.xlu0 %1984
    %1986 = vrot.lane.b32.xlu0 %v1978, 127
    %v1987 = vpop.permute.xlu0 %1986
    %v1988 = vsel %vm487, %v1983, %v1985
    %v1989 = vsel %vm487, %v1985, %v1987
    %v1993 = vmax.f32 %v1976, %v1988
    %v1994 = vmax.f32 %v1977, %v1989
    %v1995 = vmax.f32 %v1978, %v1987
    %1999 = vrot.lane.b32.xlu0 %v1993, 126
    %v2000 = vpop.permute.xlu0 %1999
    %2001 = vrot.lane.b32.xlu0 %v1994, 126
    %v2002 = vpop.permute.xlu0 %2001
    %2003 = vrot.lane.b32.xlu0 %v1995, 126
    %v2004 = vpop.permute.xlu0 %2003
    %v2005 = vsel %vm505, %v2000, %v2002
    %v2006 = vsel %vm505, %v2002, %v2004
    %v2010 = vmax.f32 %v1993, %v2005
    %v2011 = vmax.f32 %v1994, %v2006
    %v2012 = vmax.f32 %v1995, %v2004
    %2016 = vrot.lane.b32.xlu0 %v2010, 124
    %v2017 = vpop.permute.xlu0 %2016
    %2018 = vrot.lane.b32.xlu0 %v2011, 124
    %v2019 = vpop.permute.xlu0 %2018
    %2020 = vrot.lane.b32.xlu0 %v2012, 124
    %v2021 = vpop.permute.xlu0 %2020
    %v2022 = vsel %vm523, %v2017, %v2019
    %v2023 = vsel %vm523, %v2019, %v2021
    %v2027 = vmax.f32 %v2010, %v2022
    %v2028 = vmax.f32 %v2011, %v2023
    %v2029 = vmax.f32 %v2012, %v2021
    %s2030 = scalar_lea.vmem %s3, 544
    %v2031 = vld [vmem:[%s2030] sm:$0xff]
    %v2032 = vld [vmem:[%s2030 + $0x8] sm:$0xff]
    %v2033 = vld [vmem:[%s2030 + $0x10] sm:$0xff]
    %v2034 = vld [vmem:[%s2030 + $0x18] sm:$0xff]
    %v2035 = vld [vmem:[%s2030 + $0x20] sm:$0xff]
    %v2036 = vld [vmem:[%s2030 + $0x28] sm:$0xff]
    %v2037 = vld [vmem:[%s2030 + $0x30] sm:$0xff]
    %v2038 = vld [vmem:[%s2030 + $0x38] sm:$0xff]
    %v2039 = vld [vmem:[%s2030 + $0x40] sm:$0xff]
    %v2040 = vld [vmem:[%s2030 + $0x48] sm:$0xff]
    %v2041 = vld [vmem:[%s2030 + $0x50] sm:$0xff]
    %v2042 = vld [vmem:[%s2030 + $0x58] sm:$0xff]
    %v2043 = vld [vmem:[%s2030 + $0x60] sm:$0xff]
    %v2044 = vld [vmem:[%s2030 + $0x68] sm:$0xff]
    %v2045 = vld [vmem:[%s2030 + $0x70] sm:$0xff]
    %v2046 = vld [vmem:[%s2030 + $0x78] sm:$0xff]
    %v2047 = vld [vmem:[%s2030 + $0x80] sm:$0xff]
    %v2048 = vld [vmem:[%s2030 + $0x88] sm:$0xff]
    %v2049 = vld [vmem:[%s2030 + $0x90] sm:$0xff]
    %v2050 = vld [vmem:[%s2030 + $0x98] sm:$0xff]
    %v2051 = vld [vmem:[%s2030 + $0xa0] sm:$0xff]
    %v2052 = vld [vmem:[%s2030 + $0xa8] sm:$0xff]
    %v2053 = vld [vmem:[%s2030 + $0xb0] sm:$0xff]
    %v2054 = vld [vmem:[%s2030 + $0xb8] sm:$0xff]
    %v2055 = vld [vmem:[%s2030 + $0xc0] sm:$0xff]
    %v2056 = vld [vmem:[%s2030 + $0xc8] sm:$0xff]
    %v2057 = vld [vmem:[%s2030 + $0xd0] sm:$0xff]
    %v2058 = vld [vmem:[%s2030 + $0xd8] sm:$0xff]
    %v2059 = vld [vmem:[%s2030 + $0xe0] sm:$0xff]
    %v2060 = vld [vmem:[%s2030 + $0xe8] sm:$0xff]
    %v2061 = vld [vmem:[%s2030 + $0xf0] sm:$0xff]
    %v2062 = vld [vmem:[%s2030 + $0xf8] sm:$0xff]
    %v2063 = vld [vmem:[%s2030 + $0x100] sm:$0xff]
    %v2064 = vld [vmem:[%s2030 + $0x108] sm:$0x3]
    %v2066 = vsel %vm566, %v2029, 0
    %v2069 = vsel %vm570, %v2064, 0
    %2071 = vmatprep.subr.mxu0 0.0
    %2072 = vmatpush1.msra.mxu0 %v2046
    %2073 = vmatprep.subr.mxu0 0.0
    %2074 = vmatpush1.msra.mxu0 %v2045
    %2075 = vmatprep.subr.mxu0 0.0
    %2076 = vmatpush1.msra.mxu0 %v2044
    %2077 = vmatprep.subr.mxu0 0.0
    %2078 = vmatpush1.msra.mxu0 %v2043
    %2079 = vmatprep.subr.mxu0 0.0
    %2080 = vmatpush1.msra.mxu0 %v2042
    %2081 = vmatprep.subr.mxu0 0.0
    %2082 = vmatpush1.msra.mxu0 %v2041
    %2083 = vmatprep.subr.mxu0 0.0
    %2084 = vmatpush1.msra.mxu0 %v2040
    %2085 = vmatprep.subr.mxu0 0.0
    %2086 = vmatpush1.msra.mxu0 %v2039
    %2087 = vmatprep.subr.mxu0 0.0
    %2088 = vmatpush1.msra.mxu0 %v2038
    %2089 = vmatprep.subr.mxu0 0.0
    %2090 = vmatpush1.msra.mxu0 %v2037
    %2091 = vmatprep.subr.mxu0 0.0
    %2092 = vmatpush1.msra.mxu0 %v2036
    %2093 = vmatprep.subr.mxu0 0.0
    %2094 = vmatpush1.msra.mxu0 %v2035
    %2095 = vmatprep.subr.mxu0 0.0
    %2096 = vmatpush1.msra.mxu0 %v2034
    %2097 = vmatprep.subr.mxu0 0.0
    %2098 = vmatpush1.msra.mxu0 %v2033
    %2099 = vmatprep.subr.mxu0 0.0
    %2100 = vmatpush1.msra.mxu0 %v2032
    %2101 = vmatprep.subr.mxu0 0.0
    %2102 = vmatpush1.msra.mxu0 %v2031
    %2103 = vmatprep.subr.mxu0 0.0
    %2104 = vmatpush2.msra.mxu0 %v2062
    %2105 = vmatprep.subr.mxu0 0.0
    %2106 = vmatpush2.msra.mxu0 %v2061
    %2107 = vmatprep.subr.mxu0 0.0
    %2108 = vmatpush2.msra.mxu0 %v2060
    %2109 = vmatprep.subr.mxu0 0.0
    %2110 = vmatpush2.msra.mxu0 %v2059
    %2111 = vmatprep.subr.mxu0 0.0
    %2112 = vmatpush2.msra.mxu0 %v2058
    %2113 = vmatprep.subr.mxu0 0.0
    %2114 = vmatpush2.msra.mxu0 %v2057
    %2115 = vmatprep.subr.mxu0 0.0
    %2116 = vmatpush2.msra.mxu0 %v2056
    %2117 = vmatprep.subr.mxu0 0.0
    %2118 = vmatpush2.msra.mxu0 %v2055
    %2119 = vmatprep.subr.mxu0 0.0
    %2120 = vmatpush2.msra.mxu0 %v2054
    %2121 = vmatprep.subr.mxu0 0.0
    %2122 = vmatpush2.msra.mxu0 %v2053
    %2123 = vmatprep.subr.mxu0 0.0
    %2124 = vmatpush2.msra.mxu0 %v2052
    %2125 = vmatprep.subr.mxu0 0.0
    %2126 = vmatpush2.msra.mxu0 %v2051
    %2127 = vmatprep.subr.mxu0 0.0
    %2128 = vmatpush2.msra.mxu0 %v2050
    %2129 = vmatprep.subr.mxu0 0.0
    %2130 = vmatpush2.msra.mxu0 %v2049
    %2131 = vmatprep.subr.mxu0 0.0
    %2132 = vmatpush2.msra.mxu0 %v2048
    %2133 = vmatprep.subr.mxu0 0.0
    %2134 = vmatpush2.msra.mxu0 %v2047
    %2135 = vmatprep.mubr.f32.mxu0 %v2028
    %2136 = vmatmul.mubr.f32.gmra.mxu0 %v2027
    %v2137 = vpop.f32.mrf.mxu0
    %v2138 = vadd.f32 0.0, %v2137
    %v2139 = vpop.f32.mrf.mxu0
    %2140 = vdwg.mxu0
    %2141 = vmatprep.subr.mxu0 0.0
    %2142 = vmatpush1.msra.mxu0 0.0
    %2143 = vmatprep.subr.mxu0 0.0
    %2144 = vmatpush1.msra.mxu0 0.0
    %2145 = vmatprep.subr.mxu0 0.0
    %2146 = vmatpush1.msra.mxu0 0.0
    %2147 = vmatprep.subr.mxu0 0.0
    %2148 = vmatpush1.msra.mxu0 0.0
    %2149 = vmatprep.subr.mxu0 0.0
    %2150 = vmatpush1.msra.mxu0 0.0
    %2151 = vmatprep.subr.mxu0 0.0
    %2152 = vmatpush1.msra.mxu0 0.0
    %2153 = vmatprep.subr.mxu0 0.0
    %2154 = vmatpush1.msra.mxu0 0.0
    %2155 = vmatprep.subr.mxu0 0.0
    %2156 = vmatpush1.msra.mxu0 0.0
    %2157 = vmatprep.subr.mxu0 0.0
    %2158 = vmatpush1.msra.mxu0 0.0
    %2159 = vmatprep.subr.mxu0 0.0
    %2160 = vmatpush1.msra.mxu0 0.0
    %2161 = vmatprep.subr.mxu0 0.0
    %2162 = vmatpush1.msra.mxu0 0.0
    %2163 = vmatprep.subr.mxu0 0.0
    %2164 = vmatpush1.msra.mxu0 0.0
    %2165 = vmatprep.subr.mxu0 0.0
    %2166 = vmatpush1.msra.mxu0 0.0
    %2167 = vmatprep.subr.mxu0 0.0
    %2168 = vmatpush1.msra.mxu0 0.0
    %2169 = vmatprep.subr.mxu0 0.0
    %2170 = vmatpush1.msra.mxu0 %v2069
    %2171 = vmatprep.subr.mxu0 0.0
    %2172 = vmatpush1.msra.mxu0 %v2063
    %2173 = vmatprep.subr.mxu0 0.0
    %2174 = vmatpush2.msra.mxu0 0.0
    %2175 = vmatprep.subr.mxu0 0.0
    %2176 = vmatpush2.msra.mxu0 0.0
    %2177 = vmatprep.subr.mxu0 0.0
    %2178 = vmatpush2.msra.mxu0 0.0
    %2179 = vmatprep.subr.mxu0 0.0
    %2180 = vmatpush2.msra.mxu0 0.0
    %2181 = vmatprep.subr.mxu0 0.0
    %2182 = vmatpush2.msra.mxu0 0.0
    %2183 = vmatprep.subr.mxu0 0.0
    %2184 = vmatpush2.msra.mxu0 0.0
    %2185 = vmatprep.subr.mxu0 0.0
    %2186 = vmatpush2.msra.mxu0 0.0
    %2187 = vmatprep.subr.mxu0 0.0
    %2188 = vmatpush2.msra.mxu0 0.0
    %2189 = vmatprep.subr.mxu0 0.0
    %2190 = vmatpush2.msra.mxu0 0.0
    %2191 = vmatprep.subr.mxu0 0.0
    %2192 = vmatpush2.msra.mxu0 0.0
    %2193 = vmatprep.subr.mxu0 0.0
    %2194 = vmatpush2.msra.mxu0 0.0
    %2195 = vmatprep.subr.mxu0 0.0
    %2196 = vmatpush2.msra.mxu0 0.0
    %2197 = vmatprep.subr.mxu0 0.0
    %2198 = vmatpush2.msra.mxu0 0.0
    %2199 = vmatprep.subr.mxu0 0.0
    %2200 = vmatpush2.msra.mxu0 0.0
    %2201 = vmatprep.subr.mxu0 0.0
    %2202 = vmatpush2.msra.mxu0 0.0
    %2203 = vmatprep.subr.mxu0 0.0
    %2204 = vmatpush2.msra.mxu0 0.0
    %2205 = vmatprep.mubr.f32.mxu0 0.0
    %2206 = vmatmul.mubr.f32.gmra.mxu0 %v2066
    %v2207 = vpop.f32.mrf.mxu0
    %v2208 = vadd.f32 %v2138, %v2207
    %v2209 = vpop.f32.mrf.mxu0
    %2210 = vdwg.mxu0
    %v2211 = vmax.f32 %v2208, 0.0
    %s2212 = scalar_lea.vmem %s4, 48
    %v2213 = vld [vmem:[%s2212] sm:$0xff]
    %v2214 = vld [vmem:[%s2212 + $0x8] sm:$0xff]
    %v2215 = vld [vmem:[%s2212 + $0x10] sm:$0xf]
    %v2217 = vsel %vm1390, %v2211, 0
    %v2220 = vsel %vm1394, %v2215, 0
    %2222 = vmatprep.subr.mxu0 0.0
    %2223 = vmatpush1.msra.mxu0 0.0
    %2224 = vmatprep.subr.mxu0 0.0
    %2225 = vmatpush1.msra.mxu0 0.0
    %2226 = vmatprep.subr.mxu0 0.0
    %2227 = vmatpush1.msra.mxu0 0.0
    %2228 = vmatprep.subr.mxu0 0.0
    %2229 = vmatpush1.msra.mxu0 0.0
    %2230 = vmatprep.subr.mxu0 0.0
    %2231 = vmatpush1.msra.mxu0 0.0
    %2232 = vmatprep.subr.mxu0 0.0
    %2233 = vmatpush1.msra.mxu0 0.0
    %2234 = vmatprep.subr.mxu0 0.0
    %2235 = vmatpush1.msra.mxu0 0.0
    %2236 = vmatprep.subr.mxu0 0.0
    %2237 = vmatpush1.msra.mxu0 0.0
    %2238 = vmatprep.subr.mxu0 0.0
    %2239 = vmatpush1.msra.mxu0 0.0
    %2240 = vmatprep.subr.mxu0 0.0
    %2241 = vmatpush1.msra.mxu0 0.0
    %2242 = vmatprep.subr.mxu0 0.0
    %2243 = vmatpush1.msra.mxu0 0.0
    %2244 = vmatprep.subr.mxu0 0.0
    %2245 = vmatpush1.msra.mxu0 0.0
    %2246 = vmatprep.subr.mxu0 0.0
    %2247 = vmatpush1.msra.mxu0 0.0
    %2248 = vmatprep.subr.mxu0 0.0
    %2249 = vmatpush1.msra.mxu0 %v2220
    %2250 = vmatprep.subr.mxu0 0.0
    %2251 = vmatpush1.msra.mxu0 %v2214
    %2252 = vmatprep.subr.mxu0 0.0
    %2253 = vmatpush1.msra.mxu0 %v2213
    %2254 = vmatprep.subr.mxu0 0.0
    %2255 = vmatpush2.msra.mxu0 0.0
    %2256 = vmatprep.subr.mxu0 0.0
    %2257 = vmatpush2.msra.mxu0 0.0
    %2258 = vmatprep.subr.mxu0 0.0
    %2259 = vmatpush2.msra.mxu0 0.0
    %2260 = vmatprep.subr.mxu0 0.0
    %2261 = vmatpush2.msra.mxu0 0.0
    %2262 = vmatprep.subr.mxu0 0.0
    %2263 = vmatpush2.msra.mxu0 0.0
    %2264 = vmatprep.subr.mxu0 0.0
    %2265 = vmatpush2.msra.mxu0 0.0
    %2266 = vmatprep.subr.mxu0 0.0
    %2267 = vmatpush2.msra.mxu0 0.0
    %2268 = vmatprep.subr.mxu0 0.0
    %2269 = vmatpush2.msra.mxu0 0.0
    %2270 = vmatprep.subr.mxu0 0.0
    %2271 = vmatpush2.msra.mxu0 0.0
    %2272 = vmatprep.subr.mxu0 0.0
    %2273 = vmatpush2.msra.mxu0 0.0
    %2274 = vmatprep.subr.mxu0 0.0
    %2275 = vmatpush2.msra.mxu0 0.0
    %2276 = vmatprep.subr.mxu0 0.0
    %2277 = vmatpush2.msra.mxu0 0.0
    %2278 = vmatprep.subr.mxu0 0.0
    %2279 = vmatpush2.msra.mxu0 0.0
    %2280 = vmatprep.subr.mxu0 0.0
    %2281 = vmatpush2.msra.mxu0 0.0
    %2282 = vmatprep.subr.mxu0 0.0
    %2283 = vmatpush2.msra.mxu0 0.0
    %2284 = vmatprep.subr.mxu0 0.0
    %2285 = vmatpush2.msra.mxu0 0.0
    %2286 = vmatprep.mubr.f32.mxu0 0.0
    %2287 = vmatmul.mubr.f32.gmra.mxu0 %v2217
    %v2288 = vpop.f32.mrf.mxu0
    %v2289 = vadd.f32 0.0, %v2288
    %v2290 = vpop.f32.mrf.mxu0
    %2291 = vdwg.mxu0
    %v2292 = vadd.f32 %v1541, %v2289
    %v2293 = vrot.slane %v39, 3
    %v2294 = vrot.slane %v40, 3
    %v2295 = vrot.slane %v41, 3
    %v2302 = vrot.slane %v42, 7
    %v2303 = vrot.slane %v43, 7
    %v2304 = vrot.slane %v44, 7
    %v2308 = vsel %vm54, %v2293, %v2302
    %v2309 = vsel %vm54, %v2294, %v2303
    %v2310 = vsel %vm54, %v2295, %v2304
    %s2311 = scalar_lea.vmem %s1, 3024
    %v2312 = vld [vmem:[%s2311] sm:$0xff]
    %v2313 = vld [vmem:[%s2311 + $0x8] sm:$0xff]
    %v2314 = vld [vmem:[%s2311 + $0x10] sm:$0xff]
    %v2315 = vld [vmem:[%s2311 + $0x18] sm:$0xff]
    %v2316 = vld [vmem:[%s2311 + $0x20] sm:$0xff]
    %v2317 = vld [vmem:[%s2311 + $0x28] sm:$0xff]
    %v2318 = vld [vmem:[%s2311 + $0x30] sm:$0xff]
    %v2319 = vld [vmem:[%s2311 + $0x38] sm:$0xff]
    %v2320 = vld [vmem:[%s2311 + $0x40] sm:$0xff]
    %v2321 = vld [vmem:[%s2311 + $0x48] sm:$0xff]
    %v2322 = vld [vmem:[%s2311 + $0x50] sm:$0xff]
    %v2323 = vld [vmem:[%s2311 + $0x58] sm:$0xff]
    %v2324 = vld [vmem:[%s2311 + $0x60] sm:$0xff]
    %v2325 = vld [vmem:[%s2311 + $0x68] sm:$0xff]
    %v2326 = vld [vmem:[%s2311 + $0x70] sm:$0xff]
    %v2327 = vld [vmem:[%s2311 + $0x78] sm:$0xff]
    %v2328 = vld [vmem:[%s2311 + $0x80] sm:$0xff]
    %v2329 = vld [vmem:[%s2311 + $0x88] sm:$0xff]
    %v2330 = vld [vmem:[%s2311 + $0x90] sm:$0xff]
    %v2331 = vld [vmem:[%s2311 + $0x98] sm:$0xff]
    %v2332 = vld [vmem:[%s2311 + $0xa0] sm:$0xff]
    %v2333 = vld [vmem:[%s2311 + $0xa8] sm:$0xff]
    %v2334 = vld [vmem:[%s2311 + $0xb0] sm:$0xff]
    %v2335 = vld [vmem:[%s2311 + $0xb8] sm:$0xff]
    %v2336 = vld [vmem:[%s2311 + $0xc0] sm:$0xff]
    %v2337 = vld [vmem:[%s2311 + $0xc8] sm:$0xff]
    %v2338 = vld [vmem:[%s2311 + $0xd0] sm:$0xff]
    %v2339 = vld [vmem:[%s2311 + $0xd8] sm:$0xff]
    %v2340 = vld [vmem:[%s2311 + $0xe0] sm:$0xff]
    %v2341 = vld [vmem:[%s2311 + $0xe8] sm:$0xff]
    %v2342 = vld [vmem:[%s2311 + $0xf0] sm:$0xff]
    %v2343 = vld [vmem:[%s2311 + $0xf8] sm:$0xff]
    %v2344 = vld [vmem:[%s2311 + $0x100] sm:$0xff]
    %v2345 = vld [vmem:[%s2311 + $0x108] sm:$0xff]
    %v2346 = vld [vmem:[%s2311 + $0x110] sm:$0xff]
    %v2347 = vld [vmem:[%s2311 + $0x118] sm:$0xff]
    %v2348 = vld [vmem:[%s2311 + $0x120] sm:$0xff]
    %v2349 = vld [vmem:[%s2311 + $0x128] sm:$0xff]
    %v2350 = vld [vmem:[%s2311 + $0x130] sm:$0xff]
    %v2351 = vld [vmem:[%s2311 + $0x138] sm:$0xff]
    %v2352 = vld [vmem:[%s2311 + $0x140] sm:$0xff]
    %v2353 = vld [vmem:[%s2311 + $0x148] sm:$0xff]
    %v2354 = vld [vmem:[%s2311 + $0x150] sm:$0xff]
    %v2355 = vld [vmem:[%s2311 + $0x158] sm:$0xff]
    %v2356 = vld [vmem:[%s2311 + $0x160] sm:$0xff]
    %v2357 = vld [vmem:[%s2311 + $0x168] sm:$0xff]
    %v2358 = vld [vmem:[%s2311 + $0x170] sm:$0xff]
    %v2359 = vld [vmem:[%s2311 + $0x178] sm:$0xff]
    %v2360 = vld [vmem:[%s2311 + $0x180] sm:$0xff]
    %v2361 = vld [vmem:[%s2311 + $0x188] sm:$0xff]
    %v2362 = vld [vmem:[%s2311 + $0x190] sm:$0xff]
    %v2363 = vld [vmem:[%s2311 + $0x198] sm:$0xff]
    %v2364 = vld [vmem:[%s2311 + $0x1a0] sm:$0xff]
    %v2365 = vld [vmem:[%s2311 + $0x1a8] sm:$0xff]
    %v2366 = vld [vmem:[%s2311 + $0x1b0] sm:$0xff]
    %v2367 = vld [vmem:[%s2311 + $0x1b8] sm:$0xff]
    %v2368 = vld [vmem:[%s2311 + $0x1c0] sm:$0xff]
    %v2369 = vld [vmem:[%s2311 + $0x1c8] sm:$0xff]
    %v2370 = vld [vmem:[%s2311 + $0x1d0] sm:$0xff]
    %v2371 = vld [vmem:[%s2311 + $0x1d8] sm:$0xff]
    %v2372 = vld [vmem:[%s2311 + $0x1e0] sm:$0xff]
    %v2373 = vld [vmem:[%s2311 + $0x1e8] sm:$0xff]
    %v2374 = vld [vmem:[%s2311 + $0x1f0] sm:$0xff]
    %v2375 = vld [vmem:[%s2311 + $0x1f8] sm:$0xff]
    %v2376 = vld [vmem:[%s2311 + $0x200] sm:$0xff]
    %v2377 = vld [vmem:[%s2311 + $0x208] sm:$0xff]
    %v2378 = vld [vmem:[%s2311 + $0x210] sm:$0xff]
    %v2379 = vld [vmem:[%s2311 + $0x218] sm:$0xff]
    %v2380 = vld [vmem:[%s2311 + $0x220] sm:$0xff]
    %v2381 = vld [vmem:[%s2311 + $0x228] sm:$0xff]
    %v2382 = vld [vmem:[%s2311 + $0x230] sm:$0xff]
    %v2383 = vld [vmem:[%s2311 + $0x238] sm:$0xff]
    %v2384 = vld [vmem:[%s2311 + $0x240] sm:$0xff]
    %v2385 = vld [vmem:[%s2311 + $0x248] sm:$0xff]
    %v2386 = vld [vmem:[%s2311 + $0x250] sm:$0xff]
    %v2387 = vld [vmem:[%s2311 + $0x258] sm:$0xff]
    %v2388 = vld [vmem:[%s2311 + $0x260] sm:$0xff]
    %v2389 = vld [vmem:[%s2311 + $0x268] sm:$0xff]
    %v2390 = vld [vmem:[%s2311 + $0x270] sm:$0xff]
    %v2391 = vld [vmem:[%s2311 + $0x278] sm:$0xff]
    %v2392 = vld [vmem:[%s2311 + $0x280] sm:$0xff]
    %v2393 = vld [vmem:[%s2311 + $0x288] sm:$0xff]
    %v2394 = vld [vmem:[%s2311 + $0x290] sm:$0xff]
    %v2395 = vld [vmem:[%s2311 + $0x298] sm:$0xff]
    %v2396 = vld [vmem:[%s2311 + $0x2a0] sm:$0xff]
    %v2397 = vld [vmem:[%s2311 + $0x2a8] sm:$0xff]
    %v2398 = vld [vmem:[%s2311 + $0x2b0] sm:$0xff]
    %v2399 = vld [vmem:[%s2311 + $0x2b8] sm:$0xff]
    %v2400 = vld [vmem:[%s2311 + $0x2c0] sm:$0xff]
    %v2401 = vld [vmem:[%s2311 + $0x2c8] sm:$0xff]
    %v2402 = vld [vmem:[%s2311 + $0x2d0] sm:$0xff]
    %v2403 = vld [vmem:[%s2311 + $0x2d8] sm:$0xff]
    %v2404 = vld [vmem:[%s2311 + $0x2e0] sm:$0xff]
    %v2405 = vld [vmem:[%s2311 + $0x2e8] sm:$0xff]
    %v2406 = vld [vmem:[%s2311 + $0x2f0] sm:$0xff]
    %v2407 = vld [vmem:[%s2311 + $0x2f8] sm:$0xff]
    %v2408 = vld [vmem:[%s2311 + $0x300] sm:$0xff]
    %v2409 = vld [vmem:[%s2311 + $0x308] sm:$0xff]
    %v2410 = vld [vmem:[%s2311 + $0x310] sm:$0xff]
    %v2411 = vld [vmem:[%s2311 + $0x318] sm:$0xff]
    %v2412 = vld [vmem:[%s2311 + $0x320] sm:$0xff]
    %v2413 = vld [vmem:[%s2311 + $0x328] sm:$0xff]
    %v2414 = vld [vmem:[%s2311 + $0x330] sm:$0xff]
    %v2415 = vld [vmem:[%s2311 + $0x338] sm:$0xff]
    %v2416 = vld [vmem:[%s2311 + $0x340] sm:$0xff]
    %v2417 = vld [vmem:[%s2311 + $0x348] sm:$0xff]
    %v2418 = vld [vmem:[%s2311 + $0x350] sm:$0xff]
    %v2419 = vld [vmem:[%s2311 + $0x358] sm:$0xff]
    %v2420 = vld [vmem:[%s2311 + $0x360] sm:$0xff]
    %v2421 = vld [vmem:[%s2311 + $0x368] sm:$0xff]
    %v2422 = vld [vmem:[%s2311 + $0x370] sm:$0xff]
    %v2423 = vld [vmem:[%s2311 + $0x378] sm:$0xff]
    %v2424 = vld [vmem:[%s2311 + $0x380] sm:$0xff]
    %v2425 = vld [vmem:[%s2311 + $0x388] sm:$0xff]
    %v2426 = vld [vmem:[%s2311 + $0x390] sm:$0xff]
    %v2427 = vld [vmem:[%s2311 + $0x398] sm:$0xff]
    %v2428 = vld [vmem:[%s2311 + $0x3a0] sm:$0xff]
    %v2429 = vld [vmem:[%s2311 + $0x3a8] sm:$0xff]
    %v2430 = vld [vmem:[%s2311 + $0x3b0] sm:$0xff]
    %v2431 = vld [vmem:[%s2311 + $0x3b8] sm:$0xff]
    %v2432 = vld [vmem:[%s2311 + $0x3c0] sm:$0xff]
    %v2433 = vld [vmem:[%s2311 + $0x3c8] sm:$0xff]
    %v2434 = vld [vmem:[%s2311 + $0x3d0] sm:$0xff]
    %v2435 = vld [vmem:[%s2311 + $0x3d8] sm:$0xff]
    %v2436 = vld [vmem:[%s2311 + $0x3e0] sm:$0xff]
    %v2437 = vld [vmem:[%s2311 + $0x3e8] sm:$0xff]
    %v2438 = vld [vmem:[%s2 + $0x3] sm:$0x1]
    %s2440 = vtos %v2438
    %v2441 = vstv %s2440
    %v2444 = vsel %vm189, %v2310, 0
    %2446 = vmatprep.subr.mxu0 %v2358
    %2447 = vmatpush1.msra.mxu0 %v2357
    %2448 = vmatprep.subr.mxu0 %v2355
    %2449 = vmatpush1.msra.mxu0 %v2354
    %2450 = vmatprep.subr.mxu0 %v2352
    %2451 = vmatpush1.msra.mxu0 %v2351
    %2452 = vmatprep.subr.mxu0 %v2349
    %2453 = vmatpush1.msra.mxu0 %v2348
    %2454 = vmatprep.subr.mxu0 %v2346
    %2455 = vmatpush1.msra.mxu0 %v2345
    %2456 = vmatprep.subr.mxu0 %v2343
    %2457 = vmatpush1.msra.mxu0 %v2342
    %2458 = vmatprep.subr.mxu0 %v2340
    %2459 = vmatpush1.msra.mxu0 %v2339
    %2460 = vmatprep.subr.mxu0 %v2337
    %2461 = vmatpush1.msra.mxu0 %v2336
    %2462 = vmatprep.subr.mxu0 %v2334
    %2463 = vmatpush1.msra.mxu0 %v2333
    %2464 = vmatprep.subr.mxu0 %v2331
    %2465 = vmatpush1.msra.mxu0 %v2330
    %2466 = vmatprep.subr.mxu0 %v2328
    %2467 = vmatpush1.msra.mxu0 %v2327
    %2468 = vmatprep.subr.mxu0 %v2325
    %2469 = vmatpush1.msra.mxu0 %v2324
    %2470 = vmatprep.subr.mxu0 %v2322
    %2471 = vmatpush1.msra.mxu0 %v2321
    %2472 = vmatprep.subr.mxu0 %v2319
    %2473 = vmatpush1.msra.mxu0 %v2318
    %2474 = vmatprep.subr.mxu0 %v2316
    %2475 = vmatpush1.msra.mxu0 %v2315
    %2476 = vmatprep.subr.mxu0 %v2313
    %2477 = vmatpush1.msra.mxu0 %v2312
    %2478 = vmatprep.subr.mxu0 %v2406
    %2479 = vmatpush2.msra.mxu0 %v2405
    %2480 = vmatprep.subr.mxu0 %v2403
    %2481 = vmatpush2.msra.mxu0 %v2402
    %2482 = vmatprep.subr.mxu0 %v2400
    %2483 = vmatpush2.msra.mxu0 %v2399
    %2484 = vmatprep.subr.mxu0 %v2397
    %2485 = vmatpush2.msra.mxu0 %v2396
    %2486 = vmatprep.subr.mxu0 %v2394
    %2487 = vmatpush2.msra.mxu0 %v2393
    %2488 = vmatprep.subr.mxu0 %v2391
    %2489 = vmatpush2.msra.mxu0 %v2390
    %2490 = vmatprep.subr.mxu0 %v2388
    %2491 = vmatpush2.msra.mxu0 %v2387
    %2492 = vmatprep.subr.mxu0 %v2385
    %2493 = vmatpush2.msra.mxu0 %v2384
    %2494 = vmatprep.subr.mxu0 %v2382
    %2495 = vmatpush2.msra.mxu0 %v2381
    %2496 = vmatprep.subr.mxu0 %v2379
    %2497 = vmatpush2.msra.mxu0 %v2378
    %2498 = vmatprep.subr.mxu0 %v2376
    %2499 = vmatpush2.msra.mxu0 %v2375
    %2500 = vmatprep.subr.mxu0 %v2373
    %2501 = vmatpush2.msra.mxu0 %v2372
    %2502 = vmatprep.subr.mxu0 %v2370
    %2503 = vmatpush2.msra.mxu0 %v2369
    %2504 = vmatprep.subr.mxu0 %v2367
    %2505 = vmatpush2.msra.mxu0 %v2366
    %2506 = vmatprep.subr.mxu0 %v2364
    %2507 = vmatpush2.msra.mxu0 %v2363
    %2508 = vmatprep.subr.mxu0 %v2361
    %2509 = vmatpush2.msra.mxu0 %v2360
    %2510 = vmatprep.mubr.f32.mxu0 %v2309
    %2511 = vmatmul.mubr.f32.gmra.mxu0 %v2308
    %v2512 = vpop.f32.mrf.mxu0
    %v2513 = vadd.f32 %v2441, %v2512
    %v2514 = vpop.f32.mrf.mxu0
    %v2515 = vadd.f32 %v2441, %v2514
    %2516 = vdwg.mxu0
    %2517 = vmatprep.subr.mxu0 0.0
    %2518 = vmatpush1.msra.mxu0 0.0
    %2519 = vmatprep.subr.mxu0 0.0
    %2520 = vmatpush1.msra.mxu0 0.0
    %2521 = vmatprep.subr.mxu0 0.0
    %2522 = vmatpush1.msra.mxu0 0.0
    %2523 = vmatprep.subr.mxu0 0.0
    %2524 = vmatpush1.msra.mxu0 0.0
    %2525 = vmatprep.subr.mxu0 0.0
    %2526 = vmatpush1.msra.mxu0 0.0
    %2527 = vmatprep.subr.mxu0 0.0
    %2528 = vmatpush1.msra.mxu0 0.0
    %2529 = vmatprep.subr.mxu0 %v2436
    %2530 = vmatpush1.msra.mxu0 %v2435
    %2531 = vmatprep.subr.mxu0 %v2433
    %2532 = vmatpush1.msra.mxu0 %v2432
    %2533 = vmatprep.subr.mxu0 %v2430
    %2534 = vmatpush1.msra.mxu0 %v2429
    %2535 = vmatprep.subr.mxu0 %v2427
    %2536 = vmatpush1.msra.mxu0 %v2426
    %2537 = vmatprep.subr.mxu0 %v2424
    %2538 = vmatpush1.msra.mxu0 %v2423
    %2539 = vmatprep.subr.mxu0 %v2421
    %2540 = vmatpush1.msra.mxu0 %v2420
    %2541 = vmatprep.subr.mxu0 %v2418
    %2542 = vmatpush1.msra.mxu0 %v2417
    %2543 = vmatprep.subr.mxu0 %v2415
    %2544 = vmatpush1.msra.mxu0 %v2414
    %2545 = vmatprep.subr.mxu0 %v2412
    %2546 = vmatpush1.msra.mxu0 %v2411
    %2547 = vmatprep.subr.mxu0 %v2409
    %2548 = vmatpush1.msra.mxu0 %v2408
    %2549 = vmatprep.subr.mxu0 0.0
    %2550 = vmatpush2.msra.mxu0 0.0
    %2551 = vmatprep.subr.mxu0 0.0
    %2552 = vmatpush2.msra.mxu0 0.0
    %2553 = vmatprep.subr.mxu0 0.0
    %2554 = vmatpush2.msra.mxu0 0.0
    %2555 = vmatprep.subr.mxu0 0.0
    %2556 = vmatpush2.msra.mxu0 0.0
    %2557 = vmatprep.subr.mxu0 0.0
    %2558 = vmatpush2.msra.mxu0 0.0
    %2559 = vmatprep.subr.mxu0 0.0
    %2560 = vmatpush2.msra.mxu0 0.0
    %2561 = vmatprep.subr.mxu0 0.0
    %2562 = vmatpush2.msra.mxu0 0.0
    %2563 = vmatprep.subr.mxu0 0.0
    %2564 = vmatpush2.msra.mxu0 0.0
    %2565 = vmatprep.subr.mxu0 0.0
    %2566 = vmatpush2.msra.mxu0 0.0
    %2567 = vmatprep.subr.mxu0 0.0
    %2568 = vmatpush2.msra.mxu0 0.0
    %2569 = vmatprep.subr.mxu0 0.0
    %2570 = vmatpush2.msra.mxu0 0.0
    %2571 = vmatprep.subr.mxu0 0.0
    %2572 = vmatpush2.msra.mxu0 0.0
    %2573 = vmatprep.subr.mxu0 0.0
    %2574 = vmatpush2.msra.mxu0 0.0
    %2575 = vmatprep.subr.mxu0 0.0
    %2576 = vmatpush2.msra.mxu0 0.0
    %2577 = vmatprep.subr.mxu0 0.0
    %2578 = vmatpush2.msra.mxu0 0.0
    %2579 = vmatprep.subr.mxu0 0.0
    %2580 = vmatpush2.msra.mxu0 0.0
    %2581 = vmatprep.mubr.f32.mxu0 0.0
    %2582 = vmatmul.mubr.f32.gmra.mxu0 %v2444
    %v2583 = vpop.f32.mrf.mxu0
    %v2584 = vadd.f32 %v2513, %v2583
    %v2585 = vpop.f32.mrf.mxu0
    %v2586 = vadd.f32 %v2515, %v2585
    %2587 = vdwg.mxu0
    %2588 = vmatprep.subr.mxu0 0.0
    %2589 = vmatpush1.msra.mxu0 %v2359
    %2590 = vmatprep.subr.mxu0 0.0
    %2591 = vmatpush1.msra.mxu0 %v2356
    %2592 = vmatprep.subr.mxu0 0.0
    %2593 = vmatpush1.msra.mxu0 %v2353
    %2594 = vmatprep.subr.mxu0 0.0
    %2595 = vmatpush1.msra.mxu0 %v2350
    %2596 = vmatprep.subr.mxu0 0.0
    %2597 = vmatpush1.msra.mxu0 %v2347
    %2598 = vmatprep.subr.mxu0 0.0
    %2599 = vmatpush1.msra.mxu0 %v2344
    %2600 = vmatprep.subr.mxu0 0.0
    %2601 = vmatpush1.msra.mxu0 %v2341
    %2602 = vmatprep.subr.mxu0 0.0
    %2603 = vmatpush1.msra.mxu0 %v2338
    %2604 = vmatprep.subr.mxu0 0.0
    %2605 = vmatpush1.msra.mxu0 %v2335
    %2606 = vmatprep.subr.mxu0 0.0
    %2607 = vmatpush1.msra.mxu0 %v2332
    %2608 = vmatprep.subr.mxu0 0.0
    %2609 = vmatpush1.msra.mxu0 %v2329
    %2610 = vmatprep.subr.mxu0 0.0
    %2611 = vmatpush1.msra.mxu0 %v2326
    %2612 = vmatprep.subr.mxu0 0.0
    %2613 = vmatpush1.msra.mxu0 %v2323
    %2614 = vmatprep.subr.mxu0 0.0
    %2615 = vmatpush1.msra.mxu0 %v2320
    %2616 = vmatprep.subr.mxu0 0.0
    %2617 = vmatpush1.msra.mxu0 %v2317
    %2618 = vmatprep.subr.mxu0 0.0
    %2619 = vmatpush1.msra.mxu0 %v2314
    %2620 = vmatprep.subr.mxu0 0.0
    %2621 = vmatpush2.msra.mxu0 %v2407
    %2622 = vmatprep.subr.mxu0 0.0
    %2623 = vmatpush2.msra.mxu0 %v2404
    %2624 = vmatprep.subr.mxu0 0.0
    %2625 = vmatpush2.msra.mxu0 %v2401
    %2626 = vmatprep.subr.mxu0 0.0
    %2627 = vmatpush2.msra.mxu0 %v2398
    %2628 = vmatprep.subr.mxu0 0.0
    %2629 = vmatpush2.msra.mxu0 %v2395
    %2630 = vmatprep.subr.mxu0 0.0
    %2631 = vmatpush2.msra.mxu0 %v2392
    %2632 = vmatprep.subr.mxu0 0.0
    %2633 = vmatpush2.msra.mxu0 %v2389
    %2634 = vmatprep.subr.mxu0 0.0
    %2635 = vmatpush2.msra.mxu0 %v2386
    %2636 = vmatprep.subr.mxu0 0.0
    %2637 = vmatpush2.msra.mxu0 %v2383
    %2638 = vmatprep.subr.mxu0 0.0
    %2639 = vmatpush2.msra.mxu0 %v2380
    %2640 = vmatprep.subr.mxu0 0.0
    %2641 = vmatpush2.msra.mxu0 %v2377
    %2642 = vmatprep.subr.mxu0 0.0
    %2643 = vmatpush2.msra.mxu0 %v2374
    %2644 = vmatprep.subr.mxu0 0.0
    %2645 = vmatpush2.msra.mxu0 %v2371
    %2646 = vmatprep.subr.mxu0 0.0
    %2647 = vmatpush2.msra.mxu0 %v2368
    %2648 = vmatprep.subr.mxu0 0.0
    %2649 = vmatpush2.msra.mxu0 %v2365
    %2650 = vmatprep.subr.mxu0 0.0
    %2651 = vmatpush2.msra.mxu0 %v2362
    %2652 = vmatprep.mubr.f32.mxu0 %v2309
    %2653 = vmatmul.mubr.f32.gmra.mxu0 %v2308
    %v2654 = vpop.f32.mrf.mxu0
    %v2655 = vadd.f32 %v2441, %v2654
    %v2656 = vpop.f32.mrf.mxu0
    %2657 = vdwg.mxu0
    %2658 = vmatprep.subr.mxu0 0.0
    %2659 = vmatpush1.msra.mxu0 0.0
    %2660 = vmatprep.subr.mxu0 0.0
    %2661 = vmatpush1.msra.mxu0 0.0
    %2662 = vmatprep.subr.mxu0 0.0
    %2663 = vmatpush1.msra.mxu0 0.0
    %2664 = vmatprep.subr.mxu0 0.0
    %2665 = vmatpush1.msra.mxu0 0.0
    %2666 = vmatprep.subr.mxu0 0.0
    %2667 = vmatpush1.msra.mxu0 0.0
    %2668 = vmatprep.subr.mxu0 0.0
    %2669 = vmatpush1.msra.mxu0 0.0
    %2670 = vmatprep.subr.mxu0 0.0
    %2671 = vmatpush1.msra.mxu0 %v2437
    %2672 = vmatprep.subr.mxu0 0.0
    %2673 = vmatpush1.msra.mxu0 %v2434
    %2674 = vmatprep.subr.mxu0 0.0
    %2675 = vmatpush1.msra.mxu0 %v2431
    %2676 = vmatprep.subr.mxu0 0.0
    %2677 = vmatpush1.msra.mxu0 %v2428
    %2678 = vmatprep.subr.mxu0 0.0
    %2679 = vmatpush1.msra.mxu0 %v2425
    %2680 = vmatprep.subr.mxu0 0.0
    %2681 = vmatpush1.msra.mxu0 %v2422
    %2682 = vmatprep.subr.mxu0 0.0
    %2683 = vmatpush1.msra.mxu0 %v2419
    %2684 = vmatprep.subr.mxu0 0.0
    %2685 = vmatpush1.msra.mxu0 %v2416
    %2686 = vmatprep.subr.mxu0 0.0
    %2687 = vmatpush1.msra.mxu0 %v2413
    %2688 = vmatprep.subr.mxu0 0.0
    %2689 = vmatpush1.msra.mxu0 %v2410
    %2690 = vmatprep.subr.mxu0 0.0
    %2691 = vmatpush2.msra.mxu0 0.0
    %2692 = vmatprep.subr.mxu0 0.0
    %2693 = vmatpush2.msra.mxu0 0.0
    %2694 = vmatprep.subr.mxu0 0.0
    %2695 = vmatpush2.msra.mxu0 0.0
    %2696 = vmatprep.subr.mxu0 0.0
    %2697 = vmatpush2.msra.mxu0 0.0
    %2698 = vmatprep.subr.mxu0 0.0
    %2699 = vmatpush2.msra.mxu0 0.0
    %2700 = vmatprep.subr.mxu0 0.0
    %2701 = vmatpush2.msra.mxu0 0.0
    %2702 = vmatprep.subr.mxu0 0.0
    %2703 = vmatpush2.msra.mxu0 0.0
    %2704 = vmatprep.subr.mxu0 0.0
    %2705 = vmatpush2.msra.mxu0 0.0
    %2706 = vmatprep.subr.mxu0 0.0
    %2707 = vmatpush2.msra.mxu0 0.0
    %2708 = vmatprep.subr.mxu0 0.0
    %2709 = vmatpush2.msra.mxu0 0.0
    %2710 = vmatprep.subr.mxu0 0.0
    %2711 = vmatpush2.msra.mxu0 0.0
    %2712 = vmatprep.subr.mxu0 0.0
    %2713 = vmatpush2.msra.mxu0 0.0
    %2714 = vmatprep.subr.mxu0 0.0
    %2715 = vmatpush2.msra.mxu0 0.0
    %2716 = vmatprep.subr.mxu0 0.0
    %2717 = vmatpush2.msra.mxu0 0.0
    %2718 = vmatprep.subr.mxu0 0.0
    %2719 = vmatpush2.msra.mxu0 0.0
    %2720 = vmatprep.subr.mxu0 0.0
    %2721 = vmatpush2.msra.mxu0 0.0
    %2722 = vmatprep.mubr.f32.mxu0 0.0
    %2723 = vmatmul.mubr.f32.gmra.mxu0 %v2444
    %v2724 = vpop.f32.mrf.mxu0
    %v2725 = vadd.f32 %v2655, %v2724
    %v2726 = vpop.f32.mrf.mxu0
    %2727 = vdwg.mxu0
    %v2728 = vand.u32 2147483647, %v2584
    %v2729 = vand.u32 2147483647, %v2586
    %v2730 = vand.u32 2147483647, %v2725
    %2734 = vrot.lane.b32.xlu0 %v2728, 127
    %v2735 = vpop.permute.xlu0 %2734
    %2736 = vrot.lane.b32.xlu0 %v2729, 127
    %v2737 = vpop.permute.xlu0 %2736
    %2738 = vrot.lane.b32.xlu0 %v2730, 127
    %v2739 = vpop.permute.xlu0 %2738
    %v2740 = vsel %vm487, %v2735, %v2737
    %v2741 = vsel %vm487, %v2737, %v2739
    %v2745 = vmax.f32 %v2728, %v2740
    %v2746 = vmax.f32 %v2729, %v2741
    %v2747 = vmax.f32 %v2730, %v2739
    %2751 = vrot.lane.b32.xlu0 %v2745, 126
    %v2752 = vpop.permute.xlu0 %2751
    %2753 = vrot.lane.b32.xlu0 %v2746, 126
    %v2754 = vpop.permute.xlu0 %2753
    %2755 = vrot.lane.b32.xlu0 %v2747, 126
    %v2756 = vpop.permute.xlu0 %2755
    %v2757 = vsel %vm505, %v2752, %v2754
    %v2758 = vsel %vm505, %v2754, %v2756
    %v2762 = vmax.f32 %v2745, %v2757
    %v2763 = vmax.f32 %v2746, %v2758
    %v2764 = vmax.f32 %v2747, %v2756
    %2768 = vrot.lane.b32.xlu0 %v2762, 124
    %v2769 = vpop.permute.xlu0 %2768
    %2770 = vrot.lane.b32.xlu0 %v2763, 124
    %v2771 = vpop.permute.xlu0 %2770
    %2772 = vrot.lane.b32.xlu0 %v2764, 124
    %v2773 = vpop.permute.xlu0 %2772
    %v2774 = vsel %vm523, %v2769, %v2771
    %v2775 = vsel %vm523, %v2771, %v2773
    %v2779 = vmax.f32 %v2762, %v2774
    %v2780 = vmax.f32 %v2763, %v2775
    %v2781 = vmax.f32 %v2764, %v2773
    %s2782 = scalar_lea.vmem %s3, 816
    %v2783 = vld [vmem:[%s2782] sm:$0xff]
    %v2784 = vld [vmem:[%s2782 + $0x8] sm:$0xff]
    %v2785 = vld [vmem:[%s2782 + $0x10] sm:$0xff]
    %v2786 = vld [vmem:[%s2782 + $0x18] sm:$0xff]
    %v2787 = vld [vmem:[%s2782 + $0x20] sm:$0xff]
    %v2788 = vld [vmem:[%s2782 + $0x28] sm:$0xff]
    %v2789 = vld [vmem:[%s2782 + $0x30] sm:$0xff]
    %v2790 = vld [vmem:[%s2782 + $0x38] sm:$0xff]
    %v2791 = vld [vmem:[%s2782 + $0x40] sm:$0xff]
    %v2792 = vld [vmem:[%s2782 + $0x48] sm:$0xff]
    %v2793 = vld [vmem:[%s2782 + $0x50] sm:$0xff]
    %v2794 = vld [vmem:[%s2782 + $0x58] sm:$0xff]
    %v2795 = vld [vmem:[%s2782 + $0x60] sm:$0xff]
    %v2796 = vld [vmem:[%s2782 + $0x68] sm:$0xff]
    %v2797 = vld [vmem:[%s2782 + $0x70] sm:$0xff]
    %v2798 = vld [vmem:[%s2782 + $0x78] sm:$0xff]
    %v2799 = vld [vmem:[%s2782 + $0x80] sm:$0xff]
    %v2800 = vld [vmem:[%s2782 + $0x88] sm:$0xff]
    %v2801 = vld [vmem:[%s2782 + $0x90] sm:$0xff]
    %v2802 = vld [vmem:[%s2782 + $0x98] sm:$0xff]
    %v2803 = vld [vmem:[%s2782 + $0xa0] sm:$0xff]
    %v2804 = vld [vmem:[%s2782 + $0xa8] sm:$0xff]
    %v2805 = vld [vmem:[%s2782 + $0xb0] sm:$0xff]
    %v2806 = vld [vmem:[%s2782 + $0xb8] sm:$0xff]
    %v2807 = vld [vmem:[%s2782 + $0xc0] sm:$0xff]
    %v2808 = vld [vmem:[%s2782 + $0xc8] sm:$0xff]
    %v2809 = vld [vmem:[%s2782 + $0xd0] sm:$0xff]
    %v2810 = vld [vmem:[%s2782 + $0xd8] sm:$0xff]
    %v2811 = vld [vmem:[%s2782 + $0xe0] sm:$0xff]
    %v2812 = vld [vmem:[%s2782 + $0xe8] sm:$0xff]
    %v2813 = vld [vmem:[%s2782 + $0xf0] sm:$0xff]
    %v2814 = vld [vmem:[%s2782 + $0xf8] sm:$0xff]
    %v2815 = vld [vmem:[%s2782 + $0x100] sm:$0xff]
    %v2816 = vld [vmem:[%s2782 + $0x108] sm:$0x3]
    %v2818 = vsel %vm566, %v2781, 0
    %v2821 = vsel %vm570, %v2816, 0
    %2823 = vmatprep.subr.mxu0 0.0
    %2824 = vmatpush1.msra.mxu0 %v2798
    %2825 = vmatprep.subr.mxu0 0.0
    %2826 = vmatpush1.msra.mxu0 %v2797
    %2827 = vmatprep.subr.mxu0 0.0
    %2828 = vmatpush1.msra.mxu0 %v2796
    %2829 = vmatprep.subr.mxu0 0.0
    %2830 = vmatpush1.msra.mxu0 %v2795
    %2831 = vmatprep.subr.mxu0 0.0
    %2832 = vmatpush1.msra.mxu0 %v2794
    %2833 = vmatprep.subr.mxu0 0.0
    %2834 = vmatpush1.msra.mxu0 %v2793
    %2835 = vmatprep.subr.mxu0 0.0
    %2836 = vmatpush1.msra.mxu0 %v2792
    %2837 = vmatprep.subr.mxu0 0.0
    %2838 = vmatpush1.msra.mxu0 %v2791
    %2839 = vmatprep.subr.mxu0 0.0
    %2840 = vmatpush1.msra.mxu0 %v2790
    %2841 = vmatprep.subr.mxu0 0.0
    %2842 = vmatpush1.msra.mxu0 %v2789
    %2843 = vmatprep.subr.mxu0 0.0
    %2844 = vmatpush1.msra.mxu0 %v2788
    %2845 = vmatprep.subr.mxu0 0.0
    %2846 = vmatpush1.msra.mxu0 %v2787
    %2847 = vmatprep.subr.mxu0 0.0
    %2848 = vmatpush1.msra.mxu0 %v2786
    %2849 = vmatprep.subr.mxu0 0.0
    %2850 = vmatpush1.msra.mxu0 %v2785
    %2851 = vmatprep.subr.mxu0 0.0
    %2852 = vmatpush1.msra.mxu0 %v2784
    %2853 = vmatprep.subr.mxu0 0.0
    %2854 = vmatpush1.msra.mxu0 %v2783
    %2855 = vmatprep.subr.mxu0 0.0
    %2856 = vmatpush2.msra.mxu0 %v2814
    %2857 = vmatprep.subr.mxu0 0.0
    %2858 = vmatpush2.msra.mxu0 %v2813
    %2859 = vmatprep.subr.mxu0 0.0
    %2860 = vmatpush2.msra.mxu0 %v2812
    %2861 = vmatprep.subr.mxu0 0.0
    %2862 = vmatpush2.msra.mxu0 %v2811
    %2863 = vmatprep.subr.mxu0 0.0
    %2864 = vmatpush2.msra.mxu0 %v2810
    %2865 = vmatprep.subr.mxu0 0.0
    %2866 = vmatpush2.msra.mxu0 %v2809
    %2867 = vmatprep.subr.mxu0 0.0
    %2868 = vmatpush2.msra.mxu0 %v2808
    %2869 = vmatprep.subr.mxu0 0.0
    %2870 = vmatpush2.msra.mxu0 %v2807
    %2871 = vmatprep.subr.mxu0 0.0
    %2872 = vmatpush2.msra.mxu0 %v2806
    %2873 = vmatprep.subr.mxu0 0.0
    %2874 = vmatpush2.msra.mxu0 %v2805
    %2875 = vmatprep.subr.mxu0 0.0
    %2876 = vmatpush2.msra.mxu0 %v2804
    %2877 = vmatprep.subr.mxu0 0.0
    %2878 = vmatpush2.msra.mxu0 %v2803
    %2879 = vmatprep.subr.mxu0 0.0
    %2880 = vmatpush2.msra.mxu0 %v2802
    %2881 = vmatprep.subr.mxu0 0.0
    %2882 = vmatpush2.msra.mxu0 %v2801
    %2883 = vmatprep.subr.mxu0 0.0
    %2884 = vmatpush2.msra.mxu0 %v2800
    %2885 = vmatprep.subr.mxu0 0.0
    %2886 = vmatpush2.msra.mxu0 %v2799
    %2887 = vmatprep.mubr.f32.mxu0 %v2780
    %2888 = vmatmul.mubr.f32.gmra.mxu0 %v2779
    %v2889 = vpop.f32.mrf.mxu0
    %v2890 = vadd.f32 0.0, %v2889
    %v2891 = vpop.f32.mrf.mxu0
    %2892 = vdwg.mxu0
    %2893 = vmatprep.subr.mxu0 0.0
    %2894 = vmatpush1.msra.mxu0 0.0
    %2895 = vmatprep.subr.mxu0 0.0
    %2896 = vmatpush1.msra.mxu0 0.0
    %2897 = vmatprep.subr.mxu0 0.0
    %2898 = vmatpush1.msra.mxu0 0.0
    %2899 = vmatprep.subr.mxu0 0.0
    %2900 = vmatpush1.msra.mxu0 0.0
    %2901 = vmatprep.subr.mxu0 0.0
    %2902 = vmatpush1.msra.mxu0 0.0
    %2903 = vmatprep.subr.mxu0 0.0
    %2904 = vmatpush1.msra.mxu0 0.0
    %2905 = vmatprep.subr.mxu0 0.0
    %2906 = vmatpush1.msra.mxu0 0.0
    %2907 = vmatprep.subr.mxu0 0.0
    %2908 = vmatpush1.msra.mxu0 0.0
    %2909 = vmatprep.subr.mxu0 0.0
    %2910 = vmatpush1.msra.mxu0 0.0
    %2911 = vmatprep.subr.mxu0 0.0
    %2912 = vmatpush1.msra.mxu0 0.0
    %2913 = vmatprep.subr.mxu0 0.0
    %2914 = vmatpush1.msra.mxu0 0.0
    %2915 = vmatprep.subr.mxu0 0.0
    %2916 = vmatpush1.msra.mxu0 0.0
    %2917 = vmatprep.subr.mxu0 0.0
    %2918 = vmatpush1.msra.mxu0 0.0
    %2919 = vmatprep.subr.mxu0 0.0
    %2920 = vmatpush1.msra.mxu0 0.0
    %2921 = vmatprep.subr.mxu0 0.0
    %2922 = vmatpush1.msra.mxu0 %v2821
    %2923 = vmatprep.subr.mxu0 0.0
    %2924 = vmatpush1.msra.mxu0 %v2815
    %2925 = vmatprep.subr.mxu0 0.0
    %2926 = vmatpush2.msra.mxu0 0.0
    %2927 = vmatprep.subr.mxu0 0.0
    %2928 = vmatpush2.msra.mxu0 0.0
    %2929 = vmatprep.subr.mxu0 0.0
    %2930 = vmatpush2.msra.mxu0 0.0
    %2931 = vmatprep.subr.mxu0 0.0
    %2932 = vmatpush2.msra.mxu0 0.0
    %2933 = vmatprep.subr.mxu0 0.0
    %2934 = vmatpush2.msra.mxu0 0.0
    %2935 = vmatprep.subr.mxu0 0.0
    %2936 = vmatpush2.msra.mxu0 0.0
    %2937 = vmatprep.subr.mxu0 0.0
    %2938 = vmatpush2.msra.mxu0 0.0
    %2939 = vmatprep.subr.mxu0 0.0
    %2940 = vmatpush2.msra.mxu0 0.0
    %2941 = vmatprep.subr.mxu0 0.0
    %2942 = vmatpush2.msra.mxu0 0.0
    %2943 = vmatprep.subr.mxu0 0.0
    %2944 = vmatpush2.msra.mxu0 0.0
    %2945 = vmatprep.subr.mxu0 0.0
    %2946 = vmatpush2.msra.mxu0 0.0
    %2947 = vmatprep.subr.mxu0 0.0
    %2948 = vmatpush2.msra.mxu0 0.0
    %2949 = vmatprep.subr.mxu0 0.0
    %2950 = vmatpush2.msra.mxu0 0.0
    %2951 = vmatprep.subr.mxu0 0.0
    %2952 = vmatpush2.msra.mxu0 0.0
    %2953 = vmatprep.subr.mxu0 0.0
    %2954 = vmatpush2.msra.mxu0 0.0
    %2955 = vmatprep.subr.mxu0 0.0
    %2956 = vmatpush2.msra.mxu0 0.0
    %2957 = vmatprep.mubr.f32.mxu0 0.0
    %2958 = vmatmul.mubr.f32.gmra.mxu0 %v2818
    %v2959 = vpop.f32.mrf.mxu0
    %v2960 = vadd.f32 %v2890, %v2959
    %v2961 = vpop.f32.mrf.mxu0
    %2962 = vdwg.mxu0
    %v2963 = vmax.f32 %v2960, 0.0
    %s2964 = scalar_lea.vmem %s4, 72
    %v2965 = vld [vmem:[%s2964] sm:$0xff]
    %v2966 = vld [vmem:[%s2964 + $0x8] sm:$0xff]
    %v2967 = vld [vmem:[%s2964 + $0x10] sm:$0xf]
    %v2969 = vsel %vm1390, %v2963, 0
    %v2972 = vsel %vm1394, %v2967, 0
    %2974 = vmatprep.subr.mxu0 0.0
    %2975 = vmatpush1.msra.mxu0 0.0
    %2976 = vmatprep.subr.mxu0 0.0
    %2977 = vmatpush1.msra.mxu0 0.0
    %2978 = vmatprep.subr.mxu0 0.0
    %2979 = vmatpush1.msra.mxu0 0.0
    %2980 = vmatprep.subr.mxu0 0.0
    %2981 = vmatpush1.msra.mxu0 0.0
    %2982 = vmatprep.subr.mxu0 0.0
    %2983 = vmatpush1.msra.mxu0 0.0
    %2984 = vmatprep.subr.mxu0 0.0
    %2985 = vmatpush1.msra.mxu0 0.0
    %2986 = vmatprep.subr.mxu0 0.0
    %2987 = vmatpush1.msra.mxu0 0.0
    %2988 = vmatprep.subr.mxu0 0.0
    %2989 = vmatpush1.msra.mxu0 0.0
    %2990 = vmatprep.subr.mxu0 0.0
    %2991 = vmatpush1.msra.mxu0 0.0
    %2992 = vmatprep.subr.mxu0 0.0
    %2993 = vmatpush1.msra.mxu0 0.0
    %2994 = vmatprep.subr.mxu0 0.0
    %2995 = vmatpush1.msra.mxu0 0.0
    %2996 = vmatprep.subr.mxu0 0.0
    %2997 = vmatpush1.msra.mxu0 0.0
    %2998 = vmatprep.subr.mxu0 0.0
    %2999 = vmatpush1.msra.mxu0 0.0
    %3000 = vmatprep.subr.mxu0 0.0
    %3001 = vmatpush1.msra.mxu0 %v2972
    %3002 = vmatprep.subr.mxu0 0.0
    %3003 = vmatpush1.msra.mxu0 %v2966
    %3004 = vmatprep.subr.mxu0 0.0
    %3005 = vmatpush1.msra.mxu0 %v2965
    %3006 = vmatprep.subr.mxu0 0.0
    %3007 = vmatpush2.msra.mxu0 0.0
    %3008 = vmatprep.subr.mxu0 0.0
    %3009 = vmatpush2.msra.mxu0 0.0
    %3010 = vmatprep.subr.mxu0 0.0
    %3011 = vmatpush2.msra.mxu0 0.0
    %3012 = vmatprep.subr.mxu0 0.0
    %3013 = vmatpush2.msra.mxu0 0.0
    %3014 = vmatprep.subr.mxu0 0.0
    %3015 = vmatpush2.msra.mxu0 0.0
    %3016 = vmatprep.subr.mxu0 0.0
    %3017 = vmatpush2.msra.mxu0 0.0
    %3018 = vmatprep.subr.mxu0 0.0
    %3019 = vmatpush2.msra.mxu0 0.0
    %3020 = vmatprep.subr.mxu0 0.0
    %3021 = vmatpush2.msra.mxu0 0.0
    %3022 = vmatprep.subr.mxu0 0.0
    %3023 = vmatpush2.msra.mxu0 0.0
    %3024 = vmatprep.subr.mxu0 0.0
    %3025 = vmatpush2.msra.mxu0 0.0
    %3026 = vmatprep.subr.mxu0 0.0
    %3027 = vmatpush2.msra.mxu0 0.0
    %3028 = vmatprep.subr.mxu0 0.0
    %3029 = vmatpush2.msra.mxu0 0.0
    %3030 = vmatprep.subr.mxu0 0.0
    %3031 = vmatpush2.msra.mxu0 0.0
    %3032 = vmatprep.subr.mxu0 0.0
    %3033 = vmatpush2.msra.mxu0 0.0
    %3034 = vmatprep.subr.mxu0 0.0
    %3035 = vmatpush2.msra.mxu0 0.0
    %3036 = vmatprep.subr.mxu0 0.0
    %3037 = vmatpush2.msra.mxu0 0.0
    %3038 = vmatprep.mubr.f32.mxu0 0.0
    %3039 = vmatmul.mubr.f32.gmra.mxu0 %v2969
    %v3040 = vpop.f32.mrf.mxu0
    %v3041 = vadd.f32 0.0, %v3040
    %v3042 = vpop.f32.mrf.mxu0
    %3043 = vdwg.mxu0
    %v3044 = vadd.f32 %v2292, %v3041
    %v3045 = vsel %vm54, %v48, %v42
    %v3046 = vsel %vm54, %v49, %v43
    %v3047 = vsel %vm54, %v50, %v44
    %s3048 = scalar_lea.vmem %s1, 4032
    %v3049 = vld [vmem:[%s3048] sm:$0xff]
    %v3050 = vld [vmem:[%s3048 + $0x8] sm:$0xff]
    %v3051 = vld [vmem:[%s3048 + $0x10] sm:$0xff]
    %v3052 = vld [vmem:[%s3048 + $0x18] sm:$0xff]
    %v3053 = vld [vmem:[%s3048 + $0x20] sm:$0xff]
    %v3054 = vld [vmem:[%s3048 + $0x28] sm:$0xff]
    %v3055 = vld [vmem:[%s3048 + $0x30] sm:$0xff]
    %v3056 = vld [vmem:[%s3048 + $0x38] sm:$0xff]
    %v3057 = vld [vmem:[%s3048 + $0x40] sm:$0xff]
    %v3058 = vld [vmem:[%s3048 + $0x48] sm:$0xff]
    %v3059 = vld [vmem:[%s3048 + $0x50] sm:$0xff]
    %v3060 = vld [vmem:[%s3048 + $0x58] sm:$0xff]
    %v3061 = vld [vmem:[%s3048 + $0x60] sm:$0xff]
    %v3062 = vld [vmem:[%s3048 + $0x68] sm:$0xff]
    %v3063 = vld [vmem:[%s3048 + $0x70] sm:$0xff]
    %v3064 = vld [vmem:[%s3048 + $0x78] sm:$0xff]
    %v3065 = vld [vmem:[%s3048 + $0x80] sm:$0xff]
    %v3066 = vld [vmem:[%s3048 + $0x88] sm:$0xff]
    %v3067 = vld [vmem:[%s3048 + $0x90] sm:$0xff]
    %v3068 = vld [vmem:[%s3048 + $0x98] sm:$0xff]
    %v3069 = vld [vmem:[%s3048 + $0xa0] sm:$0xff]
    %v3070 = vld [vmem:[%s3048 + $0xa8] sm:$0xff]
    %v3071 = vld [vmem:[%s3048 + $0xb0] sm:$0xff]
    %v3072 = vld [vmem:[%s3048 + $0xb8] sm:$0xff]
    %v3073 = vld [vmem:[%s3048 + $0xc0] sm:$0xff]
    %v3074 = vld [vmem:[%s3048 + $0xc8] sm:$0xff]
    %v3075 = vld [vmem:[%s3048 + $0xd0] sm:$0xff]
    %v3076 = vld [vmem:[%s3048 + $0xd8] sm:$0xff]
    %v3077 = vld [vmem:[%s3048 + $0xe0] sm:$0xff]
    %v3078 = vld [vmem:[%s3048 + $0xe8] sm:$0xff]
    %v3079 = vld [vmem:[%s3048 + $0xf0] sm:$0xff]
    %v3080 = vld [vmem:[%s3048 + $0xf8] sm:$0xff]
    %v3081 = vld [vmem:[%s3048 + $0x100] sm:$0xff]
    %v3082 = vld [vmem:[%s3048 + $0x108] sm:$0xff]
    %v3083 = vld [vmem:[%s3048 + $0x110] sm:$0xff]
    %v3084 = vld [vmem:[%s3048 + $0x118] sm:$0xff]
    %v3085 = vld [vmem:[%s3048 + $0x120] sm:$0xff]
    %v3086 = vld [vmem:[%s3048 + $0x128] sm:$0xff]
    %v3087 = vld [vmem:[%s3048 + $0x130] sm:$0xff]
    %v3088 = vld [vmem:[%s3048 + $0x138] sm:$0xff]
    %v3089 = vld [vmem:[%s3048 + $0x140] sm:$0xff]
    %v3090 = vld [vmem:[%s3048 + $0x148] sm:$0xff]
    %v3091 = vld [vmem:[%s3048 + $0x150] sm:$0xff]
    %v3092 = vld [vmem:[%s3048 + $0x158] sm:$0xff]
    %v3093 = vld [vmem:[%s3048 + $0x160] sm:$0xff]
    %v3094 = vld [vmem:[%s3048 + $0x168] sm:$0xff]
    %v3095 = vld [vmem:[%s3048 + $0x170] sm:$0xff]
    %v3096 = vld [vmem:[%s3048 + $0x178] sm:$0xff]
    %v3097 = vld [vmem:[%s3048 + $0x180] sm:$0xff]
    %v3098 = vld [vmem:[%s3048 + $0x188] sm:$0xff]
    %v3099 = vld [vmem:[%s3048 + $0x190] sm:$0xff]
    %v3100 = vld [vmem:[%s3048 + $0x198] sm:$0xff]
    %v3101 = vld [vmem:[%s3048 + $0x1a0] sm:$0xff]
    %v3102 = vld [vmem:[%s3048 + $0x1a8] sm:$0xff]
    %v3103 = vld [vmem:[%s3048 + $0x1b0] sm:$0xff]
    %v3104 = vld [vmem:[%s3048 + $0x1b8] sm:$0xff]
    %v3105 = vld [vmem:[%s3048 + $0x1c0] sm:$0xff]
    %v3106 = vld [vmem:[%s3048 + $0x1c8] sm:$0xff]
    %v3107 = vld [vmem:[%s3048 + $0x1d0] sm:$0xff]
    %v3108 = vld [vmem:[%s3048 + $0x1d8] sm:$0xff]
    %v3109 = vld [vmem:[%s3048 + $0x1e0] sm:$0xff]
    %v3110 = vld [vmem:[%s3048 + $0x1e8] sm:$0xff]
    %v3111 = vld [vmem:[%s3048 + $0x1f0] sm:$0xff]
    %v3112 = vld [vmem:[%s3048 + $0x1f8] sm:$0xff]
    %v3113 = vld [vmem:[%s3048 + $0x200] sm:$0xff]
    %v3114 = vld [vmem:[%s3048 + $0x208] sm:$0xff]
    %v3115 = vld [vmem:[%s3048 + $0x210] sm:$0xff]
    %v3116 = vld [vmem:[%s3048 + $0x218] sm:$0xff]
    %v3117 = vld [vmem:[%s3048 + $0x220] sm:$0xff]
    %v3118 = vld [vmem:[%s3048 + $0x228] sm:$0xff]
    %v3119 = vld [vmem:[%s3048 + $0x230] sm:$0xff]
    %v3120 = vld [vmem:[%s3048 + $0x238] sm:$0xff]
    %v3121 = vld [vmem:[%s3048 + $0x240] sm:$0xff]
    %v3122 = vld [vmem:[%s3048 + $0x248] sm:$0xff]
    %v3123 = vld [vmem:[%s3048 + $0x250] sm:$0xff]
    %v3124 = vld [vmem:[%s3048 + $0x258] sm:$0xff]
    %v3125 = vld [vmem:[%s3048 + $0x260] sm:$0xff]
    %v3126 = vld [vmem:[%s3048 + $0x268] sm:$0xff]
    %v3127 = vld [vmem:[%s3048 + $0x270] sm:$0xff]
    %v3128 = vld [vmem:[%s3048 + $0x278] sm:$0xff]
    %v3129 = vld [vmem:[%s3048 + $0x280] sm:$0xff]
    %v3130 = vld [vmem:[%s3048 + $0x288] sm:$0xff]
    %v3131 = vld [vmem:[%s3048 + $0x290] sm:$0xff]
    %v3132 = vld [vmem:[%s3048 + $0x298] sm:$0xff]
    %v3133 = vld [vmem:[%s3048 + $0x2a0] sm:$0xff]
    %v3134 = vld [vmem:[%s3048 + $0x2a8] sm:$0xff]
    %v3135 = vld [vmem:[%s3048 + $0x2b0] sm:$0xff]
    %v3136 = vld [vmem:[%s3048 + $0x2b8] sm:$0xff]
    %v3137 = vld [vmem:[%s3048 + $0x2c0] sm:$0xff]
    %v3138 = vld [vmem:[%s3048 + $0x2c8] sm:$0xff]
    %v3139 = vld [vmem:[%s3048 + $0x2d0] sm:$0xff]
    %v3140 = vld [vmem:[%s3048 + $0x2d8] sm:$0xff]
    %v3141 = vld [vmem:[%s3048 + $0x2e0] sm:$0xff]
    %v3142 = vld [vmem:[%s3048 + $0x2e8] sm:$0xff]
    %v3143 = vld [vmem:[%s3048 + $0x2f0] sm:$0xff]
    %v3144 = vld [vmem:[%s3048 + $0x2f8] sm:$0xff]
    %v3145 = vld [vmem:[%s3048 + $0x300] sm:$0xff]
    %v3146 = vld [vmem:[%s3048 + $0x308] sm:$0xff]
    %v3147 = vld [vmem:[%s3048 + $0x310] sm:$0xff]
    %v3148 = vld [vmem:[%s3048 + $0x318] sm:$0xff]
    %v3149 = vld [vmem:[%s3048 + $0x320] sm:$0xff]
    %v3150 = vld [vmem:[%s3048 + $0x328] sm:$0xff]
    %v3151 = vld [vmem:[%s3048 + $0x330] sm:$0xff]
    %v3152 = vld [vmem:[%s3048 + $0x338] sm:$0xff]
    %v3153 = vld [vmem:[%s3048 + $0x340] sm:$0xff]
    %v3154 = vld [vmem:[%s3048 + $0x348] sm:$0xff]
    %v3155 = vld [vmem:[%s3048 + $0x350] sm:$0xff]
    %v3156 = vld [vmem:[%s3048 + $0x358] sm:$0xff]
    %v3157 = vld [vmem:[%s3048 + $0x360] sm:$0xff]
    %v3158 = vld [vmem:[%s3048 + $0x368] sm:$0xff]
    %v3159 = vld [vmem:[%s3048 + $0x370] sm:$0xff]
    %v3160 = vld [vmem:[%s3048 + $0x378] sm:$0xff]
    %v3161 = vld [vmem:[%s3048 + $0x380] sm:$0xff]
    %v3162 = vld [vmem:[%s3048 + $0x388] sm:$0xff]
    %v3163 = vld [vmem:[%s3048 + $0x390] sm:$0xff]
    %v3164 = vld [vmem:[%s3048 + $0x398] sm:$0xff]
    %v3165 = vld [vmem:[%s3048 + $0x3a0] sm:$0xff]
    %v3166 = vld [vmem:[%s3048 + $0x3a8] sm:$0xff]
    %v3167 = vld [vmem:[%s3048 + $0x3b0] sm:$0xff]
    %v3168 = vld [vmem:[%s3048 + $0x3b8] sm:$0xff]
    %v3169 = vld [vmem:[%s3048 + $0x3c0] sm:$0xff]
    %v3170 = vld [vmem:[%s3048 + $0x3c8] sm:$0xff]
    %v3171 = vld [vmem:[%s3048 + $0x3d0] sm:$0xff]
    %v3172 = vld [vmem:[%s3048 + $0x3d8] sm:$0xff]
    %v3173 = vld [vmem:[%s3048 + $0x3e0] sm:$0xff]
    %v3174 = vld [vmem:[%s3048 + $0x3e8] sm:$0xff]
    %v3175 = vld [vmem:[%s2 + $0x4] sm:$0x1]
    %s3177 = vtos %v3175
    %v3178 = vstv %s3177
    %v3181 = vsel %vm189, %v3047, 0
    %3183 = vmatprep.subr.mxu0 %v3095
    %3184 = vmatpush1.msra.mxu0 %v3094
    %3185 = vmatprep.subr.mxu0 %v3092
    %3186 = vmatpush1.msra.mxu0 %v3091
    %3187 = vmatprep.subr.mxu0 %v3089
    %3188 = vmatpush1.msra.mxu0 %v3088
    %3189 = vmatprep.subr.mxu0 %v3086
    %3190 = vmatpush1.msra.mxu0 %v3085
    %3191 = vmatprep.subr.mxu0 %v3083
    %3192 = vmatpush1.msra.mxu0 %v3082
    %3193 = vmatprep.subr.mxu0 %v3080
    %3194 = vmatpush1.msra.mxu0 %v3079
    %3195 = vmatprep.subr.mxu0 %v3077
    %3196 = vmatpush1.msra.mxu0 %v3076
    %3197 = vmatprep.subr.mxu0 %v3074
    %3198 = vmatpush1.msra.mxu0 %v3073
    %3199 = vmatprep.subr.mxu0 %v3071
    %3200 = vmatpush1.msra.mxu0 %v3070
    %3201 = vmatprep.subr.mxu0 %v3068
    %3202 = vmatpush1.msra.mxu0 %v3067
    %3203 = vmatprep.subr.mxu0 %v3065
    %3204 = vmatpush1.msra.mxu0 %v3064
    %3205 = vmatprep.subr.mxu0 %v3062
    %3206 = vmatpush1.msra.mxu0 %v3061
    %3207 = vmatprep.subr.mxu0 %v3059
    %3208 = vmatpush1.msra.mxu0 %v3058
    %3209 = vmatprep.subr.mxu0 %v3056
    %3210 = vmatpush1.msra.mxu0 %v3055
    %3211 = vmatprep.subr.mxu0 %v3053
    %3212 = vmatpush1.msra.mxu0 %v3052
    %3213 = vmatprep.subr.mxu0 %v3050
    %3214 = vmatpush1.msra.mxu0 %v3049
    %3215 = vmatprep.subr.mxu0 %v3143
    %3216 = vmatpush2.msra.mxu0 %v3142
    %3217 = vmatprep.subr.mxu0 %v3140
    %3218 = vmatpush2.msra.mxu0 %v3139
    %3219 = vmatprep.subr.mxu0 %v3137
    %3220 = vmatpush2.msra.mxu0 %v3136
    %3221 = vmatprep.subr.mxu0 %v3134
    %3222 = vmatpush2.msra.mxu0 %v3133
    %3223 = vmatprep.subr.mxu0 %v3131
    %3224 = vmatpush2.msra.mxu0 %v3130
    %3225 = vmatprep.subr.mxu0 %v3128
    %3226 = vmatpush2.msra.mxu0 %v3127
    %3227 = vmatprep.subr.mxu0 %v3125
    %3228 = vmatpush2.msra.mxu0 %v3124
    %3229 = vmatprep.subr.mxu0 %v3122
    %3230 = vmatpush2.msra.mxu0 %v3121
    %3231 = vmatprep.subr.mxu0 %v3119
    %3232 = vmatpush2.msra.mxu0 %v3118
    %3233 = vmatprep.subr.mxu0 %v3116
    %3234 = vmatpush2.msra.mxu0 %v3115
    %3235 = vmatprep.subr.mxu0 %v3113
    %3236 = vmatpush2.msra.mxu0 %v3112
    %3237 = vmatprep.subr.mxu0 %v3110
    %3238 = vmatpush2.msra.mxu0 %v3109
    %3239 = vmatprep.subr.mxu0 %v3107
    %3240 = vmatpush2.msra.mxu0 %v3106
    %3241 = vmatprep.subr.mxu0 %v3104
    %3242 = vmatpush2.msra.mxu0 %v3103
    %3243 = vmatprep.subr.mxu0 %v3101
    %3244 = vmatpush2.msra.mxu0 %v3100
    %3245 = vmatprep.subr.mxu0 %v3098
    %3246 = vmatpush2.msra.mxu0 %v3097
    %3247 = vmatprep.mubr.f32.mxu0 %v3046
    %3248 = vmatmul.mubr.f32.gmra.mxu0 %v3045
    %v3249 = vpop.f32.mrf.mxu0
    %v3250 = vadd.f32 %v3178, %v3249
    %v3251 = vpop.f32.mrf.mxu0
    %v3252 = vadd.f32 %v3178, %v3251
    %3253 = vdwg.mxu0
    %3254 = vmatprep.subr.mxu0 0.0
    %3255 = vmatpush1.msra.mxu0 0.0
    %3256 = vmatprep.subr.mxu0 0.0
    %3257 = vmatpush1.msra.mxu0 0.0
    %3258 = vmatprep.subr.mxu0 0.0
    %3259 = vmatpush1.msra.mxu0 0.0
    %3260 = vmatprep.subr.mxu0 0.0
    %3261 = vmatpush1.msra.mxu0 0.0
    %3262 = vmatprep.subr.mxu0 0.0
    %3263 = vmatpush1.msra.mxu0 0.0
    %3264 = vmatprep.subr.mxu0 0.0
    %3265 = vmatpush1.msra.mxu0 0.0
    %3266 = vmatprep.subr.mxu0 %v3173
    %3267 = vmatpush1.msra.mxu0 %v3172
    %3268 = vmatprep.subr.mxu0 %v3170
    %3269 = vmatpush1.msra.mxu0 %v3169
    %3270 = vmatprep.subr.mxu0 %v3167
    %3271 = vmatpush1.msra.mxu0 %v3166
    %3272 = vmatprep.subr.mxu0 %v3164
    %3273 = vmatpush1.msra.mxu0 %v3163
    %3274 = vmatprep.subr.mxu0 %v3161
    %3275 = vmatpush1.msra.mxu0 %v3160
    %3276 = vmatprep.subr.mxu0 %v3158
    %3277 = vmatpush1.msra.mxu0 %v3157
    %3278 = vmatprep.subr.mxu0 %v3155
    %3279 = vmatpush1.msra.mxu0 %v3154
    %3280 = vmatprep.subr.mxu0 %v3152
    %3281 = vmatpush1.msra.mxu0 %v3151
    %3282 = vmatprep.subr.mxu0 %v3149
    %3283 = vmatpush1.msra.mxu0 %v3148
    %3284 = vmatprep.subr.mxu0 %v3146
    %3285 = vmatpush1.msra.mxu0 %v3145
    %3286 = vmatprep.subr.mxu0 0.0
    %3287 = vmatpush2.msra.mxu0 0.0
    %3288 = vmatprep.subr.mxu0 0.0
    %3289 = vmatpush2.msra.mxu0 0.0
    %3290 = vmatprep.subr.mxu0 0.0
    %3291 = vmatpush2.msra.mxu0 0.0
    %3292 = vmatprep.subr.mxu0 0.0
    %3293 = vmatpush2.msra.mxu0 0.0
    %3294 = vmatprep.subr.mxu0 0.0
    %3295 = vmatpush2.msra.mxu0 0.0
    %3296 = vmatprep.subr.mxu0 0.0
    %3297 = vmatpush2.msra.mxu0 0.0
    %3298 = vmatprep.subr.mxu0 0.0
    %3299 = vmatpush2.msra.mxu0 0.0
    %3300 = vmatprep.subr.mxu0 0.0
    %3301 = vmatpush2.msra.mxu0 0.0
    %3302 = vmatprep.subr.mxu0 0.0
    %3303 = vmatpush2.msra.mxu0 0.0
    %3304 = vmatprep.subr.mxu0 0.0
    %3305 = vmatpush2.msra.mxu0 0.0
    %3306 = vmatprep.subr.mxu0 0.0
    %3307 = vmatpush2.msra.mxu0 0.0
    %3308 = vmatprep.subr.mxu0 0.0
    %3309 = vmatpush2.msra.mxu0 0.0
    %3310 = vmatprep.subr.mxu0 0.0
    %3311 = vmatpush2.msra.mxu0 0.0
    %3312 = vmatprep.subr.mxu0 0.0
    %3313 = vmatpush2.msra.mxu0 0.0
    %3314 = vmatprep.subr.mxu0 0.0
    %3315 = vmatpush2.msra.mxu0 0.0
    %3316 = vmatprep.subr.mxu0 0.0
    %3317 = vmatpush2.msra.mxu0 0.0
    %3318 = vmatprep.mubr.f32.mxu0 0.0
    %3319 = vmatmul.mubr.f32.gmra.mxu0 %v3181
    %v3320 = vpop.f32.mrf.mxu0
    %v3321 = vadd.f32 %v3250, %v3320
    %v3322 = vpop.f32.mrf.mxu0
    %v3323 = vadd.f32 %v3252, %v3322
    %3324 = vdwg.mxu0
    %3325 = vmatprep.subr.mxu0 0.0
    %3326 = vmatpush1.msra.mxu0 %v3096
    %3327 = vmatprep.subr.mxu0 0.0
    %3328 = vmatpush1.msra.mxu0 %v3093
    %3329 = vmatprep.subr.mxu0 0.0
    %3330 = vmatpush1.msra.mxu0 %v3090
    %3331 = vmatprep.subr.mxu0 0.0
    %3332 = vmatpush1.msra.mxu0 %v3087
    %3333 = vmatprep.subr.mxu0 0.0
    %3334 = vmatpush1.msra.mxu0 %v3084
    %3335 = vmatprep.subr.mxu0 0.0
    %3336 = vmatpush1.msra.mxu0 %v3081
    %3337 = vmatprep.subr.mxu0 0.0
    %3338 = vmatpush1.msra.mxu0 %v3078
    %3339 = vmatprep.subr.mxu0 0.0
    %3340 = vmatpush1.msra.mxu0 %v3075
    %3341 = vmatprep.subr.mxu0 0.0
    %3342 = vmatpush1.msra.mxu0 %v3072
    %3343 = vmatprep.subr.mxu0 0.0
    %3344 = vmatpush1.msra.mxu0 %v3069
    %3345 = vmatprep.subr.mxu0 0.0
    %3346 = vmatpush1.msra.mxu0 %v3066
    %3347 = vmatprep.subr.mxu0 0.0
    %3348 = vmatpush1.msra.mxu0 %v3063
    %3349 = vmatprep.subr.mxu0 0.0
    %3350 = vmatpush1.msra.mxu0 %v3060
    %3351 = vmatprep.subr.mxu0 0.0
    %3352 = vmatpush1.msra.mxu0 %v3057
    %3353 = vmatprep.subr.mxu0 0.0
    %3354 = vmatpush1.msra.mxu0 %v3054
    %3355 = vmatprep.subr.mxu0 0.0
    %3356 = vmatpush1.msra.mxu0 %v3051
    %3357 = vmatprep.subr.mxu0 0.0
    %3358 = vmatpush2.msra.mxu0 %v3144
    %3359 = vmatprep.subr.mxu0 0.0
    %3360 = vmatpush2.msra.mxu0 %v3141
    %3361 = vmatprep.subr.mxu0 0.0
    %3362 = vmatpush2.msra.mxu0 %v3138
    %3363 = vmatprep.subr.mxu0 0.0
    %3364 = vmatpush2.msra.mxu0 %v3135
    %3365 = vmatprep.subr.mxu0 0.0
    %3366 = vmatpush2.msra.mxu0 %v3132
    %3367 = vmatprep.subr.mxu0 0.0
    %3368 = vmatpush2.msra.mxu0 %v3129
    %3369 = vmatprep.subr.mxu0 0.0
    %3370 = vmatpush2.msra.mxu0 %v3126
    %3371 = vmatprep.subr.mxu0 0.0
    %3372 = vmatpush2.msra.mxu0 %v3123
    %3373 = vmatprep.subr.mxu0 0.0
    %3374 = vmatpush2.msra.mxu0 %v3120
    %3375 = vmatprep.subr.mxu0 0.0
    %3376 = vmatpush2.msra.mxu0 %v3117
    %3377 = vmatprep.subr.mxu0 0.0
    %3378 = vmatpush2.msra.mxu0 %v3114
    %3379 = vmatprep.subr.mxu0 0.0
    %3380 = vmatpush2.msra.mxu0 %v3111
    %3381 = vmatprep.subr.mxu0 0.0
    %3382 = vmatpush2.msra.mxu0 %v3108
    %3383 = vmatprep.subr.mxu0 0.0
    %3384 = vmatpush2.msra.mxu0 %v3105
    %3385 = vmatprep.subr.mxu0 0.0
    %3386 = vmatpush2.msra.mxu0 %v3102
    %3387 = vmatprep.subr.mxu0 0.0
    %3388 = vmatpush2.msra.mxu0 %v3099
    %3389 = vmatprep.mubr.f32.mxu0 %v3046
    %3390 = vmatmul.mubr.f32.gmra.mxu0 %v3045
    %v3391 = vpop.f32.mrf.mxu0
    %v3392 = vadd.f32 %v3178, %v3391
    %v3393 = vpop.f32.mrf.mxu0
    %3394 = vdwg.mxu0
    %3395 = vmatprep.subr.mxu0 0.0
    %3396 = vmatpush1.msra.mxu0 0.0
    %3397 = vmatprep.subr.mxu0 0.0
    %3398 = vmatpush1.msra.mxu0 0.0
    %3399 = vmatprep.subr.mxu0 0.0
    %3400 = vmatpush1.msra.mxu0 0.0
    %3401 = vmatprep.subr.mxu0 0.0
    %3402 = vmatpush1.msra.mxu0 0.0
    %3403 = vmatprep.subr.mxu0 0.0
    %3404 = vmatpush1.msra.mxu0 0.0
    %3405 = vmatprep.subr.mxu0 0.0
    %3406 = vmatpush1.msra.mxu0 0.0
    %3407 = vmatprep.subr.mxu0 0.0
    %3408 = vmatpush1.msra.mxu0 %v3174
    %3409 = vmatprep.subr.mxu0 0.0
    %3410 = vmatpush1.msra.mxu0 %v3171
    %3411 = vmatprep.subr.mxu0 0.0
    %3412 = vmatpush1.msra.mxu0 %v3168
    %3413 = vmatprep.subr.mxu0 0.0
    %3414 = vmatpush1.msra.mxu0 %v3165
    %3415 = vmatprep.subr.mxu0 0.0
    %3416 = vmatpush1.msra.mxu0 %v3162
    %3417 = vmatprep.subr.mxu0 0.0
    %3418 = vmatpush1.msra.mxu0 %v3159
    %3419 = vmatprep.subr.mxu0 0.0
    %3420 = vmatpush1.msra.mxu0 %v3156
    %3421 = vmatprep.subr.mxu0 0.0
    %3422 = vmatpush1.msra.mxu0 %v3153
    %3423 = vmatprep.subr.mxu0 0.0
    %3424 = vmatpush1.msra.mxu0 %v3150
    %3425 = vmatprep.subr.mxu0 0.0
    %3426 = vmatpush1.msra.mxu0 %v3147
    %3427 = vmatprep.subr.mxu0 0.0
    %3428 = vmatpush2.msra.mxu0 0.0
    %3429 = vmatprep.subr.mxu0 0.0
    %3430 = vmatpush2.msra.mxu0 0.0
    %3431 = vmatprep.subr.mxu0 0.0
    %3432 = vmatpush2.msra.mxu0 0.0
    %3433 = vmatprep.subr.mxu0 0.0
    %3434 = vmatpush2.msra.mxu0 0.0
    %3435 = vmatprep.subr.mxu0 0.0
    %3436 = vmatpush2.msra.mxu0 0.0
    %3437 = vmatprep.subr.mxu0 0.0
    %3438 = vmatpush2.msra.mxu0 0.0
    %3439 = vmatprep.subr.mxu0 0.0
    %3440 = vmatpush2.msra.mxu0 0.0
    %3441 = vmatprep.subr.mxu0 0.0
    %3442 = vmatpush2.msra.mxu0 0.0
    %3443 = vmatprep.subr.mxu0 0.0
    %3444 = vmatpush2.msra.mxu0 0.0
    %3445 = vmatprep.subr.mxu0 0.0
    %3446 = vmatpush2.msra.mxu0 0.0
    %3447 = vmatprep.subr.mxu0 0.0
    %3448 = vmatpush2.msra.mxu0 0.0
    %3449 = vmatprep.subr.mxu0 0.0
    %3450 = vmatpush2.msra.mxu0 0.0
    %3451 = vmatprep.subr.mxu0 0.0
    %3452 = vmatpush2.msra.mxu0 0.0
    %3453 = vmatprep.subr.mxu0 0.0
    %3454 = vmatpush2.msra.mxu0 0.0
    %3455 = vmatprep.subr.mxu0 0.0
    %3456 = vmatpush2.msra.mxu0 0.0
    %3457 = vmatprep.subr.mxu0 0.0
    %3458 = vmatpush2.msra.mxu0 0.0
    %3459 = vmatprep.mubr.f32.mxu0 0.0
    %3460 = vmatmul.mubr.f32.gmra.mxu0 %v3181
    %v3461 = vpop.f32.mrf.mxu0
    %v3462 = vadd.f32 %v3392, %v3461
    %v3463 = vpop.f32.mrf.mxu0
    %3464 = vdwg.mxu0
    %v3465 = vand.u32 2147483647, %v3321
    %v3466 = vand.u32 2147483647, %v3323
    %v3467 = vand.u32 2147483647, %v3462
    %3471 = vrot.lane.b32.xlu0 %v3465, 127
    %v3472 = vpop.permute.xlu0 %3471
    %3473 = vrot.lane.b32.xlu0 %v3466, 127
    %v3474 = vpop.permute.xlu0 %3473
    %3475 = vrot.lane.b32.xlu0 %v3467, 127
    %v3476 = vpop.permute.xlu0 %3475
    %v3477 = vsel %vm487, %v3472, %v3474
    %v3478 = vsel %vm487, %v3474, %v3476
    %v3482 = vmax.f32 %v3465, %v3477
    %v3483 = vmax.f32 %v3466, %v3478
    %v3484 = vmax.f32 %v3467, %v3476
    %3488 = vrot.lane.b32.xlu0 %v3482, 126
    %v3489 = vpop.permute.xlu0 %3488
    %3490 = vrot.lane.b32.xlu0 %v3483, 126
    %v3491 = vpop.permute.xlu0 %3490
    %3492 = vrot.lane.b32.xlu0 %v3484, 126
    %v3493 = vpop.permute.xlu0 %3492
    %v3494 = vsel %vm505, %v3489, %v3491
    %v3495 = vsel %vm505, %v3491, %v3493
    %v3499 = vmax.f32 %v3482, %v3494
    %v3500 = vmax.f32 %v3483, %v3495
    %v3501 = vmax.f32 %v3484, %v3493
    %3505 = vrot.lane.b32.xlu0 %v3499, 124
    %v3506 = vpop.permute.xlu0 %3505
    %3507 = vrot.lane.b32.xlu0 %v3500, 124
    %v3508 = vpop.permute.xlu0 %3507
    %3509 = vrot.lane.b32.xlu0 %v3501, 124
    %v3510 = vpop.permute.xlu0 %3509
    %v3511 = vsel %vm523, %v3506, %v3508
    %v3512 = vsel %vm523, %v3508, %v3510
    %v3516 = vmax.f32 %v3499, %v3511
    %v3517 = vmax.f32 %v3500, %v3512
    %v3518 = vmax.f32 %v3501, %v3510
    %s3519 = scalar_lea.vmem %s3, 1088
    %v3520 = vld [vmem:[%s3519] sm:$0xff]
    %v3521 = vld [vmem:[%s3519 + $0x8] sm:$0xff]
    %v3522 = vld [vmem:[%s3519 + $0x10] sm:$0xff]
    %v3523 = vld [vmem:[%s3519 + $0x18] sm:$0xff]
    %v3524 = vld [vmem:[%s3519 + $0x20] sm:$0xff]
    %v3525 = vld [vmem:[%s3519 + $0x28] sm:$0xff]
    %v3526 = vld [vmem:[%s3519 + $0x30] sm:$0xff]
    %v3527 = vld [vmem:[%s3519 + $0x38] sm:$0xff]
    %v3528 = vld [vmem:[%s3519 + $0x40] sm:$0xff]
    %v3529 = vld [vmem:[%s3519 + $0x48] sm:$0xff]
    %v3530 = vld [vmem:[%s3519 + $0x50] sm:$0xff]
    %v3531 = vld [vmem:[%s3519 + $0x58] sm:$0xff]
    %v3532 = vld [vmem:[%s3519 + $0x60] sm:$0xff]
    %v3533 = vld [vmem:[%s3519 + $0x68] sm:$0xff]
    %v3534 = vld [vmem:[%s3519 + $0x70] sm:$0xff]
    %v3535 = vld [vmem:[%s3519 + $0x78] sm:$0xff]
    %v3536 = vld [vmem:[%s3519 + $0x80] sm:$0xff]
    %v3537 = vld [vmem:[%s3519 + $0x88] sm:$0xff]
    %v3538 = vld [vmem:[%s3519 + $0x90] sm:$0xff]
    %v3539 = vld [vmem:[%s3519 + $0x98] sm:$0xff]
    %v3540 = vld [vmem:[%s3519 + $0xa0] sm:$0xff]
    %v3541 = vld [vmem:[%s3519 + $0xa8] sm:$0xff]
    %v3542 = vld [vmem:[%s3519 + $0xb0] sm:$0xff]
    %v3543 = vld [vmem:[%s3519 + $0xb8] sm:$0xff]
    %v3544 = vld [vmem:[%s3519 + $0xc0] sm:$0xff]
    %v3545 = vld [vmem:[%s3519 + $0xc8] sm:$0xff]
    %v3546 = vld [vmem:[%s3519 + $0xd0] sm:$0xff]
    %v3547 = vld [vmem:[%s3519 + $0xd8] sm:$0xff]
    %v3548 = vld [vmem:[%s3519 + $0xe0] sm:$0xff]
    %v3549 = vld [vmem:[%s3519 + $0xe8] sm:$0xff]
    %v3550 = vld [vmem:[%s3519 + $0xf0] sm:$0xff]
    %v3551 = vld [vmem:[%s3519 + $0xf8] sm:$0xff]
    %v3552 = vld [vmem:[%s3519 + $0x100] sm:$0xff]
    %v3553 = vld [vmem:[%s3519 + $0x108] sm:$0x3]
    %v3555 = vsel %vm566, %v3518, 0
    %v3558 = vsel %vm570, %v3553, 0
    %3560 = vmatprep.subr.mxu0 0.0
    %3561 = vmatpush1.msra.mxu0 %v3535
    %3562 = vmatprep.subr.mxu0 0.0
    %3563 = vmatpush1.msra.mxu0 %v3534
    %3564 = vmatprep.subr.mxu0 0.0
    %3565 = vmatpush1.msra.mxu0 %v3533
    %3566 = vmatprep.subr.mxu0 0.0
    %3567 = vmatpush1.msra.mxu0 %v3532
    %3568 = vmatprep.subr.mxu0 0.0
    %3569 = vmatpush1.msra.mxu0 %v3531
    %3570 = vmatprep.subr.mxu0 0.0
    %3571 = vmatpush1.msra.mxu0 %v3530
    %3572 = vmatprep.subr.mxu0 0.0
    %3573 = vmatpush1.msra.mxu0 %v3529
    %3574 = vmatprep.subr.mxu0 0.0
    %3575 = vmatpush1.msra.mxu0 %v3528
    %3576 = vmatprep.subr.mxu0 0.0
    %3577 = vmatpush1.msra.mxu0 %v3527
    %3578 = vmatprep.subr.mxu0 0.0
    %3579 = vmatpush1.msra.mxu0 %v3526
    %3580 = vmatprep.subr.mxu0 0.0
    %3581 = vmatpush1.msra.mxu0 %v3525
    %3582 = vmatprep.subr.mxu0 0.0
    %3583 = vmatpush1.msra.mxu0 %v3524
    %3584 = vmatprep.subr.mxu0 0.0
    %3585 = vmatpush1.msra.mxu0 %v3523
    %3586 = vmatprep.subr.mxu0 0.0
    %3587 = vmatpush1.msra.mxu0 %v3522
    %3588 = vmatprep.subr.mxu0 0.0
    %3589 = vmatpush1.msra.mxu0 %v3521
    %3590 = vmatprep.subr.mxu0 0.0
    %3591 = vmatpush1.msra.mxu0 %v3520
    %3592 = vmatprep.subr.mxu0 0.0
    %3593 = vmatpush2.msra.mxu0 %v3551
    %3594 = vmatprep.subr.mxu0 0.0
    %3595 = vmatpush2.msra.mxu0 %v3550
    %3596 = vmatprep.subr.mxu0 0.0
    %3597 = vmatpush2.msra.mxu0 %v3549
    %3598 = vmatprep.subr.mxu0 0.0
    %3599 = vmatpush2.msra.mxu0 %v3548
    %3600 = vmatprep.subr.mxu0 0.0
    %3601 = vmatpush2.msra.mxu0 %v3547
    %3602 = vmatprep.subr.mxu0 0.0
    %3603 = vmatpush2.msra.mxu0 %v3546
    %3604 = vmatprep.subr.mxu0 0.0
    %3605 = vmatpush2.msra.mxu0 %v3545
    %3606 = vmatprep.subr.mxu0 0.0
    %3607 = vmatpush2.msra.mxu0 %v3544
    %3608 = vmatprep.subr.mxu0 0.0
    %3609 = vmatpush2.msra.mxu0 %v3543
    %3610 = vmatprep.subr.mxu0 0.0
    %3611 = vmatpush2.msra.mxu0 %v3542
    %3612 = vmatprep.subr.mxu0 0.0
    %3613 = vmatpush2.msra.mxu0 %v3541
    %3614 = vmatprep.subr.mxu0 0.0
    %3615 = vmatpush2.msra.mxu0 %v3540
    %3616 = vmatprep.subr.mxu0 0.0
    %3617 = vmatpush2.msra.mxu0 %v3539
    %3618 = vmatprep.subr.mxu0 0.0
    %3619 = vmatpush2.msra.mxu0 %v3538
    %3620 = vmatprep.subr.mxu0 0.0
    %3621 = vmatpush2.msra.mxu0 %v3537
    %3622 = vmatprep.subr.mxu0 0.0
    %3623 = vmatpush2.msra.mxu0 %v3536
    %3624 = vmatprep.mubr.f32.mxu0 %v3517
    %3625 = vmatmul.mubr.f32.gmra.mxu0 %v3516
    %v3626 = vpop.f32.mrf.mxu0
    %v3627 = vadd.f32 0.0, %v3626
    %v3628 = vpop.f32.mrf.mxu0
    %3629 = vdwg.mxu0
    %3630 = vmatprep.subr.mxu0 0.0
    %3631 = vmatpush1.msra.mxu0 0.0
    %3632 = vmatprep.subr.mxu0 0.0
    %3633 = vmatpush1.msra.mxu0 0.0
    %3634 = vmatprep.subr.mxu0 0.0
    %3635 = vmatpush1.msra.mxu0 0.0
    %3636 = vmatprep.subr.mxu0 0.0
    %3637 = vmatpush1.msra.mxu0 0.0
    %3638 = vmatprep.subr.mxu0 0.0
    %3639 = vmatpush1.msra.mxu0 0.0
    %3640 = vmatprep.subr.mxu0 0.0
    %3641 = vmatpush1.msra.mxu0 0.0
    %3642 = vmatprep.subr.mxu0 0.0
    %3643 = vmatpush1.msra.mxu0 0.0
    %3644 = vmatprep.subr.mxu0 0.0
    %3645 = vmatpush1.msra.mxu0 0.0
    %3646 = vmatprep.subr.mxu0 0.0
    %3647 = vmatpush1.msra.mxu0 0.0
    %3648 = vmatprep.subr.mxu0 0.0
    %3649 = vmatpush1.msra.mxu0 0.0
    %3650 = vmatprep.subr.mxu0 0.0
    %3651 = vmatpush1.msra.mxu0 0.0
    %3652 = vmatprep.subr.mxu0 0.0
    %3653 = vmatpush1.msra.mxu0 0.0
    %3654 = vmatprep.subr.mxu0 0.0
    %3655 = vmatpush1.msra.mxu0 0.0
    %3656 = vmatprep.subr.mxu0 0.0
    %3657 = vmatpush1.msra.mxu0 0.0
    %3658 = vmatprep.subr.mxu0 0.0
    %3659 = vmatpush1.msra.mxu0 %v3558
    %3660 = vmatprep.subr.mxu0 0.0
    %3661 = vmatpush1.msra.mxu0 %v3552
    %3662 = vmatprep.subr.mxu0 0.0
    %3663 = vmatpush2.msra.mxu0 0.0
    %3664 = vmatprep.subr.mxu0 0.0
    %3665 = vmatpush2.msra.mxu0 0.0
    %3666 = vmatprep.subr.mxu0 0.0
    %3667 = vmatpush2.msra.mxu0 0.0
    %3668 = vmatprep.subr.mxu0 0.0
    %3669 = vmatpush2.msra.mxu0 0.0
    %3670 = vmatprep.subr.mxu0 0.0
    %3671 = vmatpush2.msra.mxu0 0.0
    %3672 = vmatprep.subr.mxu0 0.0
    %3673 = vmatpush2.msra.mxu0 0.0
    %3674 = vmatprep.subr.mxu0 0.0
    %3675 = vmatpush2.msra.mxu0 0.0
    %3676 = vmatprep.subr.mxu0 0.0
    %3677 = vmatpush2.msra.mxu0 0.0
    %3678 = vmatprep.subr.mxu0 0.0
    %3679 = vmatpush2.msra.mxu0 0.0
    %3680 = vmatprep.subr.mxu0 0.0
    %3681 = vmatpush2.msra.mxu0 0.0
    %3682 = vmatprep.subr.mxu0 0.0
    %3683 = vmatpush2.msra.mxu0 0.0
    %3684 = vmatprep.subr.mxu0 0.0
    %3685 = vmatpush2.msra.mxu0 0.0
    %3686 = vmatprep.subr.mxu0 0.0
    %3687 = vmatpush2.msra.mxu0 0.0
    %3688 = vmatprep.subr.mxu0 0.0
    %3689 = vmatpush2.msra.mxu0 0.0
    %3690 = vmatprep.subr.mxu0 0.0
    %3691 = vmatpush2.msra.mxu0 0.0
    %3692 = vmatprep.subr.mxu0 0.0
    %3693 = vmatpush2.msra.mxu0 0.0
    %3694 = vmatprep.mubr.f32.mxu0 0.0
    %3695 = vmatmul.mubr.f32.gmra.mxu0 %v3555
    %v3696 = vpop.f32.mrf.mxu0
    %v3697 = vadd.f32 %v3627, %v3696
    %v3698 = vpop.f32.mrf.mxu0
    %3699 = vdwg.mxu0
    %v3700 = vmax.f32 %v3697, 0.0
    %s3701 = scalar_lea.vmem %s4, 96
    %v3702 = vld [vmem:[%s3701] sm:$0xff]
    %v3703 = vld [vmem:[%s3701 + $0x8] sm:$0xff]
    %v3704 = vld [vmem:[%s3701 + $0x10] sm:$0xf]
    %v3706 = vsel %vm1390, %v3700, 0
    %v3709 = vsel %vm1394, %v3704, 0
    %3711 = vmatprep.subr.mxu0 0.0
    %3712 = vmatpush1.msra.mxu0 0.0
    %3713 = vmatprep.subr.mxu0 0.0
    %3714 = vmatpush1.msra.mxu0 0.0
    %3715 = vmatprep.subr.mxu0 0.0
    %3716 = vmatpush1.msra.mxu0 0.0
    %3717 = vmatprep.subr.mxu0 0.0
    %3718 = vmatpush1.msra.mxu0 0.0
    %3719 = vmatprep.subr.mxu0 0.0
    %3720 = vmatpush1.msra.mxu0 0.0
    %3721 = vmatprep.subr.mxu0 0.0
    %3722 = vmatpush1.msra.mxu0 0.0
    %3723 = vmatprep.subr.mxu0 0.0
    %3724 = vmatpush1.msra.mxu0 0.0
    %3725 = vmatprep.subr.mxu0 0.0
    %3726 = vmatpush1.msra.mxu0 0.0
    %3727 = vmatprep.subr.mxu0 0.0
    %3728 = vmatpush1.msra.mxu0 0.0
    %3729 = vmatprep.subr.mxu0 0.0
    %3730 = vmatpush1.msra.mxu0 0.0
    %3731 = vmatprep.subr.mxu0 0.0
    %3732 = vmatpush1.msra.mxu0 0.0
    %3733 = vmatprep.subr.mxu0 0.0
    %3734 = vmatpush1.msra.mxu0 0.0
    %3735 = vmatprep.subr.mxu0 0.0
    %3736 = vmatpush1.msra.mxu0 0.0
    %3737 = vmatprep.subr.mxu0 0.0
    %3738 = vmatpush1.msra.mxu0 %v3709
    %3739 = vmatprep.subr.mxu0 0.0
    %3740 = vmatpush1.msra.mxu0 %v3703
    %3741 = vmatprep.subr.mxu0 0.0
    %3742 = vmatpush1.msra.mxu0 %v3702
    %3743 = vmatprep.subr.mxu0 0.0
    %3744 = vmatpush2.msra.mxu0 0.0
    %3745 = vmatprep.subr.mxu0 0.0
    %3746 = vmatpush2.msra.mxu0 0.0
    %3747 = vmatprep.subr.mxu0 0.0
    %3748 = vmatpush2.msra.mxu0 0.0
    %3749 = vmatprep.subr.mxu0 0.0
    %3750 = vmatpush2.msra.mxu0 0.0
    %3751 = vmatprep.subr.mxu0 0.0
    %3752 = vmatpush2.msra.mxu0 0.0
    %3753 = vmatprep.subr.mxu0 0.0
    %3754 = vmatpush2.msra.mxu0 0.0
    %3755 = vmatprep.subr.mxu0 0.0
    %3756 = vmatpush2.msra.mxu0 0.0
    %3757 = vmatprep.subr.mxu0 0.0
    %3758 = vmatpush2.msra.mxu0 0.0
    %3759 = vmatprep.subr.mxu0 0.0
    %3760 = vmatpush2.msra.mxu0 0.0
    %3761 = vmatprep.subr.mxu0 0.0
    %3762 = vmatpush2.msra.mxu0 0.0
    %3763 = vmatprep.subr.mxu0 0.0
    %3764 = vmatpush2.msra.mxu0 0.0
    %3765 = vmatprep.subr.mxu0 0.0
    %3766 = vmatpush2.msra.mxu0 0.0
    %3767 = vmatprep.subr.mxu0 0.0
    %3768 = vmatpush2.msra.mxu0 0.0
    %3769 = vmatprep.subr.mxu0 0.0
    %3770 = vmatpush2.msra.mxu0 0.0
    %3771 = vmatprep.subr.mxu0 0.0
    %3772 = vmatpush2.msra.mxu0 0.0
    %3773 = vmatprep.subr.mxu0 0.0
    %3774 = vmatpush2.msra.mxu0 0.0
    %3775 = vmatprep.mubr.f32.mxu0 0.0
    %3776 = vmatmul.mubr.f32.gmra.mxu0 %v3706
    %v3777 = vpop.f32.mrf.mxu0
    %v3778 = vadd.f32 0.0, %v3777
    %v3779 = vpop.f32.mrf.mxu0
    %3780 = vdwg.mxu0
    %v3781 = vadd.f32 %v3044, %v3778
    %v3782 = vld [vmem:[%s5] sm:$0x1]
    %v3784 = vlaneseq
    %v3785 = vshrl.u32 %v3784, 7
    %v3786 = vsub.s32 0, %v3785
    %v3787 = vrot.slane %v3782, %v3786
    %v3789 = vadd.f32 %v3781, %v3787
    %v3790 = vsub.f32 0.0, %v3789
    %v3791 = vmul.f32 %v3790, 1.442695
    %v3792 = vpow.pop %v3791
    %v3793 = vadd.f32 %v3792, 1.0
    %v3794 = vrcp.pop %v3793
    %v3795 = vmul.f32 1.0, %v3794
    %v3797 = vrot.slane %v3795, 7
    %3798 = vrot.lane.b32.xlu0 %v3797, 123
    %v3799 = vpop.permute.xlu0 %3798
    %v3801 = vrot.slane %v3795, 6
    %3802 = vrot.lane.b32.xlu0 %v3801, 118
    %v3803 = vpop.permute.xlu0 %3802
    %v3805 = vrot.slane %v3795, 5
    %3806 = vrot.lane.b32.xlu0 %v3805, 113
    %v3807 = vpop.permute.xlu0 %3806
    %v3809 = vrot.slane %v3795, 4
    %3810 = vrot.lane.b32.xlu0 %v3809, 108
    %v3811 = vpop.permute.xlu0 %3810
    %v3813 = vsel %vm54, %v3795, %v3799
    %v3814 = vsel %vm570, %v3813, %v3803
    %vm3815 = vcmask 1042432
    %v3816 = vsel %vm3815, %v3814, %v3807
    %v3817 = vsel %vm1394, %v3816, %v3811
    %v3818 = vlaneseq
    %v3819 = vshrl.u32 %v3818, 7
    %v3820 = vlaneseq
    %v3821 = vand.u32 %v3820, 127
    %vm3822 = vcmp.eq.s32.totalorder %v3819, %v3821
    %v3823 = vsel %vm3822, 1.0, 0.0
    %vm3824 = vcmp.ge.s32.totalorder %v3819, 0
    %v3825 = vand.u32 2147483647, %v3817
    %v3826 = vsel %vm3824, %v3825, -1.0
    %v3827 = vcvt.s32.f32 %v3819
    %v3828 = vmul.f32 %v3827, 1e-06
    %v3829 = vsub.f32 1.0, %v3828
    %v3830 = vmul.f32 %v3826, %v3829
    %vm3831 = vcmask 4096
    %v3832 = vsel %vm3831, %v3830, -inf
    %v3833 = vrot.slane %v3832, 4
    %v3834 = vmax.f32 %v3832, %v3833
    %v3835 = vrot.slane %v3834, 2
    %v3836 = vmax.f32 %v3834, %v3835
    %v3837 = vrot.slane %v3836, 1
    %v3838 = vmax.f32 %v3836, %v3837
    %vm3839 = vcmp.ge.f32.partialorder %v3830, %v3838
    %v3840 = vsel %vm3839, 1, 0
    %v3841 = vcvt.s32.f32 %v3840
    %3843 = vset.pattern.permute.xlu0 0
    %3844 = vperm.xlu0 %3843, %v3841
    %v3845 = vpop.permute.xlu0 %3844
    %v3847 = vmul.f32 %v3845, %v3817
    %vm3848 = vcmask 36864
    %v3849 = vsel %vm3848, %v3847, 0.0
    %v3850 = vrot.slane %v3849, 4
    %v3851 = vadd.f32 %v3849, %v3850
    %v3852 = vrot.slane %v3851, 2
    %v3853 = vadd.f32 %v3851, %v3852
    %v3854 = vrot.slane %v3853, 1
    %v3855 = vadd.f32 %v3853, %v3854
    %v3856 = vmul.f32 %v3845, %v3823
    %v3857 = vsel %vm3848, %v3856, 0.0
    %v3858 = vrot.slane %v3857, 4
    %v3859 = vadd.f32 %v3857, %v3858
    %v3860 = vrot.slane %v3859, 2
    %v3861 = vadd.f32 %v3859, %v3860
    %v3862 = vrot.slane %v3861, 1
    %v3863 = vadd.f32 %v3861, %v3862
    %vm3864 = vcmp.eq.s32.totalorder %v3819, 0
    %vm3865 = vcmp.gt.f32.partialorder %v3841, 0.5
    %v3866 = vsel %vm3865, 1, 0
    %3867 = vset.pattern.permute.xlu0 0
    %3868 = vperm.xlu0 %3867, %v3866
    %v3869 = vpop.permute.xlu0 %3868
    %vm3870 = vcmp.eq.s32.totalorder %v3869, 1
    %v3871 = vlaneseq
    %v3872 = vshrl.u32 %v3871, 7
    %v3873 = vsub.s32 0, %v3872
    %v3874 = vrot.slane %v3817, %v3873
    %v3875 = vsel %vm3870, %v3874, %v3817
    %v3876 = vsel %vm3864, 1, 0
    %vm3877 = vcmp.eq.s32.totalorder %v3876, 1
    %v3878 = vsel %vm3877, %v3855, %v3875
    %v3879 = vlaneseq
    %v3880 = vshrl.u32 %v3879, 7
    %v3881 = vsub.s32 0, %v3880
    %v3882 = vrot.slane %v3823, %v3881
    %v3883 = vsel %vm3870, %v3882, %v3823
    %v3884 = vsel %vm3877, %v3863, %v3883
    %v3885 = vrcp.pop %v3878
    %v3886 = vmul.f32 1.0, %v3885
    %v3887 = vsub.f32 1.0, %v3886
    %v3888 = vlaneseq
    %v3889 = vshrl.u32 %v3888, 7
    %v3890 = vsub.s32 0, %v3889
    %v3891 = vrot.slane %v3886, %v3890
    %v3892 = vmul.f32 %v3878, %v3891
    %v3893 = vlaneseq
    %v3894 = vshrl.u32 %v3893, 7
    %v3895 = vsub.s32 0, %v3894
    %v3896 = vrot.slane %v3887, %v3895
    %v3897 = vsel %vm3864, %v3896, %v3892
    %3899 = vset.pattern.permute.xlu0 0
    %3900 = vperm.xlu0 %3899, %v3897
    %v3901 = vpop.permute.xlu0 %3900
    %v3903 = vlaneseq
    %v3904 = vshrl.u32 %v3903, 7
    %v3905 = vsub.s32 0, %v3904
    %v3906 = vrot.slane %v3878, %v3905
    %v3907 = vmul.f32 %v3901, %v3906
    %v3908 = vsub.f32 %v3878, %v3907
    %v3909 = vlaneseq
    %v3910 = vshrl.u32 %v3909, 7
    %v3911 = vsub.s32 0, %v3910
    %v3912 = vrot.slane %v3884, %v3911
    %v3913 = vmul.f32 %v3901, %v3912
    %v3914 = vsub.f32 %v3884, %v3913
    %vm3915 = vcmp.ge.s32.totalorder %v3819, 1
    %v3916 = vand.u32 2147483647, %v3908
    %v3917 = vsel %vm3915, %v3916, -1.0
    %v3918 = vmul.f32 %v3917, %v3829
    %vm3919 = vcmask 12296
    %v3920 = vsel %vm3919, %v3918, -inf
    %v3921 = vrot.slane %v3920, 4
    %v3922 = vmax.f32 %v3920, %v3921
    %v3923 = vrot.slane %v3922, 2
    %v3924 = vmax.f32 %v3922, %v3923
    %v3925 = vrot.slane %v3924, 1
    %v3926 = vmax.f32 %v3924, %v3925
    %vm3927 = vcmp.ge.f32.partialorder %v3918, %v3926
    %v3928 = vsel %vm3927, 1, 0
    %v3929 = vcvt.s32.f32 %v3928
    %3931 = vset.pattern.permute.xlu0 1
    %3932 = vperm.xlu0 %3931, %v3929
    %v3933 = vpop.permute.xlu0 %3932
    %v3935 = vmul.f32 %v3933, %v3908
    %v3936 = vsel %vm3848, %v3935, 0.0
    %v3937 = vrot.slane %v3936, 4
    %v3938 = vadd.f32 %v3936, %v3937
    %v3939 = vrot.slane %v3938, 2
    %v3940 = vadd.f32 %v3938, %v3939
    %v3941 = vrot.slane %v3940, 1
    %v3942 = vadd.f32 %v3940, %v3941
    %v3943 = vmul.f32 %v3933, %v3914
    %v3944 = vsel %vm3848, %v3943, 0.0
    %v3945 = vrot.slane %v3944, 4
    %v3946 = vadd.f32 %v3944, %v3945
    %v3947 = vrot.slane %v3946, 2
    %v3948 = vadd.f32 %v3946, %v3947
    %v3949 = vrot.slane %v3948, 1
    %v3950 = vadd.f32 %v3948, %v3949
    %vm3951 = vcmp.eq.s32.totalorder %v3819, 1
    %vm3952 = vcmp.gt.f32.partialorder %v3929, 0.5
    %v3953 = vsel %vm3952, 1, 0
    %3954 = vset.pattern.permute.xlu0 1
    %3955 = vperm.xlu0 %3954, %v3953
    %v3956 = vpop.permute.xlu0 %3955
    %vm3957 = vcmp.eq.s32.totalorder %v3956, 1
    %v3958 = vlaneseq
    %v3959 = vshrl.u32 %v3958, 7
    %v3960 = vsub.s32 1, %v3959
    %v3961 = vrot.slane %v3908, %v3960
    %v3962 = vsel %vm3957, %v3961, %v3908
    %v3963 = vsel %vm3951, 1, 0
    %vm3964 = vcmp.eq.s32.totalorder %v3963, 1
    %v3965 = vsel %vm3964, %v3942, %v3962
    %v3966 = vlaneseq
    %v3967 = vshrl.u32 %v3966, 7
    %v3968 = vsub.s32 1, %v3967
    %v3969 = vrot.slane %v3914, %v3968
    %v3970 = vsel %vm3957, %v3969, %v3914
    %v3971 = vsel %vm3964, %v3950, %v3970
    %v3972 = vrcp.pop %v3965
    %v3973 = vmul.f32 1.0, %v3972
    %v3974 = vsub.f32 1.0, %v3973
    %v3975 = vlaneseq
    %v3976 = vshrl.u32 %v3975, 7
    %v3977 = vsub.s32 1, %v3976
    %v3978 = vrot.slane %v3973, %v3977
    %v3979 = vmul.f32 %v3965, %v3978
    %v3980 = vlaneseq
    %v3981 = vshrl.u32 %v3980, 7
    %v3982 = vsub.s32 1, %v3981
    %v3983 = vrot.slane %v3974, %v3982
    %v3984 = vsel %vm3951, %v3983, %v3979
    %3986 = vset.pattern.permute.xlu0 1
    %3987 = vperm.xlu0 %3986, %v3984
    %v3988 = vpop.permute.xlu0 %3987
    %v3990 = vlaneseq
    %v3991 = vshrl.u32 %v3990, 7
    %v3992 = vsub.s32 1, %v3991
    %v3993 = vrot.slane %v3965, %v3992
    %v3994 = vmul.f32 %v3988, %v3993
    %v3995 = vsub.f32 %v3965, %v3994
    %v3996 = vlaneseq
    %v3997 = vshrl.u32 %v3996, 7
    %v3998 = vsub.s32 1, %v3997
    %v3999 = vrot.slane %v3971, %v3998
    %v4000 = vmul.f32 %v3988, %v3999
    %v4001 = vsub.f32 %v3971, %v4000
    %vm4002 = vcmp.ge.s32.totalorder %v3819, 2
    %v4003 = vand.u32 2147483647, %v3995
    %v4004 = vsel %vm4002, %v4003, -1.0
    %v4005 = vmul.f32 %v4004, %v3829
    %vm4006 = vcmask 20496
    %v4007 = vsel %vm4006, %v4005, -inf
    %v4008 = vrot.slane %v4007, 4
    %v4009 = vmax.f32 %v4007, %v4008
    %v4010 = vrot.slane %v4009, 2
    %v4011 = vmax.f32 %v4009, %v4010
    %v4012 = vrot.slane %v4011, 1
    %v4013 = vmax.f32 %v4011, %v4012
    %vm4014 = vcmp.ge.f32.partialorder %v4005, %v4013
    %v4015 = vsel %vm4014, 1, 0
    %v4016 = vcvt.s32.f32 %v4015
    %4018 = vset.pattern.permute.xlu0 2
    %4019 = vperm.xlu0 %4018, %v4016
    %v4020 = vpop.permute.xlu0 %4019
    %v4022 = vmul.f32 %v4020, %v3995
    %v4023 = vsel %vm3848, %v4022, 0.0
    %v4024 = vrot.slane %v4023, 4
    %v4025 = vadd.f32 %v4023, %v4024
    %v4026 = vrot.slane %v4025, 2
    %v4027 = vadd.f32 %v4025, %v4026
    %v4028 = vrot.slane %v4027, 1
    %v4029 = vadd.f32 %v4027, %v4028
    %v4030 = vmul.f32 %v4020, %v4001
    %v4031 = vsel %vm3848, %v4030, 0.0
    %v4032 = vrot.slane %v4031, 4
    %v4033 = vadd.f32 %v4031, %v4032
    %v4034 = vrot.slane %v4033, 2
    %v4035 = vadd.f32 %v4033, %v4034
    %v4036 = vrot.slane %v4035, 1
    %v4037 = vadd.f32 %v4035, %v4036
    %vm4038 = vcmp.eq.s32.totalorder %v3819, 2
    %vm4039 = vcmp.gt.f32.partialorder %v4016, 0.5
    %v4040 = vsel %vm4039, 1, 0
    %4041 = vset.pattern.permute.xlu0 2
    %4042 = vperm.xlu0 %4041, %v4040
    %v4043 = vpop.permute.xlu0 %4042
    %vm4044 = vcmp.eq.s32.totalorder %v4043, 1
    %v4045 = vlaneseq
    %v4046 = vshrl.u32 %v4045, 7
    %v4047 = vsub.s32 2, %v4046
    %v4048 = vrot.slane %v3995, %v4047
    %v4049 = vsel %vm4044, %v4048, %v3995
    %v4050 = vsel %vm4038, 1, 0
    %vm4051 = vcmp.eq.s32.totalorder %v4050, 1
    %v4052 = vsel %vm4051, %v4029, %v4049
    %v4053 = vlaneseq
    %v4054 = vshrl.u32 %v4053, 7
    %v4055 = vsub.s32 2, %v4054
    %v4056 = vrot.slane %v4001, %v4055
    %v4057 = vsel %vm4044, %v4056, %v4001
    %v4058 = vsel %vm4051, %v4037, %v4057
    %v4059 = vrcp.pop %v4052
    %v4060 = vmul.f32 1.0, %v4059
    %v4061 = vsub.f32 1.0, %v4060
    %v4062 = vlaneseq
    %v4063 = vshrl.u32 %v4062, 7
    %v4064 = vsub.s32 2, %v4063
    %v4065 = vrot.slane %v4060, %v4064
    %v4066 = vmul.f32 %v4052, %v4065
    %v4067 = vlaneseq
    %v4068 = vshrl.u32 %v4067, 7
    %v4069 = vsub.s32 2, %v4068
    %v4070 = vrot.slane %v4061, %v4069
    %v4071 = vsel %vm4038, %v4070, %v4066
    %4073 = vset.pattern.permute.xlu0 2
    %4074 = vperm.xlu0 %4073, %v4071
    %v4075 = vpop.permute.xlu0 %4074
    %v4077 = vlaneseq
    %v4078 = vshrl.u32 %v4077, 7
    %v4079 = vsub.s32 2, %v4078
    %v4080 = vrot.slane %v4052, %v4079
    %v4081 = vmul.f32 %v4075, %v4080
    %v4082 = vsub.f32 %v4052, %v4081
    %v4083 = vlaneseq
    %v4084 = vshrl.u32 %v4083, 7
    %v4085 = vsub.s32 2, %v4084
    %v4086 = vrot.slane %v4058, %v4085
    %v4087 = vmul.f32 %v4075, %v4086
    %v4088 = vsub.f32 %v4058, %v4087
    %vm4089 = vcmp.ge.s32.totalorder %v3819, 3
    %v4090 = vand.u32 2147483647, %v4082
    %v4091 = vsel %vm4089, %v4090, -1.0
    %v4092 = vmul.f32 %v4091, %v3829
    %vm4093 = vcmask 28696
    %v4094 = vsel %vm4093, %v4092, -inf
    %v4095 = vrot.slane %v4094, 4
    %v4096 = vmax.f32 %v4094, %v4095
    %v4097 = vrot.slane %v4096, 2
    %v4098 = vmax.f32 %v4096, %v4097
    %v4099 = vrot.slane %v4098, 1
    %v4100 = vmax.f32 %v4098, %v4099
    %vm4101 = vcmp.ge.f32.partialorder %v4092, %v4100
    %v4102 = vsel %vm4101, 1, 0
    %v4103 = vcvt.s32.f32 %v4102
    %4105 = vset.pattern.permute.xlu0 3
    %4106 = vperm.xlu0 %4105, %v4103
    %v4107 = vpop.permute.xlu0 %4106
    %v4109 = vmul.f32 %v4107, %v4082
    %v4110 = vsel %vm3848, %v4109, 0.0
    %v4111 = vrot.slane %v4110, 4
    %v4112 = vadd.f32 %v4110, %v4111
    %v4113 = vrot.slane %v4112, 2
    %v4114 = vadd.f32 %v4112, %v4113
    %v4115 = vrot.slane %v4114, 1
    %v4116 = vadd.f32 %v4114, %v4115
    %v4117 = vmul.f32 %v4107, %v4088
    %v4118 = vsel %vm3848, %v4117, 0.0
    %v4119 = vrot.slane %v4118, 4
    %v4120 = vadd.f32 %v4118, %v4119
    %v4121 = vrot.slane %v4120, 2
    %v4122 = vadd.f32 %v4120, %v4121
    %v4123 = vrot.slane %v4122, 1
    %v4124 = vadd.f32 %v4122, %v4123
    %vm4125 = vcmp.eq.s32.totalorder %v3819, 3
    %vm4126 = vcmp.gt.f32.partialorder %v4103, 0.5
    %v4127 = vsel %vm4126, 1, 0
    %4128 = vset.pattern.permute.xlu0 3
    %4129 = vperm.xlu0 %4128, %v4127
    %v4130 = vpop.permute.xlu0 %4129
    %vm4131 = vcmp.eq.s32.totalorder %v4130, 1
    %v4132 = vlaneseq
    %v4133 = vshrl.u32 %v4132, 7
    %v4134 = vsub.s32 3, %v4133
    %v4135 = vrot.slane %v4082, %v4134
    %v4136 = vsel %vm4131, %v4135, %v4082
    %v4137 = vsel %vm4125, 1, 0
    %vm4138 = vcmp.eq.s32.totalorder %v4137, 1
    %v4139 = vsel %vm4138, %v4116, %v4136
    %v4140 = vlaneseq
    %v4141 = vshrl.u32 %v4140, 7
    %v4142 = vsub.s32 3, %v4141
    %v4143 = vrot.slane %v4088, %v4142
    %v4144 = vsel %vm4131, %v4143, %v4088
    %v4145 = vsel %vm4138, %v4124, %v4144
    %v4146 = vrcp.pop %v4139
    %v4147 = vmul.f32 1.0, %v4146
    %v4148 = vsub.f32 1.0, %v4147
    %v4149 = vlaneseq
    %v4150 = vshrl.u32 %v4149, 7
    %v4151 = vsub.s32 3, %v4150
    %v4152 = vrot.slane %v4147, %v4151
    %v4153 = vmul.f32 %v4139, %v4152
    %v4154 = vlaneseq
    %v4155 = vshrl.u32 %v4154, 7
    %v4156 = vsub.s32 3, %v4155
    %v4157 = vrot.slane %v4148, %v4156
    %v4158 = vsel %vm4125, %v4157, %v4153
    %4160 = vset.pattern.permute.xlu0 3
    %4161 = vperm.xlu0 %4160, %v4158
    %v4162 = vpop.permute.xlu0 %4161
    %v4164 = vlaneseq
    %v4165 = vshrl.u32 %v4164, 7
    %v4166 = vsub.s32 3, %v4165
    %v4167 = vrot.slane %v4139, %v4166
    %v4168 = vmul.f32 %v4162, %v4167
    %v4169 = vsub.f32 %v4139, %v4168
    %v4170 = vlaneseq
    %v4171 = vshrl.u32 %v4170, 7
    %v4172 = vsub.s32 3, %v4171
    %v4173 = vrot.slane %v4145, %v4172
    %v4174 = vmul.f32 %v4162, %v4173
    %v4175 = vsub.f32 %v4145, %v4174
    %vm4176 = vcmp.ge.s32.totalorder %v3819, 4
    %v4177 = vand.u32 2147483647, %v4169
    %v4178 = vsel %vm4176, %v4177, -1.0
    %v4179 = vmul.f32 %v4178, %v3829
    %vm4180 = vcmask 36896
    %v4181 = vsel %vm4180, %v4179, -inf
    %v4182 = vrot.slane %v4181, 4
    %v4183 = vmax.f32 %v4181, %v4182
    %v4184 = vrot.slane %v4183, 2
    %v4185 = vmax.f32 %v4183, %v4184
    %v4186 = vrot.slane %v4185, 1
    %v4187 = vmax.f32 %v4185, %v4186
    %vm4188 = vcmp.ge.f32.partialorder %v4179, %v4187
    %v4189 = vsel %vm4188, 1, 0
    %v4190 = vcvt.s32.f32 %v4189
    %4192 = vset.pattern.permute.xlu0 4
    %4193 = vperm.xlu0 %4192, %v4190
    %v4194 = vpop.permute.xlu0 %4193
    %v4196 = vmul.f32 %v4194, %v4169
    %v4197 = vsel %vm3848, %v4196, 0.0
    %v4198 = vrot.slane %v4197, 4
    %v4199 = vadd.f32 %v4197, %v4198
    %v4200 = vrot.slane %v4199, 2
    %v4201 = vadd.f32 %v4199, %v4200
    %v4202 = vrot.slane %v4201, 1
    %v4203 = vadd.f32 %v4201, %v4202
    %v4204 = vmul.f32 %v4194, %v4175
    %v4205 = vsel %vm3848, %v4204, 0.0
    %v4206 = vrot.slane %v4205, 4
    %v4207 = vadd.f32 %v4205, %v4206
    %v4208 = vrot.slane %v4207, 2
    %v4209 = vadd.f32 %v4207, %v4208
    %v4210 = vrot.slane %v4209, 1
    %v4211 = vadd.f32 %v4209, %v4210
    %vm4212 = vcmp.eq.s32.totalorder %v3819, 4
    %vm4213 = vcmp.gt.f32.partialorder %v4190, 0.5
    %v4214 = vsel %vm4213, 1, 0
    %4215 = vset.pattern.permute.xlu0 4
    %4216 = vperm.xlu0 %4215, %v4214
    %v4217 = vpop.permute.xlu0 %4216
    %vm4218 = vcmp.eq.s32.totalorder %v4217, 1
    %v4219 = vlaneseq
    %v4220 = vshrl.u32 %v4219, 7
    %v4221 = vsub.s32 4, %v4220
    %v4222 = vrot.slane %v4169, %v4221
    %v4223 = vsel %vm4218, %v4222, %v4169
    %v4224 = vsel %vm4212, 1, 0
    %vm4225 = vcmp.eq.s32.totalorder %v4224, 1
    %v4226 = vsel %vm4225, %v4203, %v4223
    %v4227 = vlaneseq
    %v4228 = vshrl.u32 %v4227, 7
    %v4229 = vsub.s32 4, %v4228
    %v4230 = vrot.slane %v4175, %v4229
    %v4231 = vsel %vm4218, %v4230, %v4175
    %v4232 = vsel %vm4225, %v4211, %v4231
    %v4233 = vrcp.pop %v4226
    %v4234 = vmul.f32 1.0, %v4233
    %v4235 = vsub.f32 1.0, %v4234
    %v4236 = vlaneseq
    %v4237 = vshrl.u32 %v4236, 7
    %v4238 = vsub.s32 4, %v4237
    %v4239 = vrot.slane %v4234, %v4238
    %v4240 = vmul.f32 %v4226, %v4239
    %v4241 = vlaneseq
    %v4242 = vshrl.u32 %v4241, 7
    %v4243 = vsub.s32 4, %v4242
    %v4244 = vrot.slane %v4235, %v4243
    %v4245 = vsel %vm4212, %v4244, %v4240
    %4247 = vset.pattern.permute.xlu0 4
    %4248 = vperm.xlu0 %4247, %v4245
    %v4249 = vpop.permute.xlu0 %4248
    %v4251 = vlaneseq
    %v4252 = vshrl.u32 %v4251, 7
    %v4253 = vsub.s32 4, %v4252
    %v4254 = vrot.slane %v4232, %v4253
    %v4255 = vmul.f32 %v4249, %v4254
    %v4256 = vsub.f32 %v4232, %v4255
    %4258 = vset.pattern.permute.xlu0 0
    %4259 = vperm.xlu0 %4258, %v4256
    %v4260 = vpop.permute.xlu0 %4259
    %v4262 = vlaneseq
    %v4263 = vshrl.u32 %v4262, 7
    %v4264 = vsub.s32 0, %v4263
    %v4265 = vrot.slane %v39, %v4264
    %v4266 = vlaneseq
    %v4267 = vshrl.u32 %v4266, 7
    %v4268 = vsub.s32 0, %v4267
    %v4269 = vrot.slane %v40, %v4268
    %v4270 = vlaneseq
    %v4271 = vshrl.u32 %v4270, 7
    %v4272 = vsub.s32 0, %v4271
    %v4273 = vrot.slane %v41, %v4272
    %v4274 = vmul.f32 %v4260, %v4265
    %v4275 = vmul.f32 %v4260, %v4269
    %v4276 = vmul.f32 %v4260, %v4273
    %4277 = vset.pattern.permute.xlu0 1
    %4278 = vperm.xlu0 %4277, %v4256
    %v4279 = vpop.permute.xlu0 %4278
    %v4281 = vlaneseq
    %v4282 = vshrl.u32 %v4281, 7
    %v4283 = vsub.s32 1, %v4282
    %v4284 = vrot.slane %v39, %v4283
    %v4285 = vlaneseq
    %v4286 = vshrl.u32 %v4285, 7
    %v4287 = vsub.s32 1, %v4286
    %v4288 = vrot.slane %v40, %v4287
    %v4289 = vlaneseq
    %v4290 = vshrl.u32 %v4289, 7
    %v4291 = vsub.s32 1, %v4290
    %v4292 = vrot.slane %v41, %v4291
    %v4293 = vmul.f32 %v4279, %v4284
    %v4294 = vmul.f32 %v4279, %v4288
    %v4295 = vmul.f32 %v4279, %v4292
    %4296 = vset.pattern.permute.xlu0 2
    %4297 = vperm.xlu0 %4296, %v4256
    %v4298 = vpop.permute.xlu0 %4297
    %v4300 = vlaneseq
    %v4301 = vshrl.u32 %v4300, 7
    %v4302 = vsub.s32 2, %v4301
    %v4303 = vrot.slane %v39, %v4302
    %v4304 = vlaneseq
    %v4305 = vshrl.u32 %v4304, 7
    %v4306 = vsub.s32 2, %v4305
    %v4307 = vrot.slane %v40, %v4306
    %v4308 = vlaneseq
    %v4309 = vshrl.u32 %v4308, 7
    %v4310 = vsub.s32 2, %v4309
    %v4311 = vrot.slane %v41, %v4310
    %v4312 = vmul.f32 %v4298, %v4303
    %v4313 = vmul.f32 %v4298, %v4307
    %v4314 = vmul.f32 %v4298, %v4311
    %4315 = vset.pattern.permute.xlu0 3
    %4316 = vperm.xlu0 %4315, %v4256
    %v4317 = vpop.permute.xlu0 %4316
    %v4319 = vlaneseq
    %v4320 = vshrl.u32 %v4319, 7
    %v4321 = vsub.s32 3, %v4320
    %v4322 = vrot.slane %v39, %v4321
    %v4323 = vlaneseq
    %v4324 = vshrl.u32 %v4323, 7
    %v4325 = vsub.s32 3, %v4324
    %v4326 = vrot.slane %v40, %v4325
    %v4327 = vlaneseq
    %v4328 = vshrl.u32 %v4327, 7
    %v4329 = vsub.s32 3, %v4328
    %v4330 = vrot.slane %v41, %v4329
    %v4331 = vmul.f32 %v4317, %v4322
    %v4332 = vmul.f32 %v4317, %v4326
    %v4333 = vmul.f32 %v4317, %v4330
    %4334 = vset.pattern.permute.xlu0 4
    %4335 = vperm.xlu0 %4334, %v4256
    %v4336 = vpop.permute.xlu0 %4335
    %v4338 = vlaneseq
    %v4339 = vshrl.u32 %v4338, 7
    %v4340 = vsub.s32 4, %v4339
    %v4341 = vrot.slane %v39, %v4340
    %v4342 = vlaneseq
    %v4343 = vshrl.u32 %v4342, 7
    %v4344 = vsub.s32 4, %v4343
    %v4345 = vrot.slane %v40, %v4344
    %v4346 = vlaneseq
    %v4347 = vshrl.u32 %v4346, 7
    %v4348 = vsub.s32 4, %v4347
    %v4349 = vrot.slane %v41, %v4348
    %v4350 = vmul.f32 %v4336, %v4341
    %v4351 = vmul.f32 %v4336, %v4345
    %v4352 = vmul.f32 %v4336, %v4349
    %v4353 = vadd.f32 %v4274, %v4293
    %v4354 = vadd.f32 %v4275, %v4294
    %v4355 = vadd.f32 %v4276, %v4295
    %v4356 = vadd.f32 %v4312, %v4331
    %v4357 = vadd.f32 %v4313, %v4332
    %v4358 = vadd.f32 %v4314, %v4333
    %v4359 = vadd.f32 %v4353, %v4356
    %v4360 = vadd.f32 %v4354, %v4357
    %v4361 = vadd.f32 %v4355, %v4358
    %v4362 = vadd.f32 %v4359, %v4350
    %v4363 = vadd.f32 %v4360, %v4351
    %v4364 = vadd.f32 %v4361, %v4352
    %v4365 = vrot.slane %v3795, 1
    %4367 = vrot.lane.b32.xlu0 %v3795, 123
    %v4368 = vpop.permute.xlu0 %4367
    %4370 = vrot.lane.b32.xlu0 %v3797, 118
    %v4371 = vpop.permute.xlu0 %4370
    %4373 = vrot.lane.b32.xlu0 %v3801, 113
    %v4374 = vpop.permute.xlu0 %4373
    %4376 = vrot.lane.b32.xlu0 %v3805, 108
    %v4377 = vpop.permute.xlu0 %4376
    %v4379 = vsel %vm54, %v4365, %v4368
    %v4380 = vsel %vm570, %v4379, %v4371
    %v4381 = vsel %vm3815, %v4380, %v4374
    %v4382 = vsel %vm1394, %v4381, %v4377
    %v4383 = vand.u32 2147483647, %v4382
    %v4384 = vsel %vm3824, %v4383, -1.0
    %v4385 = vmul.f32 %v4384, %v3829
    %v4386 = vsel %vm3831, %v4385, -inf
    %v4387 = vrot.slane %v4386, 4
    %v4388 = vmax.f32 %v4386, %v4387
    %v4389 = vrot.slane %v4388, 2
    %v4390 = vmax.f32 %v4388, %v4389
    %v4391 = vrot.slane %v4390, 1
    %v4392 = vmax.f32 %v4390, %v4391
    %vm4393 = vcmp.ge.f32.partialorder %v4385, %v4392
    %v4394 = vsel %vm4393, 1, 0
    %v4395 = vcvt.s32.f32 %v4394
    %4397 = vset.pattern.permute.xlu0 0
    %4398 = vperm.xlu0 %4397, %v4395
    %v4399 = vpop.permute.xlu0 %4398
    %v4401 = vmul.f32 %v4399, %v4382
    %v4402 = vsel %vm3848, %v4401, 0.0
    %v4403 = vrot.slane %v4402, 4
    %v4404 = vadd.f32 %v4402, %v4403
    %v4405 = vrot.slane %v4404, 2
    %v4406 = vadd.f32 %v4404, %v4405
    %v4407 = vrot.slane %v4406, 1
    %v4408 = vadd.f32 %v4406, %v4407
    %v4409 = vmul.f32 %v4399, %v3823
    %v4410 = vsel %vm3848, %v4409, 0.0
    %v4411 = vrot.slane %v4410, 4
    %v4412 = vadd.f32 %v4410, %v4411
    %v4413 = vrot.slane %v4412, 2
    %v4414 = vadd.f32 %v4412, %v4413
    %v4415 = vrot.slane %v4414, 1
    %v4416 = vadd.f32 %v4414, %v4415
    %vm4417 = vcmp.gt.f32.partialorder %v4395, 0.5
    %v4418 = vsel %vm4417, 1, 0
    %4419 = vset.pattern.permute.xlu0 0
    %4420 = vperm.xlu0 %4419, %v4418
    %v4421 = vpop.permute.xlu0 %4420
    %vm4422 = vcmp.eq.s32.totalorder %v4421, 1
    %v4423 = vlaneseq
    %v4424 = vshrl.u32 %v4423, 7
    %v4425 = vsub.s32 0, %v4424
    %v4426 = vrot.slane %v4382, %v4425
    %v4427 = vsel %vm4422, %v4426, %v4382
    %v4428 = vsel %vm3877, %v4408, %v4427
    %v4429 = vsel %vm4422, %v3882, %v3823
    %v4430 = vsel %vm3877, %v4416, %v4429
    %v4431 = vrcp.pop %v4428
    %v4432 = vmul.f32 1.0, %v4431
    %v4433 = vsub.f32 1.0, %v4432
    %v4434 = vlaneseq
    %v4435 = vshrl.u32 %v4434, 7
    %v4436 = vsub.s32 0, %v4435
    %v4437 = vrot.slane %v4432, %v4436
    %v4438 = vmul.f32 %v4428, %v4437
    %v4439 = vlaneseq
    %v4440 = vshrl.u32 %v4439, 7
    %v4441 = vsub.s32 0, %v4440
    %v4442 = vrot.slane %v4433, %v4441
    %v4443 = vsel %vm3864, %v4442, %v4438
    %4445 = vset.pattern.permute.xlu0 0
    %4446 = vperm.xlu0 %4445, %v4443
    %v4447 = vpop.permute.xlu0 %4446
    %v4449 = vlaneseq
    %v4450 = vshrl.u32 %v4449, 7
    %v4451 = vsub.s32 0, %v4450
    %v4452 = vrot.slane %v4428, %v4451
    %v4453 = vmul.f32 %v4447, %v4452
    %v4454 = vsub.f32 %v4428, %v4453
    %v4455 = vlaneseq
    %v4456 = vshrl.u32 %v4455, 7
    %v4457 = vsub.s32 0, %v4456
    %v4458 = vrot.slane %v4430, %v4457
    %v4459 = vmul.f32 %v4447, %v4458
    %v4460 = vsub.f32 %v4430, %v4459
    %v4461 = vand.u32 2147483647, %v4454
    %v4462 = vsel %vm3915, %v4461, -1.0
    %v4463 = vmul.f32 %v4462, %v3829
    %v4464 = vsel %vm3919, %v4463, -inf
    %v4465 = vrot.slane %v4464, 4
    %v4466 = vmax.f32 %v4464, %v4465
    %v4467 = vrot.slane %v4466, 2
    %v4468 = vmax.f32 %v4466, %v4467
    %v4469 = vrot.slane %v4468, 1
    %v4470 = vmax.f32 %v4468, %v4469
    %vm4471 = vcmp.ge.f32.partialorder %v4463, %v4470
    %v4472 = vsel %vm4471, 1, 0
    %v4473 = vcvt.s32.f32 %v4472
    %4475 = vset.pattern.permute.xlu0 1
    %4476 = vperm.xlu0 %4475, %v4473
    %v4477 = vpop.permute.xlu0 %4476
    %v4479 = vmul.f32 %v4477, %v4454
    %v4480 = vsel %vm3848, %v4479, 0.0
    %v4481 = vrot.slane %v4480, 4
    %v4482 = vadd.f32 %v4480, %v4481
    %v4483 = vrot.slane %v4482, 2
    %v4484 = vadd.f32 %v4482, %v4483
    %v4485 = vrot.slane %v4484, 1
    %v4486 = vadd.f32 %v4484, %v4485
    %v4487 = vmul.f32 %v4477, %v4460
    %v4488 = vsel %vm3848, %v4487, 0.0
    %v4489 = vrot.slane %v4488, 4
    %v4490 = vadd.f32 %v4488, %v4489
    %v4491 = vrot.slane %v4490, 2
    %v4492 = vadd.f32 %v4490, %v4491
    %v4493 = vrot.slane %v4492, 1
    %v4494 = vadd.f32 %v4492, %v4493
    %vm4495 = vcmp.gt.f32.partialorder %v4473, 0.5
    %v4496 = vsel %vm4495, 1, 0
    %4497 = vset.pattern.permute.xlu0 1
    %4498 = vperm.xlu0 %4497, %v4496
    %v4499 = vpop.permute.xlu0 %4498
    %vm4500 = vcmp.eq.s32.totalorder %v4499, 1
    %v4501 = vlaneseq
    %v4502 = vshrl.u32 %v4501, 7
    %v4503 = vsub.s32 1, %v4502
    %v4504 = vrot.slane %v4454, %v4503
    %v4505 = vsel %vm4500, %v4504, %v4454
    %v4506 = vsel %vm3964, %v4486, %v4505
    %v4507 = vlaneseq
    %v4508 = vshrl.u32 %v4507, 7
    %v4509 = vsub.s32 1, %v4508
    %v4510 = vrot.slane %v4460, %v4509
    %v4511 = vsel %vm4500, %v4510, %v4460
    %v4512 = vsel %vm3964, %v4494, %v4511
    %v4513 = vrcp.pop %v4506
    %v4514 = vmul.f32 1.0, %v4513
    %v4515 = vsub.f32 1.0, %v4514
    %v4516 = vlaneseq
    %v4517 = vshrl.u32 %v4516, 7
    %v4518 = vsub.s32 1, %v4517
    %v4519 = vrot.slane %v4514, %v4518
    %v4520 = vmul.f32 %v4506, %v4519
    %v4521 = vlaneseq
    %v4522 = vshrl.u32 %v4521, 7
    %v4523 = vsub.s32 1, %v4522
    %v4524 = vrot.slane %v4515, %v4523
    %v4525 = vsel %vm3951, %v4524, %v4520
    %4527 = vset.pattern.permute.xlu0 1
    %4528 = vperm.xlu0 %4527, %v4525
    %v4529 = vpop.permute.xlu0 %4528
    %v4531 = vlaneseq
    %v4532 = vshrl.u32 %v4531, 7
    %v4533 = vsub.s32 1, %v4532
    %v4534 = vrot.slane %v4506, %v4533
    %v4535 = vmul.f32 %v4529, %v4534
    %v4536 = vsub.f32 %v4506, %v4535
    %v4537 = vlaneseq
    %v4538 = vshrl.u32 %v4537, 7
    %v4539 = vsub.s32 1, %v4538
    %v4540 = vrot.slane %v4512, %v4539
    %v4541 = vmul.f32 %v4529, %v4540
    %v4542 = vsub.f32 %v4512, %v4541
    %v4543 = vand.u32 2147483647, %v4536
    %v4544 = vsel %vm4002, %v4543, -1.0
    %v4545 = vmul.f32 %v4544, %v3829
    %v4546 = vsel %vm4006, %v4545, -inf
    %v4547 = vrot.slane %v4546, 4
    %v4548 = vmax.f32 %v4546, %v4547
    %v4549 = vrot.slane %v4548, 2
    %v4550 = vmax.f32 %v4548, %v4549
    %v4551 = vrot.slane %v4550, 1
    %v4552 = vmax.f32 %v4550, %v4551
    %vm4553 = vcmp.ge.f32.partialorder %v4545, %v4552
    %v4554 = vsel %vm4553, 1, 0
    %v4555 = vcvt.s32.f32 %v4554
    %4557 = vset.pattern.permute.xlu0 2
    %4558 = vperm.xlu0 %4557, %v4555
    %v4559 = vpop.permute.xlu0 %4558
    %v4561 = vmul.f32 %v4559, %v4536
    %v4562 = vsel %vm3848, %v4561, 0.0
    %v4563 = vrot.slane %v4562, 4
    %v4564 = vadd.f32 %v4562, %v4563
    %v4565 = vrot.slane %v4564, 2
    %v4566 = vadd.f32 %v4564, %v4565
    %v4567 = vrot.slane %v4566, 1
    %v4568 = vadd.f32 %v4566, %v4567
    %v4569 = vmul.f32 %v4559, %v4542
    %v4570 = vsel %vm3848, %v4569, 0.0
    %v4571 = vrot.slane %v4570, 4
    %v4572 = vadd.f32 %v4570, %v4571
    %v4573 = vrot.slane %v4572, 2
    %v4574 = vadd.f32 %v4572, %v4573
    %v4575 = vrot.slane %v4574, 1
    %v4576 = vadd.f32 %v4574, %v4575
    %vm4577 = vcmp.gt.f32.partialorder %v4555, 0.5
    %v4578 = vsel %vm4577, 1, 0
    %4579 = vset.pattern.permute.xlu0 2
    %4580 = vperm.xlu0 %4579, %v4578
    %v4581 = vpop.permute.xlu0 %4580
    %vm4582 = vcmp.eq.s32.totalorder %v4581, 1
    %v4583 = vlaneseq
    %v4584 = vshrl.u32 %v4583, 7
    %v4585 = vsub.s32 2, %v4584
    %v4586 = vrot.slane %v4536, %v4585
    %v4587 = vsel %vm4582, %v4586, %v4536
    %v4588 = vsel %vm4051, %v4568, %v4587
    %v4589 = vlaneseq
    %v4590 = vshrl.u32 %v4589, 7
    %v4591 = vsub.s32 2, %v4590
    %v4592 = vrot.slane %v4542, %v4591
    %v4593 = vsel %vm4582, %v4592, %v4542
    %v4594 = vsel %vm4051, %v4576, %v4593
    %v4595 = vrcp.pop %v4588
    %v4596 = vmul.f32 1.0, %v4595
    %v4597 = vsub.f32 1.0, %v4596
    %v4598 = vlaneseq
    %v4599 = vshrl.u32 %v4598, 7
    %v4600 = vsub.s32 2, %v4599
    %v4601 = vrot.slane %v4596, %v4600
    %v4602 = vmul.f32 %v4588, %v4601
    %v4603 = vlaneseq
    %v4604 = vshrl.u32 %v4603, 7
    %v4605 = vsub.s32 2, %v4604
    %v4606 = vrot.slane %v4597, %v4605
    %v4607 = vsel %vm4038, %v4606, %v4602
    %4609 = vset.pattern.permute.xlu0 2
    %4610 = vperm.xlu0 %4609, %v4607
    %v4611 = vpop.permute.xlu0 %4610
    %v4613 = vlaneseq
    %v4614 = vshrl.u32 %v4613, 7
    %v4615 = vsub.s32 2, %v4614
    %v4616 = vrot.slane %v4588, %v4615
    %v4617 = vmul.f32 %v4611, %v4616
    %v4618 = vsub.f32 %v4588, %v4617
    %v4619 = vlaneseq
    %v4620 = vshrl.u32 %v4619, 7
    %v4621 = vsub.s32 2, %v4620
    %v4622 = vrot.slane %v4594, %v4621
    %v4623 = vmul.f32 %v4611, %v4622
    %v4624 = vsub.f32 %v4594, %v4623
    %v4625 = vand.u32 2147483647, %v4618
    %v4626 = vsel %vm4089, %v4625, -1.0
    %v4627 = vmul.f32 %v4626, %v3829
    %v4628 = vsel %vm4093, %v4627, -inf
    %v4629 = vrot.slane %v4628, 4
    %v4630 = vmax.f32 %v4628, %v4629
    %v4631 = vrot.slane %v4630, 2
    %v4632 = vmax.f32 %v4630, %v4631
    %v4633 = vrot.slane %v4632, 1
    %v4634 = vmax.f32 %v4632, %v4633
    %vm4635 = vcmp.ge.f32.partialorder %v4627, %v4634
    %v4636 = vsel %vm4635, 1, 0
    %v4637 = vcvt.s32.f32 %v4636
    %4639 = vset.pattern.permute.xlu0 3
    %4640 = vperm.xlu0 %4639, %v4637
    %v4641 = vpop.permute.xlu0 %4640
    %v4643 = vmul.f32 %v4641, %v4618
    %v4644 = vsel %vm3848, %v4643, 0.0
    %v4645 = vrot.slane %v4644, 4
    %v4646 = vadd.f32 %v4644, %v4645
    %v4647 = vrot.slane %v4646, 2
    %v4648 = vadd.f32 %v4646, %v4647
    %v4649 = vrot.slane %v4648, 1
    %v4650 = vadd.f32 %v4648, %v4649
    %v4651 = vmul.f32 %v4641, %v4624
    %v4652 = vsel %vm3848, %v4651, 0.0
    %v4653 = vrot.slane %v4652, 4
    %v4654 = vadd.f32 %v4652, %v4653
    %v4655 = vrot.slane %v4654, 2
    %v4656 = vadd.f32 %v4654, %v4655
    %v4657 = vrot.slane %v4656, 1
    %v4658 = vadd.f32 %v4656, %v4657
    %vm4659 = vcmp.gt.f32.partialorder %v4637, 0.5
    %v4660 = vsel %vm4659, 1, 0
    %4661 = vset.pattern.permute.xlu0 3
    %4662 = vperm.xlu0 %4661, %v4660
    %v4663 = vpop.permute.xlu0 %4662
    %vm4664 = vcmp.eq.s32.totalorder %v4663, 1
    %v4665 = vlaneseq
    %v4666 = vshrl.u32 %v4665, 7
    %v4667 = vsub.s32 3, %v4666
    %v4668 = vrot.slane %v4618, %v4667
    %v4669 = vsel %vm4664, %v4668, %v4618
    %v4670 = vsel %vm4138, %v4650, %v4669
    %v4671 = vlaneseq
    %v4672 = vshrl.u32 %v4671, 7
    %v4673 = vsub.s32 3, %v4672
    %v4674 = vrot.slane %v4624, %v4673
    %v4675 = vsel %vm4664, %v4674, %v4624
    %v4676 = vsel %vm4138, %v4658, %v4675
    %v4677 = vrcp.pop %v4670
    %v4678 = vmul.f32 1.0, %v4677
    %v4679 = vsub.f32 1.0, %v4678
    %v4680 = vlaneseq
    %v4681 = vshrl.u32 %v4680, 7
    %v4682 = vsub.s32 3, %v4681
    %v4683 = vrot.slane %v4678, %v4682
    %v4684 = vmul.f32 %v4670, %v4683
    %v4685 = vlaneseq
    %v4686 = vshrl.u32 %v4685, 7
    %v4687 = vsub.s32 3, %v4686
    %v4688 = vrot.slane %v4679, %v4687
    %v4689 = vsel %vm4125, %v4688, %v4684
    %4691 = vset.pattern.permute.xlu0 3
    %4692 = vperm.xlu0 %4691, %v4689
    %v4693 = vpop.permute.xlu0 %4692
    %v4695 = vlaneseq
    %v4696 = vshrl.u32 %v4695, 7
    %v4697 = vsub.s32 3, %v4696
    %v4698 = vrot.slane %v4670, %v4697
    %v4699 = vmul.f32 %v4693, %v4698
    %v4700 = vsub.f32 %v4670, %v4699
    %v4701 = vlaneseq
    %v4702 = vshrl.u32 %v4701, 7
    %v4703 = vsub.s32 3, %v4702
    %v4704 = vrot.slane %v4676, %v4703
    %v4705 = vmul.f32 %v4693, %v4704
    %v4706 = vsub.f32 %v4676, %v4705
    %v4707 = vand.u32 2147483647, %v4700
    %v4708 = vsel %vm4176, %v4707, -1.0
    %v4709 = vmul.f32 %v4708, %v3829
    %v4710 = vsel %vm4180, %v4709, -inf
    %v4711 = vrot.slane %v4710, 4
    %v4712 = vmax.f32 %v4710, %v4711
    %v4713 = vrot.slane %v4712, 2
    %v4714 = vmax.f32 %v4712, %v4713
    %v4715 = vrot.slane %v4714, 1
    %v4716 = vmax.f32 %v4714, %v4715
    %vm4717 = vcmp.ge.f32.partialorder %v4709, %v4716
    %v4718 = vsel %vm4717, 1, 0
    %v4719 = vcvt.s32.f32 %v4718
    %4721 = vset.pattern.permute.xlu0 4
    %4722 = vperm.xlu0 %4721, %v4719
    %v4723 = vpop.permute.xlu0 %4722
    %v4725 = vmul.f32 %v4723, %v4700
    %v4726 = vsel %vm3848, %v4725, 0.0
    %v4727 = vrot.slane %v4726, 4
    %v4728 = vadd.f32 %v4726, %v4727
    %v4729 = vrot.slane %v4728, 2
    %v4730 = vadd.f32 %v4728, %v4729
    %v4731 = vrot.slane %v4730, 1
    %v4732 = vadd.f32 %v4730, %v4731
    %v4733 = vmul.f32 %v4723, %v4706
    %v4734 = vsel %vm3848, %v4733, 0.0
    %v4735 = vrot.slane %v4734, 4
    %v4736 = vadd.f32 %v4734, %v4735
    %v4737 = vrot.slane %v4736, 2
    %v4738 = vadd.f32 %v4736, %v4737
    %v4739 = vrot.slane %v4738, 1
    %v4740 = vadd.f32 %v4738, %v4739
    %vm4741 = vcmp.gt.f32.partialorder %v4719, 0.5
    %v4742 = vsel %vm4741, 1, 0
    %4743 = vset.pattern.permute.xlu0 4
    %4744 = vperm.xlu0 %4743, %v4742
    %v4745 = vpop.permute.xlu0 %4744
    %vm4746 = vcmp.eq.s32.totalorder %v4745, 1
    %v4747 = vlaneseq
    %v4748 = vshrl.u32 %v4747, 7
    %v4749 = vsub.s32 4, %v4748
    %v4750 = vrot.slane %v4700, %v4749
    %v4751 = vsel %vm4746, %v4750, %v4700
    %v4752 = vsel %vm4225, %v4732, %v4751
    %v4753 = vlaneseq
    %v4754 = vshrl.u32 %v4753, 7
    %v4755 = vsub.s32 4, %v4754
    %v4756 = vrot.slane %v4706, %v4755
    %v4757 = vsel %vm4746, %v4756, %v4706
    %v4758 = vsel %vm4225, %v4740, %v4757
    %v4759 = vrcp.pop %v4752
    %v4760 = vmul.f32 1.0, %v4759
    %v4761 = vsub.f32 1.0, %v4760
    %v4762 = vlaneseq
    %v4763 = vshrl.u32 %v4762, 7
    %v4764 = vsub.s32 4, %v4763
    %v4765 = vrot.slane %v4760, %v4764
    %v4766 = vmul.f32 %v4752, %v4765
    %v4767 = vlaneseq
    %v4768 = vshrl.u32 %v4767, 7
    %v4769 = vsub.s32 4, %v4768
    %v4770 = vrot.slane %v4761, %v4769
    %v4771 = vsel %vm4212, %v4770, %v4766
    %4773 = vset.pattern.permute.xlu0 4
    %4774 = vperm.xlu0 %4773, %v4771
    %v4775 = vpop.permute.xlu0 %4774
    %v4777 = vlaneseq
    %v4778 = vshrl.u32 %v4777, 7
    %v4779 = vsub.s32 4, %v4778
    %v4780 = vrot.slane %v4758, %v4779
    %v4781 = vmul.f32 %v4775, %v4780
    %v4782 = vsub.f32 %v4758, %v4781
    %4784 = vset.pattern.permute.xlu0 0
    %4785 = vperm.xlu0 %4784, %v4782
    %v4786 = vpop.permute.xlu0 %4785
    %v4788 = vlaneseq
    %v4789 = vshrl.u32 %v4788, 7
    %v4790 = vsub.s32 5, %v4789
    %v4791 = vrot.slane %v39, %v4790
    %v4792 = vlaneseq
    %v4793 = vshrl.u32 %v4792, 7
    %v4794 = vsub.s32 5, %v4793
    %v4795 = vrot.slane %v40, %v4794
    %v4796 = vlaneseq
    %v4797 = vshrl.u32 %v4796, 7
    %v4798 = vsub.s32 5, %v4797
    %v4799 = vrot.slane %v41, %v4798
    %v4800 = vmul.f32 %v4786, %v4791
    %v4801 = vmul.f32 %v4786, %v4795
    %v4802 = vmul.f32 %v4786, %v4799
    %4803 = vset.pattern.permute.xlu0 1
    %4804 = vperm.xlu0 %4803, %v4782
    %v4805 = vpop.permute.xlu0 %4804
    %v4807 = vlaneseq
    %v4808 = vshrl.u32 %v4807, 7
    %v4809 = vsub.s32 6, %v4808
    %v4810 = vrot.slane %v39, %v4809
    %v4811 = vlaneseq
    %v4812 = vshrl.u32 %v4811, 7
    %v4813 = vsub.s32 6, %v4812
    %v4814 = vrot.slane %v40, %v4813
    %v4815 = vlaneseq
    %v4816 = vshrl.u32 %v4815, 7
    %v4817 = vsub.s32 6, %v4816
    %v4818 = vrot.slane %v41, %v4817
    %v4819 = vmul.f32 %v4805, %v4810
    %v4820 = vmul.f32 %v4805, %v4814
    %v4821 = vmul.f32 %v4805, %v4818
    %4822 = vset.pattern.permute.xlu0 2
    %4823 = vperm.xlu0 %4822, %v4782
    %v4824 = vpop.permute.xlu0 %4823
    %v4826 = vlaneseq
    %v4827 = vshrl.u32 %v4826, 7
    %v4828 = vsub.s32 7, %v4827
    %v4829 = vrot.slane %v39, %v4828
    %v4830 = vlaneseq
    %v4831 = vshrl.u32 %v4830, 7
    %v4832 = vsub.s32 7, %v4831
    %v4833 = vrot.slane %v40, %v4832
    %v4834 = vlaneseq
    %v4835 = vshrl.u32 %v4834, 7
    %v4836 = vsub.s32 7, %v4835
    %v4837 = vrot.slane %v41, %v4836
    %v4838 = vmul.f32 %v4824, %v4829
    %v4839 = vmul.f32 %v4824, %v4833
    %v4840 = vmul.f32 %v4824, %v4837
    %4841 = vset.pattern.permute.xlu0 3
    %4842 = vperm.xlu0 %4841, %v4782
    %v4843 = vpop.permute.xlu0 %4842
    %v4845 = vlaneseq
    %v4846 = vshrl.u32 %v4845, 7
    %v4847 = vsub.s32 0, %v4846
    %v4848 = vrot.slane %v42, %v4847
    %v4849 = vlaneseq
    %v4850 = vshrl.u32 %v4849, 7
    %v4851 = vsub.s32 0, %v4850
    %v4852 = vrot.slane %v43, %v4851
    %v4853 = vlaneseq
    %v4854 = vshrl.u32 %v4853, 7
    %v4855 = vsub.s32 0, %v4854
    %v4856 = vrot.slane %v44, %v4855
    %v4857 = vmul.f32 %v4843, %v4848
    %v4858 = vmul.f32 %v4843, %v4852
    %v4859 = vmul.f32 %v4843, %v4856
    %4860 = vset.pattern.permute.xlu0 4
    %4861 = vperm.xlu0 %4860, %v4782
    %v4862 = vpop.permute.xlu0 %4861
    %v4864 = vlaneseq
    %v4865 = vshrl.u32 %v4864, 7
    %v4866 = vsub.s32 1, %v4865
    %v4867 = vrot.slane %v42, %v4866
    %v4868 = vlaneseq
    %v4869 = vshrl.u32 %v4868, 7
    %v4870 = vsub.s32 1, %v4869
    %v4871 = vrot.slane %v43, %v4870
    %v4872 = vlaneseq
    %v4873 = vshrl.u32 %v4872, 7
    %v4874 = vsub.s32 1, %v4873
    %v4875 = vrot.slane %v44, %v4874
    %v4876 = vmul.f32 %v4862, %v4867
    %v4877 = vmul.f32 %v4862, %v4871
    %v4878 = vmul.f32 %v4862, %v4875
    %v4879 = vadd.f32 %v4800, %v4819
    %v4880 = vadd.f32 %v4801, %v4820
    %v4881 = vadd.f32 %v4802, %v4821
    %v4882 = vadd.f32 %v4838, %v4857
    %v4883 = vadd.f32 %v4839, %v4858
    %v4884 = vadd.f32 %v4840, %v4859
    %v4885 = vadd.f32 %v4879, %v4882
    %v4886 = vadd.f32 %v4880, %v4883
    %v4887 = vadd.f32 %v4881, %v4884
    %v4888 = vadd.f32 %v4885, %v4876
    %v4889 = vadd.f32 %v4886, %v4877
    %v4890 = vadd.f32 %v4887, %v4878
    %v4894 = vrot.slane %v4888, 7
    %v4895 = vrot.slane %v4889, 7
    %v4896 = vrot.slane %v4890, 7
    %v4903 = vrot.slane %v4362, 7
    %v4904 = vrot.slane %v4363, 7
    %v4905 = vrot.slane %v4364, 7
    %v4909 = vrot.slane %v4888, 6
    %v4910 = vrot.slane %v4889, 6
    %v4911 = vrot.slane %v4890, 6
    %v4915 = vrot.slane %v4362, 6
    %v4916 = vrot.slane %v4363, 6
    %v4917 = vrot.slane %v4364, 6
    %v4921 = vrot.slane %v4888, 5
    %v4922 = vrot.slane %v4889, 5
    %v4923 = vrot.slane %v4890, 5
    %v4927 = vrot.slane %v4362, 5
    %v4928 = vrot.slane %v4363, 5
    %v4929 = vrot.slane %v4364, 5
    %v4933 = vrot.slane %v4888, 4
    %v4934 = vrot.slane %v4889, 4
    %v4935 = vrot.slane %v4890, 4
    %v4939 = vrot.slane %v4362, 4
    %v4940 = vrot.slane %v4363, 4
    %v4941 = vrot.slane %v4364, 4
    %v4945 = vrot.slane %v4888, 3
    %v4946 = vrot.slane %v4889, 3
    %v4947 = vrot.slane %v4890, 3
    %v4951 = vsel %vm54, %v4362, %v4894
    %v4952 = vsel %vm54, %v4363, %v4895
    %v4953 = vsel %vm54, %v4364, %v4896
    %v4954 = vsel %vm570, %v4951, %v4903
    %v4955 = vsel %vm570, %v4952, %v4904
    %v4956 = vsel %vm570, %v4953, %v4905
    %v4957 = vsel %vm3815, %v4954, %v4909
    %v4958 = vsel %vm3815, %v4955, %v4910
    %v4959 = vsel %vm3815, %v4956, %v4911
    %v4960 = vsel %vm1394, %v4957, %v4915
    %v4961 = vsel %vm1394, %v4958, %v4916
    %v4962 = vsel %vm1394, %v4959, %v4917
    %vm4963 = vcmask 1044480
    %v4964 = vsel %vm4963, %v4960, %v4921
    %v4965 = vsel %vm4963, %v4961, %v4922
    %v4966 = vsel %vm4963, %v4962, %v4923
    %vm4967 = vcmask 1045504
    %v4968 = vsel %vm4967, %v4964, %v4927
    %v4969 = vsel %vm4967, %v4965, %v4928
    %v4970 = vsel %vm4967, %v4966, %v4929
    %vm4971 = vcmask 1046528
    %v4972 = vsel %vm4971, %v4968, %v4933
    %v4973 = vsel %vm4971, %v4969, %v4934
    %v4974 = vsel %vm4971, %v4970, %v4935
    %v4975 = vsel %vm54, %v4939, %v4945
    %v4976 = vsel %vm54, %v4940, %v4946
    %v4977 = vsel %vm54, %v4941, %v4947
    %4981 = vrot.lane.b32.xlu0 %v4972, 48
    %v4982 = vpop.permute.xlu0 %4981
    %4983 = vrot.lane.b32.xlu0 %v4973, 48
    %v4984 = vpop.permute.xlu0 %4983
    %4985 = vrot.lane.b32.xlu0 %v4974, 48
    %v4986 = vpop.permute.xlu0 %4985
    %vm4987 = vcmask 392192
    %v4988 = vsel %vm4987, %v4982, %v4984
    %v4989 = vsel %vm4987, %v4984, %v4986
    %v4992 = vsel %vm570, %v4988, 0.0
    %v4993 = vsel %vm570, %v4989, 0.0
    %v4994 = vadd.f32 %v4992, %v4993
    %4995 = vadd.xlane.f32.xlu0 %v4994
    %v4996 = vpop.xlane.xlu0 %4995
    %v4997 = vsel %vm570, %v4996, 0.0
    %v4998 = vrot.slane %v4997, 4
    %v4999 = vadd.f32 %v4997, %v4998
    %v5000 = vrot.slane %v4999, 2
    %v5001 = vadd.f32 %v4999, %v5000
    %v5002 = vrot.slane %v5001, 1
    %v5003 = vadd.f32 %v5001, %v5002
    %v5004 = vmul.f32 %v5003, 0.001953125
    %v5005 = vsub.f32 %v4972, %v5004
    %v5006 = vsub.f32 %v4973, %v5004
    %v5007 = vsub.f32 %v4974, %v5004
    %v5008 = vmul.f32 %v5005, %v5005
    %v5009 = vmul.f32 %v5006, %v5006
    %v5010 = vmul.f32 %v5007, %v5007
    %5014 = vrot.lane.b32.xlu0 %v5008, 48
    %v5015 = vpop.permute.xlu0 %5014
    %5016 = vrot.lane.b32.xlu0 %v5009, 48
    %v5017 = vpop.permute.xlu0 %5016
    %5018 = vrot.lane.b32.xlu0 %v5010, 48
    %v5019 = vpop.permute.xlu0 %5018
    %v5020 = vsel %vm4987, %v5015, %v5017
    %v5021 = vsel %vm4987, %v5017, %v5019
    %v5024 = vsel %vm570, %v5020, 0.0
    %v5025 = vsel %vm570, %v5021, 0.0
    %v5026 = vadd.f32 %v5024, %v5025
    %5027 = vadd.xlane.f32.xlu0 %v5026
    %v5028 = vpop.xlane.xlu0 %5027
    %v5029 = vsel %vm570, %v5028, 0.0
    %v5030 = vrot.slane %v5029, 4
    %v5031 = vadd.f32 %v5029, %v5030
    %v5032 = vrot.slane %v5031, 2
    %v5033 = vadd.f32 %v5031, %v5032
    %v5034 = vrot.slane %v5033, 1
    %v5035 = vadd.f32 %v5033, %v5034
    %v5036 = vmul.f32 %v5035, 0.001953125
    %v5037 = vadd.f32 %v5036, 1e-05
    %v5038 = vrsqrt.pop %v5037
    %v5039 = vmul.f32 %v5005, %v5038
    %v5040 = vmul.f32 %v5006, %v5038
    %v5041 = vmul.f32 %v5007, %v5038
    %vm5042 = vcmask 1043458
    %v5043 = vsel %vm5042, %v4988, 0.0
    %v5044 = vsel %vm5042, %v4989, 0.0
    %v5045 = vadd.f32 %v5043, %v5044
    %5046 = vadd.xlane.f32.xlu0 %v5045
    %v5047 = vpop.xlane.xlu0 %5046
    %v5049 = vrot.slane %v5047, 2
    %v5051 = vsel %vm570, %v5049, 0.0
    %v5052 = vrot.slane %v5051, 4
    %v5053 = vadd.f32 %v5051, %v5052
    %v5054 = vrot.slane %v5053, 2
    %v5055 = vadd.f32 %v5053, %v5054
    %v5056 = vrot.slane %v5055, 1
    %v5057 = vadd.f32 %v5055, %v5056
    %v5058 = vmul.f32 %v5057, 0.001953125
    %v5059 = vsub.f32 %v4972, %v5058
    %v5060 = vsub.f32 %v4973, %v5058
    %v5061 = vsub.f32 %v4974, %v5058
    %v5062 = vmul.f32 %v5059, %v5059
    %v5063 = vmul.f32 %v5060, %v5060
    %v5064 = vmul.f32 %v5061, %v5061
    %5068 = vrot.lane.b32.xlu0 %v5062, 48
    %v5069 = vpop.permute.xlu0 %5068
    %5070 = vrot.lane.b32.xlu0 %v5063, 48
    %v5071 = vpop.permute.xlu0 %5070
    %5072 = vrot.lane.b32.xlu0 %v5064, 48
    %v5073 = vpop.permute.xlu0 %5072
    %v5074 = vsel %vm4987, %v5069, %v5071
    %v5075 = vsel %vm4987, %v5071, %v5073
    %v5078 = vsel %vm5042, %v5074, 0.0
    %v5079 = vsel %vm5042, %v5075, 0.0
    %v5080 = vadd.f32 %v5078, %v5079
    %5081 = vadd.xlane.f32.xlu0 %v5080
    %v5082 = vpop.xlane.xlu0 %5081
    %v5084 = vrot.slane %v5082, 2
    %v5086 = vsel %vm570, %v5084, 0.0
    %v5087 = vrot.slane %v5086, 4
    %v5088 = vadd.f32 %v5086, %v5087
    %v5089 = vrot.slane %v5088, 2
    %v5090 = vadd.f32 %v5088, %v5089
    %v5091 = vrot.slane %v5090, 1
    %v5092 = vadd.f32 %v5090, %v5091
    %v5093 = vmul.f32 %v5092, 0.001953125
    %v5094 = vadd.f32 %v5093, 1e-05
    %v5095 = vrsqrt.pop %v5094
    %v5096 = vmul.f32 %v5059, %v5095
    %v5097 = vmul.f32 %v5060, %v5095
    %v5098 = vmul.f32 %v5061, %v5095
    %vm5099 = vcmask 1045508
    %v5100 = vsel %vm5099, %v4988, 0.0
    %v5101 = vsel %vm5099, %v4989, 0.0
    %v5102 = vadd.f32 %v5100, %v5101
    %5103 = vadd.xlane.f32.xlu0 %v5102
    %v5104 = vpop.xlane.xlu0 %5103
    %v5106 = vrot.slane %v5104, 4
    %v5108 = vsel %vm570, %v5106, 0.0
    %v5109 = vrot.slane %v5108, 4
    %v5110 = vadd.f32 %v5108, %v5109
    %v5111 = vrot.slane %v5110, 2
    %v5112 = vadd.f32 %v5110, %v5111
    %v5113 = vrot.slane %v5112, 1
    %v5114 = vadd.f32 %v5112, %v5113
    %v5115 = vmul.f32 %v5114, 0.001953125
    %v5116 = vsub.f32 %v4972, %v5115
    %v5117 = vsub.f32 %v4973, %v5115
    %v5118 = vsub.f32 %v4974, %v5115
    %v5119 = vmul.f32 %v5116, %v5116
    %v5120 = vmul.f32 %v5117, %v5117
    %v5121 = vmul.f32 %v5118, %v5118
    %5125 = vrot.lane.b32.xlu0 %v5119, 48
    %v5126 = vpop.permute.xlu0 %5125
    %5127 = vrot.lane.b32.xlu0 %v5120, 48
    %v5128 = vpop.permute.xlu0 %5127
    %5129 = vrot.lane.b32.xlu0 %v5121, 48
    %v5130 = vpop.permute.xlu0 %5129
    %v5131 = vsel %vm4987, %v5126, %v5128
    %v5132 = vsel %vm4987, %v5128, %v5130
    %v5135 = vsel %vm5099, %v5131, 0.0
    %v5136 = vsel %vm5099, %v5132, 0.0
    %v5137 = vadd.f32 %v5135, %v5136
    %5138 = vadd.xlane.f32.xlu0 %v5137
    %v5139 = vpop.xlane.xlu0 %5138
    %v5141 = vrot.slane %v5139, 4
    %v5143 = vsel %vm570, %v5141, 0.0
    %v5144 = vrot.slane %v5143, 4
    %v5145 = vadd.f32 %v5143, %v5144
    %v5146 = vrot.slane %v5145, 2
    %v5147 = vadd.f32 %v5145, %v5146
    %v5148 = vrot.slane %v5147, 1
    %v5149 = vadd.f32 %v5147, %v5148
    %v5150 = vmul.f32 %v5149, 0.001953125
    %v5151 = vadd.f32 %v5150, 1e-05
    %v5152 = vrsqrt.pop %v5151
    %v5153 = vmul.f32 %v5116, %v5152
    %v5154 = vmul.f32 %v5117, %v5152
    %v5155 = vmul.f32 %v5118, %v5152
    %vm5156 = vcmask 1047558
    %v5157 = vsel %vm5156, %v4988, 0.0
    %v5158 = vsel %vm5156, %v4989, 0.0
    %v5159 = vadd.f32 %v5157, %v5158
    %5160 = vadd.xlane.f32.xlu0 %v5159
    %v5161 = vpop.xlane.xlu0 %5160
    %v5163 = vrot.slane %v5161, 6
    %v5165 = vsel %vm570, %v5163, 0.0
    %v5166 = vrot.slane %v5165, 4
    %v5167 = vadd.f32 %v5165, %v5166
    %v5168 = vrot.slane %v5167, 2
    %v5169 = vadd.f32 %v5167, %v5168
    %v5170 = vrot.slane %v5169, 1
    %v5171 = vadd.f32 %v5169, %v5170
    %v5172 = vmul.f32 %v5171, 0.001953125
    %v5173 = vsub.f32 %v4972, %v5172
    %v5174 = vsub.f32 %v4973, %v5172
    %v5175 = vsub.f32 %v4974, %v5172
    %v5176 = vmul.f32 %v5173, %v5173
    %v5177 = vmul.f32 %v5174, %v5174
    %v5178 = vmul.f32 %v5175, %v5175
    %5182 = vrot.lane.b32.xlu0 %v5176, 48
    %v5183 = vpop.permute.xlu0 %5182
    %5184 = vrot.lane.b32.xlu0 %v5177, 48
    %v5185 = vpop.permute.xlu0 %5184
    %5186 = vrot.lane.b32.xlu0 %v5178, 48
    %v5187 = vpop.permute.xlu0 %5186
    %v5188 = vsel %vm4987, %v5183, %v5185
    %v5189 = vsel %vm4987, %v5185, %v5187
    %v5192 = vsel %vm5156, %v5188, 0.0
    %v5193 = vsel %vm5156, %v5189, 0.0
    %v5194 = vadd.f32 %v5192, %v5193
    %5195 = vadd.xlane.f32.xlu0 %v5194
    %v5196 = vpop.xlane.xlu0 %5195
    %v5198 = vrot.slane %v5196, 6
    %v5200 = vsel %vm570, %v5198, 0.0
    %v5201 = vrot.slane %v5200, 4
    %v5202 = vadd.f32 %v5200, %v5201
    %v5203 = vrot.slane %v5202, 2
    %v5204 = vadd.f32 %v5202, %v5203
    %v5205 = vrot.slane %v5204, 1
    %v5206 = vadd.f32 %v5204, %v5205
    %v5207 = vmul.f32 %v5206, 0.001953125
    %v5208 = vadd.f32 %v5207, 1e-05
    %v5209 = vrsqrt.pop %v5208
    %v5210 = vmul.f32 %v5173, %v5209
    %v5211 = vmul.f32 %v5174, %v5209
    %v5212 = vmul.f32 %v5175, %v5209
    %5216 = vrot.lane.b32.xlu0 %v4975, 48
    %v5217 = vpop.permute.xlu0 %5216
    %5218 = vrot.lane.b32.xlu0 %v4976, 48
    %v5219 = vpop.permute.xlu0 %5218
    %5220 = vrot.lane.b32.xlu0 %v4977, 48
    %v5221 = vpop.permute.xlu0 %5220
    %v5222 = vsel %vm4987, %v5217, %v5219
    %v5223 = vsel %vm4987, %v5219, %v5221
    %v5226 = vsel %vm570, %v5222, 0.0
    %v5227 = vsel %vm570, %v5223, 0.0
    %v5228 = vadd.f32 %v5226, %v5227
    %5229 = vadd.xlane.f32.xlu0 %v5228
    %v5230 = vpop.xlane.xlu0 %5229
    %v5231 = vsel %vm570, %v5230, 0.0
    %v5232 = vrot.slane %v5231, 4
    %v5233 = vadd.f32 %v5231, %v5232
    %v5234 = vrot.slane %v5233, 2
    %v5235 = vadd.f32 %v5233, %v5234
    %v5236 = vrot.slane %v5235, 1
    %v5237 = vadd.f32 %v5235, %v5236
    %v5238 = vmul.f32 %v5237, 0.001953125
    %v5239 = vsub.f32 %v4975, %v5238
    %v5240 = vsub.f32 %v4976, %v5238
    %v5241 = vsub.f32 %v4977, %v5238
    %v5242 = vmul.f32 %v5239, %v5239
    %v5243 = vmul.f32 %v5240, %v5240
    %v5244 = vmul.f32 %v5241, %v5241
    %5248 = vrot.lane.b32.xlu0 %v5242, 48
    %v5249 = vpop.permute.xlu0 %5248
    %5250 = vrot.lane.b32.xlu0 %v5243, 48
    %v5251 = vpop.permute.xlu0 %5250
    %5252 = vrot.lane.b32.xlu0 %v5244, 48
    %v5253 = vpop.permute.xlu0 %5252
    %v5254 = vsel %vm4987, %v5249, %v5251
    %v5255 = vsel %vm4987, %v5251, %v5253
    %v5258 = vsel %vm570, %v5254, 0.0
    %v5259 = vsel %vm570, %v5255, 0.0
    %v5260 = vadd.f32 %v5258, %v5259
    %5261 = vadd.xlane.f32.xlu0 %v5260
    %v5262 = vpop.xlane.xlu0 %5261
    %v5263 = vsel %vm570, %v5262, 0.0
    %v5264 = vrot.slane %v5263, 4
    %v5265 = vadd.f32 %v5263, %v5264
    %v5266 = vrot.slane %v5265, 2
    %v5267 = vadd.f32 %v5265, %v5266
    %v5268 = vrot.slane %v5267, 1
    %v5269 = vadd.f32 %v5267, %v5268
    %v5270 = vmul.f32 %v5269, 0.001953125
    %v5271 = vadd.f32 %v5270, 1e-05
    %v5272 = vrsqrt.pop %v5271
    %v5273 = vmul.f32 %v5239, %v5272
    %v5274 = vmul.f32 %v5240, %v5272
    %v5275 = vmul.f32 %v5241, %v5272
    %v5276 = vsel %vm570, %v5039, %v5096
    %v5277 = vsel %vm570, %v5040, %v5097
    %v5278 = vsel %vm570, %v5041, %v5098
    %v5279 = vsel %vm1394, %v5276, %v5153
    %v5280 = vsel %vm1394, %v5277, %v5154
    %v5281 = vsel %vm1394, %v5278, %v5155
    %v5282 = vsel %vm4967, %v5279, %v5210
    %v5283 = vsel %vm4967, %v5280, %v5211
    %v5284 = vsel %vm4967, %v5281, %v5212
    %v5285 = vld [vmem:[%s6] sm:$0xff]
    %v5286 = vld [vmem:[%s6 + $0x8] sm:$0xff]
    %v5287 = vld [vmem:[%s6 + $0x10] sm:$0xff]
    %v5288 = vld [vmem:[%s6 + $0x18] sm:$0xff]
    %v5289 = vld [vmem:[%s6 + $0x20] sm:$0xff]
    %v5290 = vld [vmem:[%s6 + $0x28] sm:$0xff]
    %v5291 = vld [vmem:[%s6 + $0x30] sm:$0xff]
    %v5292 = vld [vmem:[%s6 + $0x38] sm:$0xff]
    %v5293 = vld [vmem:[%s6 + $0x40] sm:$0xff]
    %v5294 = vld [vmem:[%s6 + $0x48] sm:$0xff]
    %v5295 = vld [vmem:[%s6 + $0x50] sm:$0xff]
    %v5296 = vld [vmem:[%s6 + $0x58] sm:$0xff]
    %v5297 = vld [vmem:[%s6 + $0x60] sm:$0xff]
    %v5298 = vld [vmem:[%s6 + $0x68] sm:$0xff]
    %v5299 = vld [vmem:[%s6 + $0x70] sm:$0xff]
    %v5300 = vld [vmem:[%s6 + $0x78] sm:$0xff]
    %v5301 = vld [vmem:[%s6 + $0x80] sm:$0xff]
    %v5302 = vld [vmem:[%s6 + $0x88] sm:$0xff]
    %v5303 = vld [vmem:[%s6 + $0x90] sm:$0xff]
    %v5304 = vld [vmem:[%s6 + $0x98] sm:$0xff]
    %v5305 = vld [vmem:[%s6 + $0xa0] sm:$0xff]
    %v5306 = vld [vmem:[%s6 + $0xa8] sm:$0xff]
    %v5307 = vld [vmem:[%s6 + $0xb0] sm:$0xff]
    %v5308 = vld [vmem:[%s6 + $0xb8] sm:$0xff]
    %v5309 = vld [vmem:[%s6 + $0xc0] sm:$0xff]
    %v5310 = vld [vmem:[%s6 + $0xc8] sm:$0xff]
    %v5311 = vld [vmem:[%s6 + $0xd0] sm:$0xff]
    %v5312 = vld [vmem:[%s6 + $0xd8] sm:$0xff]
    %v5313 = vld [vmem:[%s6 + $0xe0] sm:$0xff]
    %v5314 = vld [vmem:[%s6 + $0xe8] sm:$0xff]
    %v5315 = vld [vmem:[%s6 + $0xf0] sm:$0xff]
    %v5316 = vld [vmem:[%s6 + $0xf8] sm:$0xff]
    %v5317 = vld [vmem:[%s6 + $0x100] sm:$0xff]
    %v5318 = vld [vmem:[%s6 + $0x108] sm:$0xff]
    %v5319 = vld [vmem:[%s6 + $0x110] sm:$0xff]
    %v5320 = vld [vmem:[%s6 + $0x118] sm:$0xff]
    %v5321 = vld [vmem:[%s6 + $0x120] sm:$0xff]
    %v5322 = vld [vmem:[%s6 + $0x128] sm:$0xff]
    %v5323 = vld [vmem:[%s6 + $0x130] sm:$0xff]
    %v5324 = vld [vmem:[%s6 + $0x138] sm:$0xff]
    %v5325 = vld [vmem:[%s6 + $0x140] sm:$0xff]
    %v5326 = vld [vmem:[%s6 + $0x148] sm:$0xff]
    %v5327 = vld [vmem:[%s6 + $0x150] sm:$0xff]
    %v5328 = vld [vmem:[%s6 + $0x158] sm:$0xff]
    %v5329 = vld [vmem:[%s6 + $0x160] sm:$0xff]
    %v5330 = vld [vmem:[%s6 + $0x168] sm:$0xff]
    %v5331 = vld [vmem:[%s6 + $0x170] sm:$0xff]
    %v5332 = vld [vmem:[%s6 + $0x178] sm:$0xff]
    %v5333 = vld [vmem:[%s6 + $0x180] sm:$0xff]
    %v5334 = vld [vmem:[%s6 + $0x188] sm:$0xff]
    %v5335 = vld [vmem:[%s6 + $0x190] sm:$0xff]
    %v5336 = vld [vmem:[%s6 + $0x198] sm:$0xff]
    %v5337 = vld [vmem:[%s6 + $0x1a0] sm:$0xff]
    %v5338 = vld [vmem:[%s6 + $0x1a8] sm:$0xff]
    %v5339 = vld [vmem:[%s6 + $0x1b0] sm:$0xff]
    %v5340 = vld [vmem:[%s6 + $0x1b8] sm:$0xff]
    %v5341 = vld [vmem:[%s6 + $0x1c0] sm:$0xff]
    %v5342 = vld [vmem:[%s6 + $0x1c8] sm:$0xff]
    %v5343 = vld [vmem:[%s6 + $0x1d0] sm:$0xff]
    %v5344 = vld [vmem:[%s6 + $0x1d8] sm:$0xff]
    %v5345 = vld [vmem:[%s6 + $0x1e0] sm:$0xff]
    %v5346 = vld [vmem:[%s6 + $0x1e8] sm:$0xff]
    %v5347 = vld [vmem:[%s6 + $0x1f0] sm:$0xff]
    %v5348 = vld [vmem:[%s6 + $0x1f8] sm:$0xff]
    %5352 = vrot.lane.b32.xlu0 %v5282, 48
    %v5353 = vpop.permute.xlu0 %5352
    %5354 = vrot.lane.b32.xlu0 %v5283, 48
    %v5355 = vpop.permute.xlu0 %5354
    %5356 = vrot.lane.b32.xlu0 %v5284, 48
    %v5357 = vpop.permute.xlu0 %5356
    %v5358 = vsel %vm4987, %v5353, %v5355
    %v5359 = vsel %vm4987, %v5355, %v5357
    %5362 = vmatprep.subr.mxu0 %v5316
    %5363 = vmatpush1.msra.mxu0 %v5315
    %5364 = vmatprep.subr.mxu0 %v5314
    %5365 = vmatpush1.msra.mxu0 %v5313
    %5366 = vmatprep.subr.mxu0 %v5312
    %5367 = vmatpush1.msra.mxu0 %v5311
    %5368 = vmatprep.subr.mxu0 %v5310
    %5369 = vmatpush1.msra.mxu0 %v5309
    %5370 = vmatprep.subr.mxu0 %v5308
    %5371 = vmatpush1.msra.mxu0 %v5307
    %5372 = vmatprep.subr.mxu0 %v5306
    %5373 = vmatpush1.msra.mxu0 %v5305
    %5374 = vmatprep.subr.mxu0 %v5304
    %5375 = vmatpush1.msra.mxu0 %v5303
    %5376 = vmatprep.subr.mxu0 %v5302
    %5377 = vmatpush1.msra.mxu0 %v5301
    %5378 = vmatprep.subr.mxu0 %v5300
    %5379 = vmatpush1.msra.mxu0 %v5299
    %5380 = vmatprep.subr.mxu0 %v5298
    %5381 = vmatpush1.msra.mxu0 %v5297
    %5382 = vmatprep.subr.mxu0 %v5296
    %5383 = vmatpush1.msra.mxu0 %v5295
    %5384 = vmatprep.subr.mxu0 %v5294
    %5385 = vmatpush1.msra.mxu0 %v5293
    %5386 = vmatprep.subr.mxu0 %v5292
    %5387 = vmatpush1.msra.mxu0 %v5291
    %5388 = vmatprep.subr.mxu0 %v5290
    %5389 = vmatpush1.msra.mxu0 %v5289
    %5390 = vmatprep.subr.mxu0 %v5288
    %5391 = vmatpush1.msra.mxu0 %v5287
    %5392 = vmatprep.subr.mxu0 %v5286
    %5393 = vmatpush1.msra.mxu0 %v5285
    %5394 = vmatprep.subr.mxu0 %v5348
    %5395 = vmatpush2.msra.mxu0 %v5347
    %5396 = vmatprep.subr.mxu0 %v5346
    %5397 = vmatpush2.msra.mxu0 %v5345
    %5398 = vmatprep.subr.mxu0 %v5344
    %5399 = vmatpush2.msra.mxu0 %v5343
    %5400 = vmatprep.subr.mxu0 %v5342
    %5401 = vmatpush2.msra.mxu0 %v5341
    %5402 = vmatprep.subr.mxu0 %v5340
    %5403 = vmatpush2.msra.mxu0 %v5339
    %5404 = vmatprep.subr.mxu0 %v5338
    %5405 = vmatpush2.msra.mxu0 %v5337
    %5406 = vmatprep.subr.mxu0 %v5336
    %5407 = vmatpush2.msra.mxu0 %v5335
    %5408 = vmatprep.subr.mxu0 %v5334
    %5409 = vmatpush2.msra.mxu0 %v5333
    %5410 = vmatprep.subr.mxu0 %v5332
    %5411 = vmatpush2.msra.mxu0 %v5331
    %5412 = vmatprep.subr.mxu0 %v5330
    %5413 = vmatpush2.msra.mxu0 %v5329
    %5414 = vmatprep.subr.mxu0 %v5328
    %5415 = vmatpush2.msra.mxu0 %v5327
    %5416 = vmatprep.subr.mxu0 %v5326
    %5417 = vmatpush2.msra.mxu0 %v5325
    %5418 = vmatprep.subr.mxu0 %v5324
    %5419 = vmatpush2.msra.mxu0 %v5323
    %5420 = vmatprep.subr.mxu0 %v5322
    %5421 = vmatpush2.msra.mxu0 %v5321
    %5422 = vmatprep.subr.mxu0 %v5320
    %5423 = vmatpush2.msra.mxu0 %v5319
    %5424 = vmatprep.subr.mxu0 %v5318
    %5425 = vmatpush2.msra.mxu0 %v5317
    %5426 = vmatprep.mubr.f32.mxu0 %v5359
    %5427 = vmatmul.mubr.f32.gmra.mxu0 %v5358
    %v5428 = vpop.f32.mrf.mxu0
    %v5429 = vadd.f32 0.0, %v5428
    %v5430 = vpop.f32.mrf.mxu0
    %v5431 = vadd.f32 0.0, %v5430
    %5432 = vdwg.mxu0
    %s5433 = scalar_lea.vmem %s6, 512
    %v5434 = vld [vmem:[%s5433] sm:$0xff]
    %v5435 = vld [vmem:[%s5433 + $0x8] sm:$0xff]
    %v5436 = vld [vmem:[%s5433 + $0x10] sm:$0xff]
    %v5437 = vld [vmem:[%s5433 + $0x18] sm:$0xff]
    %v5438 = vld [vmem:[%s5433 + $0x20] sm:$0xff]
    %v5439 = vld [vmem:[%s5433 + $0x28] sm:$0xff]
    %v5440 = vld [vmem:[%s5433 + $0x30] sm:$0xff]
    %v5441 = vld [vmem:[%s5433 + $0x38] sm:$0xff]
    %v5442 = vld [vmem:[%s5433 + $0x40] sm:$0xff]
    %v5443 = vld [vmem:[%s5433 + $0x48] sm:$0xff]
    %v5444 = vld [vmem:[%s5433 + $0x50] sm:$0xff]
    %v5445 = vld [vmem:[%s5433 + $0x58] sm:$0xff]
    %v5446 = vld [vmem:[%s5433 + $0x60] sm:$0xff]
    %v5447 = vld [vmem:[%s5433 + $0x68] sm:$0xff]
    %v5448 = vld [vmem:[%s5433 + $0x70] sm:$0xff]
    %v5449 = vld [vmem:[%s5433 + $0x78] sm:$0xff]
    %v5450 = vld [vmem:[%s5433 + $0x80] sm:$0xff]
    %v5451 = vld [vmem:[%s5433 + $0x88] sm:$0xff]
    %v5452 = vld [vmem:[%s5433 + $0x90] sm:$0xff]
    %v5453 = vld [vmem:[%s5433 + $0x98] sm:$0xff]
    %v5454 = vld [vmem:[%s5433 + $0xa0] sm:$0xff]
    %v5455 = vld [vmem:[%s5433 + $0xa8] sm:$0xff]
    %v5456 = vld [vmem:[%s5433 + $0xb0] sm:$0xff]
    %v5457 = vld [vmem:[%s5433 + $0xb8] sm:$0xff]
    %v5458 = vld [vmem:[%s5433 + $0xc0] sm:$0xff]
    %v5459 = vld [vmem:[%s5433 + $0xc8] sm:$0xff]
    %v5460 = vld [vmem:[%s5433 + $0xd0] sm:$0xff]
    %v5461 = vld [vmem:[%s5433 + $0xd8] sm:$0xff]
    %v5462 = vld [vmem:[%s5433 + $0xe0] sm:$0xff]
    %v5463 = vld [vmem:[%s5433 + $0xe8] sm:$0xff]
    %v5464 = vld [vmem:[%s5433 + $0xf0] sm:$0xff]
    %v5465 = vld [vmem:[%s5433 + $0xf8] sm:$0xff]
    %v5466 = vld [vmem:[%s5433 + $0x100] sm:$0xff]
    %v5467 = vld [vmem:[%s5433 + $0x108] sm:$0xff]
    %v5468 = vld [vmem:[%s5433 + $0x110] sm:$0xff]
    %v5469 = vld [vmem:[%s5433 + $0x118] sm:$0xff]
    %v5470 = vld [vmem:[%s5433 + $0x120] sm:$0xff]
    %v5471 = vld [vmem:[%s5433 + $0x128] sm:$0xff]
    %v5472 = vld [vmem:[%s5433 + $0x130] sm:$0xff]
    %v5473 = vld [vmem:[%s5433 + $0x138] sm:$0xff]
    %v5474 = vld [vmem:[%s5433 + $0x140] sm:$0xff]
    %v5475 = vld [vmem:[%s5433 + $0x148] sm:$0xff]
    %v5476 = vld [vmem:[%s5433 + $0x150] sm:$0xff]
    %v5477 = vld [vmem:[%s5433 + $0x158] sm:$0xff]
    %v5478 = vld [vmem:[%s5433 + $0x160] sm:$0xff]
    %v5479 = vld [vmem:[%s5433 + $0x168] sm:$0xff]
    %v5480 = vld [vmem:[%s5433 + $0x170] sm:$0xff]
    %v5481 = vld [vmem:[%s5433 + $0x178] sm:$0xff]
    %v5482 = vld [vmem:[%s5433 + $0x180] sm:$0xff]
    %v5483 = vld [vmem:[%s5433 + $0x188] sm:$0xff]
    %v5484 = vld [vmem:[%s5433 + $0x190] sm:$0xff]
    %v5485 = vld [vmem:[%s5433 + $0x198] sm:$0xff]
    %v5486 = vld [vmem:[%s5433 + $0x1a0] sm:$0xff]
    %v5487 = vld [vmem:[%s5433 + $0x1a8] sm:$0xff]
    %v5488 = vld [vmem:[%s5433 + $0x1b0] sm:$0xff]
    %v5489 = vld [vmem:[%s5433 + $0x1b8] sm:$0xff]
    %v5490 = vld [vmem:[%s5433 + $0x1c0] sm:$0xff]
    %v5491 = vld [vmem:[%s5433 + $0x1c8] sm:$0xff]
    %v5492 = vld [vmem:[%s5433 + $0x1d0] sm:$0xff]
    %v5493 = vld [vmem:[%s5433 + $0x1d8] sm:$0xff]
    %v5494 = vld [vmem:[%s5433 + $0x1e0] sm:$0xff]
    %v5495 = vld [vmem:[%s5433 + $0x1e8] sm:$0xff]
    %v5496 = vld [vmem:[%s5433 + $0x1f0] sm:$0xff]
    %v5497 = vld [vmem:[%s5433 + $0x1f8] sm:$0xff]
    %v5498 = vrot.slane %v5282, 2
    %v5499 = vrot.slane %v5283, 2
    %v5500 = vrot.slane %v5284, 2
    %5501 = vrot.lane.b32.xlu0 %v5498, 48
    %v5502 = vpop.permute.xlu0 %5501
    %5503 = vrot.lane.b32.xlu0 %v5499, 48
    %v5504 = vpop.permute.xlu0 %5503
    %5505 = vrot.lane.b32.xlu0 %v5500, 48
    %v5506 = vpop.permute.xlu0 %5505
    %v5507 = vsel %vm4987, %v5502, %v5504
    %v5508 = vsel %vm4987, %v5504, %v5506
    %5511 = vmatprep.subr.mxu0 %v5465
    %5512 = vmatpush1.msra.mxu0 %v5464
    %5513 = vmatprep.subr.mxu0 %v5463
    %5514 = vmatpush1.msra.mxu0 %v5462
    %5515 = vmatprep.subr.mxu0 %v5461
    %5516 = vmatpush1.msra.mxu0 %v5460
    %5517 = vmatprep.subr.mxu0 %v5459
    %5518 = vmatpush1.msra.mxu0 %v5458
    %5519 = vmatprep.subr.mxu0 %v5457
    %5520 = vmatpush1.msra.mxu0 %v5456
    %5521 = vmatprep.subr.mxu0 %v5455
    %5522 = vmatpush1.msra.mxu0 %v5454
    %5523 = vmatprep.subr.mxu0 %v5453
    %5524 = vmatpush1.msra.mxu0 %v5452
    %5525 = vmatprep.subr.mxu0 %v5451
    %5526 = vmatpush1.msra.mxu0 %v5450
    %5527 = vmatprep.subr.mxu0 %v5449
    %5528 = vmatpush1.msra.mxu0 %v5448
    %5529 = vmatprep.subr.mxu0 %v5447
    %5530 = vmatpush1.msra.mxu0 %v5446
    %5531 = vmatprep.subr.mxu0 %v5445
    %5532 = vmatpush1.msra.mxu0 %v5444
    %5533 = vmatprep.subr.mxu0 %v5443
    %5534 = vmatpush1.msra.mxu0 %v5442
    %5535 = vmatprep.subr.mxu0 %v5441
    %5536 = vmatpush1.msra.mxu0 %v5440
    %5537 = vmatprep.subr.mxu0 %v5439
    %5538 = vmatpush1.msra.mxu0 %v5438
    %5539 = vmatprep.subr.mxu0 %v5437
    %5540 = vmatpush1.msra.mxu0 %v5436
    %5541 = vmatprep.subr.mxu0 %v5435
    %5542 = vmatpush1.msra.mxu0 %v5434
    %5543 = vmatprep.subr.mxu0 %v5497
    %5544 = vmatpush2.msra.mxu0 %v5496
    %5545 = vmatprep.subr.mxu0 %v5495
    %5546 = vmatpush2.msra.mxu0 %v5494
    %5547 = vmatprep.subr.mxu0 %v5493
    %5548 = vmatpush2.msra.mxu0 %v5492
    %5549 = vmatprep.subr.mxu0 %v5491
    %5550 = vmatpush2.msra.mxu0 %v5490
    %5551 = vmatprep.subr.mxu0 %v5489
    %5552 = vmatpush2.msra.mxu0 %v5488
    %5553 = vmatprep.subr.mxu0 %v5487
    %5554 = vmatpush2.msra.mxu0 %v5486
    %5555 = vmatprep.subr.mxu0 %v5485
    %5556 = vmatpush2.msra.mxu0 %v5484
    %5557 = vmatprep.subr.mxu0 %v5483
    %5558 = vmatpush2.msra.mxu0 %v5482
    %5559 = vmatprep.subr.mxu0 %v5481
    %5560 = vmatpush2.msra.mxu0 %v5480
    %5561 = vmatprep.subr.mxu0 %v5479
    %5562 = vmatpush2.msra.mxu0 %v5478
    %5563 = vmatprep.subr.mxu0 %v5477
    %5564 = vmatpush2.msra.mxu0 %v5476
    %5565 = vmatprep.subr.mxu0 %v5475
    %5566 = vmatpush2.msra.mxu0 %v5474
    %5567 = vmatprep.subr.mxu0 %v5473
    %5568 = vmatpush2.msra.mxu0 %v5472
    %5569 = vmatprep.subr.mxu0 %v5471
    %5570 = vmatpush2.msra.mxu0 %v5470
    %5571 = vmatprep.subr.mxu0 %v5469
    %5572 = vmatpush2.msra.mxu0 %v5468
    %5573 = vmatprep.subr.mxu0 %v5467
    %5574 = vmatpush2.msra.mxu0 %v5466
    %5575 = vmatprep.mubr.f32.mxu0 %v5508
    %5576 = vmatmul.mubr.f32.gmra.mxu0 %v5507
    %v5577 = vpop.f32.mrf.mxu0
    %v5578 = vadd.f32 0.0, %v5577
    %v5579 = vpop.f32.mrf.mxu0
    %v5580 = vadd.f32 0.0, %v5579
    %5581 = vdwg.mxu0
    %s5582 = scalar_lea.vmem %s6, 1024
    %v5583 = vld [vmem:[%s5582] sm:$0xff]
    %v5584 = vld [vmem:[%s5582 + $0x8] sm:$0xff]
    %v5585 = vld [vmem:[%s5582 + $0x10] sm:$0xff]
    %v5586 = vld [vmem:[%s5582 + $0x18] sm:$0xff]
    %v5587 = vld [vmem:[%s5582 + $0x20] sm:$0xff]
    %v5588 = vld [vmem:[%s5582 + $0x28] sm:$0xff]
    %v5589 = vld [vmem:[%s5582 + $0x30] sm:$0xff]
    %v5590 = vld [vmem:[%s5582 + $0x38] sm:$0xff]
    %v5591 = vld [vmem:[%s5582 + $0x40] sm:$0xff]
    %v5592 = vld [vmem:[%s5582 + $0x48] sm:$0xff]
    %v5593 = vld [vmem:[%s5582 + $0x50] sm:$0xff]
    %v5594 = vld [vmem:[%s5582 + $0x58] sm:$0xff]
    %v5595 = vld [vmem:[%s5582 + $0x60] sm:$0xff]
    %v5596 = vld [vmem:[%s5582 + $0x68] sm:$0xff]
    %v5597 = vld [vmem:[%s5582 + $0x70] sm:$0xff]
    %v5598 = vld [vmem:[%s5582 + $0x78] sm:$0xff]
    %v5599 = vld [vmem:[%s5582 + $0x80] sm:$0xff]
    %v5600 = vld [vmem:[%s5582 + $0x88] sm:$0xff]
    %v5601 = vld [vmem:[%s5582 + $0x90] sm:$0xff]
    %v5602 = vld [vmem:[%s5582 + $0x98] sm:$0xff]
    %v5603 = vld [vmem:[%s5582 + $0xa0] sm:$0xff]
    %v5604 = vld [vmem:[%s5582 + $0xa8] sm:$0xff]
    %v5605 = vld [vmem:[%s5582 + $0xb0] sm:$0xff]
    %v5606 = vld [vmem:[%s5582 + $0xb8] sm:$0xff]
    %v5607 = vld [vmem:[%s5582 + $0xc0] sm:$0xff]
    %v5608 = vld [vmem:[%s5582 + $0xc8] sm:$0xff]
    %v5609 = vld [vmem:[%s5582 + $0xd0] sm:$0xff]
    %v5610 = vld [vmem:[%s5582 + $0xd8] sm:$0xff]
    %v5611 = vld [vmem:[%s5582 + $0xe0] sm:$0xff]
    %v5612 = vld [vmem:[%s5582 + $0xe8] sm:$0xff]
    %v5613 = vld [vmem:[%s5582 + $0xf0] sm:$0xff]
    %v5614 = vld [vmem:[%s5582 + $0xf8] sm:$0xff]
    %v5615 = vld [vmem:[%s5582 + $0x100] sm:$0xff]
    %v5616 = vld [vmem:[%s5582 + $0x108] sm:$0xff]
    %v5617 = vld [vmem:[%s5582 + $0x110] sm:$0xff]
    %v5618 = vld [vmem:[%s5582 + $0x118] sm:$0xff]
    %v5619 = vld [vmem:[%s5582 + $0x120] sm:$0xff]
    %v5620 = vld [vmem:[%s5582 + $0x128] sm:$0xff]
    %v5621 = vld [vmem:[%s5582 + $0x130] sm:$0xff]
    %v5622 = vld [vmem:[%s5582 + $0x138] sm:$0xff]
    %v5623 = vld [vmem:[%s5582 + $0x140] sm:$0xff]
    %v5624 = vld [vmem:[%s5582 + $0x148] sm:$0xff]
    %v5625 = vld [vmem:[%s5582 + $0x150] sm:$0xff]
    %v5626 = vld [vmem:[%s5582 + $0x158] sm:$0xff]
    %v5627 = vld [vmem:[%s5582 + $0x160] sm:$0xff]
    %v5628 = vld [vmem:[%s5582 + $0x168] sm:$0xff]
    %v5629 = vld [vmem:[%s5582 + $0x170] sm:$0xff]
    %v5630 = vld [vmem:[%s5582 + $0x178] sm:$0xff]
    %v5631 = vld [vmem:[%s5582 + $0x180] sm:$0xff]
    %v5632 = vld [vmem:[%s5582 + $0x188] sm:$0xff]
    %v5633 = vld [vmem:[%s5582 + $0x190] sm:$0xff]
    %v5634 = vld [vmem:[%s5582 + $0x198] sm:$0xff]
    %v5635 = vld [vmem:[%s5582 + $0x1a0] sm:$0xff]
    %v5636 = vld [vmem:[%s5582 + $0x1a8] sm:$0xff]
    %v5637 = vld [vmem:[%s5582 + $0x1b0] sm:$0xff]
    %v5638 = vld [vmem:[%s5582 + $0x1b8] sm:$0xff]
    %v5639 = vld [vmem:[%s5582 + $0x1c0] sm:$0xff]
    %v5640 = vld [vmem:[%s5582 + $0x1c8] sm:$0xff]
    %v5641 = vld [vmem:[%s5582 + $0x1d0] sm:$0xff]
    %v5642 = vld [vmem:[%s5582 + $0x1d8] sm:$0xff]
    %v5643 = vld [vmem:[%s5582 + $0x1e0] sm:$0xff]
    %v5644 = vld [vmem:[%s5582 + $0x1e8] sm:$0xff]
    %v5645 = vld [vmem:[%s5582 + $0x1f0] sm:$0xff]
    %v5646 = vld [vmem:[%s5582 + $0x1f8] sm:$0xff]
    %v5647 = vrot.slane %v5282, 4
    %v5648 = vrot.slane %v5283, 4
    %v5649 = vrot.slane %v5284, 4
    %5650 = vrot.lane.b32.xlu0 %v5647, 48
    %v5651 = vpop.permute.xlu0 %5650
    %5652 = vrot.lane.b32.xlu0 %v5648, 48
    %v5653 = vpop.permute.xlu0 %5652
    %5654 = vrot.lane.b32.xlu0 %v5649, 48
    %v5655 = vpop.permute.xlu0 %5654
    %v5656 = vsel %vm4987, %v5651, %v5653
    %v5657 = vsel %vm4987, %v5653, %v5655
    %5660 = vmatprep.subr.mxu0 %v5614
    %5661 = vmatpush1.msra.mxu0 %v5613
    %5662 = vmatprep.subr.mxu0 %v5612
    %5663 = vmatpush1.msra.mxu0 %v5611
    %5664 = vmatprep.subr.mxu0 %v5610
    %5665 = vmatpush1.msra.mxu0 %v5609
    %5666 = vmatprep.subr.mxu0 %v5608
    %5667 = vmatpush1.msra.mxu0 %v5607
    %5668 = vmatprep.subr.mxu0 %v5606
    %5669 = vmatpush1.msra.mxu0 %v5605
    %5670 = vmatprep.subr.mxu0 %v5604
    %5671 = vmatpush1.msra.mxu0 %v5603
    %5672 = vmatprep.subr.mxu0 %v5602
    %5673 = vmatpush1.msra.mxu0 %v5601
    %5674 = vmatprep.subr.mxu0 %v5600
    %5675 = vmatpush1.msra.mxu0 %v5599
    %5676 = vmatprep.subr.mxu0 %v5598
    %5677 = vmatpush1.msra.mxu0 %v5597
    %5678 = vmatprep.subr.mxu0 %v5596
    %5679 = vmatpush1.msra.mxu0 %v5595
    %5680 = vmatprep.subr.mxu0 %v5594
    %5681 = vmatpush1.msra.mxu0 %v5593
    %5682 = vmatprep.subr.mxu0 %v5592
    %5683 = vmatpush1.msra.mxu0 %v5591
    %5684 = vmatprep.subr.mxu0 %v5590
    %5685 = vmatpush1.msra.mxu0 %v5589
    %5686 = vmatprep.subr.mxu0 %v5588
    %5687 = vmatpush1.msra.mxu0 %v5587
    %5688 = vmatprep.subr.mxu0 %v5586
    %5689 = vmatpush1.msra.mxu0 %v5585
    %5690 = vmatprep.subr.mxu0 %v5584
    %5691 = vmatpush1.msra.mxu0 %v5583
    %5692 = vmatprep.subr.mxu0 %v5646
    %5693 = vmatpush2.msra.mxu0 %v5645
    %5694 = vmatprep.subr.mxu0 %v5644
    %5695 = vmatpush2.msra.mxu0 %v5643
    %5696 = vmatprep.subr.mxu0 %v5642
    %5697 = vmatpush2.msra.mxu0 %v5641
    %5698 = vmatprep.subr.mxu0 %v5640
    %5699 = vmatpush2.msra.mxu0 %v5639
    %5700 = vmatprep.subr.mxu0 %v5638
    %5701 = vmatpush2.msra.mxu0 %v5637
    %5702 = vmatprep.subr.mxu0 %v5636
    %5703 = vmatpush2.msra.mxu0 %v5635
    %5704 = vmatprep.subr.mxu0 %v5634
    %5705 = vmatpush2.msra.mxu0 %v5633
    %5706 = vmatprep.subr.mxu0 %v5632
    %5707 = vmatpush2.msra.mxu0 %v5631
    %5708 = vmatprep.subr.mxu0 %v5630
    %5709 = vmatpush2.msra.mxu0 %v5629
    %5710 = vmatprep.subr.mxu0 %v5628
    %5711 = vmatpush2.msra.mxu0 %v5627
    %5712 = vmatprep.subr.mxu0 %v5626
    %5713 = vmatpush2.msra.mxu0 %v5625
    %5714 = vmatprep.subr.mxu0 %v5624
    %5715 = vmatpush2.msra.mxu0 %v5623
    %5716 = vmatprep.subr.mxu0 %v5622
    %5717 = vmatpush2.msra.mxu0 %v5621
    %5718 = vmatprep.subr.mxu0 %v5620
    %5719 = vmatpush2.msra.mxu0 %v5619
    %5720 = vmatprep.subr.mxu0 %v5618
    %5721 = vmatpush2.msra.mxu0 %v5617
    %5722 = vmatprep.subr.mxu0 %v5616
    %5723 = vmatpush2.msra.mxu0 %v5615
    %5724 = vmatprep.mubr.f32.mxu0 %v5657
    %5725 = vmatmul.mubr.f32.gmra.mxu0 %v5656
    %v5726 = vpop.f32.mrf.mxu0
    %v5727 = vadd.f32 0.0, %v5726
    %v5728 = vpop.f32.mrf.mxu0
    %v5729 = vadd.f32 0.0, %v5728
    %5730 = vdwg.mxu0
    %s5731 = scalar_lea.vmem %s6, 1536
    %v5732 = vld [vmem:[%s5731] sm:$0xff]
    %v5733 = vld [vmem:[%s5731 + $0x8] sm:$0xff]
    %v5734 = vld [vmem:[%s5731 + $0x10] sm:$0xff]
    %v5735 = vld [vmem:[%s5731 + $0x18] sm:$0xff]
    %v5736 = vld [vmem:[%s5731 + $0x20] sm:$0xff]
    %v5737 = vld [vmem:[%s5731 + $0x28] sm:$0xff]
    %v5738 = vld [vmem:[%s5731 + $0x30] sm:$0xff]
    %v5739 = vld [vmem:[%s5731 + $0x38] sm:$0xff]
    %v5740 = vld [vmem:[%s5731 + $0x40] sm:$0xff]
    %v5741 = vld [vmem:[%s5731 + $0x48] sm:$0xff]
    %v5742 = vld [vmem:[%s5731 + $0x50] sm:$0xff]
    %v5743 = vld [vmem:[%s5731 + $0x58] sm:$0xff]
    %v5744 = vld [vmem:[%s5731 + $0x60] sm:$0xff]
    %v5745 = vld [vmem:[%s5731 + $0x68] sm:$0xff]
    %v5746 = vld [vmem:[%s5731 + $0x70] sm:$0xff]
    %v5747 = vld [vmem:[%s5731 + $0x78] sm:$0xff]
    %v5748 = vld [vmem:[%s5731 + $0x80] sm:$0xff]
    %v5749 = vld [vmem:[%s5731 + $0x88] sm:$0xff]
    %v5750 = vld [vmem:[%s5731 + $0x90] sm:$0xff]
    %v5751 = vld [vmem:[%s5731 + $0x98] sm:$0xff]
    %v5752 = vld [vmem:[%s5731 + $0xa0] sm:$0xff]
    %v5753 = vld [vmem:[%s5731 + $0xa8] sm:$0xff]
    %v5754 = vld [vmem:[%s5731 + $0xb0] sm:$0xff]
    %v5755 = vld [vmem:[%s5731 + $0xb8] sm:$0xff]
    %v5756 = vld [vmem:[%s5731 + $0xc0] sm:$0xff]
    %v5757 = vld [vmem:[%s5731 + $0xc8] sm:$0xff]
    %v5758 = vld [vmem:[%s5731 + $0xd0] sm:$0xff]
    %v5759 = vld [vmem:[%s5731 + $0xd8] sm:$0xff]
    %v5760 = vld [vmem:[%s5731 + $0xe0] sm:$0xff]
    %v5761 = vld [vmem:[%s5731 + $0xe8] sm:$0xff]
    %v5762 = vld [vmem:[%s5731 + $0xf0] sm:$0xff]
    %v5763 = vld [vmem:[%s5731 + $0xf8] sm:$0xff]
    %v5764 = vld [vmem:[%s5731 + $0x100] sm:$0xff]
    %v5765 = vld [vmem:[%s5731 + $0x108] sm:$0xff]
    %v5766 = vld [vmem:[%s5731 + $0x110] sm:$0xff]
    %v5767 = vld [vmem:[%s5731 + $0x118] sm:$0xff]
    %v5768 = vld [vmem:[%s5731 + $0x120] sm:$0xff]
    %v5769 = vld [vmem:[%s5731 + $0x128] sm:$0xff]
    %v5770 = vld [vmem:[%s5731 + $0x130] sm:$0xff]
    %v5771 = vld [vmem:[%s5731 + $0x138] sm:$0xff]
    %v5772 = vld [vmem:[%s5731 + $0x140] sm:$0xff]
    %v5773 = vld [vmem:[%s5731 + $0x148] sm:$0xff]
    %v5774 = vld [vmem:[%s5731 + $0x150] sm:$0xff]
    %v5775 = vld [vmem:[%s5731 + $0x158] sm:$0xff]
    %v5776 = vld [vmem:[%s5731 + $0x160] sm:$0xff]
    %v5777 = vld [vmem:[%s5731 + $0x168] sm:$0xff]
    %v5778 = vld [vmem:[%s5731 + $0x170] sm:$0xff]
    %v5779 = vld [vmem:[%s5731 + $0x178] sm:$0xff]
    %v5780 = vld [vmem:[%s5731 + $0x180] sm:$0xff]
    %v5781 = vld [vmem:[%s5731 + $0x188] sm:$0xff]
    %v5782 = vld [vmem:[%s5731 + $0x190] sm:$0xff]
    %v5783 = vld [vmem:[%s5731 + $0x198] sm:$0xff]
    %v5784 = vld [vmem:[%s5731 + $0x1a0] sm:$0xff]
    %v5785 = vld [vmem:[%s5731 + $0x1a8] sm:$0xff]
    %v5786 = vld [vmem:[%s5731 + $0x1b0] sm:$0xff]
    %v5787 = vld [vmem:[%s5731 + $0x1b8] sm:$0xff]
    %v5788 = vld [vmem:[%s5731 + $0x1c0] sm:$0xff]
    %v5789 = vld [vmem:[%s5731 + $0x1c8] sm:$0xff]
    %v5790 = vld [vmem:[%s5731 + $0x1d0] sm:$0xff]
    %v5791 = vld [vmem:[%s5731 + $0x1d8] sm:$0xff]
    %v5792 = vld [vmem:[%s5731 + $0x1e0] sm:$0xff]
    %v5793 = vld [vmem:[%s5731 + $0x1e8] sm:$0xff]
    %v5794 = vld [vmem:[%s5731 + $0x1f0] sm:$0xff]
    %v5795 = vld [vmem:[%s5731 + $0x1f8] sm:$0xff]
    %v5796 = vrot.slane %v5282, 6
    %v5797 = vrot.slane %v5283, 6
    %v5798 = vrot.slane %v5284, 6
    %5799 = vrot.lane.b32.xlu0 %v5796, 48
    %v5800 = vpop.permute.xlu0 %5799
    %5801 = vrot.lane.b32.xlu0 %v5797, 48
    %v5802 = vpop.permute.xlu0 %5801
    %5803 = vrot.lane.b32.xlu0 %v5798, 48
    %v5804 = vpop.permute.xlu0 %5803
    %v5805 = vsel %vm4987, %v5800, %v5802
    %v5806 = vsel %vm4987, %v5802, %v5804
    %5809 = vmatprep.subr.mxu0 %v5763
    %5810 = vmatpush1.msra.mxu0 %v5762
    %5811 = vmatprep.subr.mxu0 %v5761
    %5812 = vmatpush1.msra.mxu0 %v5760
    %5813 = vmatprep.subr.mxu0 %v5759
    %5814 = vmatpush1.msra.mxu0 %v5758
    %5815 = vmatprep.subr.mxu0 %v5757
    %5816 = vmatpush1.msra.mxu0 %v5756
    %5817 = vmatprep.subr.mxu0 %v5755
    %5818 = vmatpush1.msra.mxu0 %v5754
    %5819 = vmatprep.subr.mxu0 %v5753
    %5820 = vmatpush1.msra.mxu0 %v5752
    %5821 = vmatprep.subr.mxu0 %v5751
    %5822 = vmatpush1.msra.mxu0 %v5750
    %5823 = vmatprep.subr.mxu0 %v5749
    %5824 = vmatpush1.msra.mxu0 %v5748
    %5825 = vmatprep.subr.mxu0 %v5747
    %5826 = vmatpush1.msra.mxu0 %v5746
    %5827 = vmatprep.subr.mxu0 %v5745
    %5828 = vmatpush1.msra.mxu0 %v5744
    %5829 = vmatprep.subr.mxu0 %v5743
    %5830 = vmatpush1.msra.mxu0 %v5742
    %5831 = vmatprep.subr.mxu0 %v5741
    %5832 = vmatpush1.msra.mxu0 %v5740
    %5833 = vmatprep.subr.mxu0 %v5739
    %5834 = vmatpush1.msra.mxu0 %v5738
    %5835 = vmatprep.subr.mxu0 %v5737
    %5836 = vmatpush1.msra.mxu0 %v5736
    %5837 = vmatprep.subr.mxu0 %v5735
    %5838 = vmatpush1.msra.mxu0 %v5734
    %5839 = vmatprep.subr.mxu0 %v5733
    %5840 = vmatpush1.msra.mxu0 %v5732
    %5841 = vmatprep.subr.mxu0 %v5795
    %5842 = vmatpush2.msra.mxu0 %v5794
    %5843 = vmatprep.subr.mxu0 %v5793
    %5844 = vmatpush2.msra.mxu0 %v5792
    %5845 = vmatprep.subr.mxu0 %v5791
    %5846 = vmatpush2.msra.mxu0 %v5790
    %5847 = vmatprep.subr.mxu0 %v5789
    %5848 = vmatpush2.msra.mxu0 %v5788
    %5849 = vmatprep.subr.mxu0 %v5787
    %5850 = vmatpush2.msra.mxu0 %v5786
    %5851 = vmatprep.subr.mxu0 %v5785
    %5852 = vmatpush2.msra.mxu0 %v5784
    %5853 = vmatprep.subr.mxu0 %v5783
    %5854 = vmatpush2.msra.mxu0 %v5782
    %5855 = vmatprep.subr.mxu0 %v5781
    %5856 = vmatpush2.msra.mxu0 %v5780
    %5857 = vmatprep.subr.mxu0 %v5779
    %5858 = vmatpush2.msra.mxu0 %v5778
    %5859 = vmatprep.subr.mxu0 %v5777
    %5860 = vmatpush2.msra.mxu0 %v5776
    %5861 = vmatprep.subr.mxu0 %v5775
    %5862 = vmatpush2.msra.mxu0 %v5774
    %5863 = vmatprep.subr.mxu0 %v5773
    %5864 = vmatpush2.msra.mxu0 %v5772
    %5865 = vmatprep.subr.mxu0 %v5771
    %5866 = vmatpush2.msra.mxu0 %v5770
    %5867 = vmatprep.subr.mxu0 %v5769
    %5868 = vmatpush2.msra.mxu0 %v5768
    %5869 = vmatprep.subr.mxu0 %v5767
    %5870 = vmatpush2.msra.mxu0 %v5766
    %5871 = vmatprep.subr.mxu0 %v5765
    %5872 = vmatpush2.msra.mxu0 %v5764
    %5873 = vmatprep.mubr.f32.mxu0 %v5806
    %5874 = vmatmul.mubr.f32.gmra.mxu0 %v5805
    %v5875 = vpop.f32.mrf.mxu0
    %v5876 = vadd.f32 0.0, %v5875
    %v5877 = vpop.f32.mrf.mxu0
    %v5878 = vadd.f32 0.0, %v5877
    %5879 = vdwg.mxu0
    %s5880 = scalar_lea.vmem %s6, 2048
    %v5881 = vld [vmem:[%s5880] sm:$0xff]
    %v5882 = vld [vmem:[%s5880 + $0x8] sm:$0xff]
    %v5883 = vld [vmem:[%s5880 + $0x10] sm:$0xff]
    %v5884 = vld [vmem:[%s5880 + $0x18] sm:$0xff]
    %v5885 = vld [vmem:[%s5880 + $0x20] sm:$0xff]
    %v5886 = vld [vmem:[%s5880 + $0x28] sm:$0xff]
    %v5887 = vld [vmem:[%s5880 + $0x30] sm:$0xff]
    %v5888 = vld [vmem:[%s5880 + $0x38] sm:$0xff]
    %v5889 = vld [vmem:[%s5880 + $0x40] sm:$0xff]
    %v5890 = vld [vmem:[%s5880 + $0x48] sm:$0xff]
    %v5891 = vld [vmem:[%s5880 + $0x50] sm:$0xff]
    %v5892 = vld [vmem:[%s5880 + $0x58] sm:$0xff]
    %v5893 = vld [vmem:[%s5880 + $0x60] sm:$0xff]
    %v5894 = vld [vmem:[%s5880 + $0x68] sm:$0xff]
    %v5895 = vld [vmem:[%s5880 + $0x70] sm:$0xff]
    %v5896 = vld [vmem:[%s5880 + $0x78] sm:$0xff]
    %v5897 = vld [vmem:[%s5880 + $0x80] sm:$0xff]
    %v5898 = vld [vmem:[%s5880 + $0x88] sm:$0xff]
    %v5899 = vld [vmem:[%s5880 + $0x90] sm:$0xff]
    %v5900 = vld [vmem:[%s5880 + $0x98] sm:$0xff]
    %v5901 = vld [vmem:[%s5880 + $0xa0] sm:$0xff]
    %v5902 = vld [vmem:[%s5880 + $0xa8] sm:$0xff]
    %v5903 = vld [vmem:[%s5880 + $0xb0] sm:$0xff]
    %v5904 = vld [vmem:[%s5880 + $0xb8] sm:$0xff]
    %v5905 = vld [vmem:[%s5880 + $0xc0] sm:$0xff]
    %v5906 = vld [vmem:[%s5880 + $0xc8] sm:$0xff]
    %v5907 = vld [vmem:[%s5880 + $0xd0] sm:$0xff]
    %v5908 = vld [vmem:[%s5880 + $0xd8] sm:$0xff]
    %v5909 = vld [vmem:[%s5880 + $0xe0] sm:$0xff]
    %v5910 = vld [vmem:[%s5880 + $0xe8] sm:$0xff]
    %v5911 = vld [vmem:[%s5880 + $0xf0] sm:$0xff]
    %v5912 = vld [vmem:[%s5880 + $0xf8] sm:$0xff]
    %v5913 = vld [vmem:[%s5880 + $0x100] sm:$0xff]
    %v5914 = vld [vmem:[%s5880 + $0x108] sm:$0xff]
    %v5915 = vld [vmem:[%s5880 + $0x110] sm:$0xff]
    %v5916 = vld [vmem:[%s5880 + $0x118] sm:$0xff]
    %v5917 = vld [vmem:[%s5880 + $0x120] sm:$0xff]
    %v5918 = vld [vmem:[%s5880 + $0x128] sm:$0xff]
    %v5919 = vld [vmem:[%s5880 + $0x130] sm:$0xff]
    %v5920 = vld [vmem:[%s5880 + $0x138] sm:$0xff]
    %v5921 = vld [vmem:[%s5880 + $0x140] sm:$0xff]
    %v5922 = vld [vmem:[%s5880 + $0x148] sm:$0xff]
    %v5923 = vld [vmem:[%s5880 + $0x150] sm:$0xff]
    %v5924 = vld [vmem:[%s5880 + $0x158] sm:$0xff]
    %v5925 = vld [vmem:[%s5880 + $0x160] sm:$0xff]
    %v5926 = vld [vmem:[%s5880 + $0x168] sm:$0xff]
    %v5927 = vld [vmem:[%s5880 + $0x170] sm:$0xff]
    %v5928 = vld [vmem:[%s5880 + $0x178] sm:$0xff]
    %v5929 = vld [vmem:[%s5880 + $0x180] sm:$0xff]
    %v5930 = vld [vmem:[%s5880 + $0x188] sm:$0xff]
    %v5931 = vld [vmem:[%s5880 + $0x190] sm:$0xff]
    %v5932 = vld [vmem:[%s5880 + $0x198] sm:$0xff]
    %v5933 = vld [vmem:[%s5880 + $0x1a0] sm:$0xff]
    %v5934 = vld [vmem:[%s5880 + $0x1a8] sm:$0xff]
    %v5935 = vld [vmem:[%s5880 + $0x1b0] sm:$0xff]
    %v5936 = vld [vmem:[%s5880 + $0x1b8] sm:$0xff]
    %v5937 = vld [vmem:[%s5880 + $0x1c0] sm:$0xff]
    %v5938 = vld [vmem:[%s5880 + $0x1c8] sm:$0xff]
    %v5939 = vld [vmem:[%s5880 + $0x1d0] sm:$0xff]
    %v5940 = vld [vmem:[%s5880 + $0x1d8] sm:$0xff]
    %v5941 = vld [vmem:[%s5880 + $0x1e0] sm:$0xff]
    %v5942 = vld [vmem:[%s5880 + $0x1e8] sm:$0xff]
    %v5943 = vld [vmem:[%s5880 + $0x1f0] sm:$0xff]
    %v5944 = vld [vmem:[%s5880 + $0x1f8] sm:$0xff]
    %5948 = vrot.lane.b32.xlu0 %v5273, 48
    %v5949 = vpop.permute.xlu0 %5948
    %5950 = vrot.lane.b32.xlu0 %v5274, 48
    %v5951 = vpop.permute.xlu0 %5950
    %5952 = vrot.lane.b32.xlu0 %v5275, 48
    %v5953 = vpop.permute.xlu0 %5952
    %v5954 = vsel %vm4987, %v5949, %v5951
    %v5955 = vsel %vm4987, %v5951, %v5953
    %5958 = vmatprep.subr.mxu0 %v5912
    %5959 = vmatpush1.msra.mxu0 %v5911
    %5960 = vmatprep.subr.mxu0 %v5910
    %5961 = vmatpush1.msra.mxu0 %v5909
    %5962 = vmatprep.subr.mxu0 %v5908
    %5963 = vmatpush1.msra.mxu0 %v5907
    %5964 = vmatprep.subr.mxu0 %v5906
    %5965 = vmatpush1.msra.mxu0 %v5905
    %5966 = vmatprep.subr.mxu0 %v5904
    %5967 = vmatpush1.msra.mxu0 %v5903
    %5968 = vmatprep.subr.mxu0 %v5902
    %5969 = vmatpush1.msra.mxu0 %v5901
    %5970 = vmatprep.subr.mxu0 %v5900
    %5971 = vmatpush1.msra.mxu0 %v5899
    %5972 = vmatprep.subr.mxu0 %v5898
    %5973 = vmatpush1.msra.mxu0 %v5897
    %5974 = vmatprep.subr.mxu0 %v5896
    %5975 = vmatpush1.msra.mxu0 %v5895
    %5976 = vmatprep.subr.mxu0 %v5894
    %5977 = vmatpush1.msra.mxu0 %v5893
    %5978 = vmatprep.subr.mxu0 %v5892
    %5979 = vmatpush1.msra.mxu0 %v5891
    %5980 = vmatprep.subr.mxu0 %v5890
    %5981 = vmatpush1.msra.mxu0 %v5889
    %5982 = vmatprep.subr.mxu0 %v5888
    %5983 = vmatpush1.msra.mxu0 %v5887
    %5984 = vmatprep.subr.mxu0 %v5886
    %5985 = vmatpush1.msra.mxu0 %v5885
    %5986 = vmatprep.subr.mxu0 %v5884
    %5987 = vmatpush1.msra.mxu0 %v5883
    %5988 = vmatprep.subr.mxu0 %v5882
    %5989 = vmatpush1.msra.mxu0 %v5881
    %5990 = vmatprep.subr.mxu0 %v5944
    %5991 = vmatpush2.msra.mxu0 %v5943
    %5992 = vmatprep.subr.mxu0 %v5942
    %5993 = vmatpush2.msra.mxu0 %v5941
    %5994 = vmatprep.subr.mxu0 %v5940
    %5995 = vmatpush2.msra.mxu0 %v5939
    %5996 = vmatprep.subr.mxu0 %v5938
    %5997 = vmatpush2.msra.mxu0 %v5937
    %5998 = vmatprep.subr.mxu0 %v5936
    %5999 = vmatpush2.msra.mxu0 %v5935
    %6000 = vmatprep.subr.mxu0 %v5934
    %6001 = vmatpush2.msra.mxu0 %v5933
    %6002 = vmatprep.subr.mxu0 %v5932
    %6003 = vmatpush2.msra.mxu0 %v5931
    %6004 = vmatprep.subr.mxu0 %v5930
    %6005 = vmatpush2.msra.mxu0 %v5929
    %6006 = vmatprep.subr.mxu0 %v5928
    %6007 = vmatpush2.msra.mxu0 %v5927
    %6008 = vmatprep.subr.mxu0 %v5926
    %6009 = vmatpush2.msra.mxu0 %v5925
    %6010 = vmatprep.subr.mxu0 %v5924
    %6011 = vmatpush2.msra.mxu0 %v5923
    %6012 = vmatprep.subr.mxu0 %v5922
    %6013 = vmatpush2.msra.mxu0 %v5921
    %6014 = vmatprep.subr.mxu0 %v5920
    %6015 = vmatpush2.msra.mxu0 %v5919
    %6016 = vmatprep.subr.mxu0 %v5918
    %6017 = vmatpush2.msra.mxu0 %v5917
    %6018 = vmatprep.subr.mxu0 %v5916
    %6019 = vmatpush2.msra.mxu0 %v5915
    %6020 = vmatprep.subr.mxu0 %v5914
    %6021 = vmatpush2.msra.mxu0 %v5913
    %6022 = vmatprep.mubr.f32.mxu0 %v5955
    %6023 = vmatmul.mubr.f32.gmra.mxu0 %v5954
    %v6024 = vpop.f32.mrf.mxu0
    %v6025 = vadd.f32 0.0, %v6024
    %v6026 = vpop.f32.mrf.mxu0
    %v6027 = vadd.f32 0.0, %v6026
    %6028 = vdwg.mxu0
    %v6031 = vrot.slane %v5578, 6
    %v6032 = vrot.slane %v5580, 6
    %v6037 = vrot.slane %v5727, 4
    %v6038 = vrot.slane %v5729, 4
    %v6043 = vrot.slane %v5876, 2
    %v6044 = vrot.slane %v5878, 2
    %v6047 = vsel %vm570, %v5429, %v6031
    %v6048 = vsel %vm570, %v5431, %v6032
    %v6049 = vsel %vm1394, %v6047, %v6037
    %v6050 = vsel %vm1394, %v6048, %v6038
    %v6051 = vsel %vm4967, %v6049, %v6043
    %v6052 = vsel %vm4967, %v6050, %v6044
    %v6053 = vsel %vm570, %v6051, 0.0
    %vm6054 = vcmask 222208
    %v6055 = vsel %vm6054, %v6052, 0.0
    %v6056 = vadd.f32 %v6053, %v6055
    %6057 = vadd.xlane.f32.xlu0 %v6056
    %v6058 = vpop.xlane.xlu0 %6057
    %v6059 = vsel %vm570, %v6058, 0.0
    %v6060 = vrot.slane %v6059, 4
    %v6061 = vadd.f32 %v6059, %v6060
    %v6062 = vrot.slane %v6061, 2
    %v6063 = vadd.f32 %v6061, %v6062
    %v6064 = vrot.slane %v6063, 1
    %v6065 = vadd.f32 %v6063, %v6064
    %v6066 = vmul.f32 %v6065, 0.0032051282
    %v6067 = vsub.f32 %v6051, %v6066
    %v6068 = vsub.f32 %v6052, %v6066
    %v6069 = vmul.f32 %v6067, %v6067
    %v6070 = vmul.f32 %v6068, %v6068
    %v6071 = vsel %vm570, %v6069, 0.0
    %v6072 = vsel %vm6054, %v6070, 0.0
    %v6073 = vadd.f32 %v6071, %v6072
    %6074 = vadd.xlane.f32.xlu0 %v6073
    %v6075 = vpop.xlane.xlu0 %6074
    %v6076 = vsel %vm570, %v6075, 0.0
    %v6077 = vrot.slane %v6076, 4
    %v6078 = vadd.f32 %v6076, %v6077
    %v6079 = vrot.slane %v6078, 2
    %v6080 = vadd.f32 %v6078, %v6079
    %v6081 = vrot.slane %v6080, 1
    %v6082 = vadd.f32 %v6080, %v6081
    %v6083 = vmul.f32 %v6082, 0.0032051282
    %v6084 = vadd.f32 %v6083, 1e-05
    %v6085 = vrsqrt.pop %v6084
    %v6086 = vmul.f32 %v6067, %v6085
    %v6087 = vmul.f32 %v6068, %v6085
    %v6088 = vsel %vm5042, %v6051, 0.0
    %vm6089 = vcmask 224258
    %v6090 = vsel %vm6089, %v6052, 0.0
    %v6091 = vadd.f32 %v6088, %v6090
    %6092 = vadd.xlane.f32.xlu0 %v6091
    %v6093 = vpop.xlane.xlu0 %6092
    %v6095 = vrot.slane %v6093, 2
    %v6097 = vsel %vm570, %v6095, 0.0
    %v6098 = vrot.slane %v6097, 4
    %v6099 = vadd.f32 %v6097, %v6098
    %v6100 = vrot.slane %v6099, 2
    %v6101 = vadd.f32 %v6099, %v6100
    %v6102 = vrot.slane %v6101, 1
    %v6103 = vadd.f32 %v6101, %v6102
    %v6104 = vmul.f32 %v6103, 0.0032051282
    %v6105 = vsub.f32 %v6051, %v6104
    %v6106 = vsub.f32 %v6052, %v6104
    %v6107 = vmul.f32 %v6105, %v6105
    %v6108 = vmul.f32 %v6106, %v6106
    %v6109 = vsel %vm5042, %v6107, 0.0
    %v6110 = vsel %vm6089, %v6108, 0.0
    %v6111 = vadd.f32 %v6109, %v6110
    %6112 = vadd.xlane.f32.xlu0 %v6111
    %v6113 = vpop.xlane.xlu0 %6112
    %v6115 = vrot.slane %v6113, 2
    %v6117 = vsel %vm570, %v6115, 0.0
    %v6118 = vrot.slane %v6117, 4
    %v6119 = vadd.f32 %v6117, %v6118
    %v6120 = vrot.slane %v6119, 2
    %v6121 = vadd.f32 %v6119, %v6120
    %v6122 = vrot.slane %v6121, 1
    %v6123 = vadd.f32 %v6121, %v6122
    %v6124 = vmul.f32 %v6123, 0.0032051282
    %v6125 = vadd.f32 %v6124, 1e-05
    %v6126 = vrsqrt.pop %v6125
    %v6127 = vmul.f32 %v6105, %v6126
    %v6128 = vmul.f32 %v6106, %v6126
    %v6129 = vsel %vm5099, %v6051, 0.0
    %vm6130 = vcmask 226308
    %v6131 = vsel %vm6130, %v6052, 0.0
    %v6132 = vadd.f32 %v6129, %v6131
    %6133 = vadd.xlane.f32.xlu0 %v6132
    %v6134 = vpop.xlane.xlu0 %6133
    %v6136 = vrot.slane %v6134, 4
    %v6138 = vsel %vm570, %v6136, 0.0
    %v6139 = vrot.slane %v6138, 4
    %v6140 = vadd.f32 %v6138, %v6139
    %v6141 = vrot.slane %v6140, 2
    %v6142 = vadd.f32 %v6140, %v6141
    %v6143 = vrot.slane %v6142, 1
    %v6144 = vadd.f32 %v6142, %v6143
    %v6145 = vmul.f32 %v6144, 0.0032051282
    %v6146 = vsub.f32 %v6051, %v6145
    %v6147 = vsub.f32 %v6052, %v6145
    %v6148 = vmul.f32 %v6146, %v6146
    %v6149 = vmul.f32 %v6147, %v6147
    %v6150 = vsel %vm5099, %v6148, 0.0
    %v6151 = vsel %vm6130, %v6149, 0.0
    %v6152 = vadd.f32 %v6150, %v6151
    %6153 = vadd.xlane.f32.xlu0 %v6152
    %v6154 = vpop.xlane.xlu0 %6153
    %v6156 = vrot.slane %v6154, 4
    %v6158 = vsel %vm570, %v6156, 0.0
    %v6159 = vrot.slane %v6158, 4
    %v6160 = vadd.f32 %v6158, %v6159
    %v6161 = vrot.slane %v6160, 2
    %v6162 = vadd.f32 %v6160, %v6161
    %v6163 = vrot.slane %v6162, 1
    %v6164 = vadd.f32 %v6162, %v6163
    %v6165 = vmul.f32 %v6164, 0.0032051282
    %v6166 = vadd.f32 %v6165, 1e-05
    %v6167 = vrsqrt.pop %v6166
    %v6168 = vmul.f32 %v6146, %v6167
    %v6169 = vmul.f32 %v6147, %v6167
    %v6170 = vsel %vm5156, %v6051, 0.0
    %vm6171 = vcmask 228358
    %v6172 = vsel %vm6171, %v6052, 0.0
    %v6173 = vadd.f32 %v6170, %v6172
    %6174 = vadd.xlane.f32.xlu0 %v6173
    %v6175 = vpop.xlane.xlu0 %6174
    %v6177 = vrot.slane %v6175, 6
    %v6179 = vsel %vm570, %v6177, 0.0
    %v6180 = vrot.slane %v6179, 4
    %v6181 = vadd.f32 %v6179, %v6180
    %v6182 = vrot.slane %v6181, 2
    %v6183 = vadd.f32 %v6181, %v6182
    %v6184 = vrot.slane %v6183, 1
    %v6185 = vadd.f32 %v6183, %v6184
    %v6186 = vmul.f32 %v6185, 0.0032051282
    %v6187 = vsub.f32 %v6051, %v6186
    %v6188 = vsub.f32 %v6052, %v6186
    %v6189 = vmul.f32 %v6187, %v6187
    %v6190 = vmul.f32 %v6188, %v6188
    %v6191 = vsel %vm5156, %v6189, 0.0
    %v6192 = vsel %vm6171, %v6190, 0.0
    %v6193 = vadd.f32 %v6191, %v6192
    %6194 = vadd.xlane.f32.xlu0 %v6193
    %v6195 = vpop.xlane.xlu0 %6194
    %v6197 = vrot.slane %v6195, 6
    %v6199 = vsel %vm570, %v6197, 0.0
    %v6200 = vrot.slane %v6199, 4
    %v6201 = vadd.f32 %v6199, %v6200
    %v6202 = vrot.slane %v6201, 2
    %v6203 = vadd.f32 %v6201, %v6202
    %v6204 = vrot.slane %v6203, 1
    %v6205 = vadd.f32 %v6203, %v6204
    %v6206 = vmul.f32 %v6205, 0.0032051282
    %v6207 = vadd.f32 %v6206, 1e-05
    %v6208 = vrsqrt.pop %v6207
    %v6209 = vmul.f32 %v6187, %v6208
    %v6210 = vmul.f32 %v6188, %v6208
    %v6211 = vsel %vm570, %v6025, 0.0
    %v6212 = vsel %vm6054, %v6027, 0.0
    %v6213 = vadd.f32 %v6211, %v6212
    %6214 = vadd.xlane.f32.xlu0 %v6213
    %v6215 = vpop.xlane.xlu0 %6214
    %v6216 = vsel %vm570, %v6215, 0.0
    %v6217 = vrot.slane %v6216, 4
    %v6218 = vadd.f32 %v6216, %v6217
    %v6219 = vrot.slane %v6218, 2
    %v6220 = vadd.f32 %v6218, %v6219
    %v6221 = vrot.slane %v6220, 1
    %v6222 = vadd.f32 %v6220, %v6221
    %v6223 = vmul.f32 %v6222, 0.0032051282
    %v6224 = vsub.f32 %v6025, %v6223
    %v6225 = vsub.f32 %v6027, %v6223
    %v6226 = vmul.f32 %v6224, %v6224
    %v6227 = vmul.f32 %v6225, %v6225
    %v6228 = vsel %vm570, %v6226, 0.0
    %v6229 = vsel %vm6054, %v6227, 0.0
    %v6230 = vadd.f32 %v6228, %v6229
    %6231 = vadd.xlane.f32.xlu0 %v6230
    %v6232 = vpop.xlane.xlu0 %6231
    %v6233 = vsel %vm570, %v6232, 0.0
    %v6234 = vrot.slane %v6233, 4
    %v6235 = vadd.f32 %v6233, %v6234
    %v6236 = vrot.slane %v6235, 2
    %v6237 = vadd.f32 %v6235, %v6236
    %v6238 = vrot.slane %v6237, 1
    %v6239 = vadd.f32 %v6237, %v6238
    %v6240 = vmul.f32 %v6239, 0.0032051282
    %v6241 = vadd.f32 %v6240, 1e-05
    %v6242 = vrsqrt.pop %v6241
    %v6243 = vmul.f32 %v6224, %v6242
    %v6244 = vmul.f32 %v6225, %v6242
    %v6245 = vsel %vm570, %v6086, %v6127
    %v6246 = vsel %vm570, %v6087, %v6128
    %v6247 = vsel %vm1394, %v6245, %v6168
    %v6248 = vsel %vm1394, %v6246, %v6169
    %v6249 = vsel %vm4967, %v6247, %v6209
    %v6250 = vsel %vm4967, %v6248, %v6210
    %v6251 = vand.u32 2147483647, %v6249
    %v6252 = vand.u32 2147483647, %v6250
    %v6253 = vand.u32 2147483647, %v6243
    %v6254 = vand.u32 2147483647, %v6244
    %v6255 = vld [vmem:[%s7] sm:$0xff]
    %v6256 = vld [vmem:[%s7 + $0x8] sm:$0xff]
    %v6257 = vld [vmem:[%s7 + $0x10] sm:$0xff]
    %v6258 = vld [vmem:[%s7 + $0x18] sm:$0xff]
    %v6259 = vld [vmem:[%s7 + $0x20] sm:$0xff]
    %v6260 = vld [vmem:[%s7 + $0x28] sm:$0xff]
    %v6261 = vld [vmem:[%s7 + $0x30] sm:$0xff]
    %v6262 = vld [vmem:[%s7 + $0x38] sm:$0xff]
    %v6263 = vld [vmem:[%s7 + $0x40] sm:$0xff]
    %v6264 = vld [vmem:[%s7 + $0x48] sm:$0xff]
    %v6265 = vld [vmem:[%s7 + $0x50] sm:$0xff]
    %v6266 = vld [vmem:[%s7 + $0x58] sm:$0xff]
    %v6267 = vld [vmem:[%s7 + $0x60] sm:$0xff]
    %v6268 = vld [vmem:[%s7 + $0x68] sm:$0xff]
    %v6269 = vld [vmem:[%s7 + $0x70] sm:$0xff]
    %v6270 = vld [vmem:[%s7 + $0x78] sm:$0xff]
    %v6271 = vld [vmem:[%s7 + $0x80] sm:$0xff]
    %v6272 = vld [vmem:[%s7 + $0x88] sm:$0xff]
    %v6273 = vld [vmem:[%s7 + $0x90] sm:$0xff]
    %v6274 = vld [vmem:[%s7 + $0x98] sm:$0xf]
    %v6275 = vld [vmem:[%s8] sm:$0x1]
    %s6277 = vtos %v6275
    %v6278 = vstv %s6277
    %vm6280 = vcmask 228352
    %v6282 = vsel %vm6280, %v6252, 0
    %v6285 = vsel %vm1394, %v6274, 0
    %6287 = vmatprep.subr.mxu0 0.0
    %6288 = vmatpush1.msra.mxu0 %v6270
    %6289 = vmatprep.subr.mxu0 0.0
    %6290 = vmatpush1.msra.mxu0 %v6269
    %6291 = vmatprep.subr.mxu0 0.0
    %6292 = vmatpush1.msra.mxu0 %v6268
    %6293 = vmatprep.subr.mxu0 0.0
    %6294 = vmatpush1.msra.mxu0 %v6267
    %6295 = vmatprep.subr.mxu0 0.0
    %6296 = vmatpush1.msra.mxu0 %v6266
    %6297 = vmatprep.subr.mxu0 0.0
    %6298 = vmatpush1.msra.mxu0 %v6265
    %6299 = vmatprep.subr.mxu0 0.0
    %6300 = vmatpush1.msra.mxu0 %v6264
    %6301 = vmatprep.subr.mxu0 0.0
    %6302 = vmatpush1.msra.mxu0 %v6263
    %6303 = vmatprep.subr.mxu0 0.0
    %6304 = vmatpush1.msra.mxu0 %v6262
    %6305 = vmatprep.subr.mxu0 0.0
    %6306 = vmatpush1.msra.mxu0 %v6261
    %6307 = vmatprep.subr.mxu0 0.0
    %6308 = vmatpush1.msra.mxu0 %v6260
    %6309 = vmatprep.subr.mxu0 0.0
    %6310 = vmatpush1.msra.mxu0 %v6259
    %6311 = vmatprep.subr.mxu0 0.0
    %6312 = vmatpush1.msra.mxu0 %v6258
    %6313 = vmatprep.subr.mxu0 0.0
    %6314 = vmatpush1.msra.mxu0 %v6257
    %6315 = vmatprep.subr.mxu0 0.0
    %6316 = vmatpush1.msra.mxu0 %v6256
    %6317 = vmatprep.subr.mxu0 0.0
    %6318 = vmatpush1.msra.mxu0 %v6255
    %6319 = vmatprep.subr.mxu0 0.0
    %6320 = vmatpush2.msra.mxu0 0.0
    %6321 = vmatprep.subr.mxu0 0.0
    %6322 = vmatpush2.msra.mxu0 0.0
    %6323 = vmatprep.subr.mxu0 0.0
    %6324 = vmatpush2.msra.mxu0 0.0
    %6325 = vmatprep.subr.mxu0 0.0
    %6326 = vmatpush2.msra.mxu0 0.0
    %6327 = vmatprep.subr.mxu0 0.0
    %6328 = vmatpush2.msra.mxu0 0.0
    %6329 = vmatprep.subr.mxu0 0.0
    %6330 = vmatpush2.msra.mxu0 0.0
    %6331 = vmatprep.subr.mxu0 0.0
    %6332 = vmatpush2.msra.mxu0 0.0
    %6333 = vmatprep.subr.mxu0 0.0
    %6334 = vmatpush2.msra.mxu0 0.0
    %6335 = vmatprep.subr.mxu0 0.0
    %6336 = vmatpush2.msra.mxu0 0.0
    %6337 = vmatprep.subr.mxu0 0.0
    %6338 = vmatpush2.msra.mxu0 0.0
    %6339 = vmatprep.subr.mxu0 0.0
    %6340 = vmatpush2.msra.mxu0 0.0
    %6341 = vmatprep.subr.mxu0 0.0
    %6342 = vmatpush2.msra.mxu0 0.0
    %6343 = vmatprep.subr.mxu0 0.0
    %6344 = vmatpush2.msra.mxu0 %v6285
    %6345 = vmatprep.subr.mxu0 0.0
    %6346 = vmatpush2.msra.mxu0 %v6273
    %6347 = vmatprep.subr.mxu0 0.0
    %6348 = vmatpush2.msra.mxu0 %v6272
    %6349 = vmatprep.subr.mxu0 0.0
    %6350 = vmatpush2.msra.mxu0 %v6271
    %6351 = vmatprep.mubr.f32.mxu0 %v6282
    %6352 = vmatmul.mubr.f32.gmra.mxu0 %v6251
    %v6353 = vpop.f32.mrf.mxu0
    %v6354 = vadd.f32 %v6278, %v6353
    %v6355 = vpop.f32.mrf.mxu0
    %6356 = vdwg.mxu0
    %s6357 = scalar_lea.vmem %s7, 160
    %v6358 = vld [vmem:[%s6357] sm:$0xff]
    %v6359 = vld [vmem:[%s6357 + $0x8] sm:$0xff]
    %v6360 = vld [vmem:[%s6357 + $0x10] sm:$0xff]
    %v6361 = vld [vmem:[%s6357 + $0x18] sm:$0xff]
    %v6362 = vld [vmem:[%s6357 + $0x20] sm:$0xff]
    %v6363 = vld [vmem:[%s6357 + $0x28] sm:$0xff]
    %v6364 = vld [vmem:[%s6357 + $0x30] sm:$0xff]
    %v6365 = vld [vmem:[%s6357 + $0x38] sm:$0xff]
    %v6366 = vld [vmem:[%s6357 + $0x40] sm:$0xff]
    %v6367 = vld [vmem:[%s6357 + $0x48] sm:$0xff]
    %v6368 = vld [vmem:[%s6357 + $0x50] sm:$0xff]
    %v6369 = vld [vmem:[%s6357 + $0x58] sm:$0xff]
    %v6370 = vld [vmem:[%s6357 + $0x60] sm:$0xff]
    %v6371 = vld [vmem:[%s6357 + $0x68] sm:$0xff]
    %v6372 = vld [vmem:[%s6357 + $0x70] sm:$0xff]
    %v6373 = vld [vmem:[%s6357 + $0x78] sm:$0xff]
    %v6374 = vld [vmem:[%s6357 + $0x80] sm:$0xff]
    %v6375 = vld [vmem:[%s6357 + $0x88] sm:$0xff]
    %v6376 = vld [vmem:[%s6357 + $0x90] sm:$0xff]
    %v6377 = vld [vmem:[%s6357 + $0x98] sm:$0xf]
    %v6378 = vld [vmem:[%s8 + $0x1] sm:$0x1]
    %s6380 = vtos %v6378
    %v6381 = vstv %s6380
    %v6384 = vrot.slane %v6251, 2
    %v6385 = vrot.slane %v6252, 2
    %v6387 = vsel %vm6280, %v6385, 0
    %v6390 = vsel %vm1394, %v6377, 0
    %6392 = vmatprep.subr.mxu0 0.0
    %6393 = vmatpush1.msra.mxu0 %v6373
    %6394 = vmatprep.subr.mxu0 0.0
    %6395 = vmatpush1.msra.mxu0 %v6372
    %6396 = vmatprep.subr.mxu0 0.0
    %6397 = vmatpush1.msra.mxu0 %v6371
    %6398 = vmatprep.subr.mxu0 0.0
    %6399 = vmatpush1.msra.mxu0 %v6370
    %6400 = vmatprep.subr.mxu0 0.0
    %6401 = vmatpush1.msra.mxu0 %v6369
    %6402 = vmatprep.subr.mxu0 0.0
    %6403 = vmatpush1.msra.mxu0 %v6368
    %6404 = vmatprep.subr.mxu0 0.0
    %6405 = vmatpush1.msra.mxu0 %v6367
    %6406 = vmatprep.subr.mxu0 0.0
    %6407 = vmatpush1.msra.mxu0 %v6366
    %6408 = vmatprep.subr.mxu0 0.0
    %6409 = vmatpush1.msra.mxu0 %v6365
    %6410 = vmatprep.subr.mxu0 0.0
    %6411 = vmatpush1.msra.mxu0 %v6364
    %6412 = vmatprep.subr.mxu0 0.0
    %6413 = vmatpush1.msra.mxu0 %v6363
    %6414 = vmatprep.subr.mxu0 0.0
    %6415 = vmatpush1.msra.mxu0 %v6362
    %6416 = vmatprep.subr.mxu0 0.0
    %6417 = vmatpush1.msra.mxu0 %v6361
    %6418 = vmatprep.subr.mxu0 0.0
    %6419 = vmatpush1.msra.mxu0 %v6360
    %6420 = vmatprep.subr.mxu0 0.0
    %6421 = vmatpush1.msra.mxu0 %v6359
    %6422 = vmatprep.subr.mxu0 0.0
    %6423 = vmatpush1.msra.mxu0 %v6358
    %6424 = vmatprep.subr.mxu0 0.0
    %6425 = vmatpush2.msra.mxu0 0.0
    %6426 = vmatprep.subr.mxu0 0.0
    %6427 = vmatpush2.msra.mxu0 0.0
    %6428 = vmatprep.subr.mxu0 0.0
    %6429 = vmatpush2.msra.mxu0 0.0
    %6430 = vmatprep.subr.mxu0 0.0
    %6431 = vmatpush2.msra.mxu0 0.0
    %6432 = vmatprep.subr.mxu0 0.0
    %6433 = vmatpush2.msra.mxu0 0.0
    %6434 = vmatprep.subr.mxu0 0.0
    %6435 = vmatpush2.msra.mxu0 0.0
    %6436 = vmatprep.subr.mxu0 0.0
    %6437 = vmatpush2.msra.mxu0 0.0
    %6438 = vmatprep.subr.mxu0 0.0
    %6439 = vmatpush2.msra.mxu0 0.0
    %6440 = vmatprep.subr.mxu0 0.0
    %6441 = vmatpush2.msra.mxu0 0.0
    %6442 = vmatprep.subr.mxu0 0.0
    %6443 = vmatpush2.msra.mxu0 0.0
    %6444 = vmatprep.subr.mxu0 0.0
    %6445 = vmatpush2.msra.mxu0 0.0
    %6446 = vmatprep.subr.mxu0 0.0
    %6447 = vmatpush2.msra.mxu0 0.0
    %6448 = vmatprep.subr.mxu0 0.0
    %6449 = vmatpush2.msra.mxu0 %v6390
    %6450 = vmatprep.subr.mxu0 0.0
    %6451 = vmatpush2.msra.mxu0 %v6376
    %6452 = vmatprep.subr.mxu0 0.0
    %6453 = vmatpush2.msra.mxu0 %v6375
    %6454 = vmatprep.subr.mxu0 0.0
    %6455 = vmatpush2.msra.mxu0 %v6374
    %6456 = vmatprep.mubr.f32.mxu0 %v6387
    %6457 = vmatmul.mubr.f32.gmra.mxu0 %v6384
    %v6458 = vpop.f32.mrf.mxu0
    %v6459 = vadd.f32 %v6381, %v6458
    %v6460 = vpop.f32.mrf.mxu0
    %6461 = vdwg.mxu0
    %s6462 = scalar_lea.vmem %s7, 320
    %v6463 = vld [vmem:[%s6462] sm:$0xff]
    %v6464 = vld [vmem:[%s6462 + $0x8] sm:$0xff]
    %v6465 = vld [vmem:[%s6462 + $0x10] sm:$0xff]
    %v6466 = vld [vmem:[%s6462 + $0x18] sm:$0xff]
    %v6467 = vld [vmem:[%s6462 + $0x20] sm:$0xff]
    %v6468 = vld [vmem:[%s6462 + $0x28] sm:$0xff]
    %v6469 = vld [vmem:[%s6462 + $0x30] sm:$0xff]
    %v6470 = vld [vmem:[%s6462 + $0x38] sm:$0xff]
    %v6471 = vld [vmem:[%s6462 + $0x40] sm:$0xff]
    %v6472 = vld [vmem:[%s6462 + $0x48] sm:$0xff]
    %v6473 = vld [vmem:[%s6462 + $0x50] sm:$0xff]
    %v6474 = vld [vmem:[%s6462 + $0x58] sm:$0xff]
    %v6475 = vld [vmem:[%s6462 + $0x60] sm:$0xff]
    %v6476 = vld [vmem:[%s6462 + $0x68] sm:$0xff]
    %v6477 = vld [vmem:[%s6462 + $0x70] sm:$0xff]
    %v6478 = vld [vmem:[%s6462 + $0x78] sm:$0xff]
    %v6479 = vld [vmem:[%s6462 + $0x80] sm:$0xff]
    %v6480 = vld [vmem:[%s6462 + $0x88] sm:$0xff]
    %v6481 = vld [vmem:[%s6462 + $0x90] sm:$0xff]
    %v6482 = vld [vmem:[%s6462 + $0x98] sm:$0xf]
    %v6483 = vld [vmem:[%s8 + $0x2] sm:$0x1]
    %s6485 = vtos %v6483
    %v6486 = vstv %s6485
    %v6488 = vrot.slane %v6251, 4
    %v6489 = vrot.slane %v6252, 4
    %v6491 = vsel %vm6280, %v6489, 0
    %v6494 = vsel %vm1394, %v6482, 0
    %6496 = vmatprep.subr.mxu0 0.0
    %6497 = vmatpush1.msra.mxu0 %v6478
    %6498 = vmatprep.subr.mxu0 0.0
    %6499 = vmatpush1.msra.mxu0 %v6477
    %6500 = vmatprep.subr.mxu0 0.0
    %6501 = vmatpush1.msra.mxu0 %v6476
    %6502 = vmatprep.subr.mxu0 0.0
    %6503 = vmatpush1.msra.mxu0 %v6475
    %6504 = vmatprep.subr.mxu0 0.0
    %6505 = vmatpush1.msra.mxu0 %v6474
    %6506 = vmatprep.subr.mxu0 0.0
    %6507 = vmatpush1.msra.mxu0 %v6473
    %6508 = vmatprep.subr.mxu0 0.0
    %6509 = vmatpush1.msra.mxu0 %v6472
    %6510 = vmatprep.subr.mxu0 0.0
    %6511 = vmatpush1.msra.mxu0 %v6471
    %6512 = vmatprep.subr.mxu0 0.0
    %6513 = vmatpush1.msra.mxu0 %v6470
    %6514 = vmatprep.subr.mxu0 0.0
    %6515 = vmatpush1.msra.mxu0 %v6469
    %6516 = vmatprep.subr.mxu0 0.0
    %6517 = vmatpush1.msra.mxu0 %v6468
    %6518 = vmatprep.subr.mxu0 0.0
    %6519 = vmatpush1.msra.mxu0 %v6467
    %6520 = vmatprep.subr.mxu0 0.0
    %6521 = vmatpush1.msra.mxu0 %v6466
    %6522 = vmatprep.subr.mxu0 0.0
    %6523 = vmatpush1.msra.mxu0 %v6465
    %6524 = vmatprep.subr.mxu0 0.0
    %6525 = vmatpush1.msra.mxu0 %v6464
    %6526 = vmatprep.subr.mxu0 0.0
    %6527 = vmatpush1.msra.mxu0 %v6463
    %6528 = vmatprep.subr.mxu0 0.0
    %6529 = vmatpush2.msra.mxu0 0.0
    %6530 = vmatprep.subr.mxu0 0.0
    %6531 = vmatpush2.msra.mxu0 0.0
    %6532 = vmatprep.subr.mxu0 0.0
    %6533 = vmatpush2.msra.mxu0 0.0
    %6534 = vmatprep.subr.mxu0 0.0
    %6535 = vmatpush2.msra.mxu0 0.0
    %6536 = vmatprep.subr.mxu0 0.0
    %6537 = vmatpush2.msra.mxu0 0.0
    %6538 = vmatprep.subr.mxu0 0.0
    %6539 = vmatpush2.msra.mxu0 0.0
    %6540 = vmatprep.subr.mxu0 0.0
    %6541 = vmatpush2.msra.mxu0 0.0
    %6542 = vmatprep.subr.mxu0 0.0
    %6543 = vmatpush2.msra.mxu0 0.0
    %6544 = vmatprep.subr.mxu0 0.0
    %6545 = vmatpush2.msra.mxu0 0.0
    %6546 = vmatprep.subr.mxu0 0.0
    %6547 = vmatpush2.msra.mxu0 0.0
    %6548 = vmatprep.subr.mxu0 0.0
    %6549 = vmatpush2.msra.mxu0 0.0
    %6550 = vmatprep.subr.mxu0 0.0
    %6551 = vmatpush2.msra.mxu0 0.0
    %6552 = vmatprep.subr.mxu0 0.0
    %6553 = vmatpush2.msra.mxu0 %v6494
    %6554 = vmatprep.subr.mxu0 0.0
    %6555 = vmatpush2.msra.mxu0 %v6481
    %6556 = vmatprep.subr.mxu0 0.0
    %6557 = vmatpush2.msra.mxu0 %v6480
    %6558 = vmatprep.subr.mxu0 0.0
    %6559 = vmatpush2.msra.mxu0 %v6479
    %6560 = vmatprep.mubr.f32.mxu0 %v6491
    %6561 = vmatmul.mubr.f32.gmra.mxu0 %v6488
    %v6562 = vpop.f32.mrf.mxu0
    %v6563 = vadd.f32 %v6486, %v6562
    %v6564 = vpop.f32.mrf.mxu0
    %6565 = vdwg.mxu0
    %s6566 = scalar_lea.vmem %s7, 480
    %v6567 = vld [vmem:[%s6566] sm:$0xff]
    %v6568 = vld [vmem:[%s6566 + $0x8] sm:$0xff]
    %v6569 = vld [vmem:[%s6566 + $0x10] sm:$0xff]
    %v6570 = vld [vmem:[%s6566 + $0x18] sm:$0xff]
    %v6571 = vld [vmem:[%s6566 + $0x20] sm:$0xff]
    %v6572 = vld [vmem:[%s6566 + $0x28] sm:$0xff]
    %v6573 = vld [vmem:[%s6566 + $0x30] sm:$0xff]
    %v6574 = vld [vmem:[%s6566 + $0x38] sm:$0xff]
    %v6575 = vld [vmem:[%s6566 + $0x40] sm:$0xff]
    %v6576 = vld [vmem:[%s6566 + $0x48] sm:$0xff]
    %v6577 = vld [vmem:[%s6566 + $0x50] sm:$0xff]
    %v6578 = vld [vmem:[%s6566 + $0x58] sm:$0xff]
    %v6579 = vld [vmem:[%s6566 + $0x60] sm:$0xff]
    %v6580 = vld [vmem:[%s6566 + $0x68] sm:$0xff]
    %v6581 = vld [vmem:[%s6566 + $0x70] sm:$0xff]
    %v6582 = vld [vmem:[%s6566 + $0x78] sm:$0xff]
    %v6583 = vld [vmem:[%s6566 + $0x80] sm:$0xff]
    %v6584 = vld [vmem:[%s6566 + $0x88] sm:$0xff]
    %v6585 = vld [vmem:[%s6566 + $0x90] sm:$0xff]
    %v6586 = vld [vmem:[%s6566 + $0x98] sm:$0xf]
    %v6587 = vld [vmem:[%s8 + $0x3] sm:$0x1]
    %s6589 = vtos %v6587
    %v6590 = vstv %s6589
    %v6592 = vrot.slane %v6251, 6
    %v6593 = vrot.slane %v6252, 6
    %v6595 = vsel %vm6280, %v6593, 0
    %v6598 = vsel %vm1394, %v6586, 0
    %6600 = vmatprep.subr.mxu0 0.0
    %6601 = vmatpush1.msra.mxu0 %v6582
    %6602 = vmatprep.subr.mxu0 0.0
    %6603 = vmatpush1.msra.mxu0 %v6581
    %6604 = vmatprep.subr.mxu0 0.0
    %6605 = vmatpush1.msra.mxu0 %v6580
    %6606 = vmatprep.subr.mxu0 0.0
    %6607 = vmatpush1.msra.mxu0 %v6579
    %6608 = vmatprep.subr.mxu0 0.0
    %6609 = vmatpush1.msra.mxu0 %v6578
    %6610 = vmatprep.subr.mxu0 0.0
    %6611 = vmatpush1.msra.mxu0 %v6577
    %6612 = vmatprep.subr.mxu0 0.0
    %6613 = vmatpush1.msra.mxu0 %v6576
    %6614 = vmatprep.subr.mxu0 0.0
    %6615 = vmatpush1.msra.mxu0 %v6575
    %6616 = vmatprep.subr.mxu0 0.0
    %6617 = vmatpush1.msra.mxu0 %v6574
    %6618 = vmatprep.subr.mxu0 0.0
    %6619 = vmatpush1.msra.mxu0 %v6573
    %6620 = vmatprep.subr.mxu0 0.0
    %6621 = vmatpush1.msra.mxu0 %v6572
    %6622 = vmatprep.subr.mxu0 0.0
    %6623 = vmatpush1.msra.mxu0 %v6571
    %6624 = vmatprep.subr.mxu0 0.0
    %6625 = vmatpush1.msra.mxu0 %v6570
    %6626 = vmatprep.subr.mxu0 0.0
    %6627 = vmatpush1.msra.mxu0 %v6569
    %6628 = vmatprep.subr.mxu0 0.0
    %6629 = vmatpush1.msra.mxu0 %v6568
    %6630 = vmatprep.subr.mxu0 0.0
    %6631 = vmatpush1.msra.mxu0 %v6567
    %6632 = vmatprep.subr.mxu0 0.0
    %6633 = vmatpush2.msra.mxu0 0.0
    %6634 = vmatprep.subr.mxu0 0.0
    %6635 = vmatpush2.msra.mxu0 0.0
    %6636 = vmatprep.subr.mxu0 0.0
    %6637 = vmatpush2.msra.mxu0 0.0
    %6638 = vmatprep.subr.mxu0 0.0
    %6639 = vmatpush2.msra.mxu0 0.0
    %6640 = vmatprep.subr.mxu0 0.0
    %6641 = vmatpush2.msra.mxu0 0.0
    %6642 = vmatprep.subr.mxu0 0.0
    %6643 = vmatpush2.msra.mxu0 0.0
    %6644 = vmatprep.subr.mxu0 0.0
    %6645 = vmatpush2.msra.mxu0 0.0
    %6646 = vmatprep.subr.mxu0 0.0
    %6647 = vmatpush2.msra.mxu0 0.0
    %6648 = vmatprep.subr.mxu0 0.0
    %6649 = vmatpush2.msra.mxu0 0.0
    %6650 = vmatprep.subr.mxu0 0.0
    %6651 = vmatpush2.msra.mxu0 0.0
    %6652 = vmatprep.subr.mxu0 0.0
    %6653 = vmatpush2.msra.mxu0 0.0
    %6654 = vmatprep.subr.mxu0 0.0
    %6655 = vmatpush2.msra.mxu0 0.0
    %6656 = vmatprep.subr.mxu0 0.0
    %6657 = vmatpush2.msra.mxu0 %v6598
    %6658 = vmatprep.subr.mxu0 0.0
    %6659 = vmatpush2.msra.mxu0 %v6585
    %6660 = vmatprep.subr.mxu0 0.0
    %6661 = vmatpush2.msra.mxu0 %v6584
    %6662 = vmatprep.subr.mxu0 0.0
    %6663 = vmatpush2.msra.mxu0 %v6583
    %6664 = vmatprep.mubr.f32.mxu0 %v6595
    %6665 = vmatmul.mubr.f32.gmra.mxu0 %v6592
    %v6666 = vpop.f32.mrf.mxu0
    %v6667 = vadd.f32 %v6590, %v6666
    %v6668 = vpop.f32.mrf.mxu0
    %6669 = vdwg.mxu0
    %s6670 = scalar_lea.vmem %s7, 640
    %v6671 = vld [vmem:[%s6670] sm:$0xff]
    %v6672 = vld [vmem:[%s6670 + $0x8] sm:$0xff]
    %v6673 = vld [vmem:[%s6670 + $0x10] sm:$0xff]
    %v6674 = vld [vmem:[%s6670 + $0x18] sm:$0xff]
    %v6675 = vld [vmem:[%s6670 + $0x20] sm:$0xff]
    %v6676 = vld [vmem:[%s6670 + $0x28] sm:$0xff]
    %v6677 = vld [vmem:[%s6670 + $0x30] sm:$0xff]
    %v6678 = vld [vmem:[%s6670 + $0x38] sm:$0xff]
    %v6679 = vld [vmem:[%s6670 + $0x40] sm:$0xff]
    %v6680 = vld [vmem:[%s6670 + $0x48] sm:$0xff]
    %v6681 = vld [vmem:[%s6670 + $0x50] sm:$0xff]
    %v6682 = vld [vmem:[%s6670 + $0x58] sm:$0xff]
    %v6683 = vld [vmem:[%s6670 + $0x60] sm:$0xff]
    %v6684 = vld [vmem:[%s6670 + $0x68] sm:$0xff]
    %v6685 = vld [vmem:[%s6670 + $0x70] sm:$0xff]
    %v6686 = vld [vmem:[%s6670 + $0x78] sm:$0xff]
    %v6687 = vld [vmem:[%s6670 + $0x80] sm:$0xff]
    %v6688 = vld [vmem:[%s6670 + $0x88] sm:$0xff]
    %v6689 = vld [vmem:[%s6670 + $0x90] sm:$0xff]
    %v6690 = vld [vmem:[%s6670 + $0x98] sm:$0xf]
    %v6691 = vld [vmem:[%s8 + $0x4] sm:$0x1]
    %s6693 = vtos %v6691
    %v6694 = vstv %s6693
    %v6697 = vsel %vm6280, %v6254, 0
    %v6700 = vsel %vm1394, %v6690, 0
    %6702 = vmatprep.subr.mxu0 0.0
    %6703 = vmatpush1.msra.mxu0 %v6686
    %6704 = vmatprep.subr.mxu0 0.0
    %6705 = vmatpush1.msra.mxu0 %v6685
    %6706 = vmatprep.subr.mxu0 0.0
    %6707 = vmatpush1.msra.mxu0 %v6684
    %6708 = vmatprep.subr.mxu0 0.0
    %6709 = vmatpush1.msra.mxu0 %v6683
    %6710 = vmatprep.subr.mxu0 0.0
    %6711 = vmatpush1.msra.mxu0 %v6682
    %6712 = vmatprep.subr.mxu0 0.0
    %6713 = vmatpush1.msra.mxu0 %v6681
    %6714 = vmatprep.subr.mxu0 0.0
    %6715 = vmatpush1.msra.mxu0 %v6680
    %6716 = vmatprep.subr.mxu0 0.0
    %6717 = vmatpush1.msra.mxu0 %v6679
    %6718 = vmatprep.subr.mxu0 0.0
    %6719 = vmatpush1.msra.mxu0 %v6678
    %6720 = vmatprep.subr.mxu0 0.0
    %6721 = vmatpush1.msra.mxu0 %v6677
    %6722 = vmatprep.subr.mxu0 0.0
    %6723 = vmatpush1.msra.mxu0 %v6676
    %6724 = vmatprep.subr.mxu0 0.0
    %6725 = vmatpush1.msra.mxu0 %v6675
    %6726 = vmatprep.subr.mxu0 0.0
    %6727 = vmatpush1.msra.mxu0 %v6674
    %6728 = vmatprep.subr.mxu0 0.0
    %6729 = vmatpush1.msra.mxu0 %v6673
    %6730 = vmatprep.subr.mxu0 0.0
    %6731 = vmatpush1.msra.mxu0 %v6672
    %6732 = vmatprep.subr.mxu0 0.0
    %6733 = vmatpush1.msra.mxu0 %v6671
    %6734 = vmatprep.subr.mxu0 0.0
    %6735 = vmatpush2.msra.mxu0 0.0
    %6736 = vmatprep.subr.mxu0 0.0
    %6737 = vmatpush2.msra.mxu0 0.0
    %6738 = vmatprep.subr.mxu0 0.0
    %6739 = vmatpush2.msra.mxu0 0.0
    %6740 = vmatprep.subr.mxu0 0.0
    %6741 = vmatpush2.msra.mxu0 0.0
    %6742 = vmatprep.subr.mxu0 0.0
    %6743 = vmatpush2.msra.mxu0 0.0
    %6744 = vmatprep.subr.mxu0 0.0
    %6745 = vmatpush2.msra.mxu0 0.0
    %6746 = vmatprep.subr.mxu0 0.0
    %6747 = vmatpush2.msra.mxu0 0.0
    %6748 = vmatprep.subr.mxu0 0.0
    %6749 = vmatpush2.msra.mxu0 0.0
    %6750 = vmatprep.subr.mxu0 0.0
    %6751 = vmatpush2.msra.mxu0 0.0
    %6752 = vmatprep.subr.mxu0 0.0
    %6753 = vmatpush2.msra.mxu0 0.0
    %6754 = vmatprep.subr.mxu0 0.0
    %6755 = vmatpush2.msra.mxu0 0.0
    %6756 = vmatprep.subr.mxu0 0.0
    %6757 = vmatpush2.msra.mxu0 0.0
    %6758 = vmatprep.subr.mxu0 0.0
    %6759 = vmatpush2.msra.mxu0 %v6700
    %6760 = vmatprep.subr.mxu0 0.0
    %6761 = vmatpush2.msra.mxu0 %v6689
    %6762 = vmatprep.subr.mxu0 0.0
    %6763 = vmatpush2.msra.mxu0 %v6688
    %6764 = vmatprep.subr.mxu0 0.0
    %6765 = vmatpush2.msra.mxu0 %v6687
    %6766 = vmatprep.mubr.f32.mxu0 %v6697
    %6767 = vmatmul.mubr.f32.gmra.mxu0 %v6253
    %v6768 = vpop.f32.mrf.mxu0
    %v6769 = vadd.f32 %v6694, %v6768
    %v6770 = vpop.f32.mrf.mxu0
    %6771 = vdwg.mxu0
    %6773 = vrot.lane.b32.xlu0 %v6459, 5
    %v6774 = vpop.permute.xlu0 %6773
    %6777 = vrot.lane.b32.xlu0 %v6563, 10
    %v6778 = vpop.permute.xlu0 %6777
    %6781 = vrot.lane.b32.xlu0 %v6667, 15
    %v6782 = vpop.permute.xlu0 %6781
    %6785 = vrot.lane.b32.xlu0 %v6769, 20
    %v6786 = vpop.permute.xlu0 %6785
    %vm6788 = vcmask 39936
    %v6789 = vsel %vm6788, %v6354, %v6774
    %v6790 = vsel %vm566, %v6789, %v6778
    %vm6791 = vcmask 121856
    %v6792 = vsel %vm6791, %v6790, %v6782
    %v6793 = vsel %vm1390, %v6792, %v6786
    %vm6794 = vcmask 197632
    %v6795 = vsel %vm6794, %v6793, 0.0
    %v6796 = vrot.slane %v6795, 4
    %v6797 = vadd.f32 %v6795, %v6796
    %v6798 = vrot.slane %v6797, 2
    %v6799 = vadd.f32 %v6797, %v6798
    %v6800 = vrot.slane %v6799, 1
    %v6801 = vadd.f32 %v6799, %v6800
    %v6802 = vrcp.pop 2.0
    %v6803 = vmul.f32 %v6801, %v6802
    %v6804 = vsub.f32 %v6793, %v6803
    %v6805 = vmul.f32 %v6804, %v6804
    %v6806 = vsel %vm6794, %v6805, 0.0
    %v6807 = vrot.slane %v6806, 4
    %v6808 = vadd.f32 %v6806, %v6807
    %v6809 = vrot.slane %v6808, 2
    %v6810 = vadd.f32 %v6808, %v6809
    %v6811 = vrot.slane %v6810, 1
    %v6812 = vadd.f32 %v6810, %v6811
    %v6813 = vmul.f32 %v6812, %v6802
    %v6814 = vadd.f32 %v6813, 1e-05
    %v6815 = vrsqrt.pop %v6814
    %v6816 = vmul.f32 %v6804, %v6815
    %v6817 = vld [vmem:[%s9] sm:$0xff]
    %v6818 = vld [vmem:[%s9 + $0x8] sm:$0xff]
    %v6819 = vld [vmem:[%s9 + $0x10] sm:$0xff]
    %v6820 = vld [vmem:[%s9 + $0x18] sm:$0x1]
    %v6821 = vld [vmem:[%s10] sm:$0x1]
    %v6823 = vlaneseq
    %v6824 = vshrl.u32 %v6823, 7
    %v6825 = vsub.s32 0, %v6824
    %v6826 = vrot.slane %v6821, %v6825
    %vm6828 = vcmask 203776
    %v6830 = vsel %vm6828, %v6816, 0
    %v6833 = vsel %vm54, %v6820, 0
    %6835 = vmatprep.subr.mxu0 0.0
    %6836 = vmatpush1.msra.mxu0 0.0
    %6837 = vmatprep.subr.mxu0 0.0
    %6838 = vmatpush1.msra.mxu0 0.0
    %6839 = vmatprep.subr.mxu0 0.0
    %6840 = vmatpush1.msra.mxu0 0.0
    %6841 = vmatprep.subr.mxu0 0.0
    %6842 = vmatpush1.msra.mxu0 0.0
    %6843 = vmatprep.subr.mxu0 0.0
    %6844 = vmatpush1.msra.mxu0 0.0
    %6845 = vmatprep.subr.mxu0 0.0
    %6846 = vmatpush1.msra.mxu0 0.0
    %6847 = vmatprep.subr.mxu0 0.0
    %6848 = vmatpush1.msra.mxu0 0.0
    %6849 = vmatprep.subr.mxu0 0.0
    %6850 = vmatpush1.msra.mxu0 0.0
    %6851 = vmatprep.subr.mxu0 0.0
    %6852 = vmatpush1.msra.mxu0 0.0
    %6853 = vmatprep.subr.mxu0 0.0
    %6854 = vmatpush1.msra.mxu0 0.0
    %6855 = vmatprep.subr.mxu0 0.0
    %6856 = vmatpush1.msra.mxu0 0.0
    %6857 = vmatprep.subr.mxu0 0.0
    %6858 = vmatpush1.msra.mxu0 0.0
    %6859 = vmatprep.subr.mxu0 0.0
    %6860 = vmatpush1.msra.mxu0 %v6833
    %6861 = vmatprep.subr.mxu0 0.0
    %6862 = vmatpush1.msra.mxu0 %v6819
    %6863 = vmatprep.subr.mxu0 0.0
    %6864 = vmatpush1.msra.mxu0 %v6818
    %6865 = vmatprep.subr.mxu0 0.0
    %6866 = vmatpush1.msra.mxu0 %v6817
    %6867 = vmatprep.subr.mxu0 0.0
    %6868 = vmatpush2.msra.mxu0 0.0
    %6869 = vmatprep.subr.mxu0 0.0
    %6870 = vmatpush2.msra.mxu0 0.0
    %6871 = vmatprep.subr.mxu0 0.0
    %6872 = vmatpush2.msra.mxu0 0.0
    %6873 = vmatprep.subr.mxu0 0.0
    %6874 = vmatpush2.msra.mxu0 0.0
    %6875 = vmatprep.subr.mxu0 0.0
    %6876 = vmatpush2.msra.mxu0 0.0
    %6877 = vmatprep.subr.mxu0 0.0
    %6878 = vmatpush2.msra.mxu0 0.0
    %6879 = vmatprep.subr.mxu0 0.0
    %6880 = vmatpush2.msra.mxu0 0.0
    %6881 = vmatprep.subr.mxu0 0.0
    %6882 = vmatpush2.msra.mxu0 0.0
    %6883 = vmatprep.subr.mxu0 0.0
    %6884 = vmatpush2.msra.mxu0 0.0
    %6885 = vmatprep.subr.mxu0 0.0
    %6886 = vmatpush2.msra.mxu0 0.0
    %6887 = vmatprep.subr.mxu0 0.0
    %6888 = vmatpush2.msra.mxu0 0.0
    %6889 = vmatprep.subr.mxu0 0.0
    %6890 = vmatpush2.msra.mxu0 0.0
    %6891 = vmatprep.subr.mxu0 0.0
    %6892 = vmatpush2.msra.mxu0 0.0
    %6893 = vmatprep.subr.mxu0 0.0
    %6894 = vmatpush2.msra.mxu0 0.0
    %6895 = vmatprep.subr.mxu0 0.0
    %6896 = vmatpush2.msra.mxu0 0.0
    %6897 = vmatprep.subr.mxu0 0.0
    %6898 = vmatpush2.msra.mxu0 0.0
    %6899 = vmatprep.mubr.f32.mxu0 0.0
    %6900 = vmatmul.mubr.f32.gmra.mxu0 %v6830
    %v6901 = vpop.f32.mrf.mxu0
    %v6902 = vadd.f32 %v6826, %v6901
    %v6903 = vpop.f32.mrf.mxu0
    %6904 = vdwg.mxu0
    %v6905 = vsub.f32 0.0, %v6902
    %v6906 = vmul.f32 %v6905, 1.442695
    %v6907 = vpow.pop %v6906
    %v6908 = vadd.f32 %v6907, 1.0
    %v6909 = vrcp.pop %v6908
    %v6910 = vmul.f32 1.0, %v6909
    %vm6911 = vcmask 17408
    %6912 = vst.msk [vmem:[#allocation2] sm:$0x3] %vm6911, %v6910
    // Predicated region
    $region46: #{simple_net_forward.1} parent=1 // pred_check
      _
    $region47: #{simple_net_forward.1} parent=1 // pred_check_branch
      %6914 = sbr.rel (0) target = $region49
    $region48: #{simple_net_forward.1} parent=1 // pred_region
      %s6916 = ssub.s32 32, 32
      %6917 = vsyncadd [#allocation3], %s6916
      %s6919 = sshll.u32 [#allocation2], 4
      %s6920 = int_to_ptr.vmem [resolvable:$true] %s6919
      %6922 = dma.vmem_to_hbm [thread:$0]  %s6920, 32, %s11, [#allocation3]
    $region49: #{simple_net_forward.1} parent=1 // pred_fallthru
      _
    // Predicated region
    $region50: #{simple_net_forward.1} parent=1 // pred_check
      _
    $region51: #{simple_net_forward.1} parent=1 // pred_check_branch
      %6924 = sbr.rel (0) target = $region53
    $region52: #{simple_net_forward.1} parent=1 // pred_region
      %6925 = dma.done [#allocation3], 32
    $region53: #{simple_net_forward.1} parent=1 // pred_fallthru
      _
    %6926 = vsyncpa [#allocation3], 1

</llo_original>
